<compile_context>
chip_gen: v7x
topology: tpu7x:2x2x1
jax: 0.10.0
libtpu: 0.0.40
codegen_flags: <defaults>
</compile_context>

<pallas_src>
import jax
import jax.numpy as jnp
from jax.experimental import pallas as pl
from jax.experimental.pallas import tpu as pltpu


# conv layer specs from the nn.Sequential: (Cout, Cin, kh, kw, stride, pad)
_CONV_LAYERS = [
    (64,    1, 3, 3, 1, 1),
    (64,   64, 3, 3, 1, 1),
    (64,   64, 3, 3, 2, 1),
    (128,  64, 3, 3, 1, 1),
    (128, 128, 1, 2, 1, 1),
    (128, 128, 3, 3, 2, 1),
    (256, 128, 1, 1, 1, 0),
    (256, 256, 1, 1, 1, 0),
    (256, 256, 1, 1, 1, 0),
]

_ALPHA = 0.2          # LeakyReLU slope
_NUM_CLASSES = 2


def _make_plan(h, w):
    """Static (Python-int) per-layer geometry for the fused kernel."""
    plan = []
    for (cout, cin, kh, kw, s, p) in _CONV_LAYERS:
        hp, wp = h + 2 * p, w + 2 * p              # padded input extents
        hs1, ws1 = hp - kh + 1, wp - kw + 1        # stride-1 output extents
        ho, wo = (hs1 - 1) // s + 1, (ws1 - 1) // s + 1
        plan.append(dict(cin=cin, cout=cout, kh=kh, kw=kw, s=s, p=p,
                         hp=hp, wp=wp, hs1=hs1, ws1=ws1, ho=ho, wo=wo))
        h, w = ho, wo
    return plan


def _build_kernel(plan, h_in, w_in):
    """Kernel body: processes one batch sample end-to-end, fully in VMEM."""
    n_layers = len(plan)

    def kernel(*refs):
        x_ref = refs[0]
        w_refs = refs[1:1 + n_layers]
        wfc_ref = refs[1 + n_layers]
        bfc_ref = refs[2 + n_layers]
        logits_ref = refs[3 + n_layers]
        feat_ref = refs[4 + n_layers]
        bufs = refs[5 + n_layers:]

        # Zero the activation buffers: spatial zero-padding is baked into them
        # and VMEM scratch persists (uninitialized) across grid steps.
        for b in bufs:
            b[...] = jnp.zeros_like(b)

        # Scatter the (H*W, Cin) input into the spatially padded buffer 0.
        p0, wp0 = plan[0]['p'], plan[0]['wp']
        xv = x_ref[0]                                             # (H*W, Cin) f32
        for r in range(h_in):
            bufs[0][pl.ds((r + p0) * wp0 + p0, w_in), :] = (
                xv[r * w_in:(r + 1) * w_in, :].astype(bufs[0].dtype))

        # Conv + LeakyReLU stack (Dropout layers are identity in eval mode).
        for l, lp in enumerate(plan):
            in_buf, out_buf, w_ref = bufs[l], bufs[l + 1], w_refs[l]
            kh, kw, wp = lp['kh'], lp['kw'], lp['wp']
            m = lp['hs1'] * wp                     # flattened stride-1 output rows
            acc = jnp.zeros((m, lp['cout']), jnp.float32)
            for i in range(kh):
                for j in range(kw):
                    seg = in_buf[pl.ds(i * wp + j, m), :]         # (m, Cin) f32
                    wt = w_ref[i * kw + j]                        # (Cin, Cout) bf16
                    if lp['cin'] == 1:
                        # rank-1 first layer: plain VPU broadcast-multiply
                        acc = acc + seg * wt.astype(jnp.float32)
                    else:
                        acc = acc + jnp.dot(seg.astype(jnp.bfloat16), wt,
                                            preferred_element_type=jnp.float32)

            # LeakyReLU on the f32 accumulator, then scatter the valid (strided)
            # output rows into the next layer's zero-padded buffer.
            s, ho_n, wo_n, ws1 = lp['s'], lp['ho'], lp['wo'], lp['ws1']
            if l + 1 < n_layers:
                p_n, wp_n = plan[l + 1]['p'], plan[l + 1]['wp']
            else:
                p_n, wp_n = 0, lp['wo']
            for ho in range(ho_n):
                row = acc[ho * s * wp: ho * s * wp + ws1, :]      # (ws1, Cout)
                row = jnp.where(row >= 0.0, row, _ALPHA * row).astype(out_buf.dtype)
                base = (ho + p_n) * wp_n + p_n
                if s == 1:
                    out_buf[pl.ds(base, wo_n), :] = row
                else:                                             # column stride s
                    for k in range(wo_n):
                        out_buf[pl.ds(base + k, 1), :] = row[k * s:k * s + 1, :]

        # AvgPool2d(kernel_size=2): last conv output pools to 1x1 for this model.
        lb = bufs[n_layers]
        wo_last = plan[-1]['wo']
        pooled = (lb[pl.ds(0, 1), :] + lb[pl.ds(1, 1), :]
                  + lb[pl.ds(wo_last, 1), :] + lb[pl.ds(wo_last + 1, 1), :]) * 0.25

        feat_ref[...] = pooled.reshape(1, 1, -1)
        logits = jnp.dot(pooled.astype(jnp.bfloat16), wfc_ref[...],
                         preferred_element_type=jnp.float32) + bfc_ref[...]
        logits_ref[...] = logits.reshape(1, 1, -1)

    return kernel


def discriminator_forward(x, conv_w, w_fc, b_fc):
    """x: (N, C, H, W) f32 (PyTorch NCHW); conv_w/w_fc/b_fc from prepare_params."""
    n, c, h, w = x.shape
    plan = _make_plan(h, w)
    feat_c = plan[-1]['cout']
    # The Linear(in_features=256) head requires the pooled feature map to be 1x1.
    assert plan[-1]['ho'] // 2 == 1 and plan[-1]['wo'] // 2 == 1
    assert c == _CONV_LAYERS[0][1]

    # Channels-last, spatial flattened: C lands on the lane axis in the kernel.
    x_flat = jnp.transpose(x, (0, 2, 3, 1)).reshape(n, h * w, c)

    kernel = _build_kernel(plan, h, w)

    def _wmap(i):
        return (0, 0, 0)

    in_specs = [pl.BlockSpec((1, h * w, c), lambda i: (i, 0, 0))]
    in_specs += [pl.BlockSpec(wt.shape, _wmap) for wt in conv_w]
    in_specs += [pl.BlockSpec(w_fc.shape, lambda i: (0, 0)),
                 pl.BlockSpec(b_fc.shape, lambda i: (0, 0))]

    out_specs = (pl.BlockSpec((1, 1, _NUM_CLASSES), lambda i: (i, 0, 0)),
                 pl.BlockSpec((1, 1, feat_c), lambda i: (i, 0, 0)))
    out_shape = (jax.ShapeDtypeStruct((n, 1, _NUM_CLASSES), jnp.float32),
                 jax.ShapeDtypeStruct((n, 1, feat_c), jnp.float32))

    # Activation scratch: flattened, spatially padded, channels-last, f32.
    scratch = [pltpu.VMEM(((lp['hp'] + 1) * lp['wp'], lp['cin']), jnp.float32)
               for lp in plan]
    scratch.append(pltpu.VMEM((plan[-1]['ho'] * plan[-1]['wo'], feat_c), jnp.float32))

    logits3, feats3 = pl.pallas_call(
        kernel,
        out_shape=out_shape,
        grid_spec=pltpu.PrefetchScalarGridSpec(
            num_scalar_prefetch=0,
            grid=(n,),
            in_specs=in_specs,
            out_specs=out_specs,
            scratch_shapes=scratch),
        compiler_params=pltpu.CompilerParams(
            # batch axis -> sharded over both TensorCores on v7x; no-op on v5e/v6e
            dimension_semantics=("parallel",)),
    )(x_flat, *conv_w, w_fc, b_fc)

    return logits3.reshape(n, _NUM_CLASSES), feats3.reshape(n, feat_c)


# ----------------------------- params / reference --------------------------

def init_params(key):
    """Random params in PyTorch layout: conv v:(Cout,Cin,kh,kw), g:(Cout,)."""
    keys = jax.random.split(key, len(_CONV_LAYERS) + 2)
    conv_params = []
    for k, (cout, cin, kh, kw, _, _) in zip(keys[:len(_CONV_LAYERS)], _CONV_LAYERS):
        v = jax.random.normal(k, (cout, cin, kh, kw), jnp.float32) * 0.05
        g = jnp.sqrt(jnp.sum(v * v, axis=(1, 2, 3)))     # weight_norm default init
        conv_params.append((v, g))
    w_fc = jax.random.normal(keys[-2], (_CONV_LAYERS[-1][0], _NUM_CLASSES),
                             jnp.float32) * 0.05
    b_fc = jax.random.normal(keys[-1], (_NUM_CLASSES,), jnp.float32) * 0.05
    return conv_params, w_fc, b_fc


def prepare_params(conv_params, w_fc, b_fc):
    """Fold weight_norm ONCE (outside the jitted forward) and pack for the kernel.

    Conv weights -> (kh*kw, Cin, Cout) bf16 with tap index t = i*kw + j.
    """
    conv_w = []
    for (v, g) in conv_params:
        cout, cin, kh, kw = v.shape
        norm = jnp.sqrt(jnp.sum(v * v, axis=(1, 2, 3), keepdims=True))
        wn = g.reshape(cout, 1, 1, 1) * v / norm                   # (Cout,Cin,kh,kw)
        wt = jnp.transpose(wn, (2, 3, 1, 0)).reshape(kh * kw, cin, cout)
        conv_w.append(wt.astype(jnp.bfloat16))
    return conv_w, w_fc.astype(jnp.bfloat16), b_fc.reshape(1, -1).astype(jnp.float32)


def reference_forward(x, conv_w, w_fc, b_fc):
    """Plain-XLA reference using the same (normalized, bf16-rounded) weights."""
    out = x
    for wt, (cout, cin, kh, kw, s, p) in zip(conv_w, _CONV_LAYERS):
        wk = wt.astype(jnp.float32).reshape(kh, kw, cin, cout).transpose(3, 2, 0, 1)
        out = jax.lax.conv_general_dilated(
            out, wk, window_strides=(s, s), padding=((p, p), (p, p)),
            dimension_numbers=("NCHW", "OIHW", "NCHW"),
            precision=jax.lax.Precision.HIGHEST)
        out = jnp.where(out >= 0.0, out, _ALPHA * out)
    n, c = out.shape[0], out.shape[1]
    pooled = out[:, :, :2, :2].mean(axis=(2, 3))                   # AvgPool2d(2) -> 1x1
    feats = pooled.reshape(n, c)
    logits = jnp.dot(feats, w_fc.astype(jnp.float32),
                     precision=jax.lax.Precision.HIGHEST) + b_fc
    return logits, feats


if __name__ == "__main__":
    key = jax.random.PRNGKey(0)
    k_x, k_p = jax.random.split(key)
    # 8x8 input so the conv stack ends at 3x3 spatial and AvgPool2d(2) yields
    # 1x1x256 features, matching Linear(in_features=256).
    x = jax.random.normal(k_x, (2, 1, 8, 8), jnp.float32)          # NCHW, nc=1

    conv_params, w_fc, b_fc = init_params(k_p)
    conv_w, w_fc_p, b_fc_p = prepare_params(conv_params, w_fc, b_fc)  # once, pre-jit

    fwd = jax.jit(discriminator_forward)
    logits, feats = fwd(x, conv_w, w_fc_p, b_fc_p)
    jax.block_until_ready((logits, feats))

    assert logits.shape == (2, _NUM_CLASSES), logits.shape
    assert feats.shape == (2, 256), feats.shape
    assert bool(jnp.all(jnp.isfinite(logits))) and bool(jnp.all(jnp.isfinite(feats)))

    # Numerical sanity check against a plain-XLA reference (kernel uses bf16 MXU
    # operands, so compare with a relative-L2 tolerance).
    ref_logits, ref_feats = jax.jit(reference_forward)(x, conv_w, w_fc_p, b_fc_p)

    def _rel(a, b):
        return float(jnp.linalg.norm(a - b) / (jnp.linalg.norm(b) + 1e-12))

    assert _rel(feats, ref_feats) < 0.1, _rel(feats, ref_feats)
    assert _rel(logits, ref_logits) < 0.1, _rel(logits, ref_logits)

    print("KERNEL_OK")
</pallas_src>

<mosaic_0001>
module attributes {stable_mosaic.version = 11 : i64} {
  func.func @kernel(%arg0: i32, %arg1: memref<1x64x1xf32, #tpu.memory_space<vmem>>, %arg2: memref<9x1x64xbf16, #tpu.memory_space<vmem>>, %arg3: memref<9x64x64xbf16, #tpu.memory_space<vmem>>, %arg4: memref<9x64x64xbf16, #tpu.memory_space<vmem>>, %arg5: memref<9x64x128xbf16, #tpu.memory_space<vmem>>, %arg6: memref<2x128x128xbf16, #tpu.memory_space<vmem>>, %arg7: memref<9x128x128xbf16, #tpu.memory_space<vmem>>, %arg8: memref<1x128x256xbf16, #tpu.memory_space<vmem>>, %arg9: memref<1x256x256xbf16, #tpu.memory_space<vmem>>, %arg10: memref<1x256x256xbf16, #tpu.memory_space<vmem>>, %arg11: memref<256x2xbf16, #tpu.memory_space<vmem>>, %arg12: memref<1x2xf32, #tpu.memory_space<vmem>>, %arg13: memref<1x1x2xf32, #tpu.memory_space<vmem>>, %arg14: memref<1x1x256xf32, #tpu.memory_space<vmem>>, %arg15: memref<110x1xf32, #tpu.memory_space<vmem>>, %arg16: memref<110x64xf32, #tpu.memory_space<vmem>>, %arg17: memref<110x64xf32, #tpu.memory_space<vmem>>, %arg18: memref<42x64xf32, #tpu.memory_space<vmem>>, %arg19: memref<42x128xf32, #tpu.memory_space<vmem>>, %arg20: memref<63x128xf32, #tpu.memory_space<vmem>>, %arg21: memref<12x128xf32, #tpu.memory_space<vmem>>, %arg22: memref<12x256xf32, #tpu.memory_space<vmem>>, %arg23: memref<12x256xf32, #tpu.memory_space<vmem>>, %arg24: memref<9x256xf32, #tpu.memory_space<vmem>>) attributes {dimension_semantics = [#tpu.dimension_semantics<parallel>], iteration_bounds = array<i64: 2>, scalar_prefetch = 0 : i64, scratch_operands = 10 : i64, tpu.core_type = #tpu.core_type<tc>, window_params = [{transform_indices = @transform_0, window_bounds = array<i64: 1, 64, 1>}, {pipeline_mode = #tpu.pipeline_mode<synchronous>, transform_indices = @transform_1, window_bounds = array<i64: 9, 1, 64>}, {pipeline_mode = #tpu.pipeline_mode<synchronous>, transform_indices = @transform_2, window_bounds = array<i64: 9, 64, 64>}, {pipeline_mode = #tpu.pipeline_mode<synchronous>, transform_indices = @transform_3, window_bounds = array<i64: 9, 64, 64>}, {pipeline_mode = #tpu.pipeline_mode<synchronous>, transform_indices = @transform_4, window_bounds = array<i64: 9, 64, 128>}, {pipeline_mode = #tpu.pipeline_mode<synchronous>, transform_indices = @transform_5, window_bounds = array<i64: 2, 128, 128>}, {pipeline_mode = #tpu.pipeline_mode<synchronous>, transform_indices = @transform_6, window_bounds = array<i64: 9, 128, 128>}, {pipeline_mode = #tpu.pipeline_mode<synchronous>, transform_indices = @transform_7, window_bounds = array<i64: 1, 128, 256>}, {pipeline_mode = #tpu.pipeline_mode<synchronous>, transform_indices = @transform_8, window_bounds = array<i64: 1, 256, 256>}, {pipeline_mode = #tpu.pipeline_mode<synchronous>, transform_indices = @transform_9, window_bounds = array<i64: 1, 256, 256>}, {pipeline_mode = #tpu.pipeline_mode<synchronous>, transform_indices = @transform_10, window_bounds = array<i64: 256, 2>}, {pipeline_mode = #tpu.pipeline_mode<synchronous>, transform_indices = @transform_11, window_bounds = array<i64: 1, 2>}, {transform_indices = @transform_12, window_bounds = array<i64: 1, 1, 2>}, {transform_indices = @transform_13, window_bounds = array<i64: 1, 1, 256>}]} {
    %cst = arith.constant 0.000000e+00 : f32
    %0 = vector.broadcast %cst : f32 to vector<110x1xf32>
    %c0 = arith.constant 0 : index
    %c0_0 = arith.constant 0 : index
    %1 = vector.load %arg15[%c0, %c0_0] : memref<110x1xf32, #tpu.memory_space<vmem>>, vector<110x1xf32>
    tpu.vector_store %arg15[%c0, %c0_0], %0 {strides = array<i32>} : memref<110x1xf32, #tpu.memory_space<vmem>>, vector<110x1xf32>,
    %cst_1 = arith.constant 0.000000e+00 : f32
    %2 = vector.broadcast %cst_1 : f32 to vector<110x64xf32>
    %c0_2 = arith.constant 0 : index
    %c0_3 = arith.constant 0 : index
    %3 = vector.load %arg16[%c0_2, %c0_3] : memref<110x64xf32, #tpu.memory_space<vmem>>, vector<110x64xf32>
    tpu.vector_store %arg16[%c0_2, %c0_3], %2 {strides = array<i32>} : memref<110x64xf32, #tpu.memory_space<vmem>>, vector<110x64xf32>,
    %cst_4 = arith.constant 0.000000e+00 : f32
    %4 = vector.broadcast %cst_4 : f32 to vector<110x64xf32>
    %c0_5 = arith.constant 0 : index
    %c0_6 = arith.constant 0 : index
    %5 = vector.load %arg17[%c0_5, %c0_6] : memref<110x64xf32, #tpu.memory_space<vmem>>, vector<110x64xf32>
    tpu.vector_store %arg17[%c0_5, %c0_6], %4 {strides = array<i32>} : memref<110x64xf32, #tpu.memory_space<vmem>>, vector<110x64xf32>,
    %cst_7 = arith.constant 0.000000e+00 : f32
    %6 = vector.broadcast %cst_7 : f32 to vector<42x64xf32>
    %c0_8 = arith.constant 0 : index
    %c0_9 = arith.constant 0 : index
    %7 = vector.load %arg18[%c0_8, %c0_9] : memref<42x64xf32, #tpu.memory_space<vmem>>, vector<42x64xf32>
    tpu.vector_store %arg18[%c0_8, %c0_9], %6 {strides = array<i32>} : memref<42x64xf32, #tpu.memory_space<vmem>>, vector<42x64xf32>,
    %cst_10 = arith.constant 0.000000e+00 : f32
    %8 = vector.broadcast %cst_10 : f32 to vector<42x128xf32>
    %c0_11 = arith.constant 0 : index
    %c0_12 = arith.constant 0 : index
    %9 = vector.load %arg19[%c0_11, %c0_12] : memref<42x128xf32, #tpu.memory_space<vmem>>, vector<42x128xf32>
    tpu.vector_store %arg19[%c0_11, %c0_12], %8 {strides = array<i32>} : memref<42x128xf32, #tpu.memory_space<vmem>>, vector<42x128xf32>,
    %cst_13 = arith.constant 0.000000e+00 : f32
    %10 = vector.broadcast %cst_13 : f32 to vector<63x128xf32>
    %c0_14 = arith.constant 0 : index
    %c0_15 = arith.constant 0 : index
    %11 = vector.load %arg20[%c0_14, %c0_15] : memref<63x128xf32, #tpu.memory_space<vmem>>, vector<63x128xf32>
    tpu.vector_store %arg20[%c0_14, %c0_15], %10 {strides = array<i32>} : memref<63x128xf32, #tpu.memory_space<vmem>>, vector<63x128xf32>,
    %cst_16 = arith.constant 0.000000e+00 : f32
    %12 = vector.broadcast %cst_16 : f32 to vector<12x128xf32>
    %c0_17 = arith.constant 0 : index
    %c0_18 = arith.constant 0 : index
    %13 = vector.load %arg21[%c0_17, %c0_18] : memref<12x128xf32, #tpu.memory_space<vmem>>, vector<12x128xf32>
    tpu.vector_store %arg21[%c0_17, %c0_18], %12 {strides = array<i32>} : memref<12x128xf32, #tpu.memory_space<vmem>>, vector<12x128xf32>,
    %cst_19 = arith.constant 0.000000e+00 : f32
    %14 = vector.broadcast %cst_19 : f32 to vector<12x256xf32>
    %c0_20 = arith.constant 0 : index
    %c0_21 = arith.constant 0 : index
    %15 = vector.load %arg22[%c0_20, %c0_21] : memref<12x256xf32, #tpu.memory_space<vmem>>, vector<12x256xf32>
    tpu.vector_store %arg22[%c0_20, %c0_21], %14 {strides = array<i32>} : memref<12x256xf32, #tpu.memory_space<vmem>>, vector<12x256xf32>,
    %cst_22 = arith.constant 0.000000e+00 : f32
    %16 = vector.broadcast %cst_22 : f32 to vector<12x256xf32>
    %c0_23 = arith.constant 0 : index
    %c0_24 = arith.constant 0 : index
    %17 = vector.load %arg23[%c0_23, %c0_24] : memref<12x256xf32, #tpu.memory_space<vmem>>, vector<12x256xf32>
    tpu.vector_store %arg23[%c0_23, %c0_24], %16 {strides = array<i32>} : memref<12x256xf32, #tpu.memory_space<vmem>>, vector<12x256xf32>,
    %cst_25 = arith.constant 0.000000e+00 : f32
    %18 = vector.broadcast %cst_25 : f32 to vector<9x256xf32>
    %c0_26 = arith.constant 0 : index
    %c0_27 = arith.constant 0 : index
    %19 = vector.load %arg24[%c0_26, %c0_27] : memref<9x256xf32, #tpu.memory_space<vmem>>, vector<9x256xf32>
    tpu.vector_store %arg24[%c0_26, %c0_27], %18 {strides = array<i32>} : memref<9x256xf32, #tpu.memory_space<vmem>>, vector<9x256xf32>,
    %c0_28 = arith.constant 0 : index
    %c0_29 = arith.constant 0 : index
    %c0_30 = arith.constant 0 : index
    %20 = vector.load %arg1[%c0_28, %c0_29, %c0_30] : memref<1x64x1xf32, #tpu.memory_space<vmem>>, vector<1x64x1xf32>
    %21 = vector.shape_cast %20 : vector<1x64x1xf32> to vector<64x1xf32>
    %22 = vector.extract_strided_slice %21 {offsets = [0, 0], sizes = [8, 1], strides = [1, 1]} : vector<64x1xf32> to vector<8x1xf32>
    %c11 = arith.constant 11 : index
    %c0_31 = arith.constant 0 : index
    %23 = vector.load %arg15[%c11, %c0_31] : memref<110x1xf32, #tpu.memory_space<vmem>>, vector<8x1xf32>
    tpu.vector_store %arg15[%c11, %c0_31], %22 {strides = array<i32>} : memref<110x1xf32, #tpu.memory_space<vmem>>, vector<8x1xf32>,
    %24 = vector.extract_strided_slice %21 {offsets = [8, 0], sizes = [8, 1], strides = [1, 1]} : vector<64x1xf32> to vector<8x1xf32>
    %c21 = arith.constant 21 : index
    %c0_32 = arith.constant 0 : index
    %25 = vector.load %arg15[%c21, %c0_32] : memref<110x1xf32, #tpu.memory_space<vmem>>, vector<8x1xf32>
    tpu.vector_store %arg15[%c21, %c0_32], %24 {strides = array<i32>} : memref<110x1xf32, #tpu.memory_space<vmem>>, vector<8x1xf32>,
    %26 = vector.extract_strided_slice %21 {offsets = [16, 0], sizes = [8, 1], strides = [1, 1]} : vector<64x1xf32> to vector<8x1xf32>
    %c31 = arith.constant 31 : index
    %c0_33 = arith.constant 0 : index
    %27 = vector.load %arg15[%c31, %c0_33] : memref<110x1xf32, #tpu.memory_space<vmem>>, vector<8x1xf32>
    tpu.vector_store %arg15[%c31, %c0_33], %26 {strides = array<i32>} : memref<110x1xf32, #tpu.memory_space<vmem>>, vector<8x1xf32>,
    %28 = vector.extract_strided_slice %21 {offsets = [24, 0], sizes = [8, 1], strides = [1, 1]} : vector<64x1xf32> to vector<8x1xf32>
    %c41 = arith.constant 41 : index
    %c0_34 = arith.constant 0 : index
    %29 = vector.load %arg15[%c41, %c0_34] : memref<110x1xf32, #tpu.memory_space<vmem>>, vector<8x1xf32>
    tpu.vector_store %arg15[%c41, %c0_34], %28 {strides = array<i32>} : memref<110x1xf32, #tpu.memory_space<vmem>>, vector<8x1xf32>,
    %30 = vector.extract_strided_slice %21 {offsets = [32, 0], sizes = [8, 1], strides = [1, 1]} : vector<64x1xf32> to vector<8x1xf32>
    %c51 = arith.constant 51 : index
    %c0_35 = arith.constant 0 : index
    %31 = vector.load %arg15[%c51, %c0_35] : memref<110x1xf32, #tpu.memory_space<vmem>>, vector<8x1xf32>
    tpu.vector_store %arg15[%c51, %c0_35], %30 {strides = array<i32>} : memref<110x1xf32, #tpu.memory_space<vmem>>, vector<8x1xf32>,
    %32 = vector.extract_strided_slice %21 {offsets = [40, 0], sizes = [8, 1], strides = [1, 1]} : vector<64x1xf32> to vector<8x1xf32>
    %c61 = arith.constant 61 : index
    %c0_36 = arith.constant 0 : index
    %33 = vector.load %arg15[%c61, %c0_36] : memref<110x1xf32, #tpu.memory_space<vmem>>, vector<8x1xf32>
    tpu.vector_store %arg15[%c61, %c0_36], %32 {strides = array<i32>} : memref<110x1xf32, #tpu.memory_space<vmem>>, vector<8x1xf32>,
    %34 = vector.extract_strided_slice %21 {offsets = [48, 0], sizes = [8, 1], strides = [1, 1]} : vector<64x1xf32> to vector<8x1xf32>
    %c71 = arith.constant 71 : index
    %c0_37 = arith.constant 0 : index
    %35 = vector.load %arg15[%c71, %c0_37] : memref<110x1xf32, #tpu.memory_space<vmem>>, vector<8x1xf32>
    tpu.vector_store %arg15[%c71, %c0_37], %34 {strides = array<i32>} : memref<110x1xf32, #tpu.memory_space<vmem>>, vector<8x1xf32>,
    %36 = vector.extract_strided_slice %21 {offsets = [56, 0], sizes = [8, 1], strides = [1, 1]} : vector<64x1xf32> to vector<8x1xf32>
    %c81 = arith.constant 81 : index
    %c0_38 = arith.constant 0 : index
    %37 = vector.load %arg15[%c81, %c0_38] : memref<110x1xf32, #tpu.memory_space<vmem>>, vector<8x1xf32>
    tpu.vector_store %arg15[%c81, %c0_38], %36 {strides = array<i32>} : memref<110x1xf32, #tpu.memory_space<vmem>>, vector<8x1xf32>,
    %cst_39 = arith.constant 0.000000e+00 : f32
    %38 = vector.broadcast %cst_39 : f32 to vector<80x64xf32>
    %c0_40 = arith.constant 0 : index
    %c0_41 = arith.constant 0 : index
    %39 = vector.load %arg15[%c0_40, %c0_41] : memref<110x1xf32, #tpu.memory_space<vmem>>, vector<80x1xf32>
    %c0_42 = arith.constant 0 : index
    %c0_43 = arith.constant 0 : index
    %c0_44 = arith.constant 0 : index
    %40 = vector.load %arg2[%c0_42, %c0_43, %c0_44] : memref<9x1x64xbf16, #tpu.memory_space<vmem>>, vector<1x1x64xbf16>
    %41 = vector.shape_cast %40 : vector<1x1x64xbf16> to vector<1x64xbf16>
    %42 = arith.extf %41 : vector<1x64xbf16> to vector<1x64xf32>
    %43 = vector.broadcast %39 : vector<80x1xf32> to vector<80x64xf32>
    %44 = vector.broadcast %42 : vector<1x64xf32> to vector<80x64xf32>
    %45 = arith.mulf %43, %44 : vector<80x64xf32>
    %46 = arith.addf %38, %45 : vector<80x64xf32>
    %c1 = arith.constant 1 : index
    %c0_45 = arith.constant 0 : index
    %47 = vector.load %arg15[%c1, %c0_45] : memref<110x1xf32, #tpu.memory_space<vmem>>, vector<80x1xf32>
    %c1_46 = arith.constant 1 : index
    %c0_47 = arith.constant 0 : index
    %c0_48 = arith.constant 0 : index
    %48 = vector.load %arg2[%c1_46, %c0_47, %c0_48] : memref<9x1x64xbf16, #tpu.memory_space<vmem>>, vector<1x1x64xbf16>
    %49 = vector.shape_cast %48 : vector<1x1x64xbf16> to vector<1x64xbf16>
    %50 = arith.extf %49 : vector<1x64xbf16> to vector<1x64xf32>
    %51 = vector.broadcast %47 : vector<80x1xf32> to vector<80x64xf32>
    %52 = vector.broadcast %50 : vector<1x64xf32> to vector<80x64xf32>
    %53 = arith.mulf %51, %52 : vector<80x64xf32>
    %54 = arith.addf %46, %53 : vector<80x64xf32>
    %c2 = arith.constant 2 : index
    %c0_49 = arith.constant 0 : index
    %55 = vector.load %arg15[%c2, %c0_49] : memref<110x1xf32, #tpu.memory_space<vmem>>, vector<80x1xf32>
    %c2_50 = arith.constant 2 : index
    %c0_51 = arith.constant 0 : index
    %c0_52 = arith.constant 0 : index
    %56 = vector.load %arg2[%c2_50, %c0_51, %c0_52] : memref<9x1x64xbf16, #tpu.memory_space<vmem>>, vector<1x1x64xbf16>
    %57 = vector.shape_cast %56 : vector<1x1x64xbf16> to vector<1x64xbf16>
    %58 = arith.extf %57 : vector<1x64xbf16> to vector<1x64xf32>
    %59 = vector.broadcast %55 : vector<80x1xf32> to vector<80x64xf32>
    %60 = vector.broadcast %58 : vector<1x64xf32> to vector<80x64xf32>
    %61 = arith.mulf %59, %60 : vector<80x64xf32>
    %62 = arith.addf %54, %61 : vector<80x64xf32>
    %c10 = arith.constant 10 : index
    %c0_53 = arith.constant 0 : index
    %63 = vector.load %arg15[%c10, %c0_53] : memref<110x1xf32, #tpu.memory_space<vmem>>, vector<80x1xf32>
    %c3 = arith.constant 3 : index
    %c0_54 = arith.constant 0 : index
    %c0_55 = arith.constant 0 : index
    %64 = vector.load %arg2[%c3, %c0_54, %c0_55] : memref<9x1x64xbf16, #tpu.memory_space<vmem>>, vector<1x1x64xbf16>
    %65 = vector.shape_cast %64 : vector<1x1x64xbf16> to vector<1x64xbf16>
    %66 = arith.extf %65 : vector<1x64xbf16> to vector<1x64xf32>
    %67 = vector.broadcast %63 : vector<80x1xf32> to vector<80x64xf32>
    %68 = vector.broadcast %66 : vector<1x64xf32> to vector<80x64xf32>
    %69 = arith.mulf %67, %68 : vector<80x64xf32>
    %70 = arith.addf %62, %69 : vector<80x64xf32>
    %c11_56 = arith.constant 11 : index
    %c0_57 = arith.constant 0 : index
    %71 = vector.load %arg15[%c11_56, %c0_57] : memref<110x1xf32, #tpu.memory_space<vmem>>, vector<80x1xf32>
    %c4 = arith.constant 4 : index
    %c0_58 = arith.constant 0 : index
    %c0_59 = arith.constant 0 : index
    %72 = vector.load %arg2[%c4, %c0_58, %c0_59] : memref<9x1x64xbf16, #tpu.memory_space<vmem>>, vector<1x1x64xbf16>
    %73 = vector.shape_cast %72 : vector<1x1x64xbf16> to vector<1x64xbf16>
    %74 = arith.extf %73 : vector<1x64xbf16> to vector<1x64xf32>
    %75 = vector.broadcast %71 : vector<80x1xf32> to vector<80x64xf32>
    %76 = vector.broadcast %74 : vector<1x64xf32> to vector<80x64xf32>
    %77 = arith.mulf %75, %76 : vector<80x64xf32>
    %78 = arith.addf %70, %77 : vector<80x64xf32>
    %c12 = arith.constant 12 : index
    %c0_60 = arith.constant 0 : index
    %79 = vector.load %arg15[%c12, %c0_60] : memref<110x1xf32, #tpu.memory_space<vmem>>, vector<80x1xf32>
    %c5 = arith.constant 5 : index
    %c0_61 = arith.constant 0 : index
    %c0_62 = arith.constant 0 : index
    %80 = vector.load %arg2[%c5, %c0_61, %c0_62] : memref<9x1x64xbf16, #tpu.memory_space<vmem>>, vector<1x1x64xbf16>
    %81 = vector.shape_cast %80 : vector<1x1x64xbf16> to vector<1x64xbf16>
    %82 = arith.extf %81 : vector<1x64xbf16> to vector<1x64xf32>
    %83 = vector.broadcast %79 : vector<80x1xf32> to vector<80x64xf32>
    %84 = vector.broadcast %82 : vector<1x64xf32> to vector<80x64xf32>
    %85 = arith.mulf %83, %84 : vector<80x64xf32>
    %86 = arith.addf %78, %85 : vector<80x64xf32>
    %c20 = arith.constant 20 : index
    %c0_63 = arith.constant 0 : index
    %87 = vector.load %arg15[%c20, %c0_63] : memref<110x1xf32, #tpu.memory_space<vmem>>, vector<80x1xf32>
    %c6 = arith.constant 6 : index
    %c0_64 = arith.constant 0 : index
    %c0_65 = arith.constant 0 : index
    %88 = vector.load %arg2[%c6, %c0_64, %c0_65] : memref<9x1x64xbf16, #tpu.memory_space<vmem>>, vector<1x1x64xbf16>
    %89 = vector.shape_cast %88 : vector<1x1x64xbf16> to vector<1x64xbf16>
    %90 = arith.extf %89 : vector<1x64xbf16> to vector<1x64xf32>
    %91 = vector.broadcast %87 : vector<80x1xf32> to vector<80x64xf32>
    %92 = vector.broadcast %90 : vector<1x64xf32> to vector<80x64xf32>
    %93 = arith.mulf %91, %92 : vector<80x64xf32>
    %94 = arith.addf %86, %93 : vector<80x64xf32>
    %c21_66 = arith.constant 21 : index
    %c0_67 = arith.constant 0 : index
    %95 = vector.load %arg15[%c21_66, %c0_67] : memref<110x1xf32, #tpu.memory_space<vmem>>, vector<80x1xf32>
    %c7 = arith.constant 7 : index
    %c0_68 = arith.constant 0 : index
    %c0_69 = arith.constant 0 : index
    %96 = vector.load %arg2[%c7, %c0_68, %c0_69] : memref<9x1x64xbf16, #tpu.memory_space<vmem>>, vector<1x1x64xbf16>
    %97 = vector.shape_cast %96 : vector<1x1x64xbf16> to vector<1x64xbf16>
    %98 = arith.extf %97 : vector<1x64xbf16> to vector<1x64xf32>
    %99 = vector.broadcast %95 : vector<80x1xf32> to vector<80x64xf32>
    %100 = vector.broadcast %98 : vector<1x64xf32> to vector<80x64xf32>
    %101 = arith.mulf %99, %100 : vector<80x64xf32>
    %102 = arith.addf %94, %101 : vector<80x64xf32>
    %c22 = arith.constant 22 : index
    %c0_70 = arith.constant 0 : index
    %103 = vector.load %arg15[%c22, %c0_70] : memref<110x1xf32, #tpu.memory_space<vmem>>, vector<80x1xf32>
    %c8 = arith.constant 8 : index
    %c0_71 = arith.constant 0 : index
    %c0_72 = arith.constant 0 : index
    %104 = vector.load %arg2[%c8, %c0_71, %c0_72] : memref<9x1x64xbf16, #tpu.memory_space<vmem>>, vector<1x1x64xbf16>
    %105 = vector.shape_cast %104 : vector<1x1x64xbf16> to vector<1x64xbf16>
    %106 = arith.extf %105 : vector<1x64xbf16> to vector<1x64xf32>
    %107 = vector.broadcast %103 : vector<80x1xf32> to vector<80x64xf32>
    %108 = vector.broadcast %106 : vector<1x64xf32> to vector<80x64xf32>
    %109 = arith.mulf %107, %108 : vector<80x64xf32>
    %110 = arith.addf %102, %109 : vector<80x64xf32>
    %111 = vector.extract_strided_slice %110 {offsets = [0, 0], sizes = [8, 64], strides = [1, 1]} : vector<80x64xf32> to vector<8x64xf32>
    %cst_73 = arith.constant 0.000000e+00 : f32
    %112 = vector.broadcast %cst_73 : f32 to vector<8x64xf32>
    %113 = arith.cmpf oge, %111, %112 : vector<8x64xf32>
    %cst_74 = arith.constant 2.000000e-01 : f32
    %114 = vector.broadcast %cst_74 : f32 to vector<8x64xf32>
    %115 = arith.mulf %114, %111 : vector<8x64xf32>
    %116 = arith.select %113, %111, %115 : vector<8x64xi1>, vector<8x64xf32>
    %c11_75 = arith.constant 11 : index
    %c0_76 = arith.constant 0 : index
    %117 = vector.load %arg16[%c11_75, %c0_76] : memref<110x64xf32, #tpu.memory_space<vmem>>, vector<8x64xf32>
    tpu.vector_store %arg16[%c11_75, %c0_76], %116 {strides = array<i32>} : memref<110x64xf32, #tpu.memory_space<vmem>>, vector<8x64xf32>,
    %118 = vector.extract_strided_slice %110 {offsets = [10, 0], sizes = [8, 64], strides = [1, 1]} : vector<80x64xf32> to vector<8x64xf32>
    %cst_77 = arith.constant 0.000000e+00 : f32
    %119 = vector.broadcast %cst_77 : f32 to vector<8x64xf32>
    %120 = arith.cmpf oge, %118, %119 : vector<8x64xf32>
    %cst_78 = arith.constant 2.000000e-01 : f32
    %121 = vector.broadcast %cst_78 : f32 to vector<8x64xf32>
    %122 = arith.mulf %121, %118 : vector<8x64xf32>
    %123 = arith.select %120, %118, %122 : vector<8x64xi1>, vector<8x64xf32>
    %c21_79 = arith.constant 21 : index
    %c0_80 = arith.constant 0 : index
    %124 = vector.load %arg16[%c21_79, %c0_80] : memref<110x64xf32, #tpu.memory_space<vmem>>, vector<8x64xf32>
    tpu.vector_store %arg16[%c21_79, %c0_80], %123 {strides = array<i32>} : memref<110x64xf32, #tpu.memory_space<vmem>>, vector<8x64xf32>,
    %125 = vector.extract_strided_slice %110 {offsets = [20, 0], sizes = [8, 64], strides = [1, 1]} : vector<80x64xf32> to vector<8x64xf32>
    %cst_81 = arith.constant 0.000000e+00 : f32
    %126 = vector.broadcast %cst_81 : f32 to vector<8x64xf32>
    %127 = arith.cmpf oge, %125, %126 : vector<8x64xf32>
    %cst_82 = arith.constant 2.000000e-01 : f32
    %128 = vector.broadcast %cst_82 : f32 to vector<8x64xf32>
    %129 = arith.mulf %128, %125 : vector<8x64xf32>
    %130 = arith.select %127, %125, %129 : vector<8x64xi1>, vector<8x64xf32>
    %c31_83 = arith.constant 31 : index
    %c0_84 = arith.constant 0 : index
    %131 = vector.load %arg16[%c31_83, %c0_84] : memref<110x64xf32, #tpu.memory_space<vmem>>, vector<8x64xf32>
    tpu.vector_store %arg16[%c31_83, %c0_84], %130 {strides = array<i32>} : memref<110x64xf32, #tpu.memory_space<vmem>>, vector<8x64xf32>,
    %132 = vector.extract_strided_slice %110 {offsets = [30, 0], sizes = [8, 64], strides = [1, 1]} : vector<80x64xf32> to vector<8x64xf32>
    %cst_85 = arith.constant 0.000000e+00 : f32
    %133 = vector.broadcast %cst_85 : f32 to vector<8x64xf32>
    %134 = arith.cmpf oge, %132, %133 : vector<8x64xf32>
    %cst_86 = arith.constant 2.000000e-01 : f32
    %135 = vector.broadcast %cst_86 : f32 to vector<8x64xf32>
    %136 = arith.mulf %135, %132 : vector<8x64xf32>
    %137 = arith.select %134, %132, %136 : vector<8x64xi1>, vector<8x64xf32>
    %c41_87 = arith.constant 41 : index
    %c0_88 = arith.constant 0 : index
    %138 = vector.load %arg16[%c41_87, %c0_88] : memref<110x64xf32, #tpu.memory_space<vmem>>, vector<8x64xf32>
    tpu.vector_store %arg16[%c41_87, %c0_88], %137 {strides = array<i32>} : memref<110x64xf32, #tpu.memory_space<vmem>>, vector<8x64xf32>,
    %139 = vector.extract_strided_slice %110 {offsets = [40, 0], sizes = [8, 64], strides = [1, 1]} : vector<80x64xf32> to vector<8x64xf32>
    %cst_89 = arith.constant 0.000000e+00 : f32
    %140 = vector.broadcast %cst_89 : f32 to vector<8x64xf32>
    %141 = arith.cmpf oge, %139, %140 : vector<8x64xf32>
    %cst_90 = arith.constant 2.000000e-01 : f32
    %142 = vector.broadcast %cst_90 : f32 to vector<8x64xf32>
    %143 = arith.mulf %142, %139 : vector<8x64xf32>
    %144 = arith.select %141, %139, %143 : vector<8x64xi1>, vector<8x64xf32>
    %c51_91 = arith.constant 51 : index
    %c0_92 = arith.constant 0 : index
    %145 = vector.load %arg16[%c51_91, %c0_92] : memref<110x64xf32, #tpu.memory_space<vmem>>, vector<8x64xf32>
    tpu.vector_store %arg16[%c51_91, %c0_92], %144 {strides = array<i32>} : memref<110x64xf32, #tpu.memory_space<vmem>>, vector<8x64xf32>,
    %146 = vector.extract_strided_slice %110 {offsets = [50, 0], sizes = [8, 64], strides = [1, 1]} : vector<80x64xf32> to vector<8x64xf32>
    %cst_93 = arith.constant 0.000000e+00 : f32
    %147 = vector.broadcast %cst_93 : f32 to vector<8x64xf32>
    %148 = arith.cmpf oge, %146, %147 : vector<8x64xf32>
    %cst_94 = arith.constant 2.000000e-01 : f32
    %149 = vector.broadcast %cst_94 : f32 to vector<8x64xf32>
    %150 = arith.mulf %149, %146 : vector<8x64xf32>
    %151 = arith.select %148, %146, %150 : vector<8x64xi1>, vector<8x64xf32>
    %c61_95 = arith.constant 61 : index
    %c0_96 = arith.constant 0 : index
    %152 = vector.load %arg16[%c61_95, %c0_96] : memref<110x64xf32, #tpu.memory_space<vmem>>, vector<8x64xf32>
    tpu.vector_store %arg16[%c61_95, %c0_96], %151 {strides = array<i32>} : memref<110x64xf32, #tpu.memory_space<vmem>>, vector<8x64xf32>,
    %153 = vector.extract_strided_slice %110 {offsets = [60, 0], sizes = [8, 64], strides = [1, 1]} : vector<80x64xf32> to vector<8x64xf32>
    %cst_97 = arith.constant 0.000000e+00 : f32
    %154 = vector.broadcast %cst_97 : f32 to vector<8x64xf32>
    %155 = arith.cmpf oge, %153, %154 : vector<8x64xf32>
    %cst_98 = arith.constant 2.000000e-01 : f32
    %156 = vector.broadcast %cst_98 : f32 to vector<8x64xf32>
    %157 = arith.mulf %156, %153 : vector<8x64xf32>
    %158 = arith.select %155, %153, %157 : vector<8x64xi1>, vector<8x64xf32>
    %c71_99 = arith.constant 71 : index
    %c0_100 = arith.constant 0 : index
    %159 = vector.load %arg16[%c71_99, %c0_100] : memref<110x64xf32, #tpu.memory_space<vmem>>, vector<8x64xf32>
    tpu.vector_store %arg16[%c71_99, %c0_100], %158 {strides = array<i32>} : memref<110x64xf32, #tpu.memory_space<vmem>>, vector<8x64xf32>,
    %160 = vector.extract_strided_slice %110 {offsets = [70, 0], sizes = [8, 64], strides = [1, 1]} : vector<80x64xf32> to vector<8x64xf32>
    %cst_101 = arith.constant 0.000000e+00 : f32
    %161 = vector.broadcast %cst_101 : f32 to vector<8x64xf32>
    %162 = arith.cmpf oge, %160, %161 : vector<8x64xf32>
    %cst_102 = arith.constant 2.000000e-01 : f32
    %163 = vector.broadcast %cst_102 : f32 to vector<8x64xf32>
    %164 = arith.mulf %163, %160 : vector<8x64xf32>
    %165 = arith.select %162, %160, %164 : vector<8x64xi1>, vector<8x64xf32>
    %c81_103 = arith.constant 81 : index
    %c0_104 = arith.constant 0 : index
    %166 = vector.load %arg16[%c81_103, %c0_104] : memref<110x64xf32, #tpu.memory_space<vmem>>, vector<8x64xf32>
    tpu.vector_store %arg16[%c81_103, %c0_104], %165 {strides = array<i32>} : memref<110x64xf32, #tpu.memory_space<vmem>>, vector<8x64xf32>,
    %cst_105 = arith.constant 0.000000e+00 : f32
    %167 = vector.broadcast %cst_105 : f32 to vector<80x64xf32>
    %c0_106 = arith.constant 0 : index
    %c0_107 = arith.constant 0 : index
    %168 = vector.load %arg16[%c0_106, %c0_107] : memref<110x64xf32, #tpu.memory_space<vmem>>, vector<80x64xf32>
    %c0_108 = arith.constant 0 : index
    %c0_109 = arith.constant 0 : index
    %c0_110 = arith.constant 0 : index
    %169 = vector.load %arg3[%c0_108, %c0_109, %c0_110] : memref<9x64x64xbf16, #tpu.memory_space<vmem>>, vector<1x64x64xbf16>
    %170 = vector.shape_cast %169 : vector<1x64x64xbf16> to vector<64x64xbf16>
    %171 = arith.truncf %168 : vector<80x64xf32> to vector<80x64xbf16>
    %cst_111 = arith.constant dense<0.000000e+00> : vector<80x64xf32>
    %172 = tpu.matmul %171, %170, %cst_111 {dimension_numbers = #tpu.dot_dimension_numbers<[1], [0], [0], [1], [0, 0, 1, 1], [], []>} : vector<80x64xbf16>, vector<64x64xbf16>, vector<80x64xf32> -> vector<80x64xf32>
    %173 = arith.addf %167, %172 : vector<80x64xf32>
    %c1_112 = arith.constant 1 : index
    %c0_113 = arith.constant 0 : index
    %174 = vector.load %arg16[%c1_112, %c0_113] : memref<110x64xf32, #tpu.memory_space<vmem>>, vector<80x64xf32>
    %c1_114 = arith.constant 1 : index
    %c0_115 = arith.constant 0 : index
    %c0_116 = arith.constant 0 : index
    %175 = vector.load %arg3[%c1_114, %c0_115, %c0_116] : memref<9x64x64xbf16, #tpu.memory_space<vmem>>, vector<1x64x64xbf16>
    %176 = vector.shape_cast %175 : vector<1x64x64xbf16> to vector<64x64xbf16>
    %177 = arith.truncf %174 : vector<80x64xf32> to vector<80x64xbf16>
    %cst_117 = arith.constant dense<0.000000e+00> : vector<80x64xf32>
    %178 = tpu.matmul %177, %176, %cst_117 {dimension_numbers = #tpu.dot_dimension_numbers<[1], [0], [0], [1], [0, 0, 1, 1], [], []>} : vector<80x64xbf16>, vector<64x64xbf16>, vector<80x64xf32> -> vector<80x64xf32>
    %179 = arith.addf %173, %178 : vector<80x64xf32>
    %c2_118 = arith.constant 2 : index
    %c0_119 = arith.constant 0 : index
    %180 = vector.load %arg16[%c2_118, %c0_119] : memref<110x64xf32, #tpu.memory_space<vmem>>, vector<80x64xf32>
    %c2_120 = arith.constant 2 : index
    %c0_121 = arith.constant 0 : index
    %c0_122 = arith.constant 0 : index
    %181 = vector.load %arg3[%c2_120, %c0_121, %c0_122] : memref<9x64x64xbf16, #tpu.memory_space<vmem>>, vector<1x64x64xbf16>
    %182 = vector.shape_cast %181 : vector<1x64x64xbf16> to vector<64x64xbf16>
    %183 = arith.truncf %180 : vector<80x64xf32> to vector<80x64xbf16>
    %cst_123 = arith.constant dense<0.000000e+00> : vector<80x64xf32>
    %184 = tpu.matmul %183, %182, %cst_123 {dimension_numbers = #tpu.dot_dimension_numbers<[1], [0], [0], [1], [0, 0, 1, 1], [], []>} : vector<80x64xbf16>, vector<64x64xbf16>, vector<80x64xf32> -> vector<80x64xf32>
    %185 = arith.addf %179, %184 : vector<80x64xf32>
    %c10_124 = arith.constant 10 : index
    %c0_125 = arith.constant 0 : index
    %186 = vector.load %arg16[%c10_124, %c0_125] : memref<110x64xf32, #tpu.memory_space<vmem>>, vector<80x64xf32>
    %c3_126 = arith.constant 3 : index
    %c0_127 = arith.constant 0 : index
    %c0_128 = arith.constant 0 : index
    %187 = vector.load %arg3[%c3_126, %c0_127, %c0_128] : memref<9x64x64xbf16, #tpu.memory_space<vmem>>, vector<1x64x64xbf16>
    %188 = vector.shape_cast %187 : vector<1x64x64xbf16> to vector<64x64xbf16>
    %189 = arith.truncf %186 : vector<80x64xf32> to vector<80x64xbf16>
    %cst_129 = arith.constant dense<0.000000e+00> : vector<80x64xf32>
    %190 = tpu.matmul %189, %188, %cst_129 {dimension_numbers = #tpu.dot_dimension_numbers<[1], [0], [0], [1], [0, 0, 1, 1], [], []>} : vector<80x64xbf16>, vector<64x64xbf16>, vector<80x64xf32> -> vector<80x64xf32>
    %191 = arith.addf %185, %190 : vector<80x64xf32>
    %c11_130 = arith.constant 11 : index
    %c0_131 = arith.constant 0 : index
    %192 = vector.load %arg16[%c11_130, %c0_131] : memref<110x64xf32, #tpu.memory_space<vmem>>, vector<80x64xf32>
    %c4_132 = arith.constant 4 : index
    %c0_133 = arith.constant 0 : index
    %c0_134 = arith.constant 0 : index
    %193 = vector.load %arg3[%c4_132, %c0_133, %c0_134] : memref<9x64x64xbf16, #tpu.memory_space<vmem>>, vector<1x64x64xbf16>
    %194 = vector.shape_cast %193 : vector<1x64x64xbf16> to vector<64x64xbf16>
    %195 = arith.truncf %192 : vector<80x64xf32> to vector<80x64xbf16>
    %cst_135 = arith.constant dense<0.000000e+00> : vector<80x64xf32>
    %196 = tpu.matmul %195, %194, %cst_135 {dimension_numbers = #tpu.dot_dimension_numbers<[1], [0], [0], [1], [0, 0, 1, 1], [], []>} : vector<80x64xbf16>, vector<64x64xbf16>, vector<80x64xf32> -> vector<80x64xf32>
    %197 = arith.addf %191, %196 : vector<80x64xf32>
    %c12_136 = arith.constant 12 : index
    %c0_137 = arith.constant 0 : index
    %198 = vector.load %arg16[%c12_136, %c0_137] : memref<110x64xf32, #tpu.memory_space<vmem>>, vector<80x64xf32>
    %c5_138 = arith.constant 5 : index
    %c0_139 = arith.constant 0 : index
    %c0_140 = arith.constant 0 : index
    %199 = vector.load %arg3[%c5_138, %c0_139, %c0_140] : memref<9x64x64xbf16, #tpu.memory_space<vmem>>, vector<1x64x64xbf16>
    %200 = vector.shape_cast %199 : vector<1x64x64xbf16> to vector<64x64xbf16>
    %201 = arith.truncf %198 : vector<80x64xf32> to vector<80x64xbf16>
    %cst_141 = arith.constant dense<0.000000e+00> : vector<80x64xf32>
    %202 = tpu.matmul %201, %200, %cst_141 {dimension_numbers = #tpu.dot_dimension_numbers<[1], [0], [0], [1], [0, 0, 1, 1], [], []>} : vector<80x64xbf16>, vector<64x64xbf16>, vector<80x64xf32> -> vector<80x64xf32>
    %203 = arith.addf %197, %202 : vector<80x64xf32>
    %c20_142 = arith.constant 20 : index
    %c0_143 = arith.constant 0 : index
    %204 = vector.load %arg16[%c20_142, %c0_143] : memref<110x64xf32, #tpu.memory_space<vmem>>, vector<80x64xf32>
    %c6_144 = arith.constant 6 : index
    %c0_145 = arith.constant 0 : index
    %c0_146 = arith.constant 0 : index
    %205 = vector.load %arg3[%c6_144, %c0_145, %c0_146] : memref<9x64x64xbf16, #tpu.memory_space<vmem>>, vector<1x64x64xbf16>
    %206 = vector.shape_cast %205 : vector<1x64x64xbf16> to vector<64x64xbf16>
    %207 = arith.truncf %204 : vector<80x64xf32> to vector<80x64xbf16>
    %cst_147 = arith.constant dense<0.000000e+00> : vector<80x64xf32>
    %208 = tpu.matmul %207, %206, %cst_147 {dimension_numbers = #tpu.dot_dimension_numbers<[1], [0], [0], [1], [0, 0, 1, 1], [], []>} : vector<80x64xbf16>, vector<64x64xbf16>, vector<80x64xf32> -> vector<80x64xf32>
    %209 = arith.addf %203, %208 : vector<80x64xf32>
    %c21_148 = arith.constant 21 : index
    %c0_149 = arith.constant 0 : index
    %210 = vector.load %arg16[%c21_148, %c0_149] : memref<110x64xf32, #tpu.memory_space<vmem>>, vector<80x64xf32>
    %c7_150 = arith.constant 7 : index
    %c0_151 = arith.constant 0 : index
    %c0_152 = arith.constant 0 : index
    %211 = vector.load %arg3[%c7_150, %c0_151, %c0_152] : memref<9x64x64xbf16, #tpu.memory_space<vmem>>, vector<1x64x64xbf16>
    %212 = vector.shape_cast %211 : vector<1x64x64xbf16> to vector<64x64xbf16>
    %213 = arith.truncf %210 : vector<80x64xf32> to vector<80x64xbf16>
    %cst_153 = arith.constant dense<0.000000e+00> : vector<80x64xf32>
    %214 = tpu.matmul %213, %212, %cst_153 {dimension_numbers = #tpu.dot_dimension_numbers<[1], [0], [0], [1], [0, 0, 1, 1], [], []>} : vector<80x64xbf16>, vector<64x64xbf16>, vector<80x64xf32> -> vector<80x64xf32>
    %215 = arith.addf %209, %214 : vector<80x64xf32>
    %c22_154 = arith.constant 22 : index
    %c0_155 = arith.constant 0 : index
    %216 = vector.load %arg16[%c22_154, %c0_155] : memref<110x64xf32, #tpu.memory_space<vmem>>, vector<80x64xf32>
    %c8_156 = arith.constant 8 : index
    %c0_157 = arith.constant 0 : index
    %c0_158 = arith.constant 0 : index
    %217 = vector.load %arg3[%c8_156, %c0_157, %c0_158] : memref<9x64x64xbf16, #tpu.memory_space<vmem>>, vector<1x64x64xbf16>
    %218 = vector.shape_cast %217 : vector<1x64x64xbf16> to vector<64x64xbf16>
    %219 = arith.truncf %216 : vector<80x64xf32> to vector<80x64xbf16>
    %cst_159 = arith.constant dense<0.000000e+00> : vector<80x64xf32>
    %220 = tpu.matmul %219, %218, %cst_159 {dimension_numbers = #tpu.dot_dimension_numbers<[1], [0], [0], [1], [0, 0, 1, 1], [], []>} : vector<80x64xbf16>, vector<64x64xbf16>, vector<80x64xf32> -> vector<80x64xf32>
    %221 = arith.addf %215, %220 : vector<80x64xf32>
    %222 = vector.extract_strided_slice %221 {offsets = [0, 0], sizes = [8, 64], strides = [1, 1]} : vector<80x64xf32> to vector<8x64xf32>
    %cst_160 = arith.constant 0.000000e+00 : f32
    %223 = vector.broadcast %cst_160 : f32 to vector<8x64xf32>
    %224 = arith.cmpf oge, %222, %223 : vector<8x64xf32>
    %cst_161 = arith.constant 2.000000e-01 : f32
    %225 = vector.broadcast %cst_161 : f32 to vector<8x64xf32>
    %226 = arith.mulf %225, %222 : vector<8x64xf32>
    %227 = arith.select %224, %222, %226 : vector<8x64xi1>, vector<8x64xf32>
    %c11_162 = arith.constant 11 : index
    %c0_163 = arith.constant 0 : index
    %228 = vector.load %arg17[%c11_162, %c0_163] : memref<110x64xf32, #tpu.memory_space<vmem>>, vector<8x64xf32>
    tpu.vector_store %arg17[%c11_162, %c0_163], %227 {strides = array<i32>} : memref<110x64xf32, #tpu.memory_space<vmem>>, vector<8x64xf32>,
    %229 = vector.extract_strided_slice %221 {offsets = [10, 0], sizes = [8, 64], strides = [1, 1]} : vector<80x64xf32> to vector<8x64xf32>
    %cst_164 = arith.constant 0.000000e+00 : f32
    %230 = vector.broadcast %cst_164 : f32 to vector<8x64xf32>
    %231 = arith.cmpf oge, %229, %230 : vector<8x64xf32>
    %cst_165 = arith.constant 2.000000e-01 : f32
    %232 = vector.broadcast %cst_165 : f32 to vector<8x64xf32>
    %233 = arith.mulf %232, %229 : vector<8x64xf32>
    %234 = arith.select %231, %229, %233 : vector<8x64xi1>, vector<8x64xf32>
    %c21_166 = arith.constant 21 : index
    %c0_167 = arith.constant 0 : index
    %235 = vector.load %arg17[%c21_166, %c0_167] : memref<110x64xf32, #tpu.memory_space<vmem>>, vector<8x64xf32>
    tpu.vector_store %arg17[%c21_166, %c0_167], %234 {strides = array<i32>} : memref<110x64xf32, #tpu.memory_space<vmem>>, vector<8x64xf32>,
    %236 = vector.extract_strided_slice %221 {offsets = [20, 0], sizes = [8, 64], strides = [1, 1]} : vector<80x64xf32> to vector<8x64xf32>
    %cst_168 = arith.constant 0.000000e+00 : f32
    %237 = vector.broadcast %cst_168 : f32 to vector<8x64xf32>
    %238 = arith.cmpf oge, %236, %237 : vector<8x64xf32>
    %cst_169 = arith.constant 2.000000e-01 : f32
    %239 = vector.broadcast %cst_169 : f32 to vector<8x64xf32>
    %240 = arith.mulf %239, %236 : vector<8x64xf32>
    %241 = arith.select %238, %236, %240 : vector<8x64xi1>, vector<8x64xf32>
    %c31_170 = arith.constant 31 : index
    %c0_171 = arith.constant 0 : index
    %242 = vector.load %arg17[%c31_170, %c0_171] : memref<110x64xf32, #tpu.memory_space<vmem>>, vector<8x64xf32>
    tpu.vector_store %arg17[%c31_170, %c0_171], %241 {strides = array<i32>} : memref<110x64xf32, #tpu.memory_space<vmem>>, vector<8x64xf32>,
    %243 = vector.extract_strided_slice %221 {offsets = [30, 0], sizes = [8, 64], strides = [1, 1]} : vector<80x64xf32> to vector<8x64xf32>
    %cst_172 = arith.constant 0.000000e+00 : f32
    %244 = vector.broadcast %cst_172 : f32 to vector<8x64xf32>
    %245 = arith.cmpf oge, %243, %244 : vector<8x64xf32>
    %cst_173 = arith.constant 2.000000e-01 : f32
    %246 = vector.broadcast %cst_173 : f32 to vector<8x64xf32>
    %247 = arith.mulf %246, %243 : vector<8x64xf32>
    %248 = arith.select %245, %243, %247 : vector<8x64xi1>, vector<8x64xf32>
    %c41_174 = arith.constant 41 : index
    %c0_175 = arith.constant 0 : index
    %249 = vector.load %arg17[%c41_174, %c0_175] : memref<110x64xf32, #tpu.memory_space<vmem>>, vector<8x64xf32>
    tpu.vector_store %arg17[%c41_174, %c0_175], %248 {strides = array<i32>} : memref<110x64xf32, #tpu.memory_space<vmem>>, vector<8x64xf32>,
    %250 = vector.extract_strided_slice %221 {offsets = [40, 0], sizes = [8, 64], strides = [1, 1]} : vector<80x64xf32> to vector<8x64xf32>
    %cst_176 = arith.constant 0.000000e+00 : f32
    %251 = vector.broadcast %cst_176 : f32 to vector<8x64xf32>
    %252 = arith.cmpf oge, %250, %251 : vector<8x64xf32>
    %cst_177 = arith.constant 2.000000e-01 : f32
    %253 = vector.broadcast %cst_177 : f32 to vector<8x64xf32>
    %254 = arith.mulf %253, %250 : vector<8x64xf32>
    %255 = arith.select %252, %250, %254 : vector<8x64xi1>, vector<8x64xf32>
    %c51_178 = arith.constant 51 : index
    %c0_179 = arith.constant 0 : index
    %256 = vector.load %arg17[%c51_178, %c0_179] : memref<110x64xf32, #tpu.memory_space<vmem>>, vector<8x64xf32>
    tpu.vector_store %arg17[%c51_178, %c0_179], %255 {strides = array<i32>} : memref<110x64xf32, #tpu.memory_space<vmem>>, vector<8x64xf32>,
    %257 = vector.extract_strided_slice %221 {offsets = [50, 0], sizes = [8, 64], strides = [1, 1]} : vector<80x64xf32> to vector<8x64xf32>
    %cst_180 = arith.constant 0.000000e+00 : f32
    %258 = vector.broadcast %cst_180 : f32 to vector<8x64xf32>
    %259 = arith.cmpf oge, %257, %258 : vector<8x64xf32>
    %cst_181 = arith.constant 2.000000e-01 : f32
    %260 = vector.broadcast %cst_181 : f32 to vector<8x64xf32>
    %261 = arith.mulf %260, %257 : vector<8x64xf32>
    %262 = arith.select %259, %257, %261 : vector<8x64xi1>, vector<8x64xf32>
    %c61_182 = arith.constant 61 : index
    %c0_183 = arith.constant 0 : index
    %263 = vector.load %arg17[%c61_182, %c0_183] : memref<110x64xf32, #tpu.memory_space<vmem>>, vector<8x64xf32>
    tpu.vector_store %arg17[%c61_182, %c0_183], %262 {strides = array<i32>} : memref<110x64xf32, #tpu.memory_space<vmem>>, vector<8x64xf32>,
    %264 = vector.extract_strided_slice %221 {offsets = [60, 0], sizes = [8, 64], strides = [1, 1]} : vector<80x64xf32> to vector<8x64xf32>
    %cst_184 = arith.constant 0.000000e+00 : f32
    %265 = vector.broadcast %cst_184 : f32 to vector<8x64xf32>
    %266 = arith.cmpf oge, %264, %265 : vector<8x64xf32>
    %cst_185 = arith.constant 2.000000e-01 : f32
    %267 = vector.broadcast %cst_185 : f32 to vector<8x64xf32>
    %268 = arith.mulf %267, %264 : vector<8x64xf32>
    %269 = arith.select %266, %264, %268 : vector<8x64xi1>, vector<8x64xf32>
    %c71_186 = arith.constant 71 : index
    %c0_187 = arith.constant 0 : index
    %270 = vector.load %arg17[%c71_186, %c0_187] : memref<110x64xf32, #tpu.memory_space<vmem>>, vector<8x64xf32>
    tpu.vector_store %arg17[%c71_186, %c0_187], %269 {strides = array<i32>} : memref<110x64xf32, #tpu.memory_space<vmem>>, vector<8x64xf32>,
    %271 = vector.extract_strided_slice %221 {offsets = [70, 0], sizes = [8, 64], strides = [1, 1]} : vector<80x64xf32> to vector<8x64xf32>
    %cst_188 = arith.constant 0.000000e+00 : f32
    %272 = vector.broadcast %cst_188 : f32 to vector<8x64xf32>
    %273 = arith.cmpf oge, %271, %272 : vector<8x64xf32>
    %cst_189 = arith.constant 2.000000e-01 : f32
    %274 = vector.broadcast %cst_189 : f32 to vector<8x64xf32>
    %275 = arith.mulf %274, %271 : vector<8x64xf32>
    %276 = arith.select %273, %271, %275 : vector<8x64xi1>, vector<8x64xf32>
    %c81_190 = arith.constant 81 : index
    %c0_191 = arith.constant 0 : index
    %277 = vector.load %arg17[%c81_190, %c0_191] : memref<110x64xf32, #tpu.memory_space<vmem>>, vector<8x64xf32>
    tpu.vector_store %arg17[%c81_190, %c0_191], %276 {strides = array<i32>} : memref<110x64xf32, #tpu.memory_space<vmem>>, vector<8x64xf32>,
    %cst_192 = arith.constant 0.000000e+00 : f32
    %278 = vector.broadcast %cst_192 : f32 to vector<80x64xf32>
    %c0_193 = arith.constant 0 : index
    %c0_194 = arith.constant 0 : index
    %279 = vector.load %arg17[%c0_193, %c0_194] : memref<110x64xf32, #tpu.memory_space<vmem>>, vector<80x64xf32>
    %c0_195 = arith.constant 0 : index
    %c0_196 = arith.constant 0 : index
    %c0_197 = arith.constant 0 : index
    %280 = vector.load %arg4[%c0_195, %c0_196, %c0_197] : memref<9x64x64xbf16, #tpu.memory_space<vmem>>, vector<1x64x64xbf16>
    %281 = vector.shape_cast %280 : vector<1x64x64xbf16> to vector<64x64xbf16>
    %282 = arith.truncf %279 : vector<80x64xf32> to vector<80x64xbf16>
    %cst_198 = arith.constant dense<0.000000e+00> : vector<80x64xf32>
    %283 = tpu.matmul %282, %281, %cst_198 {dimension_numbers = #tpu.dot_dimension_numbers<[1], [0], [0], [1], [0, 0, 1, 1], [], []>} : vector<80x64xbf16>, vector<64x64xbf16>, vector<80x64xf32> -> vector<80x64xf32>
    %284 = arith.addf %278, %283 : vector<80x64xf32>
    %c1_199 = arith.constant 1 : index
    %c0_200 = arith.constant 0 : index
    %285 = vector.load %arg17[%c1_199, %c0_200] : memref<110x64xf32, #tpu.memory_space<vmem>>, vector<80x64xf32>
    %c1_201 = arith.constant 1 : index
    %c0_202 = arith.constant 0 : index
    %c0_203 = arith.constant 0 : index
    %286 = vector.load %arg4[%c1_201, %c0_202, %c0_203] : memref<9x64x64xbf16, #tpu.memory_space<vmem>>, vector<1x64x64xbf16>
    %287 = vector.shape_cast %286 : vector<1x64x64xbf16> to vector<64x64xbf16>
    %288 = arith.truncf %285 : vector<80x64xf32> to vector<80x64xbf16>
    %cst_204 = arith.constant dense<0.000000e+00> : vector<80x64xf32>
    %289 = tpu.matmul %288, %287, %cst_204 {dimension_numbers = #tpu.dot_dimension_numbers<[1], [0], [0], [1], [0, 0, 1, 1], [], []>} : vector<80x64xbf16>, vector<64x64xbf16>, vector<80x64xf32> -> vector<80x64xf32>
    %290 = arith.addf %284, %289 : vector<80x64xf32>
    %c2_205 = arith.constant 2 : index
    %c0_206 = arith.constant 0 : index
    %291 = vector.load %arg17[%c2_205, %c0_206] : memref<110x64xf32, #tpu.memory_space<vmem>>, vector<80x64xf32>
    %c2_207 = arith.constant 2 : index
    %c0_208 = arith.constant 0 : index
    %c0_209 = arith.constant 0 : index
    %292 = vector.load %arg4[%c2_207, %c0_208, %c0_209] : memref<9x64x64xbf16, #tpu.memory_space<vmem>>, vector<1x64x64xbf16>
    %293 = vector.shape_cast %292 : vector<1x64x64xbf16> to vector<64x64xbf16>
    %294 = arith.truncf %291 : vector<80x64xf32> to vector<80x64xbf16>
    %cst_210 = arith.constant dense<0.000000e+00> : vector<80x64xf32>
    %295 = tpu.matmul %294, %293, %cst_210 {dimension_numbers = #tpu.dot_dimension_numbers<[1], [0], [0], [1], [0, 0, 1, 1], [], []>} : vector<80x64xbf16>, vector<64x64xbf16>, vector<80x64xf32> -> vector<80x64xf32>
    %296 = arith.addf %290, %295 : vector<80x64xf32>
    %c10_211 = arith.constant 10 : index
    %c0_212 = arith.constant 0 : index
    %297 = vector.load %arg17[%c10_211, %c0_212] : memref<110x64xf32, #tpu.memory_space<vmem>>, vector<80x64xf32>
    %c3_213 = arith.constant 3 : index
    %c0_214 = arith.constant 0 : index
    %c0_215 = arith.constant 0 : index
    %298 = vector.load %arg4[%c3_213, %c0_214, %c0_215] : memref<9x64x64xbf16, #tpu.memory_space<vmem>>, vector<1x64x64xbf16>
    %299 = vector.shape_cast %298 : vector<1x64x64xbf16> to vector<64x64xbf16>
    %300 = arith.truncf %297 : vector<80x64xf32> to vector<80x64xbf16>
    %cst_216 = arith.constant dense<0.000000e+00> : vector<80x64xf32>
    %301 = tpu.matmul %300, %299, %cst_216 {dimension_numbers = #tpu.dot_dimension_numbers<[1], [0], [0], [1], [0, 0, 1, 1], [], []>} : vector<80x64xbf16>, vector<64x64xbf16>, vector<80x64xf32> -> vector<80x64xf32>
    %302 = arith.addf %296, %301 : vector<80x64xf32>
    %c11_217 = arith.constant 11 : index
    %c0_218 = arith.constant 0 : index
    %303 = vector.load %arg17[%c11_217, %c0_218] : memref<110x64xf32, #tpu.memory_space<vmem>>, vector<80x64xf32>
    %c4_219 = arith.constant 4 : index
    %c0_220 = arith.constant 0 : index
    %c0_221 = arith.constant 0 : index
    %304 = vector.load %arg4[%c4_219, %c0_220, %c0_221] : memref<9x64x64xbf16, #tpu.memory_space<vmem>>, vector<1x64x64xbf16>
    %305 = vector.shape_cast %304 : vector<1x64x64xbf16> to vector<64x64xbf16>
    %306 = arith.truncf %303 : vector<80x64xf32> to vector<80x64xbf16>
    %cst_222 = arith.constant dense<0.000000e+00> : vector<80x64xf32>
    %307 = tpu.matmul %306, %305, %cst_222 {dimension_numbers = #tpu.dot_dimension_numbers<[1], [0], [0], [1], [0, 0, 1, 1], [], []>} : vector<80x64xbf16>, vector<64x64xbf16>, vector<80x64xf32> -> vector<80x64xf32>
    %308 = arith.addf %302, %307 : vector<80x64xf32>
    %c12_223 = arith.constant 12 : index
    %c0_224 = arith.constant 0 : index
    %309 = vector.load %arg17[%c12_223, %c0_224] : memref<110x64xf32, #tpu.memory_space<vmem>>, vector<80x64xf32>
    %c5_225 = arith.constant 5 : index
    %c0_226 = arith.constant 0 : index
    %c0_227 = arith.constant 0 : index
    %310 = vector.load %arg4[%c5_225, %c0_226, %c0_227] : memref<9x64x64xbf16, #tpu.memory_space<vmem>>, vector<1x64x64xbf16>
    %311 = vector.shape_cast %310 : vector<1x64x64xbf16> to vector<64x64xbf16>
    %312 = arith.truncf %309 : vector<80x64xf32> to vector<80x64xbf16>
    %cst_228 = arith.constant dense<0.000000e+00> : vector<80x64xf32>
    %313 = tpu.matmul %312, %311, %cst_228 {dimension_numbers = #tpu.dot_dimension_numbers<[1], [0], [0], [1], [0, 0, 1, 1], [], []>} : vector<80x64xbf16>, vector<64x64xbf16>, vector<80x64xf32> -> vector<80x64xf32>
    %314 = arith.addf %308, %313 : vector<80x64xf32>
    %c20_229 = arith.constant 20 : index
    %c0_230 = arith.constant 0 : index
    %315 = vector.load %arg17[%c20_229, %c0_230] : memref<110x64xf32, #tpu.memory_space<vmem>>, vector<80x64xf32>
    %c6_231 = arith.constant 6 : index
    %c0_232 = arith.constant 0 : index
    %c0_233 = arith.constant 0 : index
    %316 = vector.load %arg4[%c6_231, %c0_232, %c0_233] : memref<9x64x64xbf16, #tpu.memory_space<vmem>>, vector<1x64x64xbf16>
    %317 = vector.shape_cast %316 : vector<1x64x64xbf16> to vector<64x64xbf16>
    %318 = arith.truncf %315 : vector<80x64xf32> to vector<80x64xbf16>
    %cst_234 = arith.constant dense<0.000000e+00> : vector<80x64xf32>
    %319 = tpu.matmul %318, %317, %cst_234 {dimension_numbers = #tpu.dot_dimension_numbers<[1], [0], [0], [1], [0, 0, 1, 1], [], []>} : vector<80x64xbf16>, vector<64x64xbf16>, vector<80x64xf32> -> vector<80x64xf32>
    %320 = arith.addf %314, %319 : vector<80x64xf32>
    %c21_235 = arith.constant 21 : index
    %c0_236 = arith.constant 0 : index
    %321 = vector.load %arg17[%c21_235, %c0_236] : memref<110x64xf32, #tpu.memory_space<vmem>>, vector<80x64xf32>
    %c7_237 = arith.constant 7 : index
    %c0_238 = arith.constant 0 : index
    %c0_239 = arith.constant 0 : index
    %322 = vector.load %arg4[%c7_237, %c0_238, %c0_239] : memref<9x64x64xbf16, #tpu.memory_space<vmem>>, vector<1x64x64xbf16>
    %323 = vector.shape_cast %322 : vector<1x64x64xbf16> to vector<64x64xbf16>
    %324 = arith.truncf %321 : vector<80x64xf32> to vector<80x64xbf16>
    %cst_240 = arith.constant dense<0.000000e+00> : vector<80x64xf32>
    %325 = tpu.matmul %324, %323, %cst_240 {dimension_numbers = #tpu.dot_dimension_numbers<[1], [0], [0], [1], [0, 0, 1, 1], [], []>} : vector<80x64xbf16>, vector<64x64xbf16>, vector<80x64xf32> -> vector<80x64xf32>
    %326 = arith.addf %320, %325 : vector<80x64xf32>
    %c22_241 = arith.constant 22 : index
    %c0_242 = arith.constant 0 : index
    %327 = vector.load %arg17[%c22_241, %c0_242] : memref<110x64xf32, #tpu.memory_space<vmem>>, vector<80x64xf32>
    %c8_243 = arith.constant 8 : index
    %c0_244 = arith.constant 0 : index
    %c0_245 = arith.constant 0 : index
    %328 = vector.load %arg4[%c8_243, %c0_244, %c0_245] : memref<9x64x64xbf16, #tpu.memory_space<vmem>>, vector<1x64x64xbf16>
    %329 = vector.shape_cast %328 : vector<1x64x64xbf16> to vector<64x64xbf16>
    %330 = arith.truncf %327 : vector<80x64xf32> to vector<80x64xbf16>
    %cst_246 = arith.constant dense<0.000000e+00> : vector<80x64xf32>
    %331 = tpu.matmul %330, %329, %cst_246 {dimension_numbers = #tpu.dot_dimension_numbers<[1], [0], [0], [1], [0, 0, 1, 1], [], []>} : vector<80x64xbf16>, vector<64x64xbf16>, vector<80x64xf32> -> vector<80x64xf32>
    %332 = arith.addf %326, %331 : vector<80x64xf32>
    %333 = vector.extract_strided_slice %332 {offsets = [0, 0], sizes = [8, 64], strides = [1, 1]} : vector<80x64xf32> to vector<8x64xf32>
    %cst_247 = arith.constant 0.000000e+00 : f32
    %334 = vector.broadcast %cst_247 : f32 to vector<8x64xf32>
    %335 = arith.cmpf oge, %333, %334 : vector<8x64xf32>
    %cst_248 = arith.constant 2.000000e-01 : f32
    %336 = vector.broadcast %cst_248 : f32 to vector<8x64xf32>
    %337 = arith.mulf %336, %333 : vector<8x64xf32>
    %338 = arith.select %335, %333, %337 : vector<8x64xi1>, vector<8x64xf32>
    %339 = vector.extract_strided_slice %338 {offsets = [0, 0], sizes = [1, 64], strides = [1, 1]} : vector<8x64xf32> to vector<1x64xf32>
    %c7_249 = arith.constant 7 : index
    %c0_250 = arith.constant 0 : index
    %340 = vector.load %arg18[%c7_249, %c0_250] : memref<42x64xf32, #tpu.memory_space<vmem>>, vector<1x64xf32>
    tpu.vector_store %arg18[%c7_249, %c0_250], %339 {strides = array<i32>} : memref<42x64xf32, #tpu.memory_space<vmem>>, vector<1x64xf32>,
    %341 = vector.extract_strided_slice %338 {offsets = [2, 0], sizes = [1, 64], strides = [1, 1]} : vector<8x64xf32> to vector<1x64xf32>
    %c8_251 = arith.constant 8 : index
    %c0_252 = arith.constant 0 : index
    %342 = vector.load %arg18[%c8_251, %c0_252] : memref<42x64xf32, #tpu.memory_space<vmem>>, vector<1x64xf32>
    tpu.vector_store %arg18[%c8_251, %c0_252], %341 {strides = array<i32>} : memref<42x64xf32, #tpu.memory_space<vmem>>, vector<1x64xf32>,
    %343 = vector.extract_strided_slice %338 {offsets = [4, 0], sizes = [1, 64], strides = [1, 1]} : vector<8x64xf32> to vector<1x64xf32>
    %c9 = arith.constant 9 : index
    %c0_253 = arith.constant 0 : index
    %344 = vector.load %arg18[%c9, %c0_253] : memref<42x64xf32, #tpu.memory_space<vmem>>, vector<1x64xf32>
    tpu.vector_store %arg18[%c9, %c0_253], %343 {strides = array<i32>} : memref<42x64xf32, #tpu.memory_space<vmem>>, vector<1x64xf32>,
    %345 = vector.extract_strided_slice %338 {offsets = [6, 0], sizes = [1, 64], strides = [1, 1]} : vector<8x64xf32> to vector<1x64xf32>
    %c10_254 = arith.constant 10 : index
    %c0_255 = arith.constant 0 : index
    %346 = vector.load %arg18[%c10_254, %c0_255] : memref<42x64xf32, #tpu.memory_space<vmem>>, vector<1x64xf32>
    tpu.vector_store %arg18[%c10_254, %c0_255], %345 {strides = array<i32>} : memref<42x64xf32, #tpu.memory_space<vmem>>, vector<1x64xf32>,
    %347 = vector.extract_strided_slice %332 {offsets = [20, 0], sizes = [8, 64], strides = [1, 1]} : vector<80x64xf32> to vector<8x64xf32>
    %cst_256 = arith.constant 0.000000e+00 : f32
    %348 = vector.broadcast %cst_256 : f32 to vector<8x64xf32>
    %349 = arith.cmpf oge, %347, %348 : vector<8x64xf32>
    %cst_257 = arith.constant 2.000000e-01 : f32
    %350 = vector.broadcast %cst_257 : f32 to vector<8x64xf32>
    %351 = arith.mulf %350, %347 : vector<8x64xf32>
    %352 = arith.select %349, %347, %351 : vector<8x64xi1>, vector<8x64xf32>
    %353 = vector.extract_strided_slice %352 {offsets = [0, 0], sizes = [1, 64], strides = [1, 1]} : vector<8x64xf32> to vector<1x64xf32>
    %c13 = arith.constant 13 : index
    %c0_258 = arith.constant 0 : index
    %354 = vector.load %arg18[%c13, %c0_258] : memref<42x64xf32, #tpu.memory_space<vmem>>, vector<1x64xf32>
    tpu.vector_store %arg18[%c13, %c0_258], %353 {strides = array<i32>} : memref<42x64xf32, #tpu.memory_space<vmem>>, vector<1x64xf32>,
    %355 = vector.extract_strided_slice %352 {offsets = [2, 0], sizes = [1, 64], strides = [1, 1]} : vector<8x64xf32> to vector<1x64xf32>
    %c14 = arith.constant 14 : index
    %c0_259 = arith.constant 0 : index
    %356 = vector.load %arg18[%c14, %c0_259] : memref<42x64xf32, #tpu.memory_space<vmem>>, vector<1x64xf32>
    tpu.vector_store %arg18[%c14, %c0_259], %355 {strides = array<i32>} : memref<42x64xf32, #tpu.memory_space<vmem>>, vector<1x64xf32>,
    %357 = vector.extract_strided_slice %352 {offsets = [4, 0], sizes = [1, 64], strides = [1, 1]} : vector<8x64xf32> to vector<1x64xf32>
    %c15 = arith.constant 15 : index
    %c0_260 = arith.constant 0 : index
    %358 = vector.load %arg18[%c15, %c0_260] : memref<42x64xf32, #tpu.memory_space<vmem>>, vector<1x64xf32>
    tpu.vector_store %arg18[%c15, %c0_260], %357 {strides = array<i32>} : memref<42x64xf32, #tpu.memory_space<vmem>>, vector<1x64xf32>,
    %359 = vector.extract_strided_slice %352 {offsets = [6, 0], sizes = [1, 64], strides = [1, 1]} : vector<8x64xf32> to vector<1x64xf32>
    %c16 = arith.constant 16 : index
    %c0_261 = arith.constant 0 : index
    %360 = vector.load %arg18[%c16, %c0_261] : memref<42x64xf32, #tpu.memory_space<vmem>>, vector<1x64xf32>
    tpu.vector_store %arg18[%c16, %c0_261], %359 {strides = array<i32>} : memref<42x64xf32, #tpu.memory_space<vmem>>, vector<1x64xf32>,
    %361 = vector.extract_strided_slice %332 {offsets = [40, 0], sizes = [8, 64], strides = [1, 1]} : vector<80x64xf32> to vector<8x64xf32>
    %cst_262 = arith.constant 0.000000e+00 : f32
    %362 = vector.broadcast %cst_262 : f32 to vector<8x64xf32>
    %363 = arith.cmpf oge, %361, %362 : vector<8x64xf32>
    %cst_263 = arith.constant 2.000000e-01 : f32
    %364 = vector.broadcast %cst_263 : f32 to vector<8x64xf32>
    %365 = arith.mulf %364, %361 : vector<8x64xf32>
    %366 = arith.select %363, %361, %365 : vector<8x64xi1>, vector<8x64xf32>
    %367 = vector.extract_strided_slice %366 {offsets = [0, 0], sizes = [1, 64], strides = [1, 1]} : vector<8x64xf32> to vector<1x64xf32>
    %c19 = arith.constant 19 : index
    %c0_264 = arith.constant 0 : index
    %368 = vector.load %arg18[%c19, %c0_264] : memref<42x64xf32, #tpu.memory_space<vmem>>, vector<1x64xf32>
    tpu.vector_store %arg18[%c19, %c0_264], %367 {strides = array<i32>} : memref<42x64xf32, #tpu.memory_space<vmem>>, vector<1x64xf32>,
    %369 = vector.extract_strided_slice %366 {offsets = [2, 0], sizes = [1, 64], strides = [1, 1]} : vector<8x64xf32> to vector<1x64xf32>
    %c20_265 = arith.constant 20 : index
    %c0_266 = arith.constant 0 : index
    %370 = vector.load %arg18[%c20_265, %c0_266] : memref<42x64xf32, #tpu.memory_space<vmem>>, vector<1x64xf32>
    tpu.vector_store %arg18[%c20_265, %c0_266], %369 {strides = array<i32>} : memref<42x64xf32, #tpu.memory_space<vmem>>, vector<1x64xf32>,
    %371 = vector.extract_strided_slice %366 {offsets = [4, 0], sizes = [1, 64], strides = [1, 1]} : vector<8x64xf32> to vector<1x64xf32>
    %c21_267 = arith.constant 21 : index
    %c0_268 = arith.constant 0 : index
    %372 = vector.load %arg18[%c21_267, %c0_268] : memref<42x64xf32, #tpu.memory_space<vmem>>, vector<1x64xf32>
    tpu.vector_store %arg18[%c21_267, %c0_268], %371 {strides = array<i32>} : memref<42x64xf32, #tpu.memory_space<vmem>>, vector<1x64xf32>,
    %373 = vector.extract_strided_slice %366 {offsets = [6, 0], sizes = [1, 64], strides = [1, 1]} : vector<8x64xf32> to vector<1x64xf32>
    %c22_269 = arith.constant 22 : index
    %c0_270 = arith.constant 0 : index
    %374 = vector.load %arg18[%c22_269, %c0_270] : memref<42x64xf32, #tpu.memory_space<vmem>>, vector<1x64xf32>
    tpu.vector_store %arg18[%c22_269, %c0_270], %373 {strides = array<i32>} : memref<42x64xf32, #tpu.memory_space<vmem>>, vector<1x64xf32>,
    %375 = vector.extract_strided_slice %332 {offsets = [60, 0], sizes = [8, 64], strides = [1, 1]} : vector<80x64xf32> to vector<8x64xf32>
    %cst_271 = arith.constant 0.000000e+00 : f32
    %376 = vector.broadcast %cst_271 : f32 to vector<8x64xf32>
    %377 = arith.cmpf oge, %375, %376 : vector<8x64xf32>
    %cst_272 = arith.constant 2.000000e-01 : f32
    %378 = vector.broadcast %cst_272 : f32 to vector<8x64xf32>
    %379 = arith.mulf %378, %375 : vector<8x64xf32>
    %380 = arith.select %377, %375, %379 : vector<8x64xi1>, vector<8x64xf32>
    %381 = vector.extract_strided_slice %380 {offsets = [0, 0], sizes = [1, 64], strides = [1, 1]} : vector<8x64xf32> to vector<1x64xf32>
    %c25 = arith.constant 25 : index
    %c0_273 = arith.constant 0 : index
    %382 = vector.load %arg18[%c25, %c0_273] : memref<42x64xf32, #tpu.memory_space<vmem>>, vector<1x64xf32>
    tpu.vector_store %arg18[%c25, %c0_273], %381 {strides = array<i32>} : memref<42x64xf32, #tpu.memory_space<vmem>>, vector<1x64xf32>,
    %383 = vector.extract_strided_slice %380 {offsets = [2, 0], sizes = [1, 64], strides = [1, 1]} : vector<8x64xf32> to vector<1x64xf32>
    %c26 = arith.constant 26 : index
    %c0_274 = arith.constant 0 : index
    %384 = vector.load %arg18[%c26, %c0_274] : memref<42x64xf32, #tpu.memory_space<vmem>>, vector<1x64xf32>
    tpu.vector_store %arg18[%c26, %c0_274], %383 {strides = array<i32>} : memref<42x64xf32, #tpu.memory_space<vmem>>, vector<1x64xf32>,
    %385 = vector.extract_strided_slice %380 {offsets = [4, 0], sizes = [1, 64], strides = [1, 1]} : vector<8x64xf32> to vector<1x64xf32>
    %c27 = arith.constant 27 : index
    %c0_275 = arith.constant 0 : index
    %386 = vector.load %arg18[%c27, %c0_275] : memref<42x64xf32, #tpu.memory_space<vmem>>, vector<1x64xf32>
    tpu.vector_store %arg18[%c27, %c0_275], %385 {strides = array<i32>} : memref<42x64xf32, #tpu.memory_space<vmem>>, vector<1x64xf32>,
    %387 = vector.extract_strided_slice %380 {offsets = [6, 0], sizes = [1, 64], strides = [1, 1]} : vector<8x64xf32> to vector<1x64xf32>
    %c28 = arith.constant 28 : index
    %c0_276 = arith.constant 0 : index
    %388 = vector.load %arg18[%c28, %c0_276] : memref<42x64xf32, #tpu.memory_space<vmem>>, vector<1x64xf32>
    tpu.vector_store %arg18[%c28, %c0_276], %387 {strides = array<i32>} : memref<42x64xf32, #tpu.memory_space<vmem>>, vector<1x64xf32>,
    %cst_277 = arith.constant 0.000000e+00 : f32
    %389 = vector.broadcast %cst_277 : f32 to vector<24x128xf32>
    %c0_278 = arith.constant 0 : index
    %c0_279 = arith.constant 0 : index
    %390 = vector.load %arg18[%c0_278, %c0_279] : memref<42x64xf32, #tpu.memory_space<vmem>>, vector<24x64xf32>
    %c0_280 = arith.constant 0 : index
    %c0_281 = arith.constant 0 : index
    %c0_282 = arith.constant 0 : index
    %391 = vector.load %arg5[%c0_280, %c0_281, %c0_282] : memref<9x64x128xbf16, #tpu.memory_space<vmem>>, vector<1x64x128xbf16>
    %392 = vector.shape_cast %391 : vector<1x64x128xbf16> to vector<64x128xbf16>
    %393 = arith.truncf %390 : vector<24x64xf32> to vector<24x64xbf16>
    %cst_283 = arith.constant dense<0.000000e+00> : vector<24x128xf32>
    %394 = tpu.matmul %393, %392, %cst_283 {dimension_numbers = #tpu.dot_dimension_numbers<[1], [0], [0], [1], [0, 0, 1, 1], [], []>} : vector<24x64xbf16>, vector<64x128xbf16>, vector<24x128xf32> -> vector<24x128xf32>
    %395 = arith.addf %389, %394 : vector<24x128xf32>
    %c1_284 = arith.constant 1 : index
    %c0_285 = arith.constant 0 : index
    %396 = vector.load %arg18[%c1_284, %c0_285] : memref<42x64xf32, #tpu.memory_space<vmem>>, vector<24x64xf32>
    %c1_286 = arith.constant 1 : index
    %c0_287 = arith.constant 0 : index
    %c0_288 = arith.constant 0 : index
    %397 = vector.load %arg5[%c1_286, %c0_287, %c0_288] : memref<9x64x128xbf16, #tpu.memory_space<vmem>>, vector<1x64x128xbf16>
    %398 = vector.shape_cast %397 : vector<1x64x128xbf16> to vector<64x128xbf16>
    %399 = arith.truncf %396 : vector<24x64xf32> to vector<24x64xbf16>
    %cst_289 = arith.constant dense<0.000000e+00> : vector<24x128xf32>
    %400 = tpu.matmul %399, %398, %cst_289 {dimension_numbers = #tpu.dot_dimension_numbers<[1], [0], [0], [1], [0, 0, 1, 1], [], []>} : vector<24x64xbf16>, vector<64x128xbf16>, vector<24x128xf32> -> vector<24x128xf32>
    %401 = arith.addf %395, %400 : vector<24x128xf32>
    %c2_290 = arith.constant 2 : index
    %c0_291 = arith.constant 0 : index
    %402 = vector.load %arg18[%c2_290, %c0_291] : memref<42x64xf32, #tpu.memory_space<vmem>>, vector<24x64xf32>
    %c2_292 = arith.constant 2 : index
    %c0_293 = arith.constant 0 : index
    %c0_294 = arith.constant 0 : index
    %403 = vector.load %arg5[%c2_292, %c0_293, %c0_294] : memref<9x64x128xbf16, #tpu.memory_space<vmem>>, vector<1x64x128xbf16>
    %404 = vector.shape_cast %403 : vector<1x64x128xbf16> to vector<64x128xbf16>
    %405 = arith.truncf %402 : vector<24x64xf32> to vector<24x64xbf16>
    %cst_295 = arith.constant dense<0.000000e+00> : vector<24x128xf32>
    %406 = tpu.matmul %405, %404, %cst_295 {dimension_numbers = #tpu.dot_dimension_numbers<[1], [0], [0], [1], [0, 0, 1, 1], [], []>} : vector<24x64xbf16>, vector<64x128xbf16>, vector<24x128xf32> -> vector<24x128xf32>
    %407 = arith.addf %401, %406 : vector<24x128xf32>
    %c6_296 = arith.constant 6 : index
    %c0_297 = arith.constant 0 : index
    %408 = vector.load %arg18[%c6_296, %c0_297] : memref<42x64xf32, #tpu.memory_space<vmem>>, vector<24x64xf32>
    %c3_298 = arith.constant 3 : index
    %c0_299 = arith.constant 0 : index
    %c0_300 = arith.constant 0 : index
    %409 = vector.load %arg5[%c3_298, %c0_299, %c0_300] : memref<9x64x128xbf16, #tpu.memory_space<vmem>>, vector<1x64x128xbf16>
    %410 = vector.shape_cast %409 : vector<1x64x128xbf16> to vector<64x128xbf16>
    %411 = arith.truncf %408 : vector<24x64xf32> to vector<24x64xbf16>
    %cst_301 = arith.constant dense<0.000000e+00> : vector<24x128xf32>
    %412 = tpu.matmul %411, %410, %cst_301 {dimension_numbers = #tpu.dot_dimension_numbers<[1], [0], [0], [1], [0, 0, 1, 1], [], []>} : vector<24x64xbf16>, vector<64x128xbf16>, vector<24x128xf32> -> vector<24x128xf32>
    %413 = arith.addf %407, %412 : vector<24x128xf32>
    %c7_302 = arith.constant 7 : index
    %c0_303 = arith.constant 0 : index
    %414 = vector.load %arg18[%c7_302, %c0_303] : memref<42x64xf32, #tpu.memory_space<vmem>>, vector<24x64xf32>
    %c4_304 = arith.constant 4 : index
    %c0_305 = arith.constant 0 : index
    %c0_306 = arith.constant 0 : index
    %415 = vector.load %arg5[%c4_304, %c0_305, %c0_306] : memref<9x64x128xbf16, #tpu.memory_space<vmem>>, vector<1x64x128xbf16>
    %416 = vector.shape_cast %415 : vector<1x64x128xbf16> to vector<64x128xbf16>
    %417 = arith.truncf %414 : vector<24x64xf32> to vector<24x64xbf16>
    %cst_307 = arith.constant dense<0.000000e+00> : vector<24x128xf32>
    %418 = tpu.matmul %417, %416, %cst_307 {dimension_numbers = #tpu.dot_dimension_numbers<[1], [0], [0], [1], [0, 0, 1, 1], [], []>} : vector<24x64xbf16>, vector<64x128xbf16>, vector<24x128xf32> -> vector<24x128xf32>
    %419 = arith.addf %413, %418 : vector<24x128xf32>
    %c8_308 = arith.constant 8 : index
    %c0_309 = arith.constant 0 : index
    %420 = vector.load %arg18[%c8_308, %c0_309] : memref<42x64xf32, #tpu.memory_space<vmem>>, vector<24x64xf32>
    %c5_310 = arith.constant 5 : index
    %c0_311 = arith.constant 0 : index
    %c0_312 = arith.constant 0 : index
    %421 = vector.load %arg5[%c5_310, %c0_311, %c0_312] : memref<9x64x128xbf16, #tpu.memory_space<vmem>>, vector<1x64x128xbf16>
    %422 = vector.shape_cast %421 : vector<1x64x128xbf16> to vector<64x128xbf16>
    %423 = arith.truncf %420 : vector<24x64xf32> to vector<24x64xbf16>
    %cst_313 = arith.constant dense<0.000000e+00> : vector<24x128xf32>
    %424 = tpu.matmul %423, %422, %cst_313 {dimension_numbers = #tpu.dot_dimension_numbers<[1], [0], [0], [1], [0, 0, 1, 1], [], []>} : vector<24x64xbf16>, vector<64x128xbf16>, vector<24x128xf32> -> vector<24x128xf32>
    %425 = arith.addf %419, %424 : vector<24x128xf32>
    %c12_314 = arith.constant 12 : index
    %c0_315 = arith.constant 0 : index
    %426 = vector.load %arg18[%c12_314, %c0_315] : memref<42x64xf32, #tpu.memory_space<vmem>>, vector<24x64xf32>
    %c6_316 = arith.constant 6 : index
    %c0_317 = arith.constant 0 : index
    %c0_318 = arith.constant 0 : index
    %427 = vector.load %arg5[%c6_316, %c0_317, %c0_318] : memref<9x64x128xbf16, #tpu.memory_space<vmem>>, vector<1x64x128xbf16>
    %428 = vector.shape_cast %427 : vector<1x64x128xbf16> to vector<64x128xbf16>
    %429 = arith.truncf %426 : vector<24x64xf32> to vector<24x64xbf16>
    %cst_319 = arith.constant dense<0.000000e+00> : vector<24x128xf32>
    %430 = tpu.matmul %429, %428, %cst_319 {dimension_numbers = #tpu.dot_dimension_numbers<[1], [0], [0], [1], [0, 0, 1, 1], [], []>} : vector<24x64xbf16>, vector<64x128xbf16>, vector<24x128xf32> -> vector<24x128xf32>
    %431 = arith.addf %425, %430 : vector<24x128xf32>
    %c13_320 = arith.constant 13 : index
    %c0_321 = arith.constant 0 : index
    %432 = vector.load %arg18[%c13_320, %c0_321] : memref<42x64xf32, #tpu.memory_space<vmem>>, vector<24x64xf32>
    %c7_322 = arith.constant 7 : index
    %c0_323 = arith.constant 0 : index
    %c0_324 = arith.constant 0 : index
    %433 = vector.load %arg5[%c7_322, %c0_323, %c0_324] : memref<9x64x128xbf16, #tpu.memory_space<vmem>>, vector<1x64x128xbf16>
    %434 = vector.shape_cast %433 : vector<1x64x128xbf16> to vector<64x128xbf16>
    %435 = arith.truncf %432 : vector<24x64xf32> to vector<24x64xbf16>
    %cst_325 = arith.constant dense<0.000000e+00> : vector<24x128xf32>
    %436 = tpu.matmul %435, %434, %cst_325 {dimension_numbers = #tpu.dot_dimension_numbers<[1], [0], [0], [1], [0, 0, 1, 1], [], []>} : vector<24x64xbf16>, vector<64x128xbf16>, vector<24x128xf32> -> vector<24x128xf32>
    %437 = arith.addf %431, %436 : vector<24x128xf32>
    %c14_326 = arith.constant 14 : index
    %c0_327 = arith.constant 0 : index
    %438 = vector.load %arg18[%c14_326, %c0_327] : memref<42x64xf32, #tpu.memory_space<vmem>>, vector<24x64xf32>
    %c8_328 = arith.constant 8 : index
    %c0_329 = arith.constant 0 : index
    %c0_330 = arith.constant 0 : index
    %439 = vector.load %arg5[%c8_328, %c0_329, %c0_330] : memref<9x64x128xbf16, #tpu.memory_space<vmem>>, vector<1x64x128xbf16>
    %440 = vector.shape_cast %439 : vector<1x64x128xbf16> to vector<64x128xbf16>
    %441 = arith.truncf %438 : vector<24x64xf32> to vector<24x64xbf16>
    %cst_331 = arith.constant dense<0.000000e+00> : vector<24x128xf32>
    %442 = tpu.matmul %441, %440, %cst_331 {dimension_numbers = #tpu.dot_dimension_numbers<[1], [0], [0], [1], [0, 0, 1, 1], [], []>} : vector<24x64xbf16>, vector<64x128xbf16>, vector<24x128xf32> -> vector<24x128xf32>
    %443 = arith.addf %437, %442 : vector<24x128xf32>
    %444 = vector.extract_strided_slice %443 {offsets = [0, 0], sizes = [4, 128], strides = [1, 1]} : vector<24x128xf32> to vector<4x128xf32>
    %cst_332 = arith.constant 0.000000e+00 : f32
    %445 = vector.broadcast %cst_332 : f32 to vector<4x128xf32>
    %446 = arith.cmpf oge, %444, %445 : vector<4x128xf32>
    %cst_333 = arith.constant 2.000000e-01 : f32
    %447 = vector.broadcast %cst_333 : f32 to vector<4x128xf32>
    %448 = arith.mulf %447, %444 : vector<4x128xf32>
    %449 = arith.select %446, %444, %448 : vector<4x128xi1>, vector<4x128xf32>
    %c7_334 = arith.constant 7 : index
    %c0_335 = arith.constant 0 : index
    %450 = vector.load %arg19[%c7_334, %c0_335] : memref<42x128xf32, #tpu.memory_space<vmem>>, vector<4x128xf32>
    tpu.vector_store %arg19[%c7_334, %c0_335], %449 {strides = array<i32>} : memref<42x128xf32, #tpu.memory_space<vmem>>, vector<4x128xf32>,
    %451 = vector.extract_strided_slice %443 {offsets = [6, 0], sizes = [4, 128], strides = [1, 1]} : vector<24x128xf32> to vector<4x128xf32>
    %cst_336 = arith.constant 0.000000e+00 : f32
    %452 = vector.broadcast %cst_336 : f32 to vector<4x128xf32>
    %453 = arith.cmpf oge, %451, %452 : vector<4x128xf32>
    %cst_337 = arith.constant 2.000000e-01 : f32
    %454 = vector.broadcast %cst_337 : f32 to vector<4x128xf32>
    %455 = arith.mulf %454, %451 : vector<4x128xf32>
    %456 = arith.select %453, %451, %455 : vector<4x128xi1>, vector<4x128xf32>
    %c13_338 = arith.constant 13 : index
    %c0_339 = arith.constant 0 : index
    %457 = vector.load %arg19[%c13_338, %c0_339] : memref<42x128xf32, #tpu.memory_space<vmem>>, vector<4x128xf32>
    tpu.vector_store %arg19[%c13_338, %c0_339], %456 {strides = array<i32>} : memref<42x128xf32, #tpu.memory_space<vmem>>, vector<4x128xf32>,
    %458 = vector.extract_strided_slice %443 {offsets = [12, 0], sizes = [4, 128], strides = [1, 1]} : vector<24x128xf32> to vector<4x128xf32>
    %cst_340 = arith.constant 0.000000e+00 : f32
    %459 = vector.broadcast %cst_340 : f32 to vector<4x128xf32>
    %460 = arith.cmpf oge, %458, %459 : vector<4x128xf32>
    %cst_341 = arith.constant 2.000000e-01 : f32
    %461 = vector.broadcast %cst_341 : f32 to vector<4x128xf32>
    %462 = arith.mulf %461, %458 : vector<4x128xf32>
    %463 = arith.select %460, %458, %462 : vector<4x128xi1>, vector<4x128xf32>
    %c19_342 = arith.constant 19 : index
    %c0_343 = arith.constant 0 : index
    %464 = vector.load %arg19[%c19_342, %c0_343] : memref<42x128xf32, #tpu.memory_space<vmem>>, vector<4x128xf32>
    tpu.vector_store %arg19[%c19_342, %c0_343], %463 {strides = array<i32>} : memref<42x128xf32, #tpu.memory_space<vmem>>, vector<4x128xf32>,
    %465 = vector.extract_strided_slice %443 {offsets = [18, 0], sizes = [4, 128], strides = [1, 1]} : vector<24x128xf32> to vector<4x128xf32>
    %cst_344 = arith.constant 0.000000e+00 : f32
    %466 = vector.broadcast %cst_344 : f32 to vector<4x128xf32>
    %467 = arith.cmpf oge, %465, %466 : vector<4x128xf32>
    %cst_345 = arith.constant 2.000000e-01 : f32
    %468 = vector.broadcast %cst_345 : f32 to vector<4x128xf32>
    %469 = arith.mulf %468, %465 : vector<4x128xf32>
    %470 = arith.select %467, %465, %469 : vector<4x128xi1>, vector<4x128xf32>
    %c25_346 = arith.constant 25 : index
    %c0_347 = arith.constant 0 : index
    %471 = vector.load %arg19[%c25_346, %c0_347] : memref<42x128xf32, #tpu.memory_space<vmem>>, vector<4x128xf32>
    tpu.vector_store %arg19[%c25_346, %c0_347], %470 {strides = array<i32>} : memref<42x128xf32, #tpu.memory_space<vmem>>, vector<4x128xf32>,
    %cst_348 = arith.constant 0.000000e+00 : f32
    %472 = vector.broadcast %cst_348 : f32 to vector<36x128xf32>
    %c0_349 = arith.constant 0 : index
    %c0_350 = arith.constant 0 : index
    %473 = vector.load %arg19[%c0_349, %c0_350] : memref<42x128xf32, #tpu.memory_space<vmem>>, vector<36x128xf32>
    %c0_351 = arith.constant 0 : index
    %c0_352 = arith.constant 0 : index
    %c0_353 = arith.constant 0 : index
    %474 = vector.load %arg6[%c0_351, %c0_352, %c0_353] : memref<2x128x128xbf16, #tpu.memory_space<vmem>>, vector<1x128x128xbf16>
    %475 = vector.shape_cast %474 : vector<1x128x128xbf16> to vector<128x128xbf16>
    %476 = arith.truncf %473 : vector<36x128xf32> to vector<36x128xbf16>
    %cst_354 = arith.constant dense<0.000000e+00> : vector<36x128xf32>
    %477 = tpu.matmul %476, %475, %cst_354 {dimension_numbers = #tpu.dot_dimension_numbers<[1], [0], [0], [1], [0, 0, 1, 1], [], []>} : vector<36x128xbf16>, vector<128x128xbf16>, vector<36x128xf32> -> vector<36x128xf32>
    %478 = arith.addf %472, %477 : vector<36x128xf32>
    %c1_355 = arith.constant 1 : index
    %c0_356 = arith.constant 0 : index
    %479 = vector.load %arg19[%c1_355, %c0_356] : memref<42x128xf32, #tpu.memory_space<vmem>>, vector<36x128xf32>
    %c1_357 = arith.constant 1 : index
    %c0_358 = arith.constant 0 : index
    %c0_359 = arith.constant 0 : index
    %480 = vector.load %arg6[%c1_357, %c0_358, %c0_359] : memref<2x128x128xbf16, #tpu.memory_space<vmem>>, vector<1x128x128xbf16>
    %481 = vector.shape_cast %480 : vector<1x128x128xbf16> to vector<128x128xbf16>
    %482 = arith.truncf %479 : vector<36x128xf32> to vector<36x128xbf16>
    %cst_360 = arith.constant dense<0.000000e+00> : vector<36x128xf32>
    %483 = tpu.matmul %482, %481, %cst_360 {dimension_numbers = #tpu.dot_dimension_numbers<[1], [0], [0], [1], [0, 0, 1, 1], [], []>} : vector<36x128xbf16>, vector<128x128xbf16>, vector<36x128xf32> -> vector<36x128xf32>
    %484 = arith.addf %478, %483 : vector<36x128xf32>
    %485 = vector.extract_strided_slice %484 {offsets = [0, 0], sizes = [5, 128], strides = [1, 1]} : vector<36x128xf32> to vector<5x128xf32>
    %cst_361 = arith.constant 0.000000e+00 : f32
    %486 = vector.broadcast %cst_361 : f32 to vector<5x128xf32>
    %487 = arith.cmpf oge, %485, %486 : vector<5x128xf32>
    %cst_362 = arith.constant 2.000000e-01 : f32
    %488 = vector.broadcast %cst_362 : f32 to vector<5x128xf32>
    %489 = arith.mulf %488, %485 : vector<5x128xf32>
    %490 = arith.select %487, %485, %489 : vector<5x128xi1>, vector<5x128xf32>
    %c8_363 = arith.constant 8 : index
    %c0_364 = arith.constant 0 : index
    %491 = vector.load %arg20[%c8_363, %c0_364] : memref<63x128xf32, #tpu.memory_space<vmem>>, vector<5x128xf32>
    tpu.vector_store %arg20[%c8_363, %c0_364], %490 {strides = array<i32>} : memref<63x128xf32, #tpu.memory_space<vmem>>, vector<5x128xf32>,
    %492 = vector.extract_strided_slice %484 {offsets = [6, 0], sizes = [5, 128], strides = [1, 1]} : vector<36x128xf32> to vector<5x128xf32>
    %cst_365 = arith.constant 0.000000e+00 : f32
    %493 = vector.broadcast %cst_365 : f32 to vector<5x128xf32>
    %494 = arith.cmpf oge, %492, %493 : vector<5x128xf32>
    %cst_366 = arith.constant 2.000000e-01 : f32
    %495 = vector.broadcast %cst_366 : f32 to vector<5x128xf32>
    %496 = arith.mulf %495, %492 : vector<5x128xf32>
    %497 = arith.select %494, %492, %496 : vector<5x128xi1>, vector<5x128xf32>
    %c15_367 = arith.constant 15 : index
    %c0_368 = arith.constant 0 : index
    %498 = vector.load %arg20[%c15_367, %c0_368] : memref<63x128xf32, #tpu.memory_space<vmem>>, vector<5x128xf32>
    tpu.vector_store %arg20[%c15_367, %c0_368], %497 {strides = array<i32>} : memref<63x128xf32, #tpu.memory_space<vmem>>, vector<5x128xf32>,
    %499 = vector.extract_strided_slice %484 {offsets = [12, 0], sizes = [5, 128], strides = [1, 1]} : vector<36x128xf32> to vector<5x128xf32>
    %cst_369 = arith.constant 0.000000e+00 : f32
    %500 = vector.broadcast %cst_369 : f32 to vector<5x128xf32>
    %501 = arith.cmpf oge, %499, %500 : vector<5x128xf32>
    %cst_370 = arith.constant 2.000000e-01 : f32
    %502 = vector.broadcast %cst_370 : f32 to vector<5x128xf32>
    %503 = arith.mulf %502, %499 : vector<5x128xf32>
    %504 = arith.select %501, %499, %503 : vector<5x128xi1>, vector<5x128xf32>
    %c22_371 = arith.constant 22 : index
    %c0_372 = arith.constant 0 : index
    %505 = vector.load %arg20[%c22_371, %c0_372] : memref<63x128xf32, #tpu.memory_space<vmem>>, vector<5x128xf32>
    tpu.vector_store %arg20[%c22_371, %c0_372], %504 {strides = array<i32>} : memref<63x128xf32, #tpu.memory_space<vmem>>, vector<5x128xf32>,
    %506 = vector.extract_strided_slice %484 {offsets = [18, 0], sizes = [5, 128], strides = [1, 1]} : vector<36x128xf32> to vector<5x128xf32>
    %cst_373 = arith.constant 0.000000e+00 : f32
    %507 = vector.broadcast %cst_373 : f32 to vector<5x128xf32>
    %508 = arith.cmpf oge, %506, %507 : vector<5x128xf32>
    %cst_374 = arith.constant 2.000000e-01 : f32
    %509 = vector.broadcast %cst_374 : f32 to vector<5x128xf32>
    %510 = arith.mulf %509, %506 : vector<5x128xf32>
    %511 = arith.select %508, %506, %510 : vector<5x128xi1>, vector<5x128xf32>
    %c29 = arith.constant 29 : index
    %c0_375 = arith.constant 0 : index
    %512 = vector.load %arg20[%c29, %c0_375] : memref<63x128xf32, #tpu.memory_space<vmem>>, vector<5x128xf32>
    tpu.vector_store %arg20[%c29, %c0_375], %511 {strides = array<i32>} : memref<63x128xf32, #tpu.memory_space<vmem>>, vector<5x128xf32>,
    %513 = vector.extract_strided_slice %484 {offsets = [24, 0], sizes = [5, 128], strides = [1, 1]} : vector<36x128xf32> to vector<5x128xf32>
    %cst_376 = arith.constant 0.000000e+00 : f32
    %514 = vector.broadcast %cst_376 : f32 to vector<5x128xf32>
    %515 = arith.cmpf oge, %513, %514 : vector<5x128xf32>
    %cst_377 = arith.constant 2.000000e-01 : f32
    %516 = vector.broadcast %cst_377 : f32 to vector<5x128xf32>
    %517 = arith.mulf %516, %513 : vector<5x128xf32>
    %518 = arith.select %515, %513, %517 : vector<5x128xi1>, vector<5x128xf32>
    %c36 = arith.constant 36 : index
    %c0_378 = arith.constant 0 : index
    %519 = vector.load %arg20[%c36, %c0_378] : memref<63x128xf32, #tpu.memory_space<vmem>>, vector<5x128xf32>
    tpu.vector_store %arg20[%c36, %c0_378], %518 {strides = array<i32>} : memref<63x128xf32, #tpu.memory_space<vmem>>, vector<5x128xf32>,
    %520 = vector.extract_strided_slice %484 {offsets = [30, 0], sizes = [5, 128], strides = [1, 1]} : vector<36x128xf32> to vector<5x128xf32>
    %cst_379 = arith.constant 0.000000e+00 : f32
    %521 = vector.broadcast %cst_379 : f32 to vector<5x128xf32>
    %522 = arith.cmpf oge, %520, %521 : vector<5x128xf32>
    %cst_380 = arith.constant 2.000000e-01 : f32
    %523 = vector.broadcast %cst_380 : f32 to vector<5x128xf32>
    %524 = arith.mulf %523, %520 : vector<5x128xf32>
    %525 = arith.select %522, %520, %524 : vector<5x128xi1>, vector<5x128xf32>
    %c43 = arith.constant 43 : index
    %c0_381 = arith.constant 0 : index
    %526 = vector.load %arg20[%c43, %c0_381] : memref<63x128xf32, #tpu.memory_space<vmem>>, vector<5x128xf32>
    tpu.vector_store %arg20[%c43, %c0_381], %525 {strides = array<i32>} : memref<63x128xf32, #tpu.memory_space<vmem>>, vector<5x128xf32>,
    %cst_382 = arith.constant 0.000000e+00 : f32
    %527 = vector.broadcast %cst_382 : f32 to vector<42x128xf32>
    %c0_383 = arith.constant 0 : index
    %c0_384 = arith.constant 0 : index
    %528 = vector.load %arg20[%c0_383, %c0_384] : memref<63x128xf32, #tpu.memory_space<vmem>>, vector<42x128xf32>
    %c0_385 = arith.constant 0 : index
    %c0_386 = arith.constant 0 : index
    %c0_387 = arith.constant 0 : index
    %529 = vector.load %arg7[%c0_385, %c0_386, %c0_387] : memref<9x128x128xbf16, #tpu.memory_space<vmem>>, vector<1x128x128xbf16>
    %530 = vector.shape_cast %529 : vector<1x128x128xbf16> to vector<128x128xbf16>
    %531 = arith.truncf %528 : vector<42x128xf32> to vector<42x128xbf16>
    %cst_388 = arith.constant dense<0.000000e+00> : vector<42x128xf32>
    %532 = tpu.matmul %531, %530, %cst_388 {dimension_numbers = #tpu.dot_dimension_numbers<[1], [0], [0], [1], [0, 0, 1, 1], [], []>} : vector<42x128xbf16>, vector<128x128xbf16>, vector<42x128xf32> -> vector<42x128xf32>
    %533 = arith.addf %527, %532 : vector<42x128xf32>
    %c1_389 = arith.constant 1 : index
    %c0_390 = arith.constant 0 : index
    %534 = vector.load %arg20[%c1_389, %c0_390] : memref<63x128xf32, #tpu.memory_space<vmem>>, vector<42x128xf32>
    %c1_391 = arith.constant 1 : index
    %c0_392 = arith.constant 0 : index
    %c0_393 = arith.constant 0 : index
    %535 = vector.load %arg7[%c1_391, %c0_392, %c0_393] : memref<9x128x128xbf16, #tpu.memory_space<vmem>>, vector<1x128x128xbf16>
    %536 = vector.shape_cast %535 : vector<1x128x128xbf16> to vector<128x128xbf16>
    %537 = arith.truncf %534 : vector<42x128xf32> to vector<42x128xbf16>
    %cst_394 = arith.constant dense<0.000000e+00> : vector<42x128xf32>
    %538 = tpu.matmul %537, %536, %cst_394 {dimension_numbers = #tpu.dot_dimension_numbers<[1], [0], [0], [1], [0, 0, 1, 1], [], []>} : vector<42x128xbf16>, vector<128x128xbf16>, vector<42x128xf32> -> vector<42x128xf32>
    %539 = arith.addf %533, %538 : vector<42x128xf32>
    %c2_395 = arith.constant 2 : index
    %c0_396 = arith.constant 0 : index
    %540 = vector.load %arg20[%c2_395, %c0_396] : memref<63x128xf32, #tpu.memory_space<vmem>>, vector<42x128xf32>
    %c2_397 = arith.constant 2 : index
    %c0_398 = arith.constant 0 : index
    %c0_399 = arith.constant 0 : index
    %541 = vector.load %arg7[%c2_397, %c0_398, %c0_399] : memref<9x128x128xbf16, #tpu.memory_space<vmem>>, vector<1x128x128xbf16>
    %542 = vector.shape_cast %541 : vector<1x128x128xbf16> to vector<128x128xbf16>
    %543 = arith.truncf %540 : vector<42x128xf32> to vector<42x128xbf16>
    %cst_400 = arith.constant dense<0.000000e+00> : vector<42x128xf32>
    %544 = tpu.matmul %543, %542, %cst_400 {dimension_numbers = #tpu.dot_dimension_numbers<[1], [0], [0], [1], [0, 0, 1, 1], [], []>} : vector<42x128xbf16>, vector<128x128xbf16>, vector<42x128xf32> -> vector<42x128xf32>
    %545 = arith.addf %539, %544 : vector<42x128xf32>
    %c7_401 = arith.constant 7 : index
    %c0_402 = arith.constant 0 : index
    %546 = vector.load %arg20[%c7_401, %c0_402] : memref<63x128xf32, #tpu.memory_space<vmem>>, vector<42x128xf32>
    %c3_403 = arith.constant 3 : index
    %c0_404 = arith.constant 0 : index
    %c0_405 = arith.constant 0 : index
    %547 = vector.load %arg7[%c3_403, %c0_404, %c0_405] : memref<9x128x128xbf16, #tpu.memory_space<vmem>>, vector<1x128x128xbf16>
    %548 = vector.shape_cast %547 : vector<1x128x128xbf16> to vector<128x128xbf16>
    %549 = arith.truncf %546 : vector<42x128xf32> to vector<42x128xbf16>
    %cst_406 = arith.constant dense<0.000000e+00> : vector<42x128xf32>
    %550 = tpu.matmul %549, %548, %cst_406 {dimension_numbers = #tpu.dot_dimension_numbers<[1], [0], [0], [1], [0, 0, 1, 1], [], []>} : vector<42x128xbf16>, vector<128x128xbf16>, vector<42x128xf32> -> vector<42x128xf32>
    %551 = arith.addf %545, %550 : vector<42x128xf32>
    %c8_407 = arith.constant 8 : index
    %c0_408 = arith.constant 0 : index
    %552 = vector.load %arg20[%c8_407, %c0_408] : memref<63x128xf32, #tpu.memory_space<vmem>>, vector<42x128xf32>
    %c4_409 = arith.constant 4 : index
    %c0_410 = arith.constant 0 : index
    %c0_411 = arith.constant 0 : index
    %553 = vector.load %arg7[%c4_409, %c0_410, %c0_411] : memref<9x128x128xbf16, #tpu.memory_space<vmem>>, vector<1x128x128xbf16>
    %554 = vector.shape_cast %553 : vector<1x128x128xbf16> to vector<128x128xbf16>
    %555 = arith.truncf %552 : vector<42x128xf32> to vector<42x128xbf16>
    %cst_412 = arith.constant dense<0.000000e+00> : vector<42x128xf32>
    %556 = tpu.matmul %555, %554, %cst_412 {dimension_numbers = #tpu.dot_dimension_numbers<[1], [0], [0], [1], [0, 0, 1, 1], [], []>} : vector<42x128xbf16>, vector<128x128xbf16>, vector<42x128xf32> -> vector<42x128xf32>
    %557 = arith.addf %551, %556 : vector<42x128xf32>
    %c9_413 = arith.constant 9 : index
    %c0_414 = arith.constant 0 : index
    %558 = vector.load %arg20[%c9_413, %c0_414] : memref<63x128xf32, #tpu.memory_space<vmem>>, vector<42x128xf32>
    %c5_415 = arith.constant 5 : index
    %c0_416 = arith.constant 0 : index
    %c0_417 = arith.constant 0 : index
    %559 = vector.load %arg7[%c5_415, %c0_416, %c0_417] : memref<9x128x128xbf16, #tpu.memory_space<vmem>>, vector<1x128x128xbf16>
    %560 = vector.shape_cast %559 : vector<1x128x128xbf16> to vector<128x128xbf16>
    %561 = arith.truncf %558 : vector<42x128xf32> to vector<42x128xbf16>
    %cst_418 = arith.constant dense<0.000000e+00> : vector<42x128xf32>
    %562 = tpu.matmul %561, %560, %cst_418 {dimension_numbers = #tpu.dot_dimension_numbers<[1], [0], [0], [1], [0, 0, 1, 1], [], []>} : vector<42x128xbf16>, vector<128x128xbf16>, vector<42x128xf32> -> vector<42x128xf32>
    %563 = arith.addf %557, %562 : vector<42x128xf32>
    %c14_419 = arith.constant 14 : index
    %c0_420 = arith.constant 0 : index
    %564 = vector.load %arg20[%c14_419, %c0_420] : memref<63x128xf32, #tpu.memory_space<vmem>>, vector<42x128xf32>
    %c6_421 = arith.constant 6 : index
    %c0_422 = arith.constant 0 : index
    %c0_423 = arith.constant 0 : index
    %565 = vector.load %arg7[%c6_421, %c0_422, %c0_423] : memref<9x128x128xbf16, #tpu.memory_space<vmem>>, vector<1x128x128xbf16>
    %566 = vector.shape_cast %565 : vector<1x128x128xbf16> to vector<128x128xbf16>
    %567 = arith.truncf %564 : vector<42x128xf32> to vector<42x128xbf16>
    %cst_424 = arith.constant dense<0.000000e+00> : vector<42x128xf32>
    %568 = tpu.matmul %567, %566, %cst_424 {dimension_numbers = #tpu.dot_dimension_numbers<[1], [0], [0], [1], [0, 0, 1, 1], [], []>} : vector<42x128xbf16>, vector<128x128xbf16>, vector<42x128xf32> -> vector<42x128xf32>
    %569 = arith.addf %563, %568 : vector<42x128xf32>
    %c15_425 = arith.constant 15 : index
    %c0_426 = arith.constant 0 : index
    %570 = vector.load %arg20[%c15_425, %c0_426] : memref<63x128xf32, #tpu.memory_space<vmem>>, vector<42x128xf32>
    %c7_427 = arith.constant 7 : index
    %c0_428 = arith.constant 0 : index
    %c0_429 = arith.constant 0 : index
    %571 = vector.load %arg7[%c7_427, %c0_428, %c0_429] : memref<9x128x128xbf16, #tpu.memory_space<vmem>>, vector<1x128x128xbf16>
    %572 = vector.shape_cast %571 : vector<1x128x128xbf16> to vector<128x128xbf16>
    %573 = arith.truncf %570 : vector<42x128xf32> to vector<42x128xbf16>
    %cst_430 = arith.constant dense<0.000000e+00> : vector<42x128xf32>
    %574 = tpu.matmul %573, %572, %cst_430 {dimension_numbers = #tpu.dot_dimension_numbers<[1], [0], [0], [1], [0, 0, 1, 1], [], []>} : vector<42x128xbf16>, vector<128x128xbf16>, vector<42x128xf32> -> vector<42x128xf32>
    %575 = arith.addf %569, %574 : vector<42x128xf32>
    %c16_431 = arith.constant 16 : index
    %c0_432 = arith.constant 0 : index
    %576 = vector.load %arg20[%c16_431, %c0_432] : memref<63x128xf32, #tpu.memory_space<vmem>>, vector<42x128xf32>
    %c8_433 = arith.constant 8 : index
    %c0_434 = arith.constant 0 : index
    %c0_435 = arith.constant 0 : index
    %577 = vector.load %arg7[%c8_433, %c0_434, %c0_435] : memref<9x128x128xbf16, #tpu.memory_space<vmem>>, vector<1x128x128xbf16>
    %578 = vector.shape_cast %577 : vector<1x128x128xbf16> to vector<128x128xbf16>
    %579 = arith.truncf %576 : vector<42x128xf32> to vector<42x128xbf16>
    %cst_436 = arith.constant dense<0.000000e+00> : vector<42x128xf32>
    %580 = tpu.matmul %579, %578, %cst_436 {dimension_numbers = #tpu.dot_dimension_numbers<[1], [0], [0], [1], [0, 0, 1, 1], [], []>} : vector<42x128xbf16>, vector<128x128xbf16>, vector<42x128xf32> -> vector<42x128xf32>
    %581 = arith.addf %575, %580 : vector<42x128xf32>
    %582 = vector.extract_strided_slice %581 {offsets = [0, 0], sizes = [5, 128], strides = [1, 1]} : vector<42x128xf32> to vector<5x128xf32>
    %cst_437 = arith.constant 0.000000e+00 : f32
    %583 = vector.broadcast %cst_437 : f32 to vector<5x128xf32>
    %584 = arith.cmpf oge, %582, %583 : vector<5x128xf32>
    %cst_438 = arith.constant 2.000000e-01 : f32
    %585 = vector.broadcast %cst_438 : f32 to vector<5x128xf32>
    %586 = arith.mulf %585, %582 : vector<5x128xf32>
    %587 = arith.select %584, %582, %586 : vector<5x128xi1>, vector<5x128xf32>
    %588 = vector.extract_strided_slice %587 {offsets = [0, 0], sizes = [1, 128], strides = [1, 1]} : vector<5x128xf32> to vector<1x128xf32>
    %c0_439 = arith.constant 0 : index
    %c0_440 = arith.constant 0 : index
    %589 = vector.load %arg21[%c0_439, %c0_440] : memref<12x128xf32, #tpu.memory_space<vmem>>, vector<1x128xf32>
    tpu.vector_store %arg21[%c0_439, %c0_440], %588 {strides = array<i32>} : memref<12x128xf32, #tpu.memory_space<vmem>>, vector<1x128xf32>,
    %590 = vector.extract_strided_slice %587 {offsets = [2, 0], sizes = [1, 128], strides = [1, 1]} : vector<5x128xf32> to vector<1x128xf32>
    %c1_441 = arith.constant 1 : index
    %c0_442 = arith.constant 0 : index
    %591 = vector.load %arg21[%c1_441, %c0_442] : memref<12x128xf32, #tpu.memory_space<vmem>>, vector<1x128xf32>
    tpu.vector_store %arg21[%c1_441, %c0_442], %590 {strides = array<i32>} : memref<12x128xf32, #tpu.memory_space<vmem>>, vector<1x128xf32>,
    %592 = vector.extract_strided_slice %587 {offsets = [4, 0], sizes = [1, 128], strides = [1, 1]} : vector<5x128xf32> to vector<1x128xf32>
    %c2_443 = arith.constant 2 : index
    %c0_444 = arith.constant 0 : index
    %593 = vector.load %arg21[%c2_443, %c0_444] : memref<12x128xf32, #tpu.memory_space<vmem>>, vector<1x128xf32>
    tpu.vector_store %arg21[%c2_443, %c0_444], %592 {strides = array<i32>} : memref<12x128xf32, #tpu.memory_space<vmem>>, vector<1x128xf32>,
    %594 = vector.extract_strided_slice %581 {offsets = [14, 0], sizes = [5, 128], strides = [1, 1]} : vector<42x128xf32> to vector<5x128xf32>
    %cst_445 = arith.constant 0.000000e+00 : f32
    %595 = vector.broadcast %cst_445 : f32 to vector<5x128xf32>
    %596 = arith.cmpf oge, %594, %595 : vector<5x128xf32>
    %cst_446 = arith.constant 2.000000e-01 : f32
    %597 = vector.broadcast %cst_446 : f32 to vector<5x128xf32>
    %598 = arith.mulf %597, %594 : vector<5x128xf32>
    %599 = arith.select %596, %594, %598 : vector<5x128xi1>, vector<5x128xf32>
    %600 = vector.extract_strided_slice %599 {offsets = [0, 0], sizes = [1, 128], strides = [1, 1]} : vector<5x128xf32> to vector<1x128xf32>
    %c3_447 = arith.constant 3 : index
    %c0_448 = arith.constant 0 : index
    %601 = vector.load %arg21[%c3_447, %c0_448] : memref<12x128xf32, #tpu.memory_space<vmem>>, vector<1x128xf32>
    tpu.vector_store %arg21[%c3_447, %c0_448], %600 {strides = array<i32>} : memref<12x128xf32, #tpu.memory_space<vmem>>, vector<1x128xf32>,
    %602 = vector.extract_strided_slice %599 {offsets = [2, 0], sizes = [1, 128], strides = [1, 1]} : vector<5x128xf32> to vector<1x128xf32>
    %c4_449 = arith.constant 4 : index
    %c0_450 = arith.constant 0 : index
    %603 = vector.load %arg21[%c4_449, %c0_450] : memref<12x128xf32, #tpu.memory_space<vmem>>, vector<1x128xf32>
    tpu.vector_store %arg21[%c4_449, %c0_450], %602 {strides = array<i32>} : memref<12x128xf32, #tpu.memory_space<vmem>>, vector<1x128xf32>,
    %604 = vector.extract_strided_slice %599 {offsets = [4, 0], sizes = [1, 128], strides = [1, 1]} : vector<5x128xf32> to vector<1x128xf32>
    %c5_451 = arith.constant 5 : index
    %c0_452 = arith.constant 0 : index
    %605 = vector.load %arg21[%c5_451, %c0_452] : memref<12x128xf32, #tpu.memory_space<vmem>>, vector<1x128xf32>
    tpu.vector_store %arg21[%c5_451, %c0_452], %604 {strides = array<i32>} : memref<12x128xf32, #tpu.memory_space<vmem>>, vector<1x128xf32>,
    %606 = vector.extract_strided_slice %581 {offsets = [28, 0], sizes = [5, 128], strides = [1, 1]} : vector<42x128xf32> to vector<5x128xf32>
    %cst_453 = arith.constant 0.000000e+00 : f32
    %607 = vector.broadcast %cst_453 : f32 to vector<5x128xf32>
    %608 = arith.cmpf oge, %606, %607 : vector<5x128xf32>
    %cst_454 = arith.constant 2.000000e-01 : f32
    %609 = vector.broadcast %cst_454 : f32 to vector<5x128xf32>
    %610 = arith.mulf %609, %606 : vector<5x128xf32>
    %611 = arith.select %608, %606, %610 : vector<5x128xi1>, vector<5x128xf32>
    %612 = vector.extract_strided_slice %611 {offsets = [0, 0], sizes = [1, 128], strides = [1, 1]} : vector<5x128xf32> to vector<1x128xf32>
    %c6_455 = arith.constant 6 : index
    %c0_456 = arith.constant 0 : index
    %613 = vector.load %arg21[%c6_455, %c0_456] : memref<12x128xf32, #tpu.memory_space<vmem>>, vector<1x128xf32>
    tpu.vector_store %arg21[%c6_455, %c0_456], %612 {strides = array<i32>} : memref<12x128xf32, #tpu.memory_space<vmem>>, vector<1x128xf32>,
    %614 = vector.extract_strided_slice %611 {offsets = [2, 0], sizes = [1, 128], strides = [1, 1]} : vector<5x128xf32> to vector<1x128xf32>
    %c7_457 = arith.constant 7 : index
    %c0_458 = arith.constant 0 : index
    %615 = vector.load %arg21[%c7_457, %c0_458] : memref<12x128xf32, #tpu.memory_space<vmem>>, vector<1x128xf32>
    tpu.vector_store %arg21[%c7_457, %c0_458], %614 {strides = array<i32>} : memref<12x128xf32, #tpu.memory_space<vmem>>, vector<1x128xf32>,
    %616 = vector.extract_strided_slice %611 {offsets = [4, 0], sizes = [1, 128], strides = [1, 1]} : vector<5x128xf32> to vector<1x128xf32>
    %c8_459 = arith.constant 8 : index
    %c0_460 = arith.constant 0 : index
    %617 = vector.load %arg21[%c8_459, %c0_460] : memref<12x128xf32, #tpu.memory_space<vmem>>, vector<1x128xf32>
    tpu.vector_store %arg21[%c8_459, %c0_460], %616 {strides = array<i32>} : memref<12x128xf32, #tpu.memory_space<vmem>>, vector<1x128xf32>,
    %cst_461 = arith.constant 0.000000e+00 : f32
    %618 = vector.broadcast %cst_461 : f32 to vector<9x256xf32>
    %c0_462 = arith.constant 0 : index
    %c0_463 = arith.constant 0 : index
    %619 = vector.load %arg21[%c0_462, %c0_463] : memref<12x128xf32, #tpu.memory_space<vmem>>, vector<9x128xf32>
    %c0_464 = arith.constant 0 : index
    %c0_465 = arith.constant 0 : index
    %c0_466 = arith.constant 0 : index
    %620 = vector.load %arg8[%c0_464, %c0_465, %c0_466] : memref<1x128x256xbf16, #tpu.memory_space<vmem>>, vector<1x128x256xbf16>
    %621 = vector.shape_cast %620 : vector<1x128x256xbf16> to vector<128x256xbf16>
    %622 = arith.truncf %619 : vector<9x128xf32> to vector<9x128xbf16>
    %cst_467 = arith.constant dense<0.000000e+00> : vector<9x256xf32>
    %623 = tpu.matmul %622, %621, %cst_467 {dimension_numbers = #tpu.dot_dimension_numbers<[1], [0], [0], [1], [0, 0, 1, 1], [], []>} : vector<9x128xbf16>, vector<128x256xbf16>, vector<9x256xf32> -> vector<9x256xf32>
    %624 = arith.addf %618, %623 : vector<9x256xf32>
    %625 = vector.extract_strided_slice %624 {offsets = [0, 0], sizes = [3, 256], strides = [1, 1]} : vector<9x256xf32> to vector<3x256xf32>
    %cst_468 = arith.constant 0.000000e+00 : f32
    %626 = vector.broadcast %cst_468 : f32 to vector<3x256xf32>
    %627 = arith.cmpf oge, %625, %626 : vector<3x256xf32>
    %cst_469 = arith.constant 2.000000e-01 : f32
    %628 = vector.broadcast %cst_469 : f32 to vector<3x256xf32>
    %629 = arith.mulf %628, %625 : vector<3x256xf32>
    %630 = arith.select %627, %625, %629 : vector<3x256xi1>, vector<3x256xf32>
    %c0_470 = arith.constant 0 : index
    %c0_471 = arith.constant 0 : index
    %631 = vector.load %arg22[%c0_470, %c0_471] : memref<12x256xf32, #tpu.memory_space<vmem>>, vector<3x256xf32>
    tpu.vector_store %arg22[%c0_470, %c0_471], %630 {strides = array<i32>} : memref<12x256xf32, #tpu.memory_space<vmem>>, vector<3x256xf32>,
    %632 = vector.extract_strided_slice %624 {offsets = [3, 0], sizes = [3, 256], strides = [1, 1]} : vector<9x256xf32> to vector<3x256xf32>
    %cst_472 = arith.constant 0.000000e+00 : f32
    %633 = vector.broadcast %cst_472 : f32 to vector<3x256xf32>
    %634 = arith.cmpf oge, %632, %633 : vector<3x256xf32>
    %cst_473 = arith.constant 2.000000e-01 : f32
    %635 = vector.broadcast %cst_473 : f32 to vector<3x256xf32>
    %636 = arith.mulf %635, %632 : vector<3x256xf32>
    %637 = arith.select %634, %632, %636 : vector<3x256xi1>, vector<3x256xf32>
    %c3_474 = arith.constant 3 : index
    %c0_475 = arith.constant 0 : index
    %638 = vector.load %arg22[%c3_474, %c0_475] : memref<12x256xf32, #tpu.memory_space<vmem>>, vector<3x256xf32>
    tpu.vector_store %arg22[%c3_474, %c0_475], %637 {strides = array<i32>} : memref<12x256xf32, #tpu.memory_space<vmem>>, vector<3x256xf32>,
    %639 = vector.extract_strided_slice %624 {offsets = [6, 0], sizes = [3, 256], strides = [1, 1]} : vector<9x256xf32> to vector<3x256xf32>
    %cst_476 = arith.constant 0.000000e+00 : f32
    %640 = vector.broadcast %cst_476 : f32 to vector<3x256xf32>
    %641 = arith.cmpf oge, %639, %640 : vector<3x256xf32>
    %cst_477 = arith.constant 2.000000e-01 : f32
    %642 = vector.broadcast %cst_477 : f32 to vector<3x256xf32>
    %643 = arith.mulf %642, %639 : vector<3x256xf32>
    %644 = arith.select %641, %639, %643 : vector<3x256xi1>, vector<3x256xf32>
    %c6_478 = arith.constant 6 : index
    %c0_479 = arith.constant 0 : index
    %645 = vector.load %arg22[%c6_478, %c0_479] : memref<12x256xf32, #tpu.memory_space<vmem>>, vector<3x256xf32>
    tpu.vector_store %arg22[%c6_478, %c0_479], %644 {strides = array<i32>} : memref<12x256xf32, #tpu.memory_space<vmem>>, vector<3x256xf32>,
    %cst_480 = arith.constant 0.000000e+00 : f32
    %646 = vector.broadcast %cst_480 : f32 to vector<9x256xf32>
    %c0_481 = arith.constant 0 : index
    %c0_482 = arith.constant 0 : index
    %647 = vector.load %arg22[%c0_481, %c0_482] : memref<12x256xf32, #tpu.memory_space<vmem>>, vector<9x256xf32>
    %c0_483 = arith.constant 0 : index
    %c0_484 = arith.constant 0 : index
    %c0_485 = arith.constant 0 : index
    %648 = vector.load %arg9[%c0_483, %c0_484, %c0_485] : memref<1x256x256xbf16, #tpu.memory_space<vmem>>, vector<1x256x256xbf16>
    %649 = vector.shape_cast %648 : vector<1x256x256xbf16> to vector<256x256xbf16>
    %650 = arith.truncf %647 : vector<9x256xf32> to vector<9x256xbf16>
    %cst_486 = arith.constant dense<0.000000e+00> : vector<9x256xf32>
    %651 = tpu.matmul %650, %649, %cst_486 {dimension_numbers = #tpu.dot_dimension_numbers<[1], [0], [0], [1], [0, 0, 1, 1], [], []>} : vector<9x256xbf16>, vector<256x256xbf16>, vector<9x256xf32> -> vector<9x256xf32>
    %652 = arith.addf %646, %651 : vector<9x256xf32>
    %653 = vector.extract_strided_slice %652 {offsets = [0, 0], sizes = [3, 256], strides = [1, 1]} : vector<9x256xf32> to vector<3x256xf32>
    %cst_487 = arith.constant 0.000000e+00 : f32
    %654 = vector.broadcast %cst_487 : f32 to vector<3x256xf32>
    %655 = arith.cmpf oge, %653, %654 : vector<3x256xf32>
    %cst_488 = arith.constant 2.000000e-01 : f32
    %656 = vector.broadcast %cst_488 : f32 to vector<3x256xf32>
    %657 = arith.mulf %656, %653 : vector<3x256xf32>
    %658 = arith.select %655, %653, %657 : vector<3x256xi1>, vector<3x256xf32>
    %c0_489 = arith.constant 0 : index
    %c0_490 = arith.constant 0 : index
    %659 = vector.load %arg23[%c0_489, %c0_490] : memref<12x256xf32, #tpu.memory_space<vmem>>, vector<3x256xf32>
    tpu.vector_store %arg23[%c0_489, %c0_490], %658 {strides = array<i32>} : memref<12x256xf32, #tpu.memory_space<vmem>>, vector<3x256xf32>,
    %660 = vector.extract_strided_slice %652 {offsets = [3, 0], sizes = [3, 256], strides = [1, 1]} : vector<9x256xf32> to vector<3x256xf32>
    %cst_491 = arith.constant 0.000000e+00 : f32
    %661 = vector.broadcast %cst_491 : f32 to vector<3x256xf32>
    %662 = arith.cmpf oge, %660, %661 : vector<3x256xf32>
    %cst_492 = arith.constant 2.000000e-01 : f32
    %663 = vector.broadcast %cst_492 : f32 to vector<3x256xf32>
    %664 = arith.mulf %663, %660 : vector<3x256xf32>
    %665 = arith.select %662, %660, %664 : vector<3x256xi1>, vector<3x256xf32>
    %c3_493 = arith.constant 3 : index
    %c0_494 = arith.constant 0 : index
    %666 = vector.load %arg23[%c3_493, %c0_494] : memref<12x256xf32, #tpu.memory_space<vmem>>, vector<3x256xf32>
    tpu.vector_store %arg23[%c3_493, %c0_494], %665 {strides = array<i32>} : memref<12x256xf32, #tpu.memory_space<vmem>>, vector<3x256xf32>,
    %667 = vector.extract_strided_slice %652 {offsets = [6, 0], sizes = [3, 256], strides = [1, 1]} : vector<9x256xf32> to vector<3x256xf32>
    %cst_495 = arith.constant 0.000000e+00 : f32
    %668 = vector.broadcast %cst_495 : f32 to vector<3x256xf32>
    %669 = arith.cmpf oge, %667, %668 : vector<3x256xf32>
    %cst_496 = arith.constant 2.000000e-01 : f32
    %670 = vector.broadcast %cst_496 : f32 to vector<3x256xf32>
    %671 = arith.mulf %670, %667 : vector<3x256xf32>
    %672 = arith.select %669, %667, %671 : vector<3x256xi1>, vector<3x256xf32>
    %c6_497 = arith.constant 6 : index
    %c0_498 = arith.constant 0 : index
    %673 = vector.load %arg23[%c6_497, %c0_498] : memref<12x256xf32, #tpu.memory_space<vmem>>, vector<3x256xf32>
    tpu.vector_store %arg23[%c6_497, %c0_498], %672 {strides = array<i32>} : memref<12x256xf32, #tpu.memory_space<vmem>>, vector<3x256xf32>,
    %cst_499 = arith.constant 0.000000e+00 : f32
    %674 = vector.broadcast %cst_499 : f32 to vector<9x256xf32>
    %c0_500 = arith.constant 0 : index
    %c0_501 = arith.constant 0 : index
    %675 = vector.load %arg23[%c0_500, %c0_501] : memref<12x256xf32, #tpu.memory_space<vmem>>, vector<9x256xf32>
    %c0_502 = arith.constant 0 : index
    %c0_503 = arith.constant 0 : index
    %c0_504 = arith.constant 0 : index
    %676 = vector.load %arg10[%c0_502, %c0_503, %c0_504] : memref<1x256x256xbf16, #tpu.memory_space<vmem>>, vector<1x256x256xbf16>
    %677 = vector.shape_cast %676 : vector<1x256x256xbf16> to vector<256x256xbf16>
    %678 = arith.truncf %675 : vector<9x256xf32> to vector<9x256xbf16>
    %cst_505 = arith.constant dense<0.000000e+00> : vector<9x256xf32>
    %679 = tpu.matmul %678, %677, %cst_505 {dimension_numbers = #tpu.dot_dimension_numbers<[1], [0], [0], [1], [0, 0, 1, 1], [], []>} : vector<9x256xbf16>, vector<256x256xbf16>, vector<9x256xf32> -> vector<9x256xf32>
    %680 = arith.addf %674, %679 : vector<9x256xf32>
    %681 = vector.extract_strided_slice %680 {offsets = [0, 0], sizes = [3, 256], strides = [1, 1]} : vector<9x256xf32> to vector<3x256xf32>
    %cst_506 = arith.constant 0.000000e+00 : f32
    %682 = vector.broadcast %cst_506 : f32 to vector<3x256xf32>
    %683 = arith.cmpf oge, %681, %682 : vector<3x256xf32>
    %cst_507 = arith.constant 2.000000e-01 : f32
    %684 = vector.broadcast %cst_507 : f32 to vector<3x256xf32>
    %685 = arith.mulf %684, %681 : vector<3x256xf32>
    %686 = arith.select %683, %681, %685 : vector<3x256xi1>, vector<3x256xf32>
    %c0_508 = arith.constant 0 : index
    %c0_509 = arith.constant 0 : index
    %687 = vector.load %arg24[%c0_508, %c0_509] : memref<9x256xf32, #tpu.memory_space<vmem>>, vector<3x256xf32>
    tpu.vector_store %arg24[%c0_508, %c0_509], %686 {strides = array<i32>} : memref<9x256xf32, #tpu.memory_space<vmem>>, vector<3x256xf32>,
    %688 = vector.extract_strided_slice %680 {offsets = [3, 0], sizes = [3, 256], strides = [1, 1]} : vector<9x256xf32> to vector<3x256xf32>
    %cst_510 = arith.constant 0.000000e+00 : f32
    %689 = vector.broadcast %cst_510 : f32 to vector<3x256xf32>
    %690 = arith.cmpf oge, %688, %689 : vector<3x256xf32>
    %cst_511 = arith.constant 2.000000e-01 : f32
    %691 = vector.broadcast %cst_511 : f32 to vector<3x256xf32>
    %692 = arith.mulf %691, %688 : vector<3x256xf32>
    %693 = arith.select %690, %688, %692 : vector<3x256xi1>, vector<3x256xf32>
    %c3_512 = arith.constant 3 : index
    %c0_513 = arith.constant 0 : index
    %694 = vector.load %arg24[%c3_512, %c0_513] : memref<9x256xf32, #tpu.memory_space<vmem>>, vector<3x256xf32>
    tpu.vector_store %arg24[%c3_512, %c0_513], %693 {strides = array<i32>} : memref<9x256xf32, #tpu.memory_space<vmem>>, vector<3x256xf32>,
    %695 = vector.extract_strided_slice %680 {offsets = [6, 0], sizes = [3, 256], strides = [1, 1]} : vector<9x256xf32> to vector<3x256xf32>
    %cst_514 = arith.constant 0.000000e+00 : f32
    %696 = vector.broadcast %cst_514 : f32 to vector<3x256xf32>
    %697 = arith.cmpf oge, %695, %696 : vector<3x256xf32>
    %cst_515 = arith.constant 2.000000e-01 : f32
    %698 = vector.broadcast %cst_515 : f32 to vector<3x256xf32>
    %699 = arith.mulf %698, %695 : vector<3x256xf32>
    %700 = arith.select %697, %695, %699 : vector<3x256xi1>, vector<3x256xf32>
    %c6_516 = arith.constant 6 : index
    %c0_517 = arith.constant 0 : index
    %701 = vector.load %arg24[%c6_516, %c0_517] : memref<9x256xf32, #tpu.memory_space<vmem>>, vector<3x256xf32>
    tpu.vector_store %arg24[%c6_516, %c0_517], %700 {strides = array<i32>} : memref<9x256xf32, #tpu.memory_space<vmem>>, vector<3x256xf32>,
    %c0_518 = arith.constant 0 : index
    %c0_519 = arith.constant 0 : index
    %702 = vector.load %arg24[%c0_518, %c0_519] : memref<9x256xf32, #tpu.memory_space<vmem>>, vector<1x256xf32>
    %c1_520 = arith.constant 1 : index
    %c0_521 = arith.constant 0 : index
    %703 = vector.load %arg24[%c1_520, %c0_521] : memref<9x256xf32, #tpu.memory_space<vmem>>, vector<1x256xf32>
    %704 = arith.addf %702, %703 : vector<1x256xf32>
    %c3_522 = arith.constant 3 : index
    %c0_523 = arith.constant 0 : index
    %705 = vector.load %arg24[%c3_522, %c0_523] : memref<9x256xf32, #tpu.memory_space<vmem>>, vector<1x256xf32>
    %706 = arith.addf %704, %705 : vector<1x256xf32>
    %c4_524 = arith.constant 4 : index
    %c0_525 = arith.constant 0 : index
    %707 = vector.load %arg24[%c4_524, %c0_525] : memref<9x256xf32, #tpu.memory_space<vmem>>, vector<1x256xf32>
    %708 = arith.addf %706, %707 : vector<1x256xf32>
    %cst_526 = arith.constant 2.500000e-01 : f32
    %709 = vector.broadcast %cst_526 : f32 to vector<1x256xf32>
    %710 = arith.mulf %708, %709 : vector<1x256xf32>
    %711 = vector.shape_cast %710 : vector<1x256xf32> to vector<1x1x256xf32>
    %c0_527 = arith.constant 0 : index
    %c0_528 = arith.constant 0 : index
    %c0_529 = arith.constant 0 : index
    %712 = vector.load %arg14[%c0_527, %c0_528, %c0_529] : memref<1x1x256xf32, #tpu.memory_space<vmem>>, vector<1x1x256xf32>
    tpu.vector_store %arg14[%c0_527, %c0_528, %c0_529], %711 {strides = array<i32>} : memref<1x1x256xf32, #tpu.memory_space<vmem>>, vector<1x1x256xf32>,
    %713 = arith.truncf %710 : vector<1x256xf32> to vector<1x256xbf16>
    %c0_530 = arith.constant 0 : index
    %c0_531 = arith.constant 0 : index
    %714 = vector.load %arg11[%c0_530, %c0_531] : memref<256x2xbf16, #tpu.memory_space<vmem>>, vector<256x2xbf16>
    %cst_532 = arith.constant dense<0.000000e+00> : vector<1x2xf32>
    %715 = tpu.matmul %713, %714, %cst_532 {dimension_numbers = #tpu.dot_dimension_numbers<[1], [0], [0], [1], [0, 0, 1, 1], [], []>} : vector<1x256xbf16>, vector<256x2xbf16>, vector<1x2xf32> -> vector<1x2xf32>
    %c0_533 = arith.constant 0 : index
    %c0_534 = arith.constant 0 : index
    %716 = vector.load %arg12[%c0_533, %c0_534] : memref<1x2xf32, #tpu.memory_space<vmem>>, vector<1x2xf32>
    %717 = arith.addf %715, %716 : vector<1x2xf32>
    %718 = vector.shape_cast %717 : vector<1x2xf32> to vector<1x1x2xf32>
    %c0_535 = arith.constant 0 : index
    %c0_536 = arith.constant 0 : index
    %c0_537 = arith.constant 0 : index
    %719 = vector.load %arg13[%c0_535, %c0_536, %c0_537] : memref<1x1x2xf32, #tpu.memory_space<vmem>>, vector<1x1x2xf32>
    tpu.vector_store %arg13[%c0_535, %c0_536, %c0_537], %718 {strides = array<i32>} : memref<1x1x2xf32, #tpu.memory_space<vmem>>, vector<1x1x2xf32>,
    return
  }
  func.func @transform_0(%arg0: i32) -> (i32, i32, i32) {
    %c0_i32 = arith.constant 0 : i32
    %c0_i32_0 = arith.constant 0 : i32
    %c0_i32_1 = arith.constant 0 : i32
    return %arg0, %c0_i32, %c0_i32_0 : i32, i32, i32
  }
  func.func @transform_1(%arg0: i32) -> (i32, i32, i32) {
    %c0_i32 = arith.constant 0 : i32
    %c0_i32_0 = arith.constant 0 : i32
    %c0_i32_1 = arith.constant 0 : i32
    %c0_i32_2 = arith.constant 0 : i32
    return %c0_i32, %c0_i32_0, %c0_i32_1 : i32, i32, i32
  }
  func.func @transform_2(%arg0: i32) -> (i32, i32, i32) {
    %c0_i32 = arith.constant 0 : i32
    %c0_i32_0 = arith.constant 0 : i32
    %c0_i32_1 = arith.constant 0 : i32
    %c0_i32_2 = arith.constant 0 : i32
    return %c0_i32, %c0_i32_0, %c0_i32_1 : i32, i32, i32
  }
  func.func @transform_3(%arg0: i32) -> (i32, i32, i32) {
    %c0_i32 = arith.constant 0 : i32
    %c0_i32_0 = arith.constant 0 : i32
    %c0_i32_1 = arith.constant 0 : i32
    %c0_i32_2 = arith.constant 0 : i32
    return %c0_i32, %c0_i32_0, %c0_i32_1 : i32, i32, i32
  }
  func.func @transform_4(%arg0: i32) -> (i32, i32, i32) {
    %c0_i32 = arith.constant 0 : i32
    %c0_i32_0 = arith.constant 0 : i32
    %c0_i32_1 = arith.constant 0 : i32
    %c0_i32_2 = arith.constant 0 : i32
    return %c0_i32, %c0_i32_0, %c0_i32_1 : i32, i32, i32
  }
  func.func @transform_5(%arg0: i32) -> (i32, i32, i32) {
    %c0_i32 = arith.constant 0 : i32
    %c0_i32_0 = arith.constant 0 : i32
    %c0_i32_1 = arith.constant 0 : i32
    %c0_i32_2 = arith.constant 0 : i32
    return %c0_i32, %c0_i32_0, %c0_i32_1 : i32, i32, i32
  }
  func.func @transform_6(%arg0: i32) -> (i32, i32, i32) {
    %c0_i32 = arith.constant 0 : i32
    %c0_i32_0 = arith.constant 0 : i32
    %c0_i32_1 = arith.constant 0 : i32
    %c0_i32_2 = arith.constant 0 : i32
    return %c0_i32, %c0_i32_0, %c0_i32_1 : i32, i32, i32
  }
  func.func @transform_7(%arg0: i32) -> (i32, i32, i32) {
    %c0_i32 = arith.constant 0 : i32
    %c0_i32_0 = arith.constant 0 : i32
    %c0_i32_1 = arith.constant 0 : i32
    %c0_i32_2 = arith.constant 0 : i32
    return %c0_i32, %c0_i32_0, %c0_i32_1 : i32, i32, i32
  }
  func.func @transform_8(%arg0: i32) -> (i32, i32, i32) {
    %c0_i32 = arith.constant 0 : i32
    %c0_i32_0 = arith.constant 0 : i32
    %c0_i32_1 = arith.constant 0 : i32
    %c0_i32_2 = arith.constant 0 : i32
    return %c0_i32, %c0_i32_0, %c0_i32_1 : i32, i32, i32
  }
  func.func @transform_9(%arg0: i32) -> (i32, i32, i32) {
    %c0_i32 = arith.constant 0 : i32
    %c0_i32_0 = arith.constant 0 : i32
    %c0_i32_1 = arith.constant 0 : i32
    %c0_i32_2 = arith.constant 0 : i32
    return %c0_i32, %c0_i32_0, %c0_i32_1 : i32, i32, i32
  }
  func.func @transform_10(%arg0: i32) -> (i32, i32) {
    %c0_i32 = arith.constant 0 : i32
    %c0_i32_0 = arith.constant 0 : i32
    %c0_i32_1 = arith.constant 0 : i32
    return %c0_i32, %c0_i32_0 : i32, i32
  }
  func.func @transform_11(%arg0: i32) -> (i32, i32) {
    %c0_i32 = arith.constant 0 : i32
    %c0_i32_0 = arith.constant 0 : i32
    %c0_i32_1 = arith.constant 0 : i32
    return %c0_i32, %c0_i32_0 : i32, i32
  }
  func.func @transform_12(%arg0: i32) -> (i32, i32, i32) {
    %c0_i32 = arith.constant 0 : i32
    %c0_i32_0 = arith.constant 0 : i32
    %c0_i32_1 = arith.constant 0 : i32
    return %arg0, %c0_i32, %c0_i32_0 : i32, i32, i32
  }
  func.func @transform_13(%arg0: i32) -> (i32, i32, i32) {
    %c0_i32 = arith.constant 0 : i32
    %c0_i32_0 = arith.constant 0 : i32
    %c0_i32_1 = arith.constant 0 : i32
    return %arg0, %c0_i32, %c0_i32_0 : i32, i32, i32
  }
}

</mosaic_0001>

<llo_original>
// kernel: discriminator_forward.1
$region0: #{discriminator_forward.1}
  #allocation0 [shape = 'u32[]', space=smem, size = 0x4, offset = 0x4, fixed_abs, tag = 'smem constant byte address 0x4 - core index']
  #allocation1 [shape = 'u32[144,128]{1,0:T(1,128)}', space=vmem, size = 0x12000, scoped, tag = 'internal scratch']
  #allocation2 [shape = 'f32[110,1]{1,0:T(8,128)}', space=vmem, size = 0xe000, scoped, tag = 'scratch operand']
  #allocation3 [shape = 'f32[110,64]{1,0:T(8,128)}', space=vmem, size = 0xe000, scoped, tag = 'scratch operand']
  #allocation4 [shape = 'f32[110,64]{1,0:T(8,128)}', space=vmem, size = 0xe000, scoped, tag = 'scratch operand']
  #allocation5 [shape = 'f32[42,64]{1,0:T(8,128)}', space=vmem, size = 0x6000, scoped, tag = 'scratch operand']
  #allocation6 [shape = 'f32[42,128]{1,0:T(8,128)}', space=vmem, size = 0x6000, scoped, tag = 'scratch operand']
  #allocation7 [shape = 'f32[63,128]{1,0:T(8,128)}', space=vmem, size = 0x8000, scoped, tag = 'scratch operand']
  #allocation8 [shape = 'f32[12,128]{1,0:T(8,128)}', space=vmem, size = 0x2000, scoped, tag = 'scratch operand']
  #allocation9 [shape = 'f32[12,256]{1,0:T(8,128)}', space=vmem, size = 0x4000, scoped, tag = 'scratch operand']
  #allocation10 [shape = 'f32[12,256]{1,0:T(8,128)}', space=vmem, size = 0x4000, scoped, tag = 'scratch operand']
  #allocation11 [shape = 'f32[9,256]{1,0:T(8,128)}', space=vmem, size = 0x4000, scoped, tag = 'scratch operand']
  %s0 = inlined_call_operand.vmem [shape: f32[2,64,1], index: 0, kind: input, shape index: {}]
  %s1 = inlined_call_operand.vmem [shape: bf16[9,1,64], index: 1, kind: input, shape index: {}]
  %s2 = inlined_call_operand.vmem [shape: bf16[9,64,64], index: 2, kind: input, shape index: {}]
  %s3 = inlined_call_operand.hbm [shape: bf16[9,64,64], index: 3, kind: input, shape index: {}]
  %s4 = inlined_call_operand.hbm [shape: bf16[9,64,128], index: 4, kind: input, shape index: {}]
  %s5 = inlined_call_operand.hbm [shape: bf16[2,128,128], index: 5, kind: input, shape index: {}]
  %s6 = inlined_call_operand.hbm [shape: bf16[9,128,128], index: 6, kind: input, shape index: {}]
  %s7 = inlined_call_operand.hbm [shape: bf16[1,128,256], index: 7, kind: input, shape index: {}]
  %s8 = inlined_call_operand.hbm [shape: bf16[1,256,256], index: 8, kind: input, shape index: {}]
  %s9 = inlined_call_operand.hbm [shape: bf16[1,256,256], index: 9, kind: input, shape index: {}]
  %s10 = inlined_call_operand.vmem [shape: bf16[256,2], index: 10, kind: input, shape index: {}]
  %s11 = inlined_call_operand.vmem [shape: f32[1,2], index: 11, kind: input, shape index: {}]
  %s12 = inlined_call_operand.hbm [shape: f32[2,1,2], index: 12, kind: output, shape index: {0}]
  %s13 = inlined_call_operand.vmem [shape: f32[2,1,256], index: 13, kind: output, shape index: {1}]
  %14 = xla_tuple %s12, %s13
  %s15 = sld [smem:[#allocation0]]
  $region117: #{discriminator_forward.1} parent=0
    _
  %s17 = ssub.s32 1, %s15
  %s18 = scalar_select 0, %s17, %s15
  $region1: #{discriminator_forward.1} parent=0
    #allocation12 [shape = 'u8[147456]{0}', space=vmem, size = 0x24000, scoped, tag = 'input window, operand 3, single buffered']
    #allocation13 [shape = 's32[2]{0}', space=sflag, size = 0x8, scoped, tag = 'scoped memory for discriminator_forward.1']
    #allocation14 [shape = 's32[2]{0}', space=sflag, size = 0x8, scoped, tag = 'scoped memory for discriminator_forward.1']
    #allocation15 [shape = 'u8[147456]{0}', space=vmem, size = 0x24000, scoped, tag = 'input window, operand 4, single buffered']
    #allocation16 [shape = 's32[1]{0}', space=sflag, size = 0x4, scoped, tag = 'scoped memory for discriminator_forward.1']
    #allocation17 [shape = 'u8[65536]{0}', space=vmem, size = 0x10000, scoped, tag = 'input window, operand 5, single buffered']
    #allocation18 [shape = 'u8[294912]{0}', space=vmem, size = 0x48000, scoped, tag = 'input window, operand 6, single buffered']
    #allocation19 [shape = 's32[1]{0}', space=sflag, size = 0x4, scoped, tag = 'scoped memory for discriminator_forward.1']
    #allocation20 [shape = 'u8[65536]{0}', space=vmem, size = 0x10000, scoped, tag = 'input window, operand 7, single buffered']
    #allocation21 [shape = 'u8[131072]{0}', space=vmem, size = 0x20000, scoped, tag = 'input window, operand 8, single buffered']
    #allocation22 [shape = 's32[1]{0}', space=sflag, size = 0x4, scoped, tag = 'scoped memory for discriminator_forward.1']
    #allocation23 [shape = 'u8[131072]{0}', space=vmem, size = 0x20000, scoped, tag = 'input window, operand 9, single buffered']
    #allocation24 [shape = 'u8[1024]{0}', space=vmem, size = 0x400, scoped, tag = 'output window, operand 0']
    %19 = vsyncpa [#allocation13], 0
    %20 = vsyncpa [#allocation16], 0
    %21 = vsyncpa [#allocation19], 0
    %22 = vsyncpa [#allocation22], 0
    %23 = vsyncpa [#allocation14], 0
    %s24 = scalar_lea.sflag [#allocation14], 1
    %25 = vsyncpa %s24, 0
    loop: start=0, step=1, limit=4
    $region2: #{discriminator_forward.1} parent=1 // loop_pre_header
      _
    $region3: #{discriminator_forward.1} parent=1 // loop_header
      %s27 = sphi 0, %s31
      %p28 = scmp.ge.s32.totalorder %s27, 4
      %s37 = sphi 0, %s39
      %s40 = sphi 0, %s37
      %s41 = sphi 0, %s40
      %s57 = sphi 0, %s41
      %s61 = sphi 0, %s61
      %s63 = sphi 0, %s61
      %s64 = sphi 0, %s63
      %s78 = sphi 0, %s64
      %s82 = sphi 0, %s82
      %s84 = sphi 0, %s82
      %s85 = sphi 0, %s84
      %s99 = sphi 0, %s85
      %s103 = sphi 0, %s103
      %s105 = sphi 0, %s103
      %s106 = sphi 0, %s105
      %s120 = sphi 0, %s106
      %s124 = sphi 0, %s124
      %s126 = sphi 0, %s124
      %s127 = sphi 0, %s126
      %s141 = sphi 0, %s127
      %s145 = sphi 0, %s145
      %s147 = sphi 0, %s145
      %s148 = sphi 0, %s147
      %s162 = sphi 0, %s148
      %s166 = sphi 0, %s166
      %s168 = sphi 0, %s166
      %s169 = sphi 0, %s168
      %s183 = sphi 0, %s169
      %s187 = sphi 0, %s187
      %s189 = sphi 0, %s187
      %s190 = sphi 0, %s189
      %s204 = sphi 0, %s190
      %s208 = sphi 0, %s208
      %s210 = sphi 0, %s208
      %s211 = sphi 0, %s210
      %s225 = sphi 0, %s211
      %s229 = sphi 0, %s229
      %s231 = sphi 0, %s229
      %s232 = sphi 0, %s231
      %s246 = sphi 0, %s232
      %s250 = sphi 0, %s250
      %s252 = sphi 0, %s250
      %s253 = sphi 0, %s252
      %s267 = sphi 0, %s253
      %s271 = sphi 0, %s271
      %s273 = sphi 0, %s271
      %s274 = sphi 0, %s273
      %s288 = sphi 0, %s274
      %s294 = sphi 0, %s296
      %s297 = sphi 0, %s294
      %s298 = sphi 0, %s297
      %s314 = sphi 0, %s298
      %s320 = sphi 0, %s322
      %s323 = sphi 0, %s320
      %s324 = sphi 0, %s323
      %s340 = sphi 0, %s324
    $region4: #{discriminator_forward.1} parent=1 // loop_header_branch
      %30 = sbr.rel (%p28) target = $region8
    $region5: #{discriminator_forward.1} parent=1 // loop_body
      %s32 = ssub.s32 %s27, 1
      %s33 = ssub.s32 %s27, 2
      %s34 = sadd.s32 %s27, 1
      %s35 = ssub.s32 %s27, %s34
      %p36 = scmp.eq.s32.totalorder %s35, 0
      %s38 = sadd.s32 %s37, 1
      %s39 = scalar_select %p36, %s37, %s38
      %p42 = pneg %p36
      %p43 = scmp.eq.s32.totalorder %s27, 1
      %p44 = por %p42, %p43
      %p45 = scmp.ne.s32.totalorder %s37, %s40
      %p46 = scmp.eq.s32.totalorder %s27, 0
      %p47 = por %p45, %p46
      %p48 = scmp.ne.s32.totalorder %s37, %s40
      %p49 = scmp.eq.s32.totalorder %s32, 1
      %p50 = por %p48, %p49
      %p51 = scmp.ne.s32.totalorder %s40, %s41
      %p52 = scmp.eq.s32.totalorder %s32, 0
      %p53 = por %p51, %p52
      %p54 = scmp.ne.s32.totalorder %s40, %s41
      %p55 = scmp.eq.s32.totalorder %s33, 1
      %p56 = por %p54, %p55
      %p58 = scmp.ne.s32.totalorder %s41, %s57
      %p59 = scmp.eq.s32.totalorder %s33, 0
      %p60 = por %p58, %p59
      %s62 = sadd.s32 %s61, 1
      %p65 = scmp.eq.s32.totalorder %s27, 1
      %p66 = scmp.ne.s32.totalorder %s61, %s63
      %p67 = scmp.eq.s32.totalorder %s27, 0
      %p68 = por %p66, %p67
      %p69 = scmp.ne.s32.totalorder %s61, %s63
      %p70 = scmp.eq.s32.totalorder %s32, 1
      %p71 = por %p69, %p70
      %p72 = scmp.ne.s32.totalorder %s63, %s64
      %p73 = scmp.eq.s32.totalorder %s32, 0
      %p74 = por %p72, %p73
      %p75 = scmp.ne.s32.totalorder %s63, %s64
      %p76 = scmp.eq.s32.totalorder %s33, 1
      %p77 = por %p75, %p76
      %p79 = scmp.ne.s32.totalorder %s64, %s78
      %p80 = scmp.eq.s32.totalorder %s33, 0
      %p81 = por %p79, %p80
      %s83 = sadd.s32 %s82, 1
      %p86 = scmp.eq.s32.totalorder %s27, 1
      %p87 = scmp.ne.s32.totalorder %s82, %s84
      %p88 = scmp.eq.s32.totalorder %s27, 0
      %p89 = por %p87, %p88
      %p90 = scmp.ne.s32.totalorder %s82, %s84
      %p91 = scmp.eq.s32.totalorder %s32, 1
      %p92 = por %p90, %p91
      %p93 = scmp.ne.s32.totalorder %s84, %s85
      %p94 = scmp.eq.s32.totalorder %s32, 0
      %p95 = por %p93, %p94
      %p96 = scmp.ne.s32.totalorder %s84, %s85
      %p97 = scmp.eq.s32.totalorder %s33, 1
      %p98 = por %p96, %p97
      %p100 = scmp.ne.s32.totalorder %s85, %s99
      %p101 = scmp.eq.s32.totalorder %s33, 0
      %p102 = por %p100, %p101
      %s104 = sadd.s32 %s103, 1
      %p107 = scmp.eq.s32.totalorder %s27, 1
      %p108 = scmp.ne.s32.totalorder %s103, %s105
      %p109 = scmp.eq.s32.totalorder %s27, 0
      %p110 = por %p108, %p109
      %p111 = scmp.ne.s32.totalorder %s103, %s105
      %p112 = scmp.eq.s32.totalorder %s32, 1
      %p113 = por %p111, %p112
      %p114 = scmp.ne.s32.totalorder %s105, %s106
      %p115 = scmp.eq.s32.totalorder %s32, 0
      %p116 = por %p114, %p115
      %p117 = scmp.ne.s32.totalorder %s105, %s106
      %p118 = scmp.eq.s32.totalorder %s33, 1
      %p119 = por %p117, %p118
      %p121 = scmp.ne.s32.totalorder %s106, %s120
      %p122 = scmp.eq.s32.totalorder %s33, 0
      %p123 = por %p121, %p122
      %s125 = sadd.s32 %s124, 1
      %p128 = scmp.eq.s32.totalorder %s27, 1
      %p129 = scmp.ne.s32.totalorder %s124, %s126
      %p130 = scmp.eq.s32.totalorder %s27, 0
      %p131 = por %p129, %p130
      %p132 = scmp.ne.s32.totalorder %s124, %s126
      %p133 = scmp.eq.s32.totalorder %s32, 1
      %p134 = por %p132, %p133
      %p135 = scmp.ne.s32.totalorder %s126, %s127
      %p136 = scmp.eq.s32.totalorder %s32, 0
      %p137 = por %p135, %p136
      %p138 = scmp.ne.s32.totalorder %s126, %s127
      %p139 = scmp.eq.s32.totalorder %s33, 1
      %p140 = por %p138, %p139
      %p142 = scmp.ne.s32.totalorder %s127, %s141
      %p143 = scmp.eq.s32.totalorder %s33, 0
      %p144 = por %p142, %p143
      %s146 = sadd.s32 %s145, 1
      %p149 = scmp.eq.s32.totalorder %s27, 1
      %p150 = scmp.ne.s32.totalorder %s145, %s147
      %p151 = scmp.eq.s32.totalorder %s27, 0
      %p152 = por %p150, %p151
      %p153 = scmp.ne.s32.totalorder %s145, %s147
      %p154 = scmp.eq.s32.totalorder %s32, 1
      %p155 = por %p153, %p154
      %p156 = scmp.ne.s32.totalorder %s147, %s148
      %p157 = scmp.eq.s32.totalorder %s32, 0
      %p158 = por %p156, %p157
      %p159 = scmp.ne.s32.totalorder %s147, %s148
      %p160 = scmp.eq.s32.totalorder %s33, 1
      %p161 = por %p159, %p160
      %p163 = scmp.ne.s32.totalorder %s148, %s162
      %p164 = scmp.eq.s32.totalorder %s33, 0
      %p165 = por %p163, %p164
      %s167 = sadd.s32 %s166, 1
      %p170 = scmp.eq.s32.totalorder %s27, 1
      %p171 = scmp.ne.s32.totalorder %s166, %s168
      %p172 = scmp.eq.s32.totalorder %s27, 0
      %p173 = por %p171, %p172
      %p174 = scmp.ne.s32.totalorder %s166, %s168
      %p175 = scmp.eq.s32.totalorder %s32, 1
      %p176 = por %p174, %p175
      %p177 = scmp.ne.s32.totalorder %s168, %s169
      %p178 = scmp.eq.s32.totalorder %s32, 0
      %p179 = por %p177, %p178
      %p180 = scmp.ne.s32.totalorder %s168, %s169
      %p181 = scmp.eq.s32.totalorder %s33, 1
      %p182 = por %p180, %p181
      %p184 = scmp.ne.s32.totalorder %s169, %s183
      %p185 = scmp.eq.s32.totalorder %s33, 0
      %p186 = por %p184, %p185
      %s188 = sadd.s32 %s187, 1
      %p191 = scmp.eq.s32.totalorder %s27, 1
      %p192 = scmp.ne.s32.totalorder %s187, %s189
      %p193 = scmp.eq.s32.totalorder %s27, 0
      %p194 = por %p192, %p193
      %p195 = scmp.ne.s32.totalorder %s187, %s189
      %p196 = scmp.eq.s32.totalorder %s32, 1
      %p197 = por %p195, %p196
      %p198 = scmp.ne.s32.totalorder %s189, %s190
      %p199 = scmp.eq.s32.totalorder %s32, 0
      %p200 = por %p198, %p199
      %p201 = scmp.ne.s32.totalorder %s189, %s190
      %p202 = scmp.eq.s32.totalorder %s33, 1
      %p203 = por %p201, %p202
      %p205 = scmp.ne.s32.totalorder %s190, %s204
      %p206 = scmp.eq.s32.totalorder %s33, 0
      %p207 = por %p205, %p206
      %s209 = sadd.s32 %s208, 1
      %p212 = scmp.eq.s32.totalorder %s27, 1
      %p213 = scmp.ne.s32.totalorder %s208, %s210
      %p214 = scmp.eq.s32.totalorder %s27, 0
      %p215 = por %p213, %p214
      %p216 = scmp.ne.s32.totalorder %s208, %s210
      %p217 = scmp.eq.s32.totalorder %s32, 1
      %p218 = por %p216, %p217
      %p219 = scmp.ne.s32.totalorder %s210, %s211
      %p220 = scmp.eq.s32.totalorder %s32, 0
      %p221 = por %p219, %p220
      %p222 = scmp.ne.s32.totalorder %s210, %s211
      %p223 = scmp.eq.s32.totalorder %s33, 1
      %p224 = por %p222, %p223
      %p226 = scmp.ne.s32.totalorder %s211, %s225
      %p227 = scmp.eq.s32.totalorder %s33, 0
      %p228 = por %p226, %p227
      %s230 = sadd.s32 %s229, 1
      %p233 = scmp.eq.s32.totalorder %s27, 1
      %p234 = scmp.ne.s32.totalorder %s229, %s231
      %p235 = scmp.eq.s32.totalorder %s27, 0
      %p236 = por %p234, %p235
      %p237 = scmp.ne.s32.totalorder %s229, %s231
      %p238 = scmp.eq.s32.totalorder %s32, 1
      %p239 = por %p237, %p238
      %p240 = scmp.ne.s32.totalorder %s231, %s232
      %p241 = scmp.eq.s32.totalorder %s32, 0
      %p242 = por %p240, %p241
      %p243 = scmp.ne.s32.totalorder %s231, %s232
      %p244 = scmp.eq.s32.totalorder %s33, 1
      %p245 = por %p243, %p244
      %p247 = scmp.ne.s32.totalorder %s232, %s246
      %p248 = scmp.eq.s32.totalorder %s33, 0
      %p249 = por %p247, %p248
      %s251 = sadd.s32 %s250, 1
      %p254 = scmp.eq.s32.totalorder %s27, 1
      %p255 = scmp.ne.s32.totalorder %s250, %s252
      %p256 = scmp.eq.s32.totalorder %s27, 0
      %p257 = por %p255, %p256
      %p258 = scmp.ne.s32.totalorder %s250, %s252
      %p259 = scmp.eq.s32.totalorder %s32, 1
      %p260 = por %p258, %p259
      %p261 = scmp.ne.s32.totalorder %s252, %s253
      %p262 = scmp.eq.s32.totalorder %s32, 0
      %p263 = por %p261, %p262
      %p264 = scmp.ne.s32.totalorder %s252, %s253
      %p265 = scmp.eq.s32.totalorder %s33, 1
      %p266 = por %p264, %p265
      %p268 = scmp.ne.s32.totalorder %s253, %s267
      %p269 = scmp.eq.s32.totalorder %s33, 0
      %p270 = por %p268, %p269
      %s272 = sadd.s32 %s271, 1
      %p275 = scmp.eq.s32.totalorder %s27, 1
      %p276 = scmp.ne.s32.totalorder %s271, %s273
      %p277 = scmp.eq.s32.totalorder %s27, 0
      %p278 = por %p276, %p277
      %p279 = scmp.ne.s32.totalorder %s271, %s273
      %p280 = scmp.eq.s32.totalorder %s32, 1
      %p281 = por %p279, %p280
      %p282 = scmp.ne.s32.totalorder %s273, %s274
      %p283 = scmp.eq.s32.totalorder %s32, 0
      %p284 = por %p282, %p283
      %p285 = scmp.ne.s32.totalorder %s273, %s274
      %p286 = scmp.eq.s32.totalorder %s33, 1
      %p287 = por %p285, %p286
      %p289 = scmp.ne.s32.totalorder %s274, %s288
      %p290 = scmp.eq.s32.totalorder %s33, 0
      %p291 = por %p289, %p290
      %s292 = ssub.s32 %s27, %s34
      %p293 = scmp.eq.s32.totalorder %s292, 0
      %s295 = sadd.s32 %s294, 1
      %s296 = scalar_select %p293, %s294, %s295
      %p299 = pneg %p293
      %p300 = scmp.eq.s32.totalorder %s27, 1
      %p301 = por %p299, %p300
      %p302 = scmp.ne.s32.totalorder %s294, %s297
      %p303 = scmp.eq.s32.totalorder %s27, 0
      %p304 = por %p302, %p303
      %p305 = scmp.ne.s32.totalorder %s294, %s297
      %p306 = scmp.eq.s32.totalorder %s32, 1
      %p307 = por %p305, %p306
      %p308 = scmp.ne.s32.totalorder %s297, %s298
      %p309 = scmp.eq.s32.totalorder %s32, 0
      %p310 = por %p308, %p309
      %p311 = scmp.ne.s32.totalorder %s297, %s298
      %p312 = scmp.eq.s32.totalorder %s33, 1
      %p313 = por %p311, %p312
      %p315 = scmp.ne.s32.totalorder %s298, %s314
      %p316 = scmp.eq.s32.totalorder %s33, 0
      %p317 = por %p315, %p316
      %s318 = ssub.s32 %s27, %s34
      %p319 = scmp.eq.s32.totalorder %s318, 0
      %s321 = sadd.s32 %s320, 1
      %s322 = scalar_select %p319, %s320, %s321
      %p325 = pneg %p319
      %p326 = scmp.eq.s32.totalorder %s27, 1
      %p327 = por %p325, %p326
      %p328 = scmp.ne.s32.totalorder %s320, %s323
      %p329 = scmp.eq.s32.totalorder %s27, 0
      %p330 = por %p328, %p329
      %p331 = scmp.ne.s32.totalorder %s320, %s323
      %p332 = scmp.eq.s32.totalorder %s32, 1
      %p333 = por %p331, %p332
      %p334 = scmp.ne.s32.totalorder %s323, %s324
      %p335 = scmp.eq.s32.totalorder %s32, 0
      %p336 = por %p334, %p335
      %p337 = scmp.ne.s32.totalorder %s323, %s324
      %p338 = scmp.eq.s32.totalorder %s33, 1
      %p339 = por %p337, %p338
      %p341 = scmp.ne.s32.totalorder %s324, %s340
      %p342 = scmp.eq.s32.totalorder %s33, 0
      %p343 = por %p341, %p342
      %p344 = scmp.le.s32.totalorder 1, %s27
      %p345 = scmp.lt.s32.totalorder %s27, 3
      %p346 = pnand %p344, %p345
      %p347 = pneg %p346
      // Predicated region
      $region9: #{discriminator_forward.1} parent=5 // pred_check
        _
      $region10: #{discriminator_forward.1} parent=5 // pred_check_branch
        %349 = sbr.rel (%p346) target = $region12
      $region11: #{discriminator_forward.1} parent=5 // pred_region
        %s350 = ssub.s32 %s27, 1
        // Predicated region
        $region13: #{discriminator_forward.1} parent=11 // pred_check
          %p351 = pneg %p74
        $region14: #{discriminator_forward.1} parent=11 // pred_check_branch
          %353 = sbr.rel (%p351) target = $region16
        $region15: #{discriminator_forward.1} parent=11 // pred_region
          _
        $region16: #{discriminator_forward.1} parent=11 // pred_fallthru
          _
        // Predicated region
        $region17: #{discriminator_forward.1} parent=11 // pred_check
          %p354 = pneg %p95
        $region18: #{discriminator_forward.1} parent=11 // pred_check_branch
          %356 = sbr.rel (%p354) target = $region20
        $region19: #{discriminator_forward.1} parent=11 // pred_region
          _
        $region20: #{discriminator_forward.1} parent=11 // pred_fallthru
          _
        // Predicated region
        $region21: #{discriminator_forward.1} parent=11 // pred_check
          %p357 = pneg %p116
        $region22: #{discriminator_forward.1} parent=11 // pred_check_branch
          %359 = sbr.rel (%p357) target = $region24
        $region23: #{discriminator_forward.1} parent=11 // pred_region
          %s361 = ssub.s32 4608, 4608
          %362 = vsyncadd [#allocation13], %s361
          %s363 = sshll.u32 [#allocation12], 4
          %s364 = int_to_ptr.vmem [resolvable:$true] %s363
          %369 = dma.hbm_to_vmem [thread:$0]  %s3, 4608, %s364, [#allocation13], 64, 64, 4
        $region24: #{discriminator_forward.1} parent=11 // pred_fallthru
          _
        // Predicated region
        $region25: #{discriminator_forward.1} parent=11 // pred_check
          %p370 = pneg %p137
        $region26: #{discriminator_forward.1} parent=11 // pred_check_branch
          %372 = sbr.rel (%p370) target = $region28
        $region27: #{discriminator_forward.1} parent=11 // pred_region
          %s374 = ssub.s32 4608, 4608
          %375 = vsyncadd [#allocation16], %s374
          %s376 = sshll.u32 [#allocation15], 4
          %s377 = int_to_ptr.vmem [resolvable:$true] %s376
          %382 = dma.hbm_to_vmem [thread:$0]  %s4, 4608, %s377, [#allocation16], 64, 64, 4
        $region28: #{discriminator_forward.1} parent=11 // pred_fallthru
          _
        // Predicated region
        $region29: #{discriminator_forward.1} parent=11 // pred_check
          %p383 = pneg %p158
        $region30: #{discriminator_forward.1} parent=11 // pred_check_branch
          %385 = sbr.rel (%p383) target = $region32
        $region31: #{discriminator_forward.1} parent=11 // pred_region
          %s387 = ssub.s32 2048, 2048
          %388 = vsyncadd [#allocation16], %s387
          %s389 = sshll.u32 [#allocation17], 4
          %s390 = int_to_ptr.vmem [resolvable:$true] %s389
          %395 = dma.hbm_to_vmem [thread:$0]  %s5, 2048, %s390, [#allocation16], 64, 64, 4
        $region32: #{discriminator_forward.1} parent=11 // pred_fallthru
          _
        // Predicated region
        $region33: #{discriminator_forward.1} parent=11 // pred_check
          %p396 = pneg %p179
        $region34: #{discriminator_forward.1} parent=11 // pred_check_branch
          %398 = sbr.rel (%p396) target = $region36
        $region35: #{discriminator_forward.1} parent=11 // pred_region
          %s400 = ssub.s32 9216, 9216
          %401 = vsyncadd [#allocation19], %s400
          %s402 = sshll.u32 [#allocation18], 4
          %s403 = int_to_ptr.vmem [resolvable:$true] %s402
          %408 = dma.hbm_to_vmem [thread:$0]  %s6, 9216, %s403, [#allocation19], 64, 64, 4
        $region36: #{discriminator_forward.1} parent=11 // pred_fallthru
          _
        // Predicated region
        $region37: #{discriminator_forward.1} parent=11 // pred_check
          %p409 = pneg %p200
        $region38: #{discriminator_forward.1} parent=11 // pred_check_branch
          %411 = sbr.rel (%p409) target = $region40
        $region39: #{discriminator_forward.1} parent=11 // pred_region
          %s413 = ssub.s32 2048, 2048
          %414 = vsyncadd [#allocation19], %s413
          %s415 = sshll.u32 [#allocation20], 4
          %s416 = int_to_ptr.vmem [resolvable:$true] %s415
          %421 = dma.hbm_to_vmem [thread:$0]  %s7, 2048, %s416, [#allocation19], 128, 128, 8
        $region40: #{discriminator_forward.1} parent=11 // pred_fallthru
          _
        // Predicated region
        $region41: #{discriminator_forward.1} parent=11 // pred_check
          %p422 = pneg %p221
        $region42: #{discriminator_forward.1} parent=11 // pred_check_branch
          %424 = sbr.rel (%p422) target = $region44
        $region43: #{discriminator_forward.1} parent=11 // pred_region
          %s426 = ssub.s32 4096, 4096
          %427 = vsyncadd [#allocation22], %s426
          %s428 = sshll.u32 [#allocation21], 4
          %s429 = int_to_ptr.vmem [resolvable:$true] %s428
          %434 = dma.hbm_to_vmem [thread:$0]  %s8, 4096, %s429, [#allocation22], 128, 128, 8
        $region44: #{discriminator_forward.1} parent=11 // pred_fallthru
          _
        // Predicated region
        $region45: #{discriminator_forward.1} parent=11 // pred_check
          %p435 = pneg %p242
        $region46: #{discriminator_forward.1} parent=11 // pred_check_branch
          %437 = sbr.rel (%p435) target = $region48
        $region47: #{discriminator_forward.1} parent=11 // pred_region
          %s439 = ssub.s32 4096, 4096
          %440 = vsyncadd [#allocation22], %s439
          %s441 = sshll.u32 [#allocation23], 4
          %s442 = int_to_ptr.vmem [resolvable:$true] %s441
          %447 = dma.hbm_to_vmem [thread:$0]  %s9, 4096, %s442, [#allocation22], 128, 128, 8
        $region48: #{discriminator_forward.1} parent=11 // pred_fallthru
          _
        // Predicated region
        $region49: #{discriminator_forward.1} parent=11 // pred_check
          %p448 = pneg %p263
        $region50: #{discriminator_forward.1} parent=11 // pred_check_branch
          %450 = sbr.rel (%p448) target = $region52
        $region51: #{discriminator_forward.1} parent=11 // pred_region
          _
        $region52: #{discriminator_forward.1} parent=11 // pred_fallthru
          _
        // Predicated region
        $region53: #{discriminator_forward.1} parent=11 // pred_check
          %p451 = pneg %p284
        $region54: #{discriminator_forward.1} parent=11 // pred_check_branch
          %453 = sbr.rel (%p451) target = $region56
        $region55: #{discriminator_forward.1} parent=11 // pred_region
          _
        $region56: #{discriminator_forward.1} parent=11 // pred_fallthru
          _
      $region12: #{discriminator_forward.1} parent=5 // pred_fallthru
        _
      %p454 = scmp.lt.s32.totalorder %s27, 2
      // Predicated region
      $region57: #{discriminator_forward.1} parent=5 // pred_check
        %p455 = pneg %p454
      $region58: #{discriminator_forward.1} parent=5 // pred_check_branch
        %457 = sbr.rel (%p455) target = $region60
      $region59: #{discriminator_forward.1} parent=5 // pred_region
        // Predicated region
        $region61: #{discriminator_forward.1} parent=59 // pred_check
          %p458 = pneg %p47
        $region62: #{discriminator_forward.1} parent=59 // pred_check_branch
          %460 = sbr.rel (%p458) target = $region64
        $region63: #{discriminator_forward.1} parent=59 // pred_region
          %p461 = scmp.lt.s32.totalorder %s27, 1
          %s462 = scalar_select %p461, %s27, 1
          %s463 = smul.addr %s462, 8
          %s464 = smul.addr %s463, 8
          %s465 = scalar_lea.vmem %s0, %s464
        $region64: #{discriminator_forward.1} parent=59 // pred_fallthru
          _
      $region60: #{discriminator_forward.1} parent=5 // pred_fallthru
        _
      %p466 = scmp.le.s32.totalorder 1, %s27
      %p467 = scmp.lt.s32.totalorder %s27, 3
      %p468 = pnand %p466, %p467
      %p469 = pneg %p468
      // Predicated region
      $region65: #{discriminator_forward.1} parent=5 // pred_check
        _
      $region66: #{discriminator_forward.1} parent=5 // pred_check_branch
        %471 = sbr.rel (%p468) target = $region68
      $region67: #{discriminator_forward.1} parent=5 // pred_region
        %s472 = ssub.s32 %s27, 1
        // Predicated region
        $region69: #{discriminator_forward.1} parent=67 // pred_check
          %p473 = pneg %p116
        $region70: #{discriminator_forward.1} parent=67 // pred_check_branch
          %475 = sbr.rel (%p473) target = $region72
        $region71: #{discriminator_forward.1} parent=67 // pred_region
          %476 = dma.done [#allocation13], 4608
        $region72: #{discriminator_forward.1} parent=67 // pred_fallthru
          _
        // Predicated region
        $region73: #{discriminator_forward.1} parent=67 // pred_check
          %p477 = pneg %p137
        $region74: #{discriminator_forward.1} parent=67 // pred_check_branch
          %479 = sbr.rel (%p477) target = $region76
        $region75: #{discriminator_forward.1} parent=67 // pred_region
          %480 = dma.done [#allocation16], 4608
        $region76: #{discriminator_forward.1} parent=67 // pred_fallthru
          _
        // Predicated region
        $region77: #{discriminator_forward.1} parent=67 // pred_check
          %p481 = pneg %p158
        $region78: #{discriminator_forward.1} parent=67 // pred_check_branch
          %483 = sbr.rel (%p481) target = $region80
        $region79: #{discriminator_forward.1} parent=67 // pred_region
          %484 = dma.done [#allocation16], 2048
        $region80: #{discriminator_forward.1} parent=67 // pred_fallthru
          _
        // Predicated region
        $region81: #{discriminator_forward.1} parent=67 // pred_check
          %p485 = pneg %p179
        $region82: #{discriminator_forward.1} parent=67 // pred_check_branch
          %487 = sbr.rel (%p485) target = $region84
        $region83: #{discriminator_forward.1} parent=67 // pred_region
          %488 = dma.done [#allocation19], 9216
        $region84: #{discriminator_forward.1} parent=67 // pred_fallthru
          _
        // Predicated region
        $region85: #{discriminator_forward.1} parent=67 // pred_check
          %p489 = pneg %p200
        $region86: #{discriminator_forward.1} parent=67 // pred_check_branch
          %491 = sbr.rel (%p489) target = $region88
        $region87: #{discriminator_forward.1} parent=67 // pred_region
          %492 = dma.done [#allocation19], 2048
        $region88: #{discriminator_forward.1} parent=67 // pred_fallthru
          _
        // Predicated region
        $region89: #{discriminator_forward.1} parent=67 // pred_check
          %p493 = pneg %p221
        $region90: #{discriminator_forward.1} parent=67 // pred_check_branch
          %495 = sbr.rel (%p493) target = $region92
        $region91: #{discriminator_forward.1} parent=67 // pred_region
          %496 = dma.done [#allocation22], 4096
        $region92: #{discriminator_forward.1} parent=67 // pred_fallthru
          _
        // Predicated region
        $region93: #{discriminator_forward.1} parent=67 // pred_check
          %p497 = pneg %p242
        $region94: #{discriminator_forward.1} parent=67 // pred_check_branch
          %499 = sbr.rel (%p497) target = $region96
        $region95: #{discriminator_forward.1} parent=67 // pred_region
          %500 = dma.done [#allocation22], 4096
        $region96: #{discriminator_forward.1} parent=67 // pred_fallthru
          _
        %p501 = scmp.lt.s32.totalorder %s32, 1
        %s502 = scalar_select %p501, %s32, 1
        %s503 = smul.addr %s502, 8
        %s504 = smul.addr %s503, 8
        %s505 = scalar_lea.vmem %s0, %s504
        %p506 = pneg %p53
        %p507 = pneg %p50
        %p508 = pneg %p74
        %p509 = pneg %p71
        %p510 = pneg %p95
        %p511 = pneg %p92
        %p512 = pneg %p116
        %p513 = pneg %p113
        %p514 = pneg %p137
        %p515 = pneg %p134
        %p516 = pneg %p158
        %p517 = pneg %p155
        %p518 = pneg %p179
        %p519 = pneg %p176
        %p520 = pneg %p200
        %p521 = pneg %p197
        %p522 = pneg %p221
        %p523 = pneg %p218
        %p524 = pneg %p242
        %p525 = pneg %p239
        %p526 = pneg %p263
        %p527 = pneg %p260
        %p528 = pneg %p284
        %p529 = pneg %p281
        %p530 = pneg %p310
        %p531 = pneg %p307
        %s532 = sand.u32 %s297, 1
        %s533 = scalar_lea.sflag [#allocation14], %s532
        %s534 = sand.u32 %s297, 1
        %s535 = scalar_lea.vmem [#allocation24], %s534
        %p536 = pneg %p336
        %p537 = pneg %p333
        %p538 = scmp.lt.s32.totalorder %s32, 1
        %s539 = scalar_select %p538, %s32, 1
        %s540 = smul.addr %s539, 2
        %s541 = scalar_lea.vmem %s13, %s540
        %p542 = scmp.lt.s32.totalorder %s32, 1
        %s543 = scalar_select %p542, %s32, 1
        %s544 = smul.addr %s543, 8
        %s545 = smul.addr %s544, 8
        %s546 = scalar_lea.vmem %s0, %s545
        %p547 = scmp.lt.s32.totalorder %s32, 1
        %s548 = scalar_select %p547, %s32, 1
        %s549 = smul.addr %s548, 2
        %s550 = scalar_lea.vmem %s13, %s549
        %vm552 = vcmask 7168
        %553 = vst.msk [vmem:[#allocation2] sm:$0xff] %vm552, 0.0
        %554 = vst.msk [vmem:[#allocation2 + $0x8] sm:$0xff] %vm552, 0.0
        %555 = vst.msk [vmem:[#allocation2 + $0x10] sm:$0xff] %vm552, 0.0
        %556 = vst.msk [vmem:[#allocation2 + $0x18] sm:$0xff] %vm552, 0.0
        %557 = vst.msk [vmem:[#allocation2 + $0x20] sm:$0xff] %vm552, 0.0
        %558 = vst.msk [vmem:[#allocation2 + $0x28] sm:$0xff] %vm552, 0.0
        %559 = vst.msk [vmem:[#allocation2 + $0x30] sm:$0xff] %vm552, 0.0
        %560 = vst.msk [vmem:[#allocation2 + $0x38] sm:$0xff] %vm552, 0.0
        %561 = vst.msk [vmem:[#allocation2 + $0x40] sm:$0xff] %vm552, 0.0
        %562 = vst.msk [vmem:[#allocation2 + $0x48] sm:$0xff] %vm552, 0.0
        %563 = vst.msk [vmem:[#allocation2 + $0x50] sm:$0xff] %vm552, 0.0
        %564 = vst.msk [vmem:[#allocation2 + $0x58] sm:$0xff] %vm552, 0.0
        %565 = vst.msk [vmem:[#allocation2 + $0x60] sm:$0xff] %vm552, 0.0
        %vm566 = vcmask 5120
        %567 = vst.msk [vmem:[#allocation2 + $0x68] sm:$0x3f] %vm566, 0.0
        %vm568 = vcmask 523264
        %569 = vst.msk [vmem:[#allocation3] sm:$0xff] %vm568, 0.0
        %570 = vst.msk [vmem:[#allocation3 + $0x8] sm:$0xff] %vm568, 0.0
        %571 = vst.msk [vmem:[#allocation3 + $0x10] sm:$0xff] %vm568, 0.0
        %572 = vst.msk [vmem:[#allocation3 + $0x18] sm:$0xff] %vm568, 0.0
        %573 = vst.msk [vmem:[#allocation3 + $0x20] sm:$0xff] %vm568, 0.0
        %574 = vst.msk [vmem:[#allocation3 + $0x28] sm:$0xff] %vm568, 0.0
        %575 = vst.msk [vmem:[#allocation3 + $0x30] sm:$0xff] %vm568, 0.0
        %576 = vst.msk [vmem:[#allocation3 + $0x38] sm:$0xff] %vm568, 0.0
        %577 = vst.msk [vmem:[#allocation3 + $0x40] sm:$0xff] %vm568, 0.0
        %578 = vst.msk [vmem:[#allocation3 + $0x48] sm:$0xff] %vm568, 0.0
        %579 = vst.msk [vmem:[#allocation3 + $0x50] sm:$0xff] %vm568, 0.0
        %580 = vst.msk [vmem:[#allocation3 + $0x58] sm:$0xff] %vm568, 0.0
        %581 = vst.msk [vmem:[#allocation3 + $0x60] sm:$0xff] %vm568, 0.0
        %vm582 = vcmask 521216
        %583 = vst.msk [vmem:[#allocation3 + $0x68] sm:$0x3f] %vm582, 0.0
        %584 = vst.msk [vmem:[#allocation4] sm:$0xff] %vm568, 0.0
        %585 = vst.msk [vmem:[#allocation4 + $0x8] sm:$0xff] %vm568, 0.0
        %586 = vst.msk [vmem:[#allocation4 + $0x10] sm:$0xff] %vm568, 0.0
        %587 = vst.msk [vmem:[#allocation4 + $0x18] sm:$0xff] %vm568, 0.0
        %588 = vst.msk [vmem:[#allocation4 + $0x20] sm:$0xff] %vm568, 0.0
        %589 = vst.msk [vmem:[#allocation4 + $0x28] sm:$0xff] %vm568, 0.0
        %590 = vst.msk [vmem:[#allocation4 + $0x30] sm:$0xff] %vm568, 0.0
        %591 = vst.msk [vmem:[#allocation4 + $0x38] sm:$0xff] %vm568, 0.0
        %592 = vst.msk [vmem:[#allocation4 + $0x40] sm:$0xff] %vm568, 0.0
        %593 = vst.msk [vmem:[#allocation4 + $0x48] sm:$0xff] %vm568, 0.0
        %594 = vst.msk [vmem:[#allocation4 + $0x50] sm:$0xff] %vm568, 0.0
        %595 = vst.msk [vmem:[#allocation4 + $0x58] sm:$0xff] %vm568, 0.0
        %596 = vst.msk [vmem:[#allocation4 + $0x60] sm:$0xff] %vm568, 0.0
        %597 = vst.msk [vmem:[#allocation4 + $0x68] sm:$0x3f] %vm582, 0.0
        %598 = vst.msk [vmem:[#allocation5] sm:$0xff] %vm568, 0.0
        %599 = vst.msk [vmem:[#allocation5 + $0x8] sm:$0xff] %vm568, 0.0
        %600 = vst.msk [vmem:[#allocation5 + $0x10] sm:$0xff] %vm568, 0.0
        %601 = vst.msk [vmem:[#allocation5 + $0x18] sm:$0xff] %vm568, 0.0
        %602 = vst.msk [vmem:[#allocation5 + $0x20] sm:$0xff] %vm568, 0.0
        %vm603 = vcmask 517120
        %604 = vst.msk [vmem:[#allocation5 + $0x28] sm:$0x3] %vm603, 0.0
        %605 = vst [vmem:[#allocation6] sm:$0xff] 0.0
        %606 = vst [vmem:[#allocation6 + $0x8] sm:$0xff] 0.0
        %607 = vst [vmem:[#allocation6 + $0x10] sm:$0xff] 0.0
        %608 = vst [vmem:[#allocation6 + $0x18] sm:$0xff] 0.0
        %609 = vst [vmem:[#allocation6 + $0x20] sm:$0xff] 0.0
        %610 = vst [vmem:[#allocation6 + $0x28] sm:$0x3] 0.0
        %611 = vst [vmem:[#allocation7] sm:$0xff] 0.0
        %612 = vst [vmem:[#allocation7 + $0x8] sm:$0xff] 0.0
        %613 = vst [vmem:[#allocation7 + $0x10] sm:$0xff] 0.0
        %614 = vst [vmem:[#allocation7 + $0x18] sm:$0xff] 0.0
        %615 = vst [vmem:[#allocation7 + $0x20] sm:$0xff] 0.0
        %616 = vst [vmem:[#allocation7 + $0x28] sm:$0xff] 0.0
        %617 = vst [vmem:[#allocation7 + $0x30] sm:$0xff] 0.0
        %618 = vst [vmem:[#allocation7 + $0x38] sm:$0x7f] 0.0
        %619 = vst [vmem:[#allocation8] sm:$0xff] 0.0
        %620 = vst [vmem:[#allocation8 + $0x8] sm:$0xf] 0.0
        %621 = vst [vmem:[#allocation9] sm:$0xff] 0.0
        %622 = vst [vmem:[#allocation9 + $0x8] sm:$0xff] 0.0
        %623 = vst [vmem:[#allocation9 + $0x10] sm:$0xf] 0.0
        %624 = vst [vmem:[#allocation9 + $0x18] sm:$0xf] 0.0
        %625 = vst [vmem:[#allocation10] sm:$0xff] 0.0
        %626 = vst [vmem:[#allocation10 + $0x8] sm:$0xff] 0.0
        %627 = vst [vmem:[#allocation10 + $0x10] sm:$0xf] 0.0
        %628 = vst [vmem:[#allocation10 + $0x18] sm:$0xf] 0.0
        %629 = vst [vmem:[#allocation11] sm:$0xff] 0.0
        %630 = vst [vmem:[#allocation11 + $0x8] sm:$0xff] 0.0
        %631 = vst [vmem:[#allocation11 + $0x10] sm:$0x1] 0.0
        %632 = vst [vmem:[#allocation11 + $0x18] sm:$0x1] 0.0
        %v633 = vld [vmem:[%s546] sm:$0xff]
        %v634 = vld [vmem:[%s546 + $0x8] sm:$0xff]
        %v635 = vld [vmem:[%s546 + $0x10] sm:$0xff]
        %v636 = vld [vmem:[%s546 + $0x18] sm:$0xff]
        %v637 = vld [vmem:[%s546 + $0x20] sm:$0xff]
        %v638 = vld [vmem:[%s546 + $0x28] sm:$0xff]
        %v639 = vld [vmem:[%s546 + $0x30] sm:$0xff]
        %v640 = vld [vmem:[%s546 + $0x38] sm:$0xff]
        %641 = vst.msk [vmem:[#allocation2 + $0xb] sm:$0xff] %vm552, %v633
        %642 = vst.msk [vmem:[#allocation2 + $0x15] sm:$0xff] %vm552, %v634
        %643 = vst.msk [vmem:[#allocation2 + $0x1f] sm:$0xff] %vm552, %v635
        %644 = vst.msk [vmem:[#allocation2 + $0x29] sm:$0xff] %vm552, %v636
        %645 = vst.msk [vmem:[#allocation2 + $0x33] sm:$0xff] %vm552, %v637
        %646 = vst.msk [vmem:[#allocation2 + $0x3d] sm:$0xff] %vm552, %v638
        %647 = vst.msk [vmem:[#allocation2 + $0x47] sm:$0xff] %vm552, %v639
        %648 = vst.msk [vmem:[#allocation2 + $0x51] sm:$0xff] %vm552, %v640
        %v649 = vld [vmem:[#allocation2] sm:$0xff]
        %v650 = vld [vmem:[#allocation2 + $0x8] sm:$0xff]
        %v651 = vld [vmem:[#allocation2 + $0x10] sm:$0xff]
        %v652 = vld [vmem:[#allocation2 + $0x18] sm:$0xff]
        %v653 = vld [vmem:[#allocation2 + $0x20] sm:$0xff]
        %v654 = vld [vmem:[#allocation2 + $0x28] sm:$0xff]
        %v655 = vld [vmem:[#allocation2 + $0x30] sm:$0xff]
        %v656 = vld [vmem:[#allocation2 + $0x38] sm:$0xff]
        %v657 = vld [vmem:[#allocation2 + $0x40] sm:$0xff]
        %v658 = vld [vmem:[#allocation2 + $0x48] sm:$0xff]
        %v659 = vld [vmem:[%s1] sm:$0x1]
        %v660 = vunpack.c.l.bf16 %v659
        %662 = vset.pattern.permute.xlu0 0
        %663 = vperm.xlu0 %662, %v649
        %v664 = vpop.permute.xlu0 %663
        %667 = vset.pattern.permute.xlu0 0
        %668 = vperm.xlu0 %667, %v650
        %v669 = vpop.permute.xlu0 %668
        %672 = vset.pattern.permute.xlu0 0
        %673 = vperm.xlu0 %672, %v651
        %v674 = vpop.permute.xlu0 %673
        %677 = vset.pattern.permute.xlu0 0
        %678 = vperm.xlu0 %677, %v652
        %v679 = vpop.permute.xlu0 %678
        %682 = vset.pattern.permute.xlu0 0
        %683 = vperm.xlu0 %682, %v653
        %v684 = vpop.permute.xlu0 %683
        %687 = vset.pattern.permute.xlu0 0
        %688 = vperm.xlu0 %687, %v654
        %v689 = vpop.permute.xlu0 %688
        %692 = vset.pattern.permute.xlu0 0
        %693 = vperm.xlu0 %692, %v655
        %v694 = vpop.permute.xlu0 %693
        %697 = vset.pattern.permute.xlu0 0
        %698 = vperm.xlu0 %697, %v656
        %v699 = vpop.permute.xlu0 %698
        %702 = vset.pattern.permute.xlu0 0
        %703 = vperm.xlu0 %702, %v657
        %v704 = vpop.permute.xlu0 %703
        %707 = vset.pattern.permute.xlu0 0
        %708 = vperm.xlu0 %707, %v658
        %v709 = vpop.permute.xlu0 %708
        %v711 = vlaneseq
        %v712 = vshrl.u32 %v711, 7
        %v713 = vsub.s32 0, %v712
        %v714 = vrot.slane %v660, %v713
        %v715 = vmul.f32 %v664, %v714
        %v716 = vmul.f32 %v669, %v714
        %v717 = vmul.f32 %v674, %v714
        %v718 = vmul.f32 %v679, %v714
        %v719 = vmul.f32 %v684, %v714
        %v720 = vmul.f32 %v689, %v714
        %v721 = vmul.f32 %v694, %v714
        %v722 = vmul.f32 %v699, %v714
        %v723 = vmul.f32 %v704, %v714
        %v724 = vmul.f32 %v709, %v714
        %v725 = vadd.f32 %v715, 0.0
        %v726 = vadd.f32 %v716, 0.0
        %v727 = vadd.f32 %v717, 0.0
        %v728 = vadd.f32 %v718, 0.0
        %v729 = vadd.f32 %v719, 0.0
        %v730 = vadd.f32 %v720, 0.0
        %v731 = vadd.f32 %v721, 0.0
        %v732 = vadd.f32 %v722, 0.0
        %v733 = vadd.f32 %v723, 0.0
        %v734 = vadd.f32 %v724, 0.0
        %v735 = vld [vmem:[#allocation2 + $0x1] sm:$0xff]
        %v736 = vld [vmem:[#allocation2 + $0x9] sm:$0xff]
        %v737 = vld [vmem:[#allocation2 + $0x11] sm:$0xff]
        %v738 = vld [vmem:[#allocation2 + $0x19] sm:$0xff]
        %v739 = vld [vmem:[#allocation2 + $0x21] sm:$0xff]
        %v740 = vld [vmem:[#allocation2 + $0x29] sm:$0xff]
        %v741 = vld [vmem:[#allocation2 + $0x31] sm:$0xff]
        %v742 = vld [vmem:[#allocation2 + $0x39] sm:$0xff]
        %v743 = vld [vmem:[#allocation2 + $0x41] sm:$0xff]
        %v744 = vld [vmem:[#allocation2 + $0x49] sm:$0xff]
        %s745 = scalar_lea.vmem %s1, 1
        %v746 = vld [vmem:[%s745] sm:$0x1]
        %v747 = vunpack.c.l.bf16 %v746
        %749 = vset.pattern.permute.xlu0 0
        %750 = vperm.xlu0 %749, %v735
        %v751 = vpop.permute.xlu0 %750
        %754 = vset.pattern.permute.xlu0 0
        %755 = vperm.xlu0 %754, %v736
        %v756 = vpop.permute.xlu0 %755
        %759 = vset.pattern.permute.xlu0 0
        %760 = vperm.xlu0 %759, %v737
        %v761 = vpop.permute.xlu0 %760
        %764 = vset.pattern.permute.xlu0 0
        %765 = vperm.xlu0 %764, %v738
        %v766 = vpop.permute.xlu0 %765
        %769 = vset.pattern.permute.xlu0 0
        %770 = vperm.xlu0 %769, %v739
        %v771 = vpop.permute.xlu0 %770
        %774 = vset.pattern.permute.xlu0 0
        %775 = vperm.xlu0 %774, %v740
        %v776 = vpop.permute.xlu0 %775
        %779 = vset.pattern.permute.xlu0 0
        %780 = vperm.xlu0 %779, %v741
        %v781 = vpop.permute.xlu0 %780
        %784 = vset.pattern.permute.xlu0 0
        %785 = vperm.xlu0 %784, %v742
        %v786 = vpop.permute.xlu0 %785
        %789 = vset.pattern.permute.xlu0 0
        %790 = vperm.xlu0 %789, %v743
        %v791 = vpop.permute.xlu0 %790
        %794 = vset.pattern.permute.xlu0 0
        %795 = vperm.xlu0 %794, %v744
        %v796 = vpop.permute.xlu0 %795
        %v798 = vlaneseq
        %v799 = vshrl.u32 %v798, 7
        %v800 = vsub.s32 0, %v799
        %v801 = vrot.slane %v747, %v800
        %v802 = vmul.f32 %v751, %v801
        %v803 = vmul.f32 %v756, %v801
        %v804 = vmul.f32 %v761, %v801
        %v805 = vmul.f32 %v766, %v801
        %v806 = vmul.f32 %v771, %v801
        %v807 = vmul.f32 %v776, %v801
        %v808 = vmul.f32 %v781, %v801
        %v809 = vmul.f32 %v786, %v801
        %v810 = vmul.f32 %v791, %v801
        %v811 = vmul.f32 %v796, %v801
        %v812 = vadd.f32 %v725, %v802
        %v813 = vadd.f32 %v726, %v803
        %v814 = vadd.f32 %v727, %v804
        %v815 = vadd.f32 %v728, %v805
        %v816 = vadd.f32 %v729, %v806
        %v817 = vadd.f32 %v730, %v807
        %v818 = vadd.f32 %v731, %v808
        %v819 = vadd.f32 %v732, %v809
        %v820 = vadd.f32 %v733, %v810
        %v821 = vadd.f32 %v734, %v811
        %v822 = vld [vmem:[#allocation2 + $0x2] sm:$0xff]
        %v823 = vld [vmem:[#allocation2 + $0xa] sm:$0xff]
        %v824 = vld [vmem:[#allocation2 + $0x12] sm:$0xff]
        %v825 = vld [vmem:[#allocation2 + $0x1a] sm:$0xff]
        %v826 = vld [vmem:[#allocation2 + $0x22] sm:$0xff]
        %v827 = vld [vmem:[#allocation2 + $0x2a] sm:$0xff]
        %v828 = vld [vmem:[#allocation2 + $0x32] sm:$0xff]
        %v829 = vld [vmem:[#allocation2 + $0x3a] sm:$0xff]
        %v830 = vld [vmem:[#allocation2 + $0x42] sm:$0xff]
        %v831 = vld [vmem:[#allocation2 + $0x4a] sm:$0xff]
        %s832 = scalar_lea.vmem %s1, 2
        %v833 = vld [vmem:[%s832] sm:$0x1]
        %v834 = vunpack.c.l.bf16 %v833
        %836 = vset.pattern.permute.xlu0 0
        %837 = vperm.xlu0 %836, %v822
        %v838 = vpop.permute.xlu0 %837
        %841 = vset.pattern.permute.xlu0 0
        %842 = vperm.xlu0 %841, %v823
        %v843 = vpop.permute.xlu0 %842
        %846 = vset.pattern.permute.xlu0 0
        %847 = vperm.xlu0 %846, %v824
        %v848 = vpop.permute.xlu0 %847
        %851 = vset.pattern.permute.xlu0 0
        %852 = vperm.xlu0 %851, %v825
        %v853 = vpop.permute.xlu0 %852
        %856 = vset.pattern.permute.xlu0 0
        %857 = vperm.xlu0 %856, %v826
        %v858 = vpop.permute.xlu0 %857
        %861 = vset.pattern.permute.xlu0 0
        %862 = vperm.xlu0 %861, %v827
        %v863 = vpop.permute.xlu0 %862
        %866 = vset.pattern.permute.xlu0 0
        %867 = vperm.xlu0 %866, %v828
        %v868 = vpop.permute.xlu0 %867
        %871 = vset.pattern.permute.xlu0 0
        %872 = vperm.xlu0 %871, %v829
        %v873 = vpop.permute.xlu0 %872
        %876 = vset.pattern.permute.xlu0 0
        %877 = vperm.xlu0 %876, %v830
        %v878 = vpop.permute.xlu0 %877
        %881 = vset.pattern.permute.xlu0 0
        %882 = vperm.xlu0 %881, %v831
        %v883 = vpop.permute.xlu0 %882
        %v885 = vlaneseq
        %v886 = vshrl.u32 %v885, 7
        %v887 = vsub.s32 0, %v886
        %v888 = vrot.slane %v834, %v887
        %v889 = vmul.f32 %v838, %v888
        %v890 = vmul.f32 %v843, %v888
        %v891 = vmul.f32 %v848, %v888
        %v892 = vmul.f32 %v853, %v888
        %v893 = vmul.f32 %v858, %v888
        %v894 = vmul.f32 %v863, %v888
        %v895 = vmul.f32 %v868, %v888
        %v896 = vmul.f32 %v873, %v888
        %v897 = vmul.f32 %v878, %v888
        %v898 = vmul.f32 %v883, %v888
        %v899 = vadd.f32 %v812, %v889
        %v900 = vadd.f32 %v813, %v890
        %v901 = vadd.f32 %v814, %v891
        %v902 = vadd.f32 %v815, %v892
        %v903 = vadd.f32 %v816, %v893
        %v904 = vadd.f32 %v817, %v894
        %v905 = vadd.f32 %v818, %v895
        %v906 = vadd.f32 %v819, %v896
        %v907 = vadd.f32 %v820, %v897
        %v908 = vadd.f32 %v821, %v898
        %v909 = vld [vmem:[#allocation2 + $0xa] sm:$0xff]
        %v910 = vld [vmem:[#allocation2 + $0x12] sm:$0xff]
        %v911 = vld [vmem:[#allocation2 + $0x1a] sm:$0xff]
        %v912 = vld [vmem:[#allocation2 + $0x22] sm:$0xff]
        %v913 = vld [vmem:[#allocation2 + $0x2a] sm:$0xff]
        %v914 = vld [vmem:[#allocation2 + $0x32] sm:$0xff]
        %v915 = vld [vmem:[#allocation2 + $0x3a] sm:$0xff]
        %v916 = vld [vmem:[#allocation2 + $0x42] sm:$0xff]
        %v917 = vld [vmem:[#allocation2 + $0x4a] sm:$0xff]
        %v918 = vld [vmem:[#allocation2 + $0x52] sm:$0xff]
        %s919 = scalar_lea.vmem %s1, 3
        %v920 = vld [vmem:[%s919] sm:$0x1]
        %v921 = vunpack.c.l.bf16 %v920
        %923 = vset.pattern.permute.xlu0 0
        %924 = vperm.xlu0 %923, %v909
        %v925 = vpop.permute.xlu0 %924
        %928 = vset.pattern.permute.xlu0 0
        %929 = vperm.xlu0 %928, %v910
        %v930 = vpop.permute.xlu0 %929
        %933 = vset.pattern.permute.xlu0 0
        %934 = vperm.xlu0 %933, %v911
        %v935 = vpop.permute.xlu0 %934
        %938 = vset.pattern.permute.xlu0 0
        %939 = vperm.xlu0 %938, %v912
        %v940 = vpop.permute.xlu0 %939
        %943 = vset.pattern.permute.xlu0 0
        %944 = vperm.xlu0 %943, %v913
        %v945 = vpop.permute.xlu0 %944
        %948 = vset.pattern.permute.xlu0 0
        %949 = vperm.xlu0 %948, %v914
        %v950 = vpop.permute.xlu0 %949
        %953 = vset.pattern.permute.xlu0 0
        %954 = vperm.xlu0 %953, %v915
        %v955 = vpop.permute.xlu0 %954
        %958 = vset.pattern.permute.xlu0 0
        %959 = vperm.xlu0 %958, %v916
        %v960 = vpop.permute.xlu0 %959
        %963 = vset.pattern.permute.xlu0 0
        %964 = vperm.xlu0 %963, %v917
        %v965 = vpop.permute.xlu0 %964
        %968 = vset.pattern.permute.xlu0 0
        %969 = vperm.xlu0 %968, %v918
        %v970 = vpop.permute.xlu0 %969
        %v972 = vlaneseq
        %v973 = vshrl.u32 %v972, 7
        %v974 = vsub.s32 0, %v973
        %v975 = vrot.slane %v921, %v974
        %v976 = vmul.f32 %v925, %v975
        %v977 = vmul.f32 %v930, %v975
        %v978 = vmul.f32 %v935, %v975
        %v979 = vmul.f32 %v940, %v975
        %v980 = vmul.f32 %v945, %v975
        %v981 = vmul.f32 %v950, %v975
        %v982 = vmul.f32 %v955, %v975
        %v983 = vmul.f32 %v960, %v975
        %v984 = vmul.f32 %v965, %v975
        %v985 = vmul.f32 %v970, %v975
        %v986 = vadd.f32 %v899, %v976
        %v987 = vadd.f32 %v900, %v977
        %v988 = vadd.f32 %v901, %v978
        %v989 = vadd.f32 %v902, %v979
        %v990 = vadd.f32 %v903, %v980
        %v991 = vadd.f32 %v904, %v981
        %v992 = vadd.f32 %v905, %v982
        %v993 = vadd.f32 %v906, %v983
        %v994 = vadd.f32 %v907, %v984
        %v995 = vadd.f32 %v908, %v985
        %v996 = vld [vmem:[#allocation2 + $0xb] sm:$0xff]
        %v997 = vld [vmem:[#allocation2 + $0x13] sm:$0xff]
        %v998 = vld [vmem:[#allocation2 + $0x1b] sm:$0xff]
        %v999 = vld [vmem:[#allocation2 + $0x23] sm:$0xff]
        %v1000 = vld [vmem:[#allocation2 + $0x2b] sm:$0xff]
        %v1001 = vld [vmem:[#allocation2 + $0x33] sm:$0xff]
        %v1002 = vld [vmem:[#allocation2 + $0x3b] sm:$0xff]
        %v1003 = vld [vmem:[#allocation2 + $0x43] sm:$0xff]
        %v1004 = vld [vmem:[#allocation2 + $0x4b] sm:$0xff]
        %v1005 = vld [vmem:[#allocation2 + $0x53] sm:$0xff]
        %s1006 = scalar_lea.vmem %s1, 4
        %v1007 = vld [vmem:[%s1006] sm:$0x1]
        %v1008 = vunpack.c.l.bf16 %v1007
        %1010 = vset.pattern.permute.xlu0 0
        %1011 = vperm.xlu0 %1010, %v996
        %v1012 = vpop.permute.xlu0 %1011
        %1015 = vset.pattern.permute.xlu0 0
        %1016 = vperm.xlu0 %1015, %v997
        %v1017 = vpop.permute.xlu0 %1016
        %1020 = vset.pattern.permute.xlu0 0
        %1021 = vperm.xlu0 %1020, %v998
        %v1022 = vpop.permute.xlu0 %1021
        %1025 = vset.pattern.permute.xlu0 0
        %1026 = vperm.xlu0 %1025, %v999
        %v1027 = vpop.permute.xlu0 %1026
        %1030 = vset.pattern.permute.xlu0 0
        %1031 = vperm.xlu0 %1030, %v1000
        %v1032 = vpop.permute.xlu0 %1031
        %1035 = vset.pattern.permute.xlu0 0
        %1036 = vperm.xlu0 %1035, %v1001
        %v1037 = vpop.permute.xlu0 %1036
        %1040 = vset.pattern.permute.xlu0 0
        %1041 = vperm.xlu0 %1040, %v1002
        %v1042 = vpop.permute.xlu0 %1041
        %1045 = vset.pattern.permute.xlu0 0
        %1046 = vperm.xlu0 %1045, %v1003
        %v1047 = vpop.permute.xlu0 %1046
        %1050 = vset.pattern.permute.xlu0 0
        %1051 = vperm.xlu0 %1050, %v1004
        %v1052 = vpop.permute.xlu0 %1051
        %1055 = vset.pattern.permute.xlu0 0
        %1056 = vperm.xlu0 %1055, %v1005
        %v1057 = vpop.permute.xlu0 %1056
        %v1059 = vlaneseq
        %v1060 = vshrl.u32 %v1059, 7
        %v1061 = vsub.s32 0, %v1060
        %v1062 = vrot.slane %v1008, %v1061
        %v1063 = vmul.f32 %v1012, %v1062
        %v1064 = vmul.f32 %v1017, %v1062
        %v1065 = vmul.f32 %v1022, %v1062
        %v1066 = vmul.f32 %v1027, %v1062
        %v1067 = vmul.f32 %v1032, %v1062
        %v1068 = vmul.f32 %v1037, %v1062
        %v1069 = vmul.f32 %v1042, %v1062
        %v1070 = vmul.f32 %v1047, %v1062
        %v1071 = vmul.f32 %v1052, %v1062
        %v1072 = vmul.f32 %v1057, %v1062
        %v1073 = vadd.f32 %v986, %v1063
        %v1074 = vadd.f32 %v987, %v1064
        %v1075 = vadd.f32 %v988, %v1065
        %v1076 = vadd.f32 %v989, %v1066
        %v1077 = vadd.f32 %v990, %v1067
        %v1078 = vadd.f32 %v991, %v1068
        %v1079 = vadd.f32 %v992, %v1069
        %v1080 = vadd.f32 %v993, %v1070
        %v1081 = vadd.f32 %v994, %v1071
        %v1082 = vadd.f32 %v995, %v1072
        %v1083 = vld [vmem:[#allocation2 + $0xc] sm:$0xff]
        %v1084 = vld [vmem:[#allocation2 + $0x14] sm:$0xff]
        %v1085 = vld [vmem:[#allocation2 + $0x1c] sm:$0xff]
        %v1086 = vld [vmem:[#allocation2 + $0x24] sm:$0xff]
        %v1087 = vld [vmem:[#allocation2 + $0x2c] sm:$0xff]
        %v1088 = vld [vmem:[#allocation2 + $0x34] sm:$0xff]
        %v1089 = vld [vmem:[#allocation2 + $0x3c] sm:$0xff]
        %v1090 = vld [vmem:[#allocation2 + $0x44] sm:$0xff]
        %v1091 = vld [vmem:[#allocation2 + $0x4c] sm:$0xff]
        %v1092 = vld [vmem:[#allocation2 + $0x54] sm:$0xff]
        %s1093 = scalar_lea.vmem %s1, 5
        %v1094 = vld [vmem:[%s1093] sm:$0x1]
        %v1095 = vunpack.c.l.bf16 %v1094
        %1097 = vset.pattern.permute.xlu0 0
        %1098 = vperm.xlu0 %1097, %v1083
        %v1099 = vpop.permute.xlu0 %1098
        %1102 = vset.pattern.permute.xlu0 0
        %1103 = vperm.xlu0 %1102, %v1084
        %v1104 = vpop.permute.xlu0 %1103
        %1107 = vset.pattern.permute.xlu0 0
        %1108 = vperm.xlu0 %1107, %v1085
        %v1109 = vpop.permute.xlu0 %1108
        %1112 = vset.pattern.permute.xlu0 0
        %1113 = vperm.xlu0 %1112, %v1086
        %v1114 = vpop.permute.xlu0 %1113
        %1117 = vset.pattern.permute.xlu0 0
        %1118 = vperm.xlu0 %1117, %v1087
        %v1119 = vpop.permute.xlu0 %1118
        %1122 = vset.pattern.permute.xlu0 0
        %1123 = vperm.xlu0 %1122, %v1088
        %v1124 = vpop.permute.xlu0 %1123
        %1127 = vset.pattern.permute.xlu0 0
        %1128 = vperm.xlu0 %1127, %v1089
        %v1129 = vpop.permute.xlu0 %1128
        %1132 = vset.pattern.permute.xlu0 0
        %1133 = vperm.xlu0 %1132, %v1090
        %v1134 = vpop.permute.xlu0 %1133
        %1137 = vset.pattern.permute.xlu0 0
        %1138 = vperm.xlu0 %1137, %v1091
        %v1139 = vpop.permute.xlu0 %1138
        %1142 = vset.pattern.permute.xlu0 0
        %1143 = vperm.xlu0 %1142, %v1092
        %v1144 = vpop.permute.xlu0 %1143
        %v1146 = vlaneseq
        %v1147 = vshrl.u32 %v1146, 7
        %v1148 = vsub.s32 0, %v1147
        %v1149 = vrot.slane %v1095, %v1148
        %v1150 = vmul.f32 %v1099, %v1149
        %v1151 = vmul.f32 %v1104, %v1149
        %v1152 = vmul.f32 %v1109, %v1149
        %v1153 = vmul.f32 %v1114, %v1149
        %v1154 = vmul.f32 %v1119, %v1149
        %v1155 = vmul.f32 %v1124, %v1149
        %v1156 = vmul.f32 %v1129, %v1149
        %v1157 = vmul.f32 %v1134, %v1149
        %v1158 = vmul.f32 %v1139, %v1149
        %v1159 = vmul.f32 %v1144, %v1149
        %v1160 = vadd.f32 %v1073, %v1150
        %v1161 = vadd.f32 %v1074, %v1151
        %v1162 = vadd.f32 %v1075, %v1152
        %v1163 = vadd.f32 %v1076, %v1153
        %v1164 = vadd.f32 %v1077, %v1154
        %v1165 = vadd.f32 %v1078, %v1155
        %v1166 = vadd.f32 %v1079, %v1156
        %v1167 = vadd.f32 %v1080, %v1157
        %v1168 = vadd.f32 %v1081, %v1158
        %v1169 = vadd.f32 %v1082, %v1159
        %v1170 = vld [vmem:[#allocation2 + $0x14] sm:$0xff]
        %v1171 = vld [vmem:[#allocation2 + $0x1c] sm:$0xff]
        %v1172 = vld [vmem:[#allocation2 + $0x24] sm:$0xff]
        %v1173 = vld [vmem:[#allocation2 + $0x2c] sm:$0xff]
        %v1174 = vld [vmem:[#allocation2 + $0x34] sm:$0xff]
        %v1175 = vld [vmem:[#allocation2 + $0x3c] sm:$0xff]
        %v1176 = vld [vmem:[#allocation2 + $0x44] sm:$0xff]
        %v1177 = vld [vmem:[#allocation2 + $0x4c] sm:$0xff]
        %v1178 = vld [vmem:[#allocation2 + $0x54] sm:$0xff]
        %v1179 = vld [vmem:[#allocation2 + $0x5c] sm:$0xff]
        %s1180 = scalar_lea.vmem %s1, 6
        %v1181 = vld [vmem:[%s1180] sm:$0x1]
        %v1182 = vunpack.c.l.bf16 %v1181
        %1184 = vset.pattern.permute.xlu0 0
        %1185 = vperm.xlu0 %1184, %v1170
        %v1186 = vpop.permute.xlu0 %1185
        %1189 = vset.pattern.permute.xlu0 0
        %1190 = vperm.xlu0 %1189, %v1171
        %v1191 = vpop.permute.xlu0 %1190
        %1194 = vset.pattern.permute.xlu0 0
        %1195 = vperm.xlu0 %1194, %v1172
        %v1196 = vpop.permute.xlu0 %1195
        %1199 = vset.pattern.permute.xlu0 0
        %1200 = vperm.xlu0 %1199, %v1173
        %v1201 = vpop.permute.xlu0 %1200
        %1204 = vset.pattern.permute.xlu0 0
        %1205 = vperm.xlu0 %1204, %v1174
        %v1206 = vpop.permute.xlu0 %1205
        %1209 = vset.pattern.permute.xlu0 0
        %1210 = vperm.xlu0 %1209, %v1175
        %v1211 = vpop.permute.xlu0 %1210
        %1214 = vset.pattern.permute.xlu0 0
        %1215 = vperm.xlu0 %1214, %v1176
        %v1216 = vpop.permute.xlu0 %1215
        %1219 = vset.pattern.permute.xlu0 0
        %1220 = vperm.xlu0 %1219, %v1177
        %v1221 = vpop.permute.xlu0 %1220
        %1224 = vset.pattern.permute.xlu0 0
        %1225 = vperm.xlu0 %1224, %v1178
        %v1226 = vpop.permute.xlu0 %1225
        %1229 = vset.pattern.permute.xlu0 0
        %1230 = vperm.xlu0 %1229, %v1179
        %v1231 = vpop.permute.xlu0 %1230
        %v1233 = vlaneseq
        %v1234 = vshrl.u32 %v1233, 7
        %v1235 = vsub.s32 0, %v1234
        %v1236 = vrot.slane %v1182, %v1235
        %v1237 = vmul.f32 %v1186, %v1236
        %v1238 = vmul.f32 %v1191, %v1236
        %v1239 = vmul.f32 %v1196, %v1236
        %v1240 = vmul.f32 %v1201, %v1236
        %v1241 = vmul.f32 %v1206, %v1236
        %v1242 = vmul.f32 %v1211, %v1236
        %v1243 = vmul.f32 %v1216, %v1236
        %v1244 = vmul.f32 %v1221, %v1236
        %v1245 = vmul.f32 %v1226, %v1236
        %v1246 = vmul.f32 %v1231, %v1236
        %v1247 = vadd.f32 %v1160, %v1237
        %v1248 = vadd.f32 %v1161, %v1238
        %v1249 = vadd.f32 %v1162, %v1239
        %v1250 = vadd.f32 %v1163, %v1240
        %v1251 = vadd.f32 %v1164, %v1241
        %v1252 = vadd.f32 %v1165, %v1242
        %v1253 = vadd.f32 %v1166, %v1243
        %v1254 = vadd.f32 %v1167, %v1244
        %v1255 = vadd.f32 %v1168, %v1245
        %v1256 = vadd.f32 %v1169, %v1246
        %v1257 = vld [vmem:[#allocation2 + $0x15] sm:$0xff]
        %v1258 = vld [vmem:[#allocation2 + $0x1d] sm:$0xff]
        %v1259 = vld [vmem:[#allocation2 + $0x25] sm:$0xff]
        %v1260 = vld [vmem:[#allocation2 + $0x2d] sm:$0xff]
        %v1261 = vld [vmem:[#allocation2 + $0x35] sm:$0xff]
        %v1262 = vld [vmem:[#allocation2 + $0x3d] sm:$0xff]
        %v1263 = vld [vmem:[#allocation2 + $0x45] sm:$0xff]
        %v1264 = vld [vmem:[#allocation2 + $0x4d] sm:$0xff]
        %v1265 = vld [vmem:[#allocation2 + $0x55] sm:$0xff]
        %v1266 = vld [vmem:[#allocation2 + $0x5d] sm:$0xff]
        %s1267 = scalar_lea.vmem %s1, 7
        %v1268 = vld [vmem:[%s1267] sm:$0x1]
        %v1269 = vunpack.c.l.bf16 %v1268
        %1271 = vset.pattern.permute.xlu0 0
        %1272 = vperm.xlu0 %1271, %v1257
        %v1273 = vpop.permute.xlu0 %1272
        %1276 = vset.pattern.permute.xlu0 0
        %1277 = vperm.xlu0 %1276, %v1258
        %v1278 = vpop.permute.xlu0 %1277
        %1281 = vset.pattern.permute.xlu0 0
        %1282 = vperm.xlu0 %1281, %v1259
        %v1283 = vpop.permute.xlu0 %1282
        %1286 = vset.pattern.permute.xlu0 0
        %1287 = vperm.xlu0 %1286, %v1260
        %v1288 = vpop.permute.xlu0 %1287
        %1291 = vset.pattern.permute.xlu0 0
        %1292 = vperm.xlu0 %1291, %v1261
        %v1293 = vpop.permute.xlu0 %1292
        %1296 = vset.pattern.permute.xlu0 0
        %1297 = vperm.xlu0 %1296, %v1262
        %v1298 = vpop.permute.xlu0 %1297
        %1301 = vset.pattern.permute.xlu0 0
        %1302 = vperm.xlu0 %1301, %v1263
        %v1303 = vpop.permute.xlu0 %1302
        %1306 = vset.pattern.permute.xlu0 0
        %1307 = vperm.xlu0 %1306, %v1264
        %v1308 = vpop.permute.xlu0 %1307
        %1311 = vset.pattern.permute.xlu0 0
        %1312 = vperm.xlu0 %1311, %v1265
        %v1313 = vpop.permute.xlu0 %1312
        %1316 = vset.pattern.permute.xlu0 0
        %1317 = vperm.xlu0 %1316, %v1266
        %v1318 = vpop.permute.xlu0 %1317
        %v1320 = vlaneseq
        %v1321 = vshrl.u32 %v1320, 7
        %v1322 = vsub.s32 0, %v1321
        %v1323 = vrot.slane %v1269, %v1322
        %v1324 = vmul.f32 %v1273, %v1323
        %v1325 = vmul.f32 %v1278, %v1323
        %v1326 = vmul.f32 %v1283, %v1323
        %v1327 = vmul.f32 %v1288, %v1323
        %v1328 = vmul.f32 %v1293, %v1323
        %v1329 = vmul.f32 %v1298, %v1323
        %v1330 = vmul.f32 %v1303, %v1323
        %v1331 = vmul.f32 %v1308, %v1323
        %v1332 = vmul.f32 %v1313, %v1323
        %v1333 = vmul.f32 %v1318, %v1323
        %v1334 = vadd.f32 %v1247, %v1324
        %v1335 = vadd.f32 %v1248, %v1325
        %v1336 = vadd.f32 %v1249, %v1326
        %v1337 = vadd.f32 %v1250, %v1327
        %v1338 = vadd.f32 %v1251, %v1328
        %v1339 = vadd.f32 %v1252, %v1329
        %v1340 = vadd.f32 %v1253, %v1330
        %v1341 = vadd.f32 %v1254, %v1331
        %v1342 = vadd.f32 %v1255, %v1332
        %v1343 = vadd.f32 %v1256, %v1333
        %v1344 = vld [vmem:[#allocation2 + $0x16] sm:$0xff]
        %v1345 = vld [vmem:[#allocation2 + $0x1e] sm:$0xff]
        %v1346 = vld [vmem:[#allocation2 + $0x26] sm:$0xff]
        %v1347 = vld [vmem:[#allocation2 + $0x2e] sm:$0xff]
        %v1348 = vld [vmem:[#allocation2 + $0x36] sm:$0xff]
        %v1349 = vld [vmem:[#allocation2 + $0x3e] sm:$0xff]
        %v1350 = vld [vmem:[#allocation2 + $0x46] sm:$0xff]
        %v1351 = vld [vmem:[#allocation2 + $0x4e] sm:$0xff]
        %v1352 = vld [vmem:[#allocation2 + $0x56] sm:$0xff]
        %v1353 = vld [vmem:[#allocation2 + $0x5e] sm:$0xff]
        %s1354 = scalar_lea.vmem %s1, 8
        %v1355 = vld [vmem:[%s1354] sm:$0x1]
        %v1356 = vunpack.c.l.bf16 %v1355
        %1358 = vset.pattern.permute.xlu0 0
        %1359 = vperm.xlu0 %1358, %v1344
        %v1360 = vpop.permute.xlu0 %1359
        %1363 = vset.pattern.permute.xlu0 0
        %1364 = vperm.xlu0 %1363, %v1345
        %v1365 = vpop.permute.xlu0 %1364
        %1368 = vset.pattern.permute.xlu0 0
        %1369 = vperm.xlu0 %1368, %v1346
        %v1370 = vpop.permute.xlu0 %1369
        %1373 = vset.pattern.permute.xlu0 0
        %1374 = vperm.xlu0 %1373, %v1347
        %v1375 = vpop.permute.xlu0 %1374
        %1378 = vset.pattern.permute.xlu0 0
        %1379 = vperm.xlu0 %1378, %v1348
        %v1380 = vpop.permute.xlu0 %1379
        %1383 = vset.pattern.permute.xlu0 0
        %1384 = vperm.xlu0 %1383, %v1349
        %v1385 = vpop.permute.xlu0 %1384
        %1388 = vset.pattern.permute.xlu0 0
        %1389 = vperm.xlu0 %1388, %v1350
        %v1390 = vpop.permute.xlu0 %1389
        %1393 = vset.pattern.permute.xlu0 0
        %1394 = vperm.xlu0 %1393, %v1351
        %v1395 = vpop.permute.xlu0 %1394
        %1398 = vset.pattern.permute.xlu0 0
        %1399 = vperm.xlu0 %1398, %v1352
        %v1400 = vpop.permute.xlu0 %1399
        %1403 = vset.pattern.permute.xlu0 0
        %1404 = vperm.xlu0 %1403, %v1353
        %v1405 = vpop.permute.xlu0 %1404
        %v1407 = vlaneseq
        %v1408 = vshrl.u32 %v1407, 7
        %v1409 = vsub.s32 0, %v1408
        %v1410 = vrot.slane %v1356, %v1409
        %v1411 = vmul.f32 %v1360, %v1410
        %v1412 = vmul.f32 %v1365, %v1410
        %v1413 = vmul.f32 %v1370, %v1410
        %v1414 = vmul.f32 %v1375, %v1410
        %v1415 = vmul.f32 %v1380, %v1410
        %v1416 = vmul.f32 %v1385, %v1410
        %v1417 = vmul.f32 %v1390, %v1410
        %v1418 = vmul.f32 %v1395, %v1410
        %v1419 = vmul.f32 %v1400, %v1410
        %v1420 = vmul.f32 %v1405, %v1410
        %v1421 = vadd.f32 %v1334, %v1411
        %v1422 = vadd.f32 %v1335, %v1412
        %v1423 = vadd.f32 %v1336, %v1413
        %v1424 = vadd.f32 %v1337, %v1414
        %v1425 = vadd.f32 %v1338, %v1415
        %v1426 = vadd.f32 %v1339, %v1416
        %v1427 = vadd.f32 %v1340, %v1417
        %v1428 = vadd.f32 %v1341, %v1418
        %v1429 = vadd.f32 %v1342, %v1419
        %v1430 = vadd.f32 %v1343, %v1420
        %vm1431 = vcmp.ge.f32.partialorder %v1421, 0.0
        %v1432 = vmul.f32 %v1421, 0.2
        %v1433 = vsel %vm1431, %v1421, %v1432
        %1434 = vst.msk [vmem:[#allocation3 + $0xb] sm:$0xff] %vm568, %v1433
        %vm1435 = vcmp.ge.f32.partialorder %v1422, 0.0
        %vm1436 = vcmp.ge.f32.partialorder %v1423, 0.0
        %v1437 = vmul.f32 %v1422, 0.2
        %v1438 = vmul.f32 %v1423, 0.2
        %v1439 = vsel %vm1435, %v1422, %v1437
        %v1440 = vsel %vm1436, %v1423, %v1438
        %vm1441 = vcmask 523266
        %1442 = vst.msk [vmem:[#allocation3 + $0x13] sm:$0xfc] %vm1441, %v1439
        %1443 = vst.msk [vmem:[#allocation3 + $0x1b] sm:$0x3] %vm603, %v1440
        %vm1444 = vcmp.ge.f32.partialorder %v1424, 0.0
        %v1445 = vmul.f32 %v1424, 0.2
        %v1446 = vsel %vm1444, %v1424, %v1445
        %vm1447 = vcmask 523268
        %1448 = vst.msk [vmem:[#allocation3 + $0x1b] sm:$0xf0] %vm1447, %v1440
        %vm1449 = vcmask 519168
        %1450 = vst.msk [vmem:[#allocation3 + $0x23] sm:$0xf] %vm1449, %v1446
        %vm1451 = vcmp.ge.f32.partialorder %v1425, 0.0
        %v1452 = vmul.f32 %v1425, 0.2
        %v1453 = vsel %vm1451, %v1425, %v1452
        %vm1454 = vcmask 523270
        %1455 = vst.msk [vmem:[#allocation3 + $0x23] sm:$0xc0] %vm1454, %v1446
        %1456 = vst.msk [vmem:[#allocation3 + $0x2b] sm:$0x3f] %vm582, %v1453
        %vm1457 = vcmp.ge.f32.partialorder %v1426, 0.0
        %v1458 = vmul.f32 %v1426, 0.2
        %v1459 = vsel %vm1457, %v1426, %v1458
        %1460 = vst.msk [vmem:[#allocation3 + $0x33] sm:$0xff] %vm568, %v1459
        %vm1461 = vcmp.ge.f32.partialorder %v1427, 0.0
        %vm1462 = vcmp.ge.f32.partialorder %v1428, 0.0
        %v1463 = vmul.f32 %v1427, 0.2
        %v1464 = vmul.f32 %v1428, 0.2
        %v1465 = vsel %vm1461, %v1427, %v1463
        %v1466 = vsel %vm1462, %v1428, %v1464
        %1467 = vst.msk [vmem:[#allocation3 + $0x3b] sm:$0xfc] %vm1441, %v1465
        %1468 = vst.msk [vmem:[#allocation3 + $0x43] sm:$0x3] %vm603, %v1466
        %vm1469 = vcmp.ge.f32.partialorder %v1429, 0.0
        %v1470 = vmul.f32 %v1429, 0.2
        %v1471 = vsel %vm1469, %v1429, %v1470
        %1472 = vst.msk [vmem:[#allocation3 + $0x43] sm:$0xf0] %vm1447, %v1466
        %1473 = vst.msk [vmem:[#allocation3 + $0x4b] sm:$0xf] %vm1449, %v1471
        %vm1474 = vcmp.ge.f32.partialorder %v1430, 0.0
        %v1475 = vmul.f32 %v1430, 0.2
        %v1476 = vsel %vm1474, %v1430, %v1475
        %1477 = vst.msk [vmem:[#allocation3 + $0x4b] sm:$0xc0] %vm1454, %v1471
        %1478 = vst.msk [vmem:[#allocation3 + $0x53] sm:$0x3f] %vm582, %v1476
        %v1479 = vld [vmem:[#allocation3] sm:$0xff]
        %v1480 = vld [vmem:[#allocation3 + $0x8] sm:$0xff]
        %v1481 = vld [vmem:[#allocation3 + $0x10] sm:$0xff]
        %v1482 = vld [vmem:[#allocation3 + $0x18] sm:$0xff]
        %v1483 = vld [vmem:[#allocation3 + $0x20] sm:$0xff]
        %v1484 = vld [vmem:[#allocation3 + $0x28] sm:$0xff]
        %v1485 = vld [vmem:[#allocation3 + $0x30] sm:$0xff]
        %v1486 = vld [vmem:[#allocation3 + $0x38] sm:$0xff]
        %v1487 = vld [vmem:[#allocation3 + $0x40] sm:$0xff]
        %v1488 = vld [vmem:[#allocation3 + $0x48] sm:$0xff]
        %v1489 = vld [vmem:[%s2] sm:$0xf]
        %v1490 = vld [vmem:[%s2 + $0x4] sm:$0xf]
        %v1491 = vld [vmem:[%s2 + $0x8] sm:$0xf]
        %v1492 = vld [vmem:[%s2 + $0xc] sm:$0xf]
        %v1493 = vld [vmem:[%s2 + $0x10] sm:$0xf]
        %v1494 = vld [vmem:[%s2 + $0x14] sm:$0xf]
        %v1495 = vld [vmem:[%s2 + $0x18] sm:$0xf]
        %v1496 = vld [vmem:[%s2 + $0x1c] sm:$0xf]
        %v1497 = vpack.c.bf16 %v1480, %v1479
        %v1498 = vpack.c.bf16 %v1482, %v1481
        %v1499 = vpack.c.bf16 %v1484, %v1483
        %v1500 = vpack.c.bf16 %v1486, %v1485
        %v1501 = vpack.c.bf16 %v1488, %v1487
        %v1502 = vld [vmem:[#allocation3 + $0x1] sm:$0xff]
        %v1503 = vld [vmem:[#allocation3 + $0x9] sm:$0xff]
        %v1504 = vld [vmem:[#allocation3 + $0x11] sm:$0xff]
        %v1505 = vld [vmem:[#allocation3 + $0x19] sm:$0xff]
        %v1506 = vld [vmem:[#allocation3 + $0x21] sm:$0xff]
        %v1507 = vld [vmem:[#allocation3 + $0x29] sm:$0xff]
        %v1508 = vld [vmem:[#allocation3 + $0x31] sm:$0xff]
        %v1509 = vld [vmem:[#allocation3 + $0x39] sm:$0xff]
        %v1510 = vld [vmem:[#allocation3 + $0x41] sm:$0xff]
        %v1511 = vld [vmem:[#allocation3 + $0x49] sm:$0xff]
        %s1512 = scalar_lea.vmem %s2, 32
        %v1513 = vld [vmem:[%s1512] sm:$0xf]
        %v1514 = vld [vmem:[%s1512 + $0x4] sm:$0xf]
        %v1515 = vld [vmem:[%s1512 + $0x8] sm:$0xf]
        %v1516 = vld [vmem:[%s1512 + $0xc] sm:$0xf]
        %v1517 = vld [vmem:[%s1512 + $0x10] sm:$0xf]
        %v1518 = vld [vmem:[%s1512 + $0x14] sm:$0xf]
        %v1519 = vld [vmem:[%s1512 + $0x18] sm:$0xf]
        %v1520 = vld [vmem:[%s1512 + $0x1c] sm:$0xf]
        %v1521 = vpack.c.bf16 %v1503, %v1502
        %v1522 = vpack.c.bf16 %v1505, %v1504
        %v1523 = vpack.c.bf16 %v1507, %v1506
        %v1524 = vpack.c.bf16 %v1509, %v1508
        %v1525 = vpack.c.bf16 %v1511, %v1510
        %v1534 = vunpack.c.l.b16 %v1513
        %v1535 = vunpack.c.l.b16 %v1514
        %v1536 = vunpack.c.l.b16 %v1515
        %v1537 = vunpack.c.l.b16 %v1516
        %v1538 = vunpack.c.l.b16 %v1517
        %v1539 = vunpack.c.l.b16 %v1518
        %v1540 = vunpack.c.l.b16 %v1519
        %v1541 = vunpack.c.l.b16 %v1520
        %v1542 = vpack.c.b16 %v1535, %v1534
        %v1543 = vpack.c.b16 %v1537, %v1536
        %v1544 = vpack.c.b16 %v1539, %v1538
        %v1545 = vpack.c.b16 %v1541, %v1540
        %v1551 = vsel %vm568, %v1521, 0
        %v1554 = vsel %vm568, %v1522, 0
        %v1557 = vsel %vm568, %v1523, 0
        %v1560 = vsel %vm568, %v1524, 0
        %v1563 = vsel %vm568, %v1525, 0
        %1565 = vmatprep.subr.bf16.mxu0 0
        %1566 = vmatpush1.bf16.msra.mxu0 %v1542
        %1567 = vmatprep.subr.bf16.mxu0 0
        %1568 = vmatpush1.bf16.msra.mxu0 %v1543
        %1569 = vmatprep.subr.bf16.mxu0 0
        %1570 = vmatpush1.bf16.msra.mxu0 %v1544
        %1571 = vmatprep.subr.bf16.mxu0 0
        %1572 = vmatpush1.bf16.msra.mxu0 %v1545
        %1573 = vmatprep.subr.bf16.mxu0 0
        %1574 = vmatpush1.bf16.msra.mxu0 0
        %1575 = vmatprep.subr.bf16.mxu0 0
        %1576 = vmatpush1.bf16.msra.mxu0 0
        %1577 = vmatprep.subr.bf16.mxu0 0
        %1578 = vmatpush1.bf16.msra.mxu0 0
        %1579 = vmatprep.subr.bf16.mxu0 0
        %1580 = vmatpush1.bf16.msra.mxu0 0
        %1581 = vmatprep.subr.bf16.mxu0 0
        %1582 = vmatpush1.bf16.msra.mxu0 0
        %1583 = vmatprep.subr.bf16.mxu0 0
        %1584 = vmatpush1.bf16.msra.mxu0 0
        %1585 = vmatprep.subr.bf16.mxu0 0
        %1586 = vmatpush1.bf16.msra.mxu0 0
        %1587 = vmatprep.subr.bf16.mxu0 0
        %1588 = vmatpush1.bf16.msra.mxu0 0
        %1589 = vmatprep.subr.bf16.mxu0 0
        %1590 = vmatpush1.bf16.msra.mxu0 0
        %1591 = vmatprep.subr.bf16.mxu0 0
        %1592 = vmatpush1.bf16.msra.mxu0 0
        %1593 = vmatprep.subr.bf16.mxu0 0
        %1594 = vmatpush1.bf16.msra.mxu0 0
        %1595 = vmatprep.subr.bf16.mxu0 0
        %1596 = vmatpush1.bf16.msra.mxu0 0
        %1597 = vmatprep.mubr.bf16.mxu0 0
        %1598 = vmatmul.mubr.bf16.gmra.mrb[0].mxu0 %v1551
        %v1599 = vpop.f32.mrb[0].mxu0
        %v1600 = vadd.f32 0.0, %v1599
        %v1601 = vpop.f32.mrb[0].mxu0
        %v1602 = vpop.f32.mrb[0].mxu0
        %v1603 = vadd.f32 0.0, %v1602
        %v1604 = vpop.f32.mrb[0].mxu0
        %1605 = vmatprep.mubr.bf16.mxu0 0
        %1606 = vmatmul.mubr.bf16.gmra.mrb[0].mxu0 %v1554
        %v1607 = vpop.f32.mrb[0].mxu0
        %v1608 = vadd.f32 0.0, %v1607
        %v1609 = vpop.f32.mrb[0].mxu0
        %v1610 = vpop.f32.mrb[0].mxu0
        %v1611 = vadd.f32 0.0, %v1610
        %v1612 = vpop.f32.mrb[0].mxu0
        %1613 = vmatprep.mubr.bf16.mxu0 0
        %1614 = vmatmul.mubr.bf16.gmra.mrb[0].mxu0 %v1557
        %v1615 = vpop.f32.mrb[0].mxu0
        %v1616 = vadd.f32 0.0, %v1615
        %v1617 = vpop.f32.mrb[0].mxu0
        %v1618 = vpop.f32.mrb[0].mxu0
        %v1619 = vadd.f32 0.0, %v1618
        %v1620 = vpop.f32.mrb[0].mxu0
        %1621 = vmatprep.mubr.bf16.mxu0 0
        %1622 = vmatmul.mubr.bf16.gmra.mrb[0].mxu0 %v1560
        %v1623 = vpop.f32.mrb[0].mxu0
        %v1624 = vadd.f32 0.0, %v1623
        %v1625 = vpop.f32.mrb[0].mxu0
        %v1626 = vpop.f32.mrb[0].mxu0
        %v1627 = vadd.f32 0.0, %v1626
        %v1628 = vpop.f32.mrb[0].mxu0
        %1629 = vmatprep.mubr.bf16.mxu0 0
        %1630 = vmatmul.mubr.bf16.gmra.mrb[0].mxu0 %v1563
        %v1631 = vpop.f32.mrb[0].mxu0
        %v1632 = vadd.f32 0.0, %v1631
        %v1633 = vpop.f32.mrb[0].mxu0
        %v1634 = vpop.f32.mrb[0].mxu0
        %v1635 = vadd.f32 0.0, %v1634
        %v1636 = vpop.f32.mrb[0].mxu0
        %1637 = vdwg.mxu0
        %v1646 = vunpack.c.l.b16 %v1489
        %v1647 = vunpack.c.l.b16 %v1490
        %v1648 = vunpack.c.l.b16 %v1491
        %v1649 = vunpack.c.l.b16 %v1492
        %v1650 = vunpack.c.l.b16 %v1493
        %v1651 = vunpack.c.l.b16 %v1494
        %v1652 = vunpack.c.l.b16 %v1495
        %v1653 = vunpack.c.l.b16 %v1496
        %v1654 = vpack.c.b16 %v1647, %v1646
        %v1655 = vpack.c.b16 %v1649, %v1648
        %v1656 = vpack.c.b16 %v1651, %v1650
        %v1657 = vpack.c.b16 %v1653, %v1652
        %v1663 = vsel %vm568, %v1497, 0
        %v1666 = vsel %vm568, %v1498, 0
        %v1669 = vsel %vm568, %v1499, 0
        %v1672 = vsel %vm568, %v1500, 0
        %v1675 = vsel %vm568, %v1501, 0
        %1677 = vmatprep.subr.bf16.mxu0 0
        %1678 = vmatpush1.bf16.msra.mxu0 %v1654
        %1679 = vmatprep.subr.bf16.mxu0 0
        %1680 = vmatpush1.bf16.msra.mxu0 %v1655
        %1681 = vmatprep.subr.bf16.mxu0 0
        %1682 = vmatpush1.bf16.msra.mxu0 %v1656
        %1683 = vmatprep.subr.bf16.mxu0 0
        %1684 = vmatpush1.bf16.msra.mxu0 %v1657
        %1685 = vmatprep.subr.bf16.mxu0 0
        %1686 = vmatpush1.bf16.msra.mxu0 0
        %1687 = vmatprep.subr.bf16.mxu0 0
        %1688 = vmatpush1.bf16.msra.mxu0 0
        %1689 = vmatprep.subr.bf16.mxu0 0
        %1690 = vmatpush1.bf16.msra.mxu0 0
        %1691 = vmatprep.subr.bf16.mxu0 0
        %1692 = vmatpush1.bf16.msra.mxu0 0
        %1693 = vmatprep.subr.bf16.mxu0 0
        %1694 = vmatpush1.bf16.msra.mxu0 0
        %1695 = vmatprep.subr.bf16.mxu0 0
        %1696 = vmatpush1.bf16.msra.mxu0 0
        %1697 = vmatprep.subr.bf16.mxu0 0
        %1698 = vmatpush1.bf16.msra.mxu0 0
        %1699 = vmatprep.subr.bf16.mxu0 0
        %1700 = vmatpush1.bf16.msra.mxu0 0
        %1701 = vmatprep.subr.bf16.mxu0 0
        %1702 = vmatpush1.bf16.msra.mxu0 0
        %1703 = vmatprep.subr.bf16.mxu0 0
        %1704 = vmatpush1.bf16.msra.mxu0 0
        %1705 = vmatprep.subr.bf16.mxu0 0
        %1706 = vmatpush1.bf16.msra.mxu0 0
        %1707 = vmatprep.subr.bf16.mxu0 0
        %1708 = vmatpush1.bf16.msra.mxu0 0
        %1709 = vmatprep.mubr.bf16.mxu0 0
        %1710 = vmatmul.mubr.bf16.gmra.mrb[0].mxu0 %v1663
        %v1711 = vpop.f32.mrb[0].mxu0
        %v1712 = vadd.f32 %v1600, %v1711
        %v1713 = vpop.f32.mrb[0].mxu0
        %v1714 = vpop.f32.mrb[0].mxu0
        %v1715 = vadd.f32 %v1603, %v1714
        %v1716 = vpop.f32.mrb[0].mxu0
        %1717 = vmatprep.mubr.bf16.mxu0 0
        %1718 = vmatmul.mubr.bf16.gmra.mrb[0].mxu0 %v1666
        %v1719 = vpop.f32.mrb[0].mxu0
        %v1720 = vadd.f32 %v1608, %v1719
        %v1721 = vpop.f32.mrb[0].mxu0
        %v1722 = vpop.f32.mrb[0].mxu0
        %v1723 = vadd.f32 %v1611, %v1722
        %v1724 = vpop.f32.mrb[0].mxu0
        %1725 = vmatprep.mubr.bf16.mxu0 0
        %1726 = vmatmul.mubr.bf16.gmra.mrb[0].mxu0 %v1669
        %v1727 = vpop.f32.mrb[0].mxu0
        %v1728 = vadd.f32 %v1616, %v1727
        %v1729 = vpop.f32.mrb[0].mxu0
        %v1730 = vpop.f32.mrb[0].mxu0
        %v1731 = vadd.f32 %v1619, %v1730
        %v1732 = vpop.f32.mrb[0].mxu0
        %1733 = vmatprep.mubr.bf16.mxu0 0
        %1734 = vmatmul.mubr.bf16.gmra.mrb[0].mxu0 %v1672
        %v1735 = vpop.f32.mrb[0].mxu0
        %v1736 = vadd.f32 %v1624, %v1735
        %v1737 = vpop.f32.mrb[0].mxu0
        %v1738 = vpop.f32.mrb[0].mxu0
        %v1739 = vadd.f32 %v1627, %v1738
        %v1740 = vpop.f32.mrb[0].mxu0
        %1741 = vmatprep.mubr.bf16.mxu0 0
        %1742 = vmatmul.mubr.bf16.gmra.mrb[0].mxu0 %v1675
        %v1743 = vpop.f32.mrb[0].mxu0
        %v1744 = vadd.f32 %v1632, %v1743
        %v1745 = vpop.f32.mrb[0].mxu0
        %v1746 = vpop.f32.mrb[0].mxu0
        %v1747 = vadd.f32 %v1635, %v1746
        %v1748 = vpop.f32.mrb[0].mxu0
        %1749 = vdwg.mxu0
        %v1750 = vld [vmem:[#allocation3 + $0x2] sm:$0xff]
        %v1751 = vld [vmem:[#allocation3 + $0xa] sm:$0xff]
        %v1752 = vld [vmem:[#allocation3 + $0x12] sm:$0xff]
        %v1753 = vld [vmem:[#allocation3 + $0x1a] sm:$0xff]
        %v1754 = vld [vmem:[#allocation3 + $0x22] sm:$0xff]
        %v1755 = vld [vmem:[#allocation3 + $0x2a] sm:$0xff]
        %v1756 = vld [vmem:[#allocation3 + $0x32] sm:$0xff]
        %v1757 = vld [vmem:[#allocation3 + $0x3a] sm:$0xff]
        %v1758 = vld [vmem:[#allocation3 + $0x42] sm:$0xff]
        %v1759 = vld [vmem:[#allocation3 + $0x4a] sm:$0xff]
        %s1760 = scalar_lea.vmem %s2, 64
        %v1761 = vld [vmem:[%s1760] sm:$0xf]
        %v1762 = vld [vmem:[%s1760 + $0x4] sm:$0xf]
        %v1763 = vld [vmem:[%s1760 + $0x8] sm:$0xf]
        %v1764 = vld [vmem:[%s1760 + $0xc] sm:$0xf]
        %v1765 = vld [vmem:[%s1760 + $0x10] sm:$0xf]
        %v1766 = vld [vmem:[%s1760 + $0x14] sm:$0xf]
        %v1767 = vld [vmem:[%s1760 + $0x18] sm:$0xf]
        %v1768 = vld [vmem:[%s1760 + $0x1c] sm:$0xf]
        %v1769 = vpack.c.bf16 %v1751, %v1750
        %v1770 = vpack.c.bf16 %v1753, %v1752
        %v1771 = vpack.c.bf16 %v1755, %v1754
        %v1772 = vpack.c.bf16 %v1757, %v1756
        %v1773 = vpack.c.bf16 %v1759, %v1758
        %v1782 = vunpack.c.l.b16 %v1761
        %v1783 = vunpack.c.l.b16 %v1762
        %v1784 = vunpack.c.l.b16 %v1763
        %v1785 = vunpack.c.l.b16 %v1764
        %v1786 = vunpack.c.l.b16 %v1765
        %v1787 = vunpack.c.l.b16 %v1766
        %v1788 = vunpack.c.l.b16 %v1767
        %v1789 = vunpack.c.l.b16 %v1768
        %v1790 = vpack.c.b16 %v1783, %v1782
        %v1791 = vpack.c.b16 %v1785, %v1784
        %v1792 = vpack.c.b16 %v1787, %v1786
        %v1793 = vpack.c.b16 %v1789, %v1788
        %v1799 = vsel %vm568, %v1769, 0
        %v1802 = vsel %vm568, %v1770, 0
        %v1805 = vsel %vm568, %v1771, 0
        %v1808 = vsel %vm568, %v1772, 0
        %v1811 = vsel %vm568, %v1773, 0
        %1813 = vmatprep.subr.bf16.mxu0 0
        %1814 = vmatpush1.bf16.msra.mxu0 %v1790
        %1815 = vmatprep.subr.bf16.mxu0 0
        %1816 = vmatpush1.bf16.msra.mxu0 %v1791
        %1817 = vmatprep.subr.bf16.mxu0 0
        %1818 = vmatpush1.bf16.msra.mxu0 %v1792
        %1819 = vmatprep.subr.bf16.mxu0 0
        %1820 = vmatpush1.bf16.msra.mxu0 %v1793
        %1821 = vmatprep.subr.bf16.mxu0 0
        %1822 = vmatpush1.bf16.msra.mxu0 0
        %1823 = vmatprep.subr.bf16.mxu0 0
        %1824 = vmatpush1.bf16.msra.mxu0 0
        %1825 = vmatprep.subr.bf16.mxu0 0
        %1826 = vmatpush1.bf16.msra.mxu0 0
        %1827 = vmatprep.subr.bf16.mxu0 0
        %1828 = vmatpush1.bf16.msra.mxu0 0
        %1829 = vmatprep.subr.bf16.mxu0 0
        %1830 = vmatpush1.bf16.msra.mxu0 0
        %1831 = vmatprep.subr.bf16.mxu0 0
        %1832 = vmatpush1.bf16.msra.mxu0 0
        %1833 = vmatprep.subr.bf16.mxu0 0
        %1834 = vmatpush1.bf16.msra.mxu0 0
        %1835 = vmatprep.subr.bf16.mxu0 0
        %1836 = vmatpush1.bf16.msra.mxu0 0
        %1837 = vmatprep.subr.bf16.mxu0 0
        %1838 = vmatpush1.bf16.msra.mxu0 0
        %1839 = vmatprep.subr.bf16.mxu0 0
        %1840 = vmatpush1.bf16.msra.mxu0 0
        %1841 = vmatprep.subr.bf16.mxu0 0
        %1842 = vmatpush1.bf16.msra.mxu0 0
        %1843 = vmatprep.subr.bf16.mxu0 0
        %1844 = vmatpush1.bf16.msra.mxu0 0
        %1845 = vmatprep.mubr.bf16.mxu0 0
        %1846 = vmatmul.mubr.bf16.gmra.mrb[0].mxu0 %v1799
        %v1847 = vpop.f32.mrb[0].mxu0
        %v1848 = vadd.f32 0.0, %v1847
        %v1849 = vpop.f32.mrb[0].mxu0
        %v1850 = vpop.f32.mrb[0].mxu0
        %v1851 = vadd.f32 0.0, %v1850
        %v1852 = vpop.f32.mrb[0].mxu0
        %1853 = vmatprep.mubr.bf16.mxu0 0
        %1854 = vmatmul.mubr.bf16.gmra.mrb[0].mxu0 %v1802
        %v1855 = vpop.f32.mrb[0].mxu0
        %v1856 = vadd.f32 0.0, %v1855
        %v1857 = vpop.f32.mrb[0].mxu0
        %v1858 = vpop.f32.mrb[0].mxu0
        %v1859 = vadd.f32 0.0, %v1858
        %v1860 = vpop.f32.mrb[0].mxu0
        %1861 = vmatprep.mubr.bf16.mxu0 0
        %1862 = vmatmul.mubr.bf16.gmra.mrb[0].mxu0 %v1805
        %v1863 = vpop.f32.mrb[0].mxu0
        %v1864 = vadd.f32 0.0, %v1863
        %v1865 = vpop.f32.mrb[0].mxu0
        %v1866 = vpop.f32.mrb[0].mxu0
        %v1867 = vadd.f32 0.0, %v1866
        %v1868 = vpop.f32.mrb[0].mxu0
        %1869 = vmatprep.mubr.bf16.mxu0 0
        %1870 = vmatmul.mubr.bf16.gmra.mrb[0].mxu0 %v1808
        %v1871 = vpop.f32.mrb[0].mxu0
        %v1872 = vadd.f32 0.0, %v1871
        %v1873 = vpop.f32.mrb[0].mxu0
        %v1874 = vpop.f32.mrb[0].mxu0
        %v1875 = vadd.f32 0.0, %v1874
        %v1876 = vpop.f32.mrb[0].mxu0
        %1877 = vmatprep.mubr.bf16.mxu0 0
        %1878 = vmatmul.mubr.bf16.gmra.mrb[0].mxu0 %v1811
        %v1879 = vpop.f32.mrb[0].mxu0
        %v1880 = vadd.f32 0.0, %v1879
        %v1881 = vpop.f32.mrb[0].mxu0
        %v1882 = vpop.f32.mrb[0].mxu0
        %v1883 = vadd.f32 0.0, %v1882
        %v1884 = vpop.f32.mrb[0].mxu0
        %1885 = vdwg.mxu0
        %v1886 = vadd.f32 %v1712, %v1848
        %v1887 = vadd.f32 %v1715, %v1851
        %v1888 = vadd.f32 %v1720, %v1856
        %v1889 = vadd.f32 %v1723, %v1859
        %v1890 = vadd.f32 %v1728, %v1864
        %v1891 = vadd.f32 %v1731, %v1867
        %v1892 = vadd.f32 %v1736, %v1872
        %v1893 = vadd.f32 %v1739, %v1875
        %v1894 = vadd.f32 %v1744, %v1880
        %v1895 = vadd.f32 %v1747, %v1883
        %v1896 = vld [vmem:[#allocation3 + $0xa] sm:$0xff]
        %v1897 = vld [vmem:[#allocation3 + $0x12] sm:$0xff]
        %v1898 = vld [vmem:[#allocation3 + $0x1a] sm:$0xff]
        %v1899 = vld [vmem:[#allocation3 + $0x22] sm:$0xff]
        %v1900 = vld [vmem:[#allocation3 + $0x2a] sm:$0xff]
        %v1901 = vld [vmem:[#allocation3 + $0x32] sm:$0xff]
        %v1902 = vld [vmem:[#allocation3 + $0x3a] sm:$0xff]
        %v1903 = vld [vmem:[#allocation3 + $0x42] sm:$0xff]
        %v1904 = vld [vmem:[#allocation3 + $0x4a] sm:$0xff]
        %v1905 = vld [vmem:[#allocation3 + $0x52] sm:$0xff]
        %s1906 = scalar_lea.vmem %s2, 96
        %v1907 = vld [vmem:[%s1906] sm:$0xf]
        %v1908 = vld [vmem:[%s1906 + $0x4] sm:$0xf]
        %v1909 = vld [vmem:[%s1906 + $0x8] sm:$0xf]
        %v1910 = vld [vmem:[%s1906 + $0xc] sm:$0xf]
        %v1911 = vld [vmem:[%s1906 + $0x10] sm:$0xf]
        %v1912 = vld [vmem:[%s1906 + $0x14] sm:$0xf]
        %v1913 = vld [vmem:[%s1906 + $0x18] sm:$0xf]
        %v1914 = vld [vmem:[%s1906 + $0x1c] sm:$0xf]
        %v1915 = vpack.c.bf16 %v1897, %v1896
        %v1916 = vpack.c.bf16 %v1899, %v1898
        %v1917 = vpack.c.bf16 %v1901, %v1900
        %v1918 = vpack.c.bf16 %v1903, %v1902
        %v1919 = vpack.c.bf16 %v1905, %v1904
        %v1928 = vunpack.c.l.b16 %v1907
        %v1929 = vunpack.c.l.b16 %v1908
        %v1930 = vunpack.c.l.b16 %v1909
        %v1931 = vunpack.c.l.b16 %v1910
        %v1932 = vunpack.c.l.b16 %v1911
        %v1933 = vunpack.c.l.b16 %v1912
        %v1934 = vunpack.c.l.b16 %v1913
        %v1935 = vunpack.c.l.b16 %v1914
        %v1936 = vpack.c.b16 %v1929, %v1928
        %v1937 = vpack.c.b16 %v1931, %v1930
        %v1938 = vpack.c.b16 %v1933, %v1932
        %v1939 = vpack.c.b16 %v1935, %v1934
        %v1945 = vsel %vm568, %v1915, 0
        %v1948 = vsel %vm568, %v1916, 0
        %v1951 = vsel %vm568, %v1917, 0
        %v1954 = vsel %vm568, %v1918, 0
        %v1957 = vsel %vm568, %v1919, 0
        %1959 = vmatprep.subr.bf16.mxu0 0
        %1960 = vmatpush1.bf16.msra.mxu0 %v1936
        %1961 = vmatprep.subr.bf16.mxu0 0
        %1962 = vmatpush1.bf16.msra.mxu0 %v1937
        %1963 = vmatprep.subr.bf16.mxu0 0
        %1964 = vmatpush1.bf16.msra.mxu0 %v1938
        %1965 = vmatprep.subr.bf16.mxu0 0
        %1966 = vmatpush1.bf16.msra.mxu0 %v1939
        %1967 = vmatprep.subr.bf16.mxu0 0
        %1968 = vmatpush1.bf16.msra.mxu0 0
        %1969 = vmatprep.subr.bf16.mxu0 0
        %1970 = vmatpush1.bf16.msra.mxu0 0
        %1971 = vmatprep.subr.bf16.mxu0 0
        %1972 = vmatpush1.bf16.msra.mxu0 0
        %1973 = vmatprep.subr.bf16.mxu0 0
        %1974 = vmatpush1.bf16.msra.mxu0 0
        %1975 = vmatprep.subr.bf16.mxu0 0
        %1976 = vmatpush1.bf16.msra.mxu0 0
        %1977 = vmatprep.subr.bf16.mxu0 0
        %1978 = vmatpush1.bf16.msra.mxu0 0
        %1979 = vmatprep.subr.bf16.mxu0 0
        %1980 = vmatpush1.bf16.msra.mxu0 0
        %1981 = vmatprep.subr.bf16.mxu0 0
        %1982 = vmatpush1.bf16.msra.mxu0 0
        %1983 = vmatprep.subr.bf16.mxu0 0
        %1984 = vmatpush1.bf16.msra.mxu0 0
        %1985 = vmatprep.subr.bf16.mxu0 0
        %1986 = vmatpush1.bf16.msra.mxu0 0
        %1987 = vmatprep.subr.bf16.mxu0 0
        %1988 = vmatpush1.bf16.msra.mxu0 0
        %1989 = vmatprep.subr.bf16.mxu0 0
        %1990 = vmatpush1.bf16.msra.mxu0 0
        %1991 = vmatprep.mubr.bf16.mxu0 0
        %1992 = vmatmul.mubr.bf16.gmra.mrb[0].mxu0 %v1945
        %v1993 = vpop.f32.mrb[0].mxu0
        %v1994 = vadd.f32 0.0, %v1993
        %v1995 = vpop.f32.mrb[0].mxu0
        %v1996 = vpop.f32.mrb[0].mxu0
        %v1997 = vadd.f32 0.0, %v1996
        %v1998 = vpop.f32.mrb[0].mxu0
        %1999 = vmatprep.mubr.bf16.mxu0 0
        %2000 = vmatmul.mubr.bf16.gmra.mrb[0].mxu0 %v1948
        %v2001 = vpop.f32.mrb[0].mxu0
        %v2002 = vadd.f32 0.0, %v2001
        %v2003 = vpop.f32.mrb[0].mxu0
        %v2004 = vpop.f32.mrb[0].mxu0
        %v2005 = vadd.f32 0.0, %v2004
        %v2006 = vpop.f32.mrb[0].mxu0
        %2007 = vmatprep.mubr.bf16.mxu0 0
        %2008 = vmatmul.mubr.bf16.gmra.mrb[0].mxu0 %v1951
        %v2009 = vpop.f32.mrb[0].mxu0
        %v2010 = vadd.f32 0.0, %v2009
        %v2011 = vpop.f32.mrb[0].mxu0
        %v2012 = vpop.f32.mrb[0].mxu0
        %v2013 = vadd.f32 0.0, %v2012
        %v2014 = vpop.f32.mrb[0].mxu0
        %2015 = vmatprep.mubr.bf16.mxu0 0
        %2016 = vmatmul.mubr.bf16.gmra.mrb[0].mxu0 %v1954
        %v2017 = vpop.f32.mrb[0].mxu0
        %v2018 = vadd.f32 0.0, %v2017
        %v2019 = vpop.f32.mrb[0].mxu0
        %v2020 = vpop.f32.mrb[0].mxu0
        %v2021 = vadd.f32 0.0, %v2020
        %v2022 = vpop.f32.mrb[0].mxu0
        %2023 = vmatprep.mubr.bf16.mxu0 0
        %2024 = vmatmul.mubr.bf16.gmra.mrb[0].mxu0 %v1957
        %v2025 = vpop.f32.mrb[0].mxu0
        %v2026 = vadd.f32 0.0, %v2025
        %v2027 = vpop.f32.mrb[0].mxu0
        %v2028 = vpop.f32.mrb[0].mxu0
        %v2029 = vadd.f32 0.0, %v2028
        %v2030 = vpop.f32.mrb[0].mxu0
        %2031 = vdwg.mxu0
        %v2032 = vadd.f32 %v1886, %v1994
        %v2033 = vadd.f32 %v1887, %v1997
        %v2034 = vadd.f32 %v1888, %v2002
        %v2035 = vadd.f32 %v1889, %v2005
        %v2036 = vadd.f32 %v1890, %v2010
        %v2037 = vadd.f32 %v1891, %v2013
        %v2038 = vadd.f32 %v1892, %v2018
        %v2039 = vadd.f32 %v1893, %v2021
        %v2040 = vadd.f32 %v1894, %v2026
        %v2041 = vadd.f32 %v1895, %v2029
        %v2042 = vld [vmem:[#allocation3 + $0xb] sm:$0xff]
        %v2043 = vld [vmem:[#allocation3 + $0x13] sm:$0xff]
        %v2044 = vld [vmem:[#allocation3 + $0x1b] sm:$0xff]
        %v2045 = vld [vmem:[#allocation3 + $0x23] sm:$0xff]
        %v2046 = vld [vmem:[#allocation3 + $0x2b] sm:$0xff]
        %v2047 = vld [vmem:[#allocation3 + $0x33] sm:$0xff]
        %v2048 = vld [vmem:[#allocation3 + $0x3b] sm:$0xff]
        %v2049 = vld [vmem:[#allocation3 + $0x43] sm:$0xff]
        %v2050 = vld [vmem:[#allocation3 + $0x4b] sm:$0xff]
        %v2051 = vld [vmem:[#allocation3 + $0x53] sm:$0xff]
        %s2052 = scalar_lea.vmem %s2, 128
        %v2053 = vld [vmem:[%s2052] sm:$0xf]
        %v2054 = vld [vmem:[%s2052 + $0x4] sm:$0xf]
        %v2055 = vld [vmem:[%s2052 + $0x8] sm:$0xf]
        %v2056 = vld [vmem:[%s2052 + $0xc] sm:$0xf]
        %v2057 = vld [vmem:[%s2052 + $0x10] sm:$0xf]
        %v2058 = vld [vmem:[%s2052 + $0x14] sm:$0xf]
        %v2059 = vld [vmem:[%s2052 + $0x18] sm:$0xf]
        %v2060 = vld [vmem:[%s2052 + $0x1c] sm:$0xf]
        %v2061 = vpack.c.bf16 %v2043, %v2042
        %v2062 = vpack.c.bf16 %v2045, %v2044
        %v2063 = vpack.c.bf16 %v2047, %v2046
        %v2064 = vpack.c.bf16 %v2049, %v2048
        %v2065 = vpack.c.bf16 %v2051, %v2050
        %v2074 = vunpack.c.l.b16 %v2053
        %v2075 = vunpack.c.l.b16 %v2054
        %v2076 = vunpack.c.l.b16 %v2055
        %v2077 = vunpack.c.l.b16 %v2056
        %v2078 = vunpack.c.l.b16 %v2057
        %v2079 = vunpack.c.l.b16 %v2058
        %v2080 = vunpack.c.l.b16 %v2059
        %v2081 = vunpack.c.l.b16 %v2060
        %v2082 = vpack.c.b16 %v2075, %v2074
        %v2083 = vpack.c.b16 %v2077, %v2076
        %v2084 = vpack.c.b16 %v2079, %v2078
        %v2085 = vpack.c.b16 %v2081, %v2080
        %v2091 = vsel %vm568, %v2061, 0
        %v2094 = vsel %vm568, %v2062, 0
        %v2097 = vsel %vm568, %v2063, 0
        %v2100 = vsel %vm568, %v2064, 0
        %v2103 = vsel %vm568, %v2065, 0
        %2105 = vmatprep.subr.bf16.mxu0 0
        %2106 = vmatpush1.bf16.msra.mxu0 %v2082
        %2107 = vmatprep.subr.bf16.mxu0 0
        %2108 = vmatpush1.bf16.msra.mxu0 %v2083
        %2109 = vmatprep.subr.bf16.mxu0 0
        %2110 = vmatpush1.bf16.msra.mxu0 %v2084
        %2111 = vmatprep.subr.bf16.mxu0 0
        %2112 = vmatpush1.bf16.msra.mxu0 %v2085
        %2113 = vmatprep.subr.bf16.mxu0 0
        %2114 = vmatpush1.bf16.msra.mxu0 0
        %2115 = vmatprep.subr.bf16.mxu0 0
        %2116 = vmatpush1.bf16.msra.mxu0 0
        %2117 = vmatprep.subr.bf16.mxu0 0
        %2118 = vmatpush1.bf16.msra.mxu0 0
        %2119 = vmatprep.subr.bf16.mxu0 0
        %2120 = vmatpush1.bf16.msra.mxu0 0
        %2121 = vmatprep.subr.bf16.mxu0 0
        %2122 = vmatpush1.bf16.msra.mxu0 0
        %2123 = vmatprep.subr.bf16.mxu0 0
        %2124 = vmatpush1.bf16.msra.mxu0 0
        %2125 = vmatprep.subr.bf16.mxu0 0
        %2126 = vmatpush1.bf16.msra.mxu0 0
        %2127 = vmatprep.subr.bf16.mxu0 0
        %2128 = vmatpush1.bf16.msra.mxu0 0
        %2129 = vmatprep.subr.bf16.mxu0 0
        %2130 = vmatpush1.bf16.msra.mxu0 0
        %2131 = vmatprep.subr.bf16.mxu0 0
        %2132 = vmatpush1.bf16.msra.mxu0 0
        %2133 = vmatprep.subr.bf16.mxu0 0
        %2134 = vmatpush1.bf16.msra.mxu0 0
        %2135 = vmatprep.subr.bf16.mxu0 0
        %2136 = vmatpush1.bf16.msra.mxu0 0
        %2137 = vmatprep.mubr.bf16.mxu0 0
        %2138 = vmatmul.mubr.bf16.gmra.mrb[0].mxu0 %v2091
        %v2139 = vpop.f32.mrb[0].mxu0
        %v2140 = vadd.f32 0.0, %v2139
        %v2141 = vpop.f32.mrb[0].mxu0
        %v2142 = vpop.f32.mrb[0].mxu0
        %v2143 = vadd.f32 0.0, %v2142
        %v2144 = vpop.f32.mrb[0].mxu0
        %2145 = vmatprep.mubr.bf16.mxu0 0
        %2146 = vmatmul.mubr.bf16.gmra.mrb[0].mxu0 %v2094
        %v2147 = vpop.f32.mrb[0].mxu0
        %v2148 = vadd.f32 0.0, %v2147
        %v2149 = vpop.f32.mrb[0].mxu0
        %v2150 = vpop.f32.mrb[0].mxu0
        %v2151 = vadd.f32 0.0, %v2150
        %v2152 = vpop.f32.mrb[0].mxu0
        %2153 = vmatprep.mubr.bf16.mxu0 0
        %2154 = vmatmul.mubr.bf16.gmra.mrb[0].mxu0 %v2097
        %v2155 = vpop.f32.mrb[0].mxu0
        %v2156 = vadd.f32 0.0, %v2155
        %v2157 = vpop.f32.mrb[0].mxu0
        %v2158 = vpop.f32.mrb[0].mxu0
        %v2159 = vadd.f32 0.0, %v2158
        %v2160 = vpop.f32.mrb[0].mxu0
        %2161 = vmatprep.mubr.bf16.mxu0 0
        %2162 = vmatmul.mubr.bf16.gmra.mrb[0].mxu0 %v2100
        %v2163 = vpop.f32.mrb[0].mxu0
        %v2164 = vadd.f32 0.0, %v2163
        %v2165 = vpop.f32.mrb[0].mxu0
        %v2166 = vpop.f32.mrb[0].mxu0
        %v2167 = vadd.f32 0.0, %v2166
        %v2168 = vpop.f32.mrb[0].mxu0
        %2169 = vmatprep.mubr.bf16.mxu0 0
        %2170 = vmatmul.mubr.bf16.gmra.mrb[0].mxu0 %v2103
        %v2171 = vpop.f32.mrb[0].mxu0
        %v2172 = vadd.f32 0.0, %v2171
        %v2173 = vpop.f32.mrb[0].mxu0
        %v2174 = vpop.f32.mrb[0].mxu0
        %v2175 = vadd.f32 0.0, %v2174
        %v2176 = vpop.f32.mrb[0].mxu0
        %2177 = vdwg.mxu0
        %v2178 = vadd.f32 %v2032, %v2140
        %v2179 = vadd.f32 %v2033, %v2143
        %v2180 = vadd.f32 %v2034, %v2148
        %v2181 = vadd.f32 %v2035, %v2151
        %v2182 = vadd.f32 %v2036, %v2156
        %v2183 = vadd.f32 %v2037, %v2159
        %v2184 = vadd.f32 %v2038, %v2164
        %v2185 = vadd.f32 %v2039, %v2167
        %v2186 = vadd.f32 %v2040, %v2172
        %v2187 = vadd.f32 %v2041, %v2175
        %v2188 = vld [vmem:[#allocation3 + $0xc] sm:$0xff]
        %v2189 = vld [vmem:[#allocation3 + $0x14] sm:$0xff]
        %v2190 = vld [vmem:[#allocation3 + $0x1c] sm:$0xff]
        %v2191 = vld [vmem:[#allocation3 + $0x24] sm:$0xff]
        %v2192 = vld [vmem:[#allocation3 + $0x2c] sm:$0xff]
        %v2193 = vld [vmem:[#allocation3 + $0x34] sm:$0xff]
        %v2194 = vld [vmem:[#allocation3 + $0x3c] sm:$0xff]
        %v2195 = vld [vmem:[#allocation3 + $0x44] sm:$0xff]
        %v2196 = vld [vmem:[#allocation3 + $0x4c] sm:$0xff]
        %v2197 = vld [vmem:[#allocation3 + $0x54] sm:$0xff]
        %s2198 = scalar_lea.vmem %s2, 160
        %v2199 = vld [vmem:[%s2198] sm:$0xf]
        %v2200 = vld [vmem:[%s2198 + $0x4] sm:$0xf]
        %v2201 = vld [vmem:[%s2198 + $0x8] sm:$0xf]
        %v2202 = vld [vmem:[%s2198 + $0xc] sm:$0xf]
        %v2203 = vld [vmem:[%s2198 + $0x10] sm:$0xf]
        %v2204 = vld [vmem:[%s2198 + $0x14] sm:$0xf]
        %v2205 = vld [vmem:[%s2198 + $0x18] sm:$0xf]
        %v2206 = vld [vmem:[%s2198 + $0x1c] sm:$0xf]
        %v2207 = vpack.c.bf16 %v2189, %v2188
        %v2208 = vpack.c.bf16 %v2191, %v2190
        %v2209 = vpack.c.bf16 %v2193, %v2192
        %v2210 = vpack.c.bf16 %v2195, %v2194
        %v2211 = vpack.c.bf16 %v2197, %v2196
        %v2220 = vunpack.c.l.b16 %v2199
        %v2221 = vunpack.c.l.b16 %v2200
        %v2222 = vunpack.c.l.b16 %v2201
        %v2223 = vunpack.c.l.b16 %v2202
        %v2224 = vunpack.c.l.b16 %v2203
        %v2225 = vunpack.c.l.b16 %v2204
        %v2226 = vunpack.c.l.b16 %v2205
        %v2227 = vunpack.c.l.b16 %v2206
        %v2228 = vpack.c.b16 %v2221, %v2220
        %v2229 = vpack.c.b16 %v2223, %v2222
        %v2230 = vpack.c.b16 %v2225, %v2224
        %v2231 = vpack.c.b16 %v2227, %v2226
        %v2237 = vsel %vm568, %v2207, 0
        %v2240 = vsel %vm568, %v2208, 0
        %v2243 = vsel %vm568, %v2209, 0
        %v2246 = vsel %vm568, %v2210, 0
        %v2249 = vsel %vm568, %v2211, 0
        %2251 = vmatprep.subr.bf16.mxu0 0
        %2252 = vmatpush1.bf16.msra.mxu0 %v2228
        %2253 = vmatprep.subr.bf16.mxu0 0
        %2254 = vmatpush1.bf16.msra.mxu0 %v2229
        %2255 = vmatprep.subr.bf16.mxu0 0
        %2256 = vmatpush1.bf16.msra.mxu0 %v2230
        %2257 = vmatprep.subr.bf16.mxu0 0
        %2258 = vmatpush1.bf16.msra.mxu0 %v2231
        %2259 = vmatprep.subr.bf16.mxu0 0
        %2260 = vmatpush1.bf16.msra.mxu0 0
        %2261 = vmatprep.subr.bf16.mxu0 0
        %2262 = vmatpush1.bf16.msra.mxu0 0
        %2263 = vmatprep.subr.bf16.mxu0 0
        %2264 = vmatpush1.bf16.msra.mxu0 0
        %2265 = vmatprep.subr.bf16.mxu0 0
        %2266 = vmatpush1.bf16.msra.mxu0 0
        %2267 = vmatprep.subr.bf16.mxu0 0
        %2268 = vmatpush1.bf16.msra.mxu0 0
        %2269 = vmatprep.subr.bf16.mxu0 0
        %2270 = vmatpush1.bf16.msra.mxu0 0
        %2271 = vmatprep.subr.bf16.mxu0 0
        %2272 = vmatpush1.bf16.msra.mxu0 0
        %2273 = vmatprep.subr.bf16.mxu0 0
        %2274 = vmatpush1.bf16.msra.mxu0 0
        %2275 = vmatprep.subr.bf16.mxu0 0
        %2276 = vmatpush1.bf16.msra.mxu0 0
        %2277 = vmatprep.subr.bf16.mxu0 0
        %2278 = vmatpush1.bf16.msra.mxu0 0
        %2279 = vmatprep.subr.bf16.mxu0 0
        %2280 = vmatpush1.bf16.msra.mxu0 0
        %2281 = vmatprep.subr.bf16.mxu0 0
        %2282 = vmatpush1.bf16.msra.mxu0 0
        %2283 = vmatprep.mubr.bf16.mxu0 0
        %2284 = vmatmul.mubr.bf16.gmra.mrb[0].mxu0 %v2237
        %v2285 = vpop.f32.mrb[0].mxu0
        %v2286 = vadd.f32 0.0, %v2285
        %v2287 = vpop.f32.mrb[0].mxu0
        %v2288 = vpop.f32.mrb[0].mxu0
        %v2289 = vadd.f32 0.0, %v2288
        %v2290 = vpop.f32.mrb[0].mxu0
        %2291 = vmatprep.mubr.bf16.mxu0 0
        %2292 = vmatmul.mubr.bf16.gmra.mrb[0].mxu0 %v2240
        %v2293 = vpop.f32.mrb[0].mxu0
        %v2294 = vadd.f32 0.0, %v2293
        %v2295 = vpop.f32.mrb[0].mxu0
        %v2296 = vpop.f32.mrb[0].mxu0
        %v2297 = vadd.f32 0.0, %v2296
        %v2298 = vpop.f32.mrb[0].mxu0
        %2299 = vmatprep.mubr.bf16.mxu0 0
        %2300 = vmatmul.mubr.bf16.gmra.mrb[0].mxu0 %v2243
        %v2301 = vpop.f32.mrb[0].mxu0
        %v2302 = vadd.f32 0.0, %v2301
        %v2303 = vpop.f32.mrb[0].mxu0
        %v2304 = vpop.f32.mrb[0].mxu0
        %v2305 = vadd.f32 0.0, %v2304
        %v2306 = vpop.f32.mrb[0].mxu0
        %2307 = vmatprep.mubr.bf16.mxu0 0
        %2308 = vmatmul.mubr.bf16.gmra.mrb[0].mxu0 %v2246
        %v2309 = vpop.f32.mrb[0].mxu0
        %v2310 = vadd.f32 0.0, %v2309
        %v2311 = vpop.f32.mrb[0].mxu0
        %v2312 = vpop.f32.mrb[0].mxu0
        %v2313 = vadd.f32 0.0, %v2312
        %v2314 = vpop.f32.mrb[0].mxu0
        %2315 = vmatprep.mubr.bf16.mxu0 0
        %2316 = vmatmul.mubr.bf16.gmra.mrb[0].mxu0 %v2249
        %v2317 = vpop.f32.mrb[0].mxu0
        %v2318 = vadd.f32 0.0, %v2317
        %v2319 = vpop.f32.mrb[0].mxu0
        %v2320 = vpop.f32.mrb[0].mxu0
        %v2321 = vadd.f32 0.0, %v2320
        %v2322 = vpop.f32.mrb[0].mxu0
        %2323 = vdwg.mxu0
        %v2324 = vadd.f32 %v2178, %v2286
        %v2325 = vadd.f32 %v2179, %v2289
        %v2326 = vadd.f32 %v2180, %v2294
        %v2327 = vadd.f32 %v2181, %v2297
        %v2328 = vadd.f32 %v2182, %v2302
        %v2329 = vadd.f32 %v2183, %v2305
        %v2330 = vadd.f32 %v2184, %v2310
        %v2331 = vadd.f32 %v2185, %v2313
        %v2332 = vadd.f32 %v2186, %v2318
        %v2333 = vadd.f32 %v2187, %v2321
        %v2334 = vld [vmem:[#allocation3 + $0x14] sm:$0xff]
        %v2335 = vld [vmem:[#allocation3 + $0x1c] sm:$0xff]
        %v2336 = vld [vmem:[#allocation3 + $0x24] sm:$0xff]
        %v2337 = vld [vmem:[#allocation3 + $0x2c] sm:$0xff]
        %v2338 = vld [vmem:[#allocation3 + $0x34] sm:$0xff]
        %v2339 = vld [vmem:[#allocation3 + $0x3c] sm:$0xff]
        %v2340 = vld [vmem:[#allocation3 + $0x44] sm:$0xff]
        %v2341 = vld [vmem:[#allocation3 + $0x4c] sm:$0xff]
        %v2342 = vld [vmem:[#allocation3 + $0x54] sm:$0xff]
        %v2343 = vld [vmem:[#allocation3 + $0x5c] sm:$0xff]
        %s2344 = scalar_lea.vmem %s2, 192
        %v2345 = vld [vmem:[%s2344] sm:$0xf]
        %v2346 = vld [vmem:[%s2344 + $0x4] sm:$0xf]
        %v2347 = vld [vmem:[%s2344 + $0x8] sm:$0xf]
        %v2348 = vld [vmem:[%s2344 + $0xc] sm:$0xf]
        %v2349 = vld [vmem:[%s2344 + $0x10] sm:$0xf]
        %v2350 = vld [vmem:[%s2344 + $0x14] sm:$0xf]
        %v2351 = vld [vmem:[%s2344 + $0x18] sm:$0xf]
        %v2352 = vld [vmem:[%s2344 + $0x1c] sm:$0xf]
        %v2353 = vpack.c.bf16 %v2335, %v2334
        %v2354 = vpack.c.bf16 %v2337, %v2336
        %v2355 = vpack.c.bf16 %v2339, %v2338
        %v2356 = vpack.c.bf16 %v2341, %v2340
        %v2357 = vpack.c.bf16 %v2343, %v2342
        %v2366 = vunpack.c.l.b16 %v2345
        %v2367 = vunpack.c.l.b16 %v2346
        %v2368 = vunpack.c.l.b16 %v2347
        %v2369 = vunpack.c.l.b16 %v2348
        %v2370 = vunpack.c.l.b16 %v2349
        %v2371 = vunpack.c.l.b16 %v2350
        %v2372 = vunpack.c.l.b16 %v2351
        %v2373 = vunpack.c.l.b16 %v2352
        %v2374 = vpack.c.b16 %v2367, %v2366
        %v2375 = vpack.c.b16 %v2369, %v2368
        %v2376 = vpack.c.b16 %v2371, %v2370
        %v2377 = vpack.c.b16 %v2373, %v2372
        %v2383 = vsel %vm568, %v2353, 0
        %v2386 = vsel %vm568, %v2354, 0
        %v2389 = vsel %vm568, %v2355, 0
        %v2392 = vsel %vm568, %v2356, 0
        %v2395 = vsel %vm568, %v2357, 0
        %2397 = vmatprep.subr.bf16.mxu0 0
        %2398 = vmatpush1.bf16.msra.mxu0 %v2374
        %2399 = vmatprep.subr.bf16.mxu0 0
        %2400 = vmatpush1.bf16.msra.mxu0 %v2375
        %2401 = vmatprep.subr.bf16.mxu0 0
        %2402 = vmatpush1.bf16.msra.mxu0 %v2376
        %2403 = vmatprep.subr.bf16.mxu0 0
        %2404 = vmatpush1.bf16.msra.mxu0 %v2377
        %2405 = vmatprep.subr.bf16.mxu0 0
        %2406 = vmatpush1.bf16.msra.mxu0 0
        %2407 = vmatprep.subr.bf16.mxu0 0
        %2408 = vmatpush1.bf16.msra.mxu0 0
        %2409 = vmatprep.subr.bf16.mxu0 0
        %2410 = vmatpush1.bf16.msra.mxu0 0
        %2411 = vmatprep.subr.bf16.mxu0 0
        %2412 = vmatpush1.bf16.msra.mxu0 0
        %2413 = vmatprep.subr.bf16.mxu0 0
        %2414 = vmatpush1.bf16.msra.mxu0 0
        %2415 = vmatprep.subr.bf16.mxu0 0
        %2416 = vmatpush1.bf16.msra.mxu0 0
        %2417 = vmatprep.subr.bf16.mxu0 0
        %2418 = vmatpush1.bf16.msra.mxu0 0
        %2419 = vmatprep.subr.bf16.mxu0 0
        %2420 = vmatpush1.bf16.msra.mxu0 0
        %2421 = vmatprep.subr.bf16.mxu0 0
        %2422 = vmatpush1.bf16.msra.mxu0 0
        %2423 = vmatprep.subr.bf16.mxu0 0
        %2424 = vmatpush1.bf16.msra.mxu0 0
        %2425 = vmatprep.subr.bf16.mxu0 0
        %2426 = vmatpush1.bf16.msra.mxu0 0
        %2427 = vmatprep.subr.bf16.mxu0 0
        %2428 = vmatpush1.bf16.msra.mxu0 0
        %2429 = vmatprep.mubr.bf16.mxu0 0
        %2430 = vmatmul.mubr.bf16.gmra.mrb[0].mxu0 %v2383
        %v2431 = vpop.f32.mrb[0].mxu0
        %v2432 = vadd.f32 0.0, %v2431
        %v2433 = vpop.f32.mrb[0].mxu0
        %v2434 = vpop.f32.mrb[0].mxu0
        %v2435 = vadd.f32 0.0, %v2434
        %v2436 = vpop.f32.mrb[0].mxu0
        %2437 = vmatprep.mubr.bf16.mxu0 0
        %2438 = vmatmul.mubr.bf16.gmra.mrb[0].mxu0 %v2386
        %v2439 = vpop.f32.mrb[0].mxu0
        %v2440 = vadd.f32 0.0, %v2439
        %v2441 = vpop.f32.mrb[0].mxu0
        %v2442 = vpop.f32.mrb[0].mxu0
        %v2443 = vadd.f32 0.0, %v2442
        %v2444 = vpop.f32.mrb[0].mxu0
        %2445 = vmatprep.mubr.bf16.mxu0 0
        %2446 = vmatmul.mubr.bf16.gmra.mrb[0].mxu0 %v2389
        %v2447 = vpop.f32.mrb[0].mxu0
        %v2448 = vadd.f32 0.0, %v2447
        %v2449 = vpop.f32.mrb[0].mxu0
        %v2450 = vpop.f32.mrb[0].mxu0
        %v2451 = vadd.f32 0.0, %v2450
        %v2452 = vpop.f32.mrb[0].mxu0
        %2453 = vmatprep.mubr.bf16.mxu0 0
        %2454 = vmatmul.mubr.bf16.gmra.mrb[0].mxu0 %v2392
        %v2455 = vpop.f32.mrb[0].mxu0
        %v2456 = vadd.f32 0.0, %v2455
        %v2457 = vpop.f32.mrb[0].mxu0
        %v2458 = vpop.f32.mrb[0].mxu0
        %v2459 = vadd.f32 0.0, %v2458
        %v2460 = vpop.f32.mrb[0].mxu0
        %2461 = vmatprep.mubr.bf16.mxu0 0
        %2462 = vmatmul.mubr.bf16.gmra.mrb[0].mxu0 %v2395
        %v2463 = vpop.f32.mrb[0].mxu0
        %v2464 = vadd.f32 0.0, %v2463
        %v2465 = vpop.f32.mrb[0].mxu0
        %v2466 = vpop.f32.mrb[0].mxu0
        %v2467 = vadd.f32 0.0, %v2466
        %v2468 = vpop.f32.mrb[0].mxu0
        %2469 = vdwg.mxu0
        %v2470 = vadd.f32 %v2324, %v2432
        %v2471 = vadd.f32 %v2325, %v2435
        %v2472 = vadd.f32 %v2326, %v2440
        %v2473 = vadd.f32 %v2327, %v2443
        %v2474 = vadd.f32 %v2328, %v2448
        %v2475 = vadd.f32 %v2329, %v2451
        %v2476 = vadd.f32 %v2330, %v2456
        %v2477 = vadd.f32 %v2331, %v2459
        %v2478 = vadd.f32 %v2332, %v2464
        %v2479 = vadd.f32 %v2333, %v2467
        %v2480 = vld [vmem:[#allocation3 + $0x15] sm:$0xff]
        %v2481 = vld [vmem:[#allocation3 + $0x1d] sm:$0xff]
        %v2482 = vld [vmem:[#allocation3 + $0x25] sm:$0xff]
        %v2483 = vld [vmem:[#allocation3 + $0x2d] sm:$0xff]
        %v2484 = vld [vmem:[#allocation3 + $0x35] sm:$0xff]
        %v2485 = vld [vmem:[#allocation3 + $0x3d] sm:$0xff]
        %v2486 = vld [vmem:[#allocation3 + $0x45] sm:$0xff]
        %v2487 = vld [vmem:[#allocation3 + $0x4d] sm:$0xff]
        %v2488 = vld [vmem:[#allocation3 + $0x55] sm:$0xff]
        %v2489 = vld [vmem:[#allocation3 + $0x5d] sm:$0xff]
        %s2490 = scalar_lea.vmem %s2, 224
        %v2491 = vld [vmem:[%s2490] sm:$0xf]
        %v2492 = vld [vmem:[%s2490 + $0x4] sm:$0xf]
        %v2493 = vld [vmem:[%s2490 + $0x8] sm:$0xf]
        %v2494 = vld [vmem:[%s2490 + $0xc] sm:$0xf]
        %v2495 = vld [vmem:[%s2490 + $0x10] sm:$0xf]
        %v2496 = vld [vmem:[%s2490 + $0x14] sm:$0xf]
        %v2497 = vld [vmem:[%s2490 + $0x18] sm:$0xf]
        %v2498 = vld [vmem:[%s2490 + $0x1c] sm:$0xf]
        %v2499 = vpack.c.bf16 %v2481, %v2480
        %v2500 = vpack.c.bf16 %v2483, %v2482
        %v2501 = vpack.c.bf16 %v2485, %v2484
        %v2502 = vpack.c.bf16 %v2487, %v2486
        %v2503 = vpack.c.bf16 %v2489, %v2488
        %v2512 = vunpack.c.l.b16 %v2491
        %v2513 = vunpack.c.l.b16 %v2492
        %v2514 = vunpack.c.l.b16 %v2493
        %v2515 = vunpack.c.l.b16 %v2494
        %v2516 = vunpack.c.l.b16 %v2495
        %v2517 = vunpack.c.l.b16 %v2496
        %v2518 = vunpack.c.l.b16 %v2497
        %v2519 = vunpack.c.l.b16 %v2498
        %v2520 = vpack.c.b16 %v2513, %v2512
        %v2521 = vpack.c.b16 %v2515, %v2514
        %v2522 = vpack.c.b16 %v2517, %v2516
        %v2523 = vpack.c.b16 %v2519, %v2518
        %v2529 = vsel %vm568, %v2499, 0
        %v2532 = vsel %vm568, %v2500, 0
        %v2535 = vsel %vm568, %v2501, 0
        %v2538 = vsel %vm568, %v2502, 0
        %v2541 = vsel %vm568, %v2503, 0
        %2543 = vmatprep.subr.bf16.mxu0 0
        %2544 = vmatpush1.bf16.msra.mxu0 %v2520
        %2545 = vmatprep.subr.bf16.mxu0 0
        %2546 = vmatpush1.bf16.msra.mxu0 %v2521
        %2547 = vmatprep.subr.bf16.mxu0 0
        %2548 = vmatpush1.bf16.msra.mxu0 %v2522
        %2549 = vmatprep.subr.bf16.mxu0 0
        %2550 = vmatpush1.bf16.msra.mxu0 %v2523
        %2551 = vmatprep.subr.bf16.mxu0 0
        %2552 = vmatpush1.bf16.msra.mxu0 0
        %2553 = vmatprep.subr.bf16.mxu0 0
        %2554 = vmatpush1.bf16.msra.mxu0 0
        %2555 = vmatprep.subr.bf16.mxu0 0
        %2556 = vmatpush1.bf16.msra.mxu0 0
        %2557 = vmatprep.subr.bf16.mxu0 0
        %2558 = vmatpush1.bf16.msra.mxu0 0
        %2559 = vmatprep.subr.bf16.mxu0 0
        %2560 = vmatpush1.bf16.msra.mxu0 0
        %2561 = vmatprep.subr.bf16.mxu0 0
        %2562 = vmatpush1.bf16.msra.mxu0 0
        %2563 = vmatprep.subr.bf16.mxu0 0
        %2564 = vmatpush1.bf16.msra.mxu0 0
        %2565 = vmatprep.subr.bf16.mxu0 0
        %2566 = vmatpush1.bf16.msra.mxu0 0
        %2567 = vmatprep.subr.bf16.mxu0 0
        %2568 = vmatpush1.bf16.msra.mxu0 0
        %2569 = vmatprep.subr.bf16.mxu0 0
        %2570 = vmatpush1.bf16.msra.mxu0 0
        %2571 = vmatprep.subr.bf16.mxu0 0
        %2572 = vmatpush1.bf16.msra.mxu0 0
        %2573 = vmatprep.subr.bf16.mxu0 0
        %2574 = vmatpush1.bf16.msra.mxu0 0
        %2575 = vmatprep.mubr.bf16.mxu0 0
        %2576 = vmatmul.mubr.bf16.gmra.mrb[0].mxu0 %v2529
        %v2577 = vpop.f32.mrb[0].mxu0
        %v2578 = vadd.f32 0.0, %v2577
        %v2579 = vpop.f32.mrb[0].mxu0
        %v2580 = vpop.f32.mrb[0].mxu0
        %v2581 = vadd.f32 0.0, %v2580
        %v2582 = vpop.f32.mrb[0].mxu0
        %2583 = vmatprep.mubr.bf16.mxu0 0
        %2584 = vmatmul.mubr.bf16.gmra.mrb[0].mxu0 %v2532
        %v2585 = vpop.f32.mrb[0].mxu0
        %v2586 = vadd.f32 0.0, %v2585
        %v2587 = vpop.f32.mrb[0].mxu0
        %v2588 = vpop.f32.mrb[0].mxu0
        %v2589 = vadd.f32 0.0, %v2588
        %v2590 = vpop.f32.mrb[0].mxu0
        %2591 = vmatprep.mubr.bf16.mxu0 0
        %2592 = vmatmul.mubr.bf16.gmra.mrb[0].mxu0 %v2535
        %v2593 = vpop.f32.mrb[0].mxu0
        %v2594 = vadd.f32 0.0, %v2593
        %v2595 = vpop.f32.mrb[0].mxu0
        %v2596 = vpop.f32.mrb[0].mxu0
        %v2597 = vadd.f32 0.0, %v2596
        %v2598 = vpop.f32.mrb[0].mxu0
        %2599 = vmatprep.mubr.bf16.mxu0 0
        %2600 = vmatmul.mubr.bf16.gmra.mrb[0].mxu0 %v2538
        %v2601 = vpop.f32.mrb[0].mxu0
        %v2602 = vadd.f32 0.0, %v2601
        %v2603 = vpop.f32.mrb[0].mxu0
        %v2604 = vpop.f32.mrb[0].mxu0
        %v2605 = vadd.f32 0.0, %v2604
        %v2606 = vpop.f32.mrb[0].mxu0
        %2607 = vmatprep.mubr.bf16.mxu0 0
        %2608 = vmatmul.mubr.bf16.gmra.mrb[0].mxu0 %v2541
        %v2609 = vpop.f32.mrb[0].mxu0
        %v2610 = vadd.f32 0.0, %v2609
        %v2611 = vpop.f32.mrb[0].mxu0
        %v2612 = vpop.f32.mrb[0].mxu0
        %v2613 = vadd.f32 0.0, %v2612
        %v2614 = vpop.f32.mrb[0].mxu0
        %2615 = vdwg.mxu0
        %v2616 = vadd.f32 %v2470, %v2578
        %v2617 = vadd.f32 %v2471, %v2581
        %v2618 = vadd.f32 %v2472, %v2586
        %v2619 = vadd.f32 %v2473, %v2589
        %v2620 = vadd.f32 %v2474, %v2594
        %v2621 = vadd.f32 %v2475, %v2597
        %v2622 = vadd.f32 %v2476, %v2602
        %v2623 = vadd.f32 %v2477, %v2605
        %v2624 = vadd.f32 %v2478, %v2610
        %v2625 = vadd.f32 %v2479, %v2613
        %v2626 = vld [vmem:[#allocation3 + $0x16] sm:$0xff]
        %v2627 = vld [vmem:[#allocation3 + $0x1e] sm:$0xff]
        %v2628 = vld [vmem:[#allocation3 + $0x26] sm:$0xff]
        %v2629 = vld [vmem:[#allocation3 + $0x2e] sm:$0xff]
        %v2630 = vld [vmem:[#allocation3 + $0x36] sm:$0xff]
        %v2631 = vld [vmem:[#allocation3 + $0x3e] sm:$0xff]
        %v2632 = vld [vmem:[#allocation3 + $0x46] sm:$0xff]
        %v2633 = vld [vmem:[#allocation3 + $0x4e] sm:$0xff]
        %v2634 = vld [vmem:[#allocation3 + $0x56] sm:$0xff]
        %v2635 = vld [vmem:[#allocation3 + $0x5e] sm:$0xff]
        %s2636 = scalar_lea.vmem %s2, 256
        %v2637 = vld [vmem:[%s2636] sm:$0xf]
        %v2638 = vld [vmem:[%s2636 + $0x4] sm:$0xf]
        %v2639 = vld [vmem:[%s2636 + $0x8] sm:$0xf]
        %v2640 = vld [vmem:[%s2636 + $0xc] sm:$0xf]
        %v2641 = vld [vmem:[%s2636 + $0x10] sm:$0xf]
        %v2642 = vld [vmem:[%s2636 + $0x14] sm:$0xf]
        %v2643 = vld [vmem:[%s2636 + $0x18] sm:$0xf]
        %v2644 = vld [vmem:[%s2636 + $0x1c] sm:$0xf]
        %v2645 = vpack.c.bf16 %v2627, %v2626
        %v2646 = vpack.c.bf16 %v2629, %v2628
        %v2647 = vpack.c.bf16 %v2631, %v2630
        %v2648 = vpack.c.bf16 %v2633, %v2632
        %v2649 = vpack.c.bf16 %v2635, %v2634
        %v2658 = vunpack.c.l.b16 %v2637
        %v2659 = vunpack.c.l.b16 %v2638
        %v2660 = vunpack.c.l.b16 %v2639
        %v2661 = vunpack.c.l.b16 %v2640
        %v2662 = vunpack.c.l.b16 %v2641
        %v2663 = vunpack.c.l.b16 %v2642
        %v2664 = vunpack.c.l.b16 %v2643
        %v2665 = vunpack.c.l.b16 %v2644
        %v2666 = vpack.c.b16 %v2659, %v2658
        %v2667 = vpack.c.b16 %v2661, %v2660
        %v2668 = vpack.c.b16 %v2663, %v2662
        %v2669 = vpack.c.b16 %v2665, %v2664
        %v2675 = vsel %vm568, %v2645, 0
        %v2678 = vsel %vm568, %v2646, 0
        %v2681 = vsel %vm568, %v2647, 0
        %v2684 = vsel %vm568, %v2648, 0
        %v2687 = vsel %vm568, %v2649, 0
        %2689 = vmatprep.subr.bf16.mxu0 0
        %2690 = vmatpush1.bf16.msra.mxu0 %v2666
        %2691 = vmatprep.subr.bf16.mxu0 0
        %2692 = vmatpush1.bf16.msra.mxu0 %v2667
        %2693 = vmatprep.subr.bf16.mxu0 0
        %2694 = vmatpush1.bf16.msra.mxu0 %v2668
        %2695 = vmatprep.subr.bf16.mxu0 0
        %2696 = vmatpush1.bf16.msra.mxu0 %v2669
        %2697 = vmatprep.subr.bf16.mxu0 0
        %2698 = vmatpush1.bf16.msra.mxu0 0
        %2699 = vmatprep.subr.bf16.mxu0 0
        %2700 = vmatpush1.bf16.msra.mxu0 0
        %2701 = vmatprep.subr.bf16.mxu0 0
        %2702 = vmatpush1.bf16.msra.mxu0 0
        %2703 = vmatprep.subr.bf16.mxu0 0
        %2704 = vmatpush1.bf16.msra.mxu0 0
        %2705 = vmatprep.subr.bf16.mxu0 0
        %2706 = vmatpush1.bf16.msra.mxu0 0
        %2707 = vmatprep.subr.bf16.mxu0 0
        %2708 = vmatpush1.bf16.msra.mxu0 0
        %2709 = vmatprep.subr.bf16.mxu0 0
        %2710 = vmatpush1.bf16.msra.mxu0 0
        %2711 = vmatprep.subr.bf16.mxu0 0
        %2712 = vmatpush1.bf16.msra.mxu0 0
        %2713 = vmatprep.subr.bf16.mxu0 0
        %2714 = vmatpush1.bf16.msra.mxu0 0
        %2715 = vmatprep.subr.bf16.mxu0 0
        %2716 = vmatpush1.bf16.msra.mxu0 0
        %2717 = vmatprep.subr.bf16.mxu0 0
        %2718 = vmatpush1.bf16.msra.mxu0 0
        %2719 = vmatprep.subr.bf16.mxu0 0
        %2720 = vmatpush1.bf16.msra.mxu0 0
        %2721 = vmatprep.mubr.bf16.mxu0 0
        %2722 = vmatmul.mubr.bf16.gmra.mrb[0].mxu0 %v2675
        %v2723 = vpop.f32.mrb[0].mxu0
        %v2724 = vadd.f32 0.0, %v2723
        %v2725 = vpop.f32.mrb[0].mxu0
        %v2726 = vpop.f32.mrb[0].mxu0
        %v2727 = vadd.f32 0.0, %v2726
        %v2728 = vpop.f32.mrb[0].mxu0
        %2729 = vmatprep.mubr.bf16.mxu0 0
        %2730 = vmatmul.mubr.bf16.gmra.mrb[0].mxu0 %v2678
        %v2731 = vpop.f32.mrb[0].mxu0
        %v2732 = vadd.f32 0.0, %v2731
        %v2733 = vpop.f32.mrb[0].mxu0
        %v2734 = vpop.f32.mrb[0].mxu0
        %v2735 = vadd.f32 0.0, %v2734
        %v2736 = vpop.f32.mrb[0].mxu0
        %2737 = vmatprep.mubr.bf16.mxu0 0
        %2738 = vmatmul.mubr.bf16.gmra.mrb[0].mxu0 %v2681
        %v2739 = vpop.f32.mrb[0].mxu0
        %v2740 = vadd.f32 0.0, %v2739
        %v2741 = vpop.f32.mrb[0].mxu0
        %v2742 = vpop.f32.mrb[0].mxu0
        %v2743 = vadd.f32 0.0, %v2742
        %v2744 = vpop.f32.mrb[0].mxu0
        %2745 = vmatprep.mubr.bf16.mxu0 0
        %2746 = vmatmul.mubr.bf16.gmra.mrb[0].mxu0 %v2684
        %v2747 = vpop.f32.mrb[0].mxu0
        %v2748 = vadd.f32 0.0, %v2747
        %v2749 = vpop.f32.mrb[0].mxu0
        %v2750 = vpop.f32.mrb[0].mxu0
        %v2751 = vadd.f32 0.0, %v2750
        %v2752 = vpop.f32.mrb[0].mxu0
        %2753 = vmatprep.mubr.bf16.mxu0 0
        %2754 = vmatmul.mubr.bf16.gmra.mrb[0].mxu0 %v2687
        %v2755 = vpop.f32.mrb[0].mxu0
        %v2756 = vadd.f32 0.0, %v2755
        %v2757 = vpop.f32.mrb[0].mxu0
        %v2758 = vpop.f32.mrb[0].mxu0
        %v2759 = vadd.f32 0.0, %v2758
        %v2760 = vpop.f32.mrb[0].mxu0
        %2761 = vdwg.mxu0
        %v2762 = vadd.f32 %v2616, %v2724
        %v2763 = vadd.f32 %v2617, %v2727
        %v2764 = vadd.f32 %v2618, %v2732
        %v2765 = vadd.f32 %v2619, %v2735
        %v2766 = vadd.f32 %v2620, %v2740
        %v2767 = vadd.f32 %v2621, %v2743
        %v2768 = vadd.f32 %v2622, %v2748
        %v2769 = vadd.f32 %v2623, %v2751
        %v2770 = vadd.f32 %v2624, %v2756
        %v2771 = vadd.f32 %v2625, %v2759
        %vm2772 = vcmp.ge.f32.partialorder %v2762, 0.0
        %v2773 = vmul.f32 %v2762, 0.2
        %v2774 = vsel %vm2772, %v2762, %v2773
        %2775 = vst.msk [vmem:[#allocation4 + $0xb] sm:$0xff] %vm568, %v2774
        %vm2776 = vcmp.ge.f32.partialorder %v2763, 0.0
        %vm2777 = vcmp.ge.f32.partialorder %v2764, 0.0
        %v2778 = vmul.f32 %v2763, 0.2
        %v2779 = vmul.f32 %v2764, 0.2
        %v2780 = vsel %vm2776, %v2763, %v2778
        %v2781 = vsel %vm2777, %v2764, %v2779
        %2782 = vst.msk [vmem:[#allocation4 + $0x13] sm:$0xfc] %vm1441, %v2780
        %2783 = vst.msk [vmem:[#allocation4 + $0x1b] sm:$0x3] %vm603, %v2781
        %vm2784 = vcmp.ge.f32.partialorder %v2765, 0.0
        %v2785 = vmul.f32 %v2765, 0.2
        %v2786 = vsel %vm2784, %v2765, %v2785
        %2787 = vst.msk [vmem:[#allocation4 + $0x1b] sm:$0xf0] %vm1447, %v2781
        %2788 = vst.msk [vmem:[#allocation4 + $0x23] sm:$0xf] %vm1449, %v2786
        %vm2789 = vcmp.ge.f32.partialorder %v2766, 0.0
        %v2790 = vmul.f32 %v2766, 0.2
        %v2791 = vsel %vm2789, %v2766, %v2790
        %2792 = vst.msk [vmem:[#allocation4 + $0x23] sm:$0xc0] %vm1454, %v2786
        %2793 = vst.msk [vmem:[#allocation4 + $0x2b] sm:$0x3f] %vm582, %v2791
        %vm2794 = vcmp.ge.f32.partialorder %v2767, 0.0
        %v2795 = vmul.f32 %v2767, 0.2
        %v2796 = vsel %vm2794, %v2767, %v2795
        %2797 = vst.msk [vmem:[#allocation4 + $0x33] sm:$0xff] %vm568, %v2796
        %vm2798 = vcmp.ge.f32.partialorder %v2768, 0.0
        %vm2799 = vcmp.ge.f32.partialorder %v2769, 0.0
        %v2800 = vmul.f32 %v2768, 0.2
        %v2801 = vmul.f32 %v2769, 0.2
        %v2802 = vsel %vm2798, %v2768, %v2800
        %v2803 = vsel %vm2799, %v2769, %v2801
        %2804 = vst.msk [vmem:[#allocation4 + $0x3b] sm:$0xfc] %vm1441, %v2802
        %2805 = vst.msk [vmem:[#allocation4 + $0x43] sm:$0x3] %vm603, %v2803
        %vm2806 = vcmp.ge.f32.partialorder %v2770, 0.0
        %v2807 = vmul.f32 %v2770, 0.2
        %v2808 = vsel %vm2806, %v2770, %v2807
        %2809 = vst.msk [vmem:[#allocation4 + $0x43] sm:$0xf0] %vm1447, %v2803
        %2810 = vst.msk [vmem:[#allocation4 + $0x4b] sm:$0xf] %vm1449, %v2808
        %vm2811 = vcmp.ge.f32.partialorder %v2771, 0.0
        %v2812 = vmul.f32 %v2771, 0.2
        %v2813 = vsel %vm2811, %v2771, %v2812
        %2814 = vst.msk [vmem:[#allocation4 + $0x4b] sm:$0xc0] %vm1454, %v2808
        %2815 = vst.msk [vmem:[#allocation4 + $0x53] sm:$0x3f] %vm582, %v2813
        %v2816 = vld [vmem:[#allocation4] sm:$0xff]
        %v2817 = vld [vmem:[#allocation4 + $0x8] sm:$0xff]
        %v2818 = vld [vmem:[#allocation4 + $0x10] sm:$0xff]
        %v2819 = vld [vmem:[#allocation4 + $0x18] sm:$0xff]
        %v2820 = vld [vmem:[#allocation4 + $0x20] sm:$0xff]
        %v2821 = vld [vmem:[#allocation4 + $0x28] sm:$0xff]
        %v2822 = vld [vmem:[#allocation4 + $0x30] sm:$0xff]
        %v2823 = vld [vmem:[#allocation4 + $0x38] sm:$0xff]
        %v2824 = vld [vmem:[#allocation4 + $0x40] sm:$0xff]
        %v2825 = vld [vmem:[#allocation4 + $0x48] sm:$0xff]
        %v2826 = vld [vmem:[#allocation12] sm:$0xf]
        %v2827 = vld [vmem:[#allocation12 + $0x4] sm:$0xf]
        %v2828 = vld [vmem:[#allocation12 + $0x8] sm:$0xf]
        %v2829 = vld [vmem:[#allocation12 + $0xc] sm:$0xf]
        %v2830 = vld [vmem:[#allocation12 + $0x10] sm:$0xf]
        %v2831 = vld [vmem:[#allocation12 + $0x14] sm:$0xf]
        %v2832 = vld [vmem:[#allocation12 + $0x18] sm:$0xf]
        %v2833 = vld [vmem:[#allocation12 + $0x1c] sm:$0xf]
        %v2834 = vpack.c.bf16 %v2817, %v2816
        %v2835 = vpack.c.bf16 %v2819, %v2818
        %v2836 = vpack.c.bf16 %v2821, %v2820
        %v2837 = vpack.c.bf16 %v2823, %v2822
        %v2838 = vpack.c.bf16 %v2825, %v2824
        %v2839 = vld [vmem:[#allocation4 + $0x1] sm:$0xff]
        %v2840 = vld [vmem:[#allocation4 + $0x9] sm:$0xff]
        %v2841 = vld [vmem:[#allocation4 + $0x11] sm:$0xff]
        %v2842 = vld [vmem:[#allocation4 + $0x19] sm:$0xff]
        %v2843 = vld [vmem:[#allocation4 + $0x21] sm:$0xff]
        %v2844 = vld [vmem:[#allocation4 + $0x29] sm:$0xff]
        %v2845 = vld [vmem:[#allocation4 + $0x31] sm:$0xff]
        %v2846 = vld [vmem:[#allocation4 + $0x39] sm:$0xff]
        %v2847 = vld [vmem:[#allocation4 + $0x41] sm:$0xff]
        %v2848 = vld [vmem:[#allocation4 + $0x49] sm:$0xff]
        %s2849 = scalar_lea.vmem [#allocation12], 32
        %v2850 = vld [vmem:[%s2849] sm:$0xf]
        %v2851 = vld [vmem:[%s2849 + $0x4] sm:$0xf]
        %v2852 = vld [vmem:[%s2849 + $0x8] sm:$0xf]
        %v2853 = vld [vmem:[%s2849 + $0xc] sm:$0xf]
        %v2854 = vld [vmem:[%s2849 + $0x10] sm:$0xf]
        %v2855 = vld [vmem:[%s2849 + $0x14] sm:$0xf]
        %v2856 = vld [vmem:[%s2849 + $0x18] sm:$0xf]
        %v2857 = vld [vmem:[%s2849 + $0x1c] sm:$0xf]
        %v2858 = vpack.c.bf16 %v2840, %v2839
        %v2859 = vpack.c.bf16 %v2842, %v2841
        %v2860 = vpack.c.bf16 %v2844, %v2843
        %v2861 = vpack.c.bf16 %v2846, %v2845
        %v2862 = vpack.c.bf16 %v2848, %v2847
        %v2871 = vunpack.c.l.b16 %v2850
        %v2872 = vunpack.c.l.b16 %v2851
        %v2873 = vunpack.c.l.b16 %v2852
        %v2874 = vunpack.c.l.b16 %v2853
        %v2875 = vunpack.c.l.b16 %v2854
        %v2876 = vunpack.c.l.b16 %v2855
        %v2877 = vunpack.c.l.b16 %v2856
        %v2878 = vunpack.c.l.b16 %v2857
        %v2879 = vpack.c.b16 %v2872, %v2871
        %v2880 = vpack.c.b16 %v2874, %v2873
        %v2881 = vpack.c.b16 %v2876, %v2875
        %v2882 = vpack.c.b16 %v2878, %v2877
        %v2888 = vsel %vm568, %v2858, 0
        %v2891 = vsel %vm568, %v2859, 0
        %v2894 = vsel %vm568, %v2860, 0
        %v2897 = vsel %vm568, %v2861, 0
        %v2900 = vsel %vm568, %v2862, 0
        %2902 = vmatprep.subr.bf16.mxu0 0
        %2903 = vmatpush1.bf16.msra.mxu0 %v2879
        %2904 = vmatprep.subr.bf16.mxu0 0
        %2905 = vmatpush1.bf16.msra.mxu0 %v2880
        %2906 = vmatprep.subr.bf16.mxu0 0
        %2907 = vmatpush1.bf16.msra.mxu0 %v2881
        %2908 = vmatprep.subr.bf16.mxu0 0
        %2909 = vmatpush1.bf16.msra.mxu0 %v2882
        %2910 = vmatprep.subr.bf16.mxu0 0
        %2911 = vmatpush1.bf16.msra.mxu0 0
        %2912 = vmatprep.subr.bf16.mxu0 0
        %2913 = vmatpush1.bf16.msra.mxu0 0
        %2914 = vmatprep.subr.bf16.mxu0 0
        %2915 = vmatpush1.bf16.msra.mxu0 0
        %2916 = vmatprep.subr.bf16.mxu0 0
        %2917 = vmatpush1.bf16.msra.mxu0 0
        %2918 = vmatprep.subr.bf16.mxu0 0
        %2919 = vmatpush1.bf16.msra.mxu0 0
        %2920 = vmatprep.subr.bf16.mxu0 0
        %2921 = vmatpush1.bf16.msra.mxu0 0
        %2922 = vmatprep.subr.bf16.mxu0 0
        %2923 = vmatpush1.bf16.msra.mxu0 0
        %2924 = vmatprep.subr.bf16.mxu0 0
        %2925 = vmatpush1.bf16.msra.mxu0 0
        %2926 = vmatprep.subr.bf16.mxu0 0
        %2927 = vmatpush1.bf16.msra.mxu0 0
        %2928 = vmatprep.subr.bf16.mxu0 0
        %2929 = vmatpush1.bf16.msra.mxu0 0
        %2930 = vmatprep.subr.bf16.mxu0 0
        %2931 = vmatpush1.bf16.msra.mxu0 0
        %2932 = vmatprep.subr.bf16.mxu0 0
        %2933 = vmatpush1.bf16.msra.mxu0 0
        %2934 = vmatprep.mubr.bf16.mxu0 0
        %2935 = vmatmul.mubr.bf16.gmra.mrb[0].mxu0 %v2888
        %v2936 = vpop.f32.mrb[0].mxu0
        %v2937 = vadd.f32 0.0, %v2936
        %v2938 = vpop.f32.mrb[0].mxu0
        %v2939 = vpop.f32.mrb[0].mxu0
        %v2940 = vpop.f32.mrb[0].mxu0
        %2941 = vmatprep.mubr.bf16.mxu0 0
        %2942 = vmatmul.mubr.bf16.gmra.mrb[0].mxu0 %v2891
        %v2943 = vpop.f32.mrb[0].mxu0
        %v2944 = vadd.f32 0.0, %v2943
        %v2945 = vpop.f32.mrb[0].mxu0
        %v2946 = vpop.f32.mrb[0].mxu0
        %v2947 = vadd.f32 0.0, %v2946
        %v2948 = vpop.f32.mrb[0].mxu0
        %2949 = vmatprep.mubr.bf16.mxu0 0
        %2950 = vmatmul.mubr.bf16.gmra.mrb[0].mxu0 %v2894
        %v2951 = vpop.f32.mrb[0].mxu0
        %v2952 = vpop.f32.mrb[0].mxu0
        %v2953 = vpop.f32.mrb[0].mxu0
        %v2954 = vadd.f32 0.0, %v2953
        %v2955 = vpop.f32.mrb[0].mxu0
        %2956 = vmatprep.mubr.bf16.mxu0 0
        %2957 = vmatmul.mubr.bf16.gmra.mrb[0].mxu0 %v2897
        %v2958 = vpop.f32.mrb[0].mxu0
        %v2959 = vpop.f32.mrb[0].mxu0
        %v2960 = vpop.f32.mrb[0].mxu0
        %v2961 = vadd.f32 0.0, %v2960
        %v2962 = vpop.f32.mrb[0].mxu0
        %2963 = vmatprep.mubr.bf16.mxu0 0
        %2964 = vmatmul.mubr.bf16.gmra.mrb[0].mxu0 %v2900
        %v2965 = vpop.f32.mrb[0].mxu0
        %v2966 = vadd.f32 0.0, %v2965
        %v2967 = vpop.f32.mrb[0].mxu0
        %v2968 = vpop.f32.mrb[0].mxu0
        %v2969 = vpop.f32.mrb[0].mxu0
        %2970 = vdwg.mxu0
        %v2979 = vunpack.c.l.b16 %v2826
        %v2980 = vunpack.c.l.b16 %v2827
        %v2981 = vunpack.c.l.b16 %v2828
        %v2982 = vunpack.c.l.b16 %v2829
        %v2983 = vunpack.c.l.b16 %v2830
        %v2984 = vunpack.c.l.b16 %v2831
        %v2985 = vunpack.c.l.b16 %v2832
        %v2986 = vunpack.c.l.b16 %v2833
        %v2987 = vpack.c.b16 %v2980, %v2979
        %v2988 = vpack.c.b16 %v2982, %v2981
        %v2989 = vpack.c.b16 %v2984, %v2983
        %v2990 = vpack.c.b16 %v2986, %v2985
        %v2996 = vsel %vm568, %v2834, 0
        %v2999 = vsel %vm568, %v2835, 0
        %v3002 = vsel %vm568, %v2836, 0
        %v3005 = vsel %vm568, %v2837, 0
        %v3008 = vsel %vm568, %v2838, 0
        %3010 = vmatprep.subr.bf16.mxu0 0
        %3011 = vmatpush1.bf16.msra.mxu0 %v2987
        %3012 = vmatprep.subr.bf16.mxu0 0
        %3013 = vmatpush1.bf16.msra.mxu0 %v2988
        %3014 = vmatprep.subr.bf16.mxu0 0
        %3015 = vmatpush1.bf16.msra.mxu0 %v2989
        %3016 = vmatprep.subr.bf16.mxu0 0
        %3017 = vmatpush1.bf16.msra.mxu0 %v2990
        %3018 = vmatprep.subr.bf16.mxu0 0
        %3019 = vmatpush1.bf16.msra.mxu0 0
        %3020 = vmatprep.subr.bf16.mxu0 0
        %3021 = vmatpush1.bf16.msra.mxu0 0
        %3022 = vmatprep.subr.bf16.mxu0 0
        %3023 = vmatpush1.bf16.msra.mxu0 0
        %3024 = vmatprep.subr.bf16.mxu0 0
        %3025 = vmatpush1.bf16.msra.mxu0 0
        %3026 = vmatprep.subr.bf16.mxu0 0
        %3027 = vmatpush1.bf16.msra.mxu0 0
        %3028 = vmatprep.subr.bf16.mxu0 0
        %3029 = vmatpush1.bf16.msra.mxu0 0
        %3030 = vmatprep.subr.bf16.mxu0 0
        %3031 = vmatpush1.bf16.msra.mxu0 0
        %3032 = vmatprep.subr.bf16.mxu0 0
        %3033 = vmatpush1.bf16.msra.mxu0 0
        %3034 = vmatprep.subr.bf16.mxu0 0
        %3035 = vmatpush1.bf16.msra.mxu0 0
        %3036 = vmatprep.subr.bf16.mxu0 0
        %3037 = vmatpush1.bf16.msra.mxu0 0
        %3038 = vmatprep.subr.bf16.mxu0 0
        %3039 = vmatpush1.bf16.msra.mxu0 0
        %3040 = vmatprep.subr.bf16.mxu0 0
        %3041 = vmatpush1.bf16.msra.mxu0 0
        %3042 = vmatprep.mubr.bf16.mxu0 0
        %3043 = vmatmul.mubr.bf16.gmra.mrb[0].mxu0 %v2996
        %v3044 = vpop.f32.mrb[0].mxu0
        %v3045 = vadd.f32 %v2937, %v3044
        %v3046 = vpop.f32.mrb[0].mxu0
        %v3047 = vpop.f32.mrb[0].mxu0
        %v3048 = vpop.f32.mrb[0].mxu0
        %3049 = vmatprep.mubr.bf16.mxu0 0
        %3050 = vmatmul.mubr.bf16.gmra.mrb[0].mxu0 %v2999
        %v3051 = vpop.f32.mrb[0].mxu0
        %v3052 = vadd.f32 %v2944, %v3051
        %v3053 = vpop.f32.mrb[0].mxu0
        %v3054 = vpop.f32.mrb[0].mxu0
        %v3055 = vadd.f32 %v2947, %v3054
        %v3056 = vpop.f32.mrb[0].mxu0
        %3057 = vmatprep.mubr.bf16.mxu0 0
        %3058 = vmatmul.mubr.bf16.gmra.mrb[0].mxu0 %v3002
        %v3059 = vpop.f32.mrb[0].mxu0
        %v3060 = vpop.f32.mrb[0].mxu0
        %v3061 = vpop.f32.mrb[0].mxu0
        %v3062 = vadd.f32 %v2954, %v3061
        %v3063 = vpop.f32.mrb[0].mxu0
        %3064 = vmatprep.mubr.bf16.mxu0 0
        %3065 = vmatmul.mubr.bf16.gmra.mrb[0].mxu0 %v3005
        %v3066 = vpop.f32.mrb[0].mxu0
        %v3067 = vpop.f32.mrb[0].mxu0
        %v3068 = vpop.f32.mrb[0].mxu0
        %v3069 = vadd.f32 %v2961, %v3068
        %v3070 = vpop.f32.mrb[0].mxu0
        %3071 = vmatprep.mubr.bf16.mxu0 0
        %3072 = vmatmul.mubr.bf16.gmra.mrb[0].mxu0 %v3008
        %v3073 = vpop.f32.mrb[0].mxu0
        %v3074 = vadd.f32 %v2966, %v3073
        %v3075 = vpop.f32.mrb[0].mxu0
        %v3076 = vpop.f32.mrb[0].mxu0
        %v3077 = vpop.f32.mrb[0].mxu0
        %3078 = vdwg.mxu0
        %v3079 = vld [vmem:[#allocation4 + $0x2] sm:$0xff]
        %v3080 = vld [vmem:[#allocation4 + $0xa] sm:$0xff]
        %v3081 = vld [vmem:[#allocation4 + $0x12] sm:$0xff]
        %v3082 = vld [vmem:[#allocation4 + $0x1a] sm:$0xff]
        %v3083 = vld [vmem:[#allocation4 + $0x22] sm:$0xff]
        %v3084 = vld [vmem:[#allocation4 + $0x2a] sm:$0xff]
        %v3085 = vld [vmem:[#allocation4 + $0x32] sm:$0xff]
        %v3086 = vld [vmem:[#allocation4 + $0x3a] sm:$0xff]
        %v3087 = vld [vmem:[#allocation4 + $0x42] sm:$0xff]
        %v3088 = vld [vmem:[#allocation4 + $0x4a] sm:$0xff]
        %s3089 = scalar_lea.vmem [#allocation12], 64
        %v3090 = vld [vmem:[%s3089] sm:$0xf]
        %v3091 = vld [vmem:[%s3089 + $0x4] sm:$0xf]
        %v3092 = vld [vmem:[%s3089 + $0x8] sm:$0xf]
        %v3093 = vld [vmem:[%s3089 + $0xc] sm:$0xf]
        %v3094 = vld [vmem:[%s3089 + $0x10] sm:$0xf]
        %v3095 = vld [vmem:[%s3089 + $0x14] sm:$0xf]
        %v3096 = vld [vmem:[%s3089 + $0x18] sm:$0xf]
        %v3097 = vld [vmem:[%s3089 + $0x1c] sm:$0xf]
        %v3098 = vpack.c.bf16 %v3080, %v3079
        %v3099 = vpack.c.bf16 %v3082, %v3081
        %v3100 = vpack.c.bf16 %v3084, %v3083
        %v3101 = vpack.c.bf16 %v3086, %v3085
        %v3102 = vpack.c.bf16 %v3088, %v3087
        %v3111 = vunpack.c.l.b16 %v3090
        %v3112 = vunpack.c.l.b16 %v3091
        %v3113 = vunpack.c.l.b16 %v3092
        %v3114 = vunpack.c.l.b16 %v3093
        %v3115 = vunpack.c.l.b16 %v3094
        %v3116 = vunpack.c.l.b16 %v3095
        %v3117 = vunpack.c.l.b16 %v3096
        %v3118 = vunpack.c.l.b16 %v3097
        %v3119 = vpack.c.b16 %v3112, %v3111
        %v3120 = vpack.c.b16 %v3114, %v3113
        %v3121 = vpack.c.b16 %v3116, %v3115
        %v3122 = vpack.c.b16 %v3118, %v3117
        %v3128 = vsel %vm568, %v3098, 0
        %v3131 = vsel %vm568, %v3099, 0
        %v3134 = vsel %vm568, %v3100, 0
        %v3137 = vsel %vm568, %v3101, 0
        %v3140 = vsel %vm568, %v3102, 0
        %3142 = vmatprep.subr.bf16.mxu0 0
        %3143 = vmatpush1.bf16.msra.mxu0 %v3119
        %3144 = vmatprep.subr.bf16.mxu0 0
        %3145 = vmatpush1.bf16.msra.mxu0 %v3120
        %3146 = vmatprep.subr.bf16.mxu0 0
        %3147 = vmatpush1.bf16.msra.mxu0 %v3121
        %3148 = vmatprep.subr.bf16.mxu0 0
        %3149 = vmatpush1.bf16.msra.mxu0 %v3122
        %3150 = vmatprep.subr.bf16.mxu0 0
        %3151 = vmatpush1.bf16.msra.mxu0 0
        %3152 = vmatprep.subr.bf16.mxu0 0
        %3153 = vmatpush1.bf16.msra.mxu0 0
        %3154 = vmatprep.subr.bf16.mxu0 0
        %3155 = vmatpush1.bf16.msra.mxu0 0
        %3156 = vmatprep.subr.bf16.mxu0 0
        %3157 = vmatpush1.bf16.msra.mxu0 0
        %3158 = vmatprep.subr.bf16.mxu0 0
        %3159 = vmatpush1.bf16.msra.mxu0 0
        %3160 = vmatprep.subr.bf16.mxu0 0
        %3161 = vmatpush1.bf16.msra.mxu0 0
        %3162 = vmatprep.subr.bf16.mxu0 0
        %3163 = vmatpush1.bf16.msra.mxu0 0
        %3164 = vmatprep.subr.bf16.mxu0 0
        %3165 = vmatpush1.bf16.msra.mxu0 0
        %3166 = vmatprep.subr.bf16.mxu0 0
        %3167 = vmatpush1.bf16.msra.mxu0 0
        %3168 = vmatprep.subr.bf16.mxu0 0
        %3169 = vmatpush1.bf16.msra.mxu0 0
        %3170 = vmatprep.subr.bf16.mxu0 0
        %3171 = vmatpush1.bf16.msra.mxu0 0
        %3172 = vmatprep.subr.bf16.mxu0 0
        %3173 = vmatpush1.bf16.msra.mxu0 0
        %3174 = vmatprep.mubr.bf16.mxu0 0
        %3175 = vmatmul.mubr.bf16.gmra.mrb[0].mxu0 %v3128
        %v3176 = vpop.f32.mrb[0].mxu0
        %v3177 = vadd.f32 0.0, %v3176
        %v3178 = vpop.f32.mrb[0].mxu0
        %v3179 = vpop.f32.mrb[0].mxu0
        %v3180 = vpop.f32.mrb[0].mxu0
        %3181 = vmatprep.mubr.bf16.mxu0 0
        %3182 = vmatmul.mubr.bf16.gmra.mrb[0].mxu0 %v3131
        %v3183 = vpop.f32.mrb[0].mxu0
        %v3184 = vadd.f32 0.0, %v3183
        %v3185 = vpop.f32.mrb[0].mxu0
        %v3186 = vpop.f32.mrb[0].mxu0
        %v3187 = vadd.f32 0.0, %v3186
        %v3188 = vpop.f32.mrb[0].mxu0
        %3189 = vmatprep.mubr.bf16.mxu0 0
        %3190 = vmatmul.mubr.bf16.gmra.mrb[0].mxu0 %v3134
        %v3191 = vpop.f32.mrb[0].mxu0
        %v3192 = vpop.f32.mrb[0].mxu0
        %v3193 = vpop.f32.mrb[0].mxu0
        %v3194 = vadd.f32 0.0, %v3193
        %v3195 = vpop.f32.mrb[0].mxu0
        %3196 = vmatprep.mubr.bf16.mxu0 0
        %3197 = vmatmul.mubr.bf16.gmra.mrb[0].mxu0 %v3137
        %v3198 = vpop.f32.mrb[0].mxu0
        %v3199 = vpop.f32.mrb[0].mxu0
        %v3200 = vpop.f32.mrb[0].mxu0
        %v3201 = vadd.f32 0.0, %v3200
        %v3202 = vpop.f32.mrb[0].mxu0
        %3203 = vmatprep.mubr.bf16.mxu0 0
        %3204 = vmatmul.mubr.bf16.gmra.mrb[0].mxu0 %v3140
        %v3205 = vpop.f32.mrb[0].mxu0
        %v3206 = vadd.f32 0.0, %v3205
        %v3207 = vpop.f32.mrb[0].mxu0
        %v3208 = vpop.f32.mrb[0].mxu0
        %v3209 = vpop.f32.mrb[0].mxu0
        %3210 = vdwg.mxu0
        %v3211 = vadd.f32 %v3045, %v3177
        %v3212 = vadd.f32 %v3052, %v3184
        %v3213 = vadd.f32 %v3055, %v3187
        %v3214 = vadd.f32 %v3062, %v3194
        %v3215 = vadd.f32 %v3069, %v3201
        %v3216 = vadd.f32 %v3074, %v3206
        %v3217 = vld [vmem:[#allocation4 + $0xa] sm:$0xff]
        %v3218 = vld [vmem:[#allocation4 + $0x12] sm:$0xff]
        %v3219 = vld [vmem:[#allocation4 + $0x1a] sm:$0xff]
        %v3220 = vld [vmem:[#allocation4 + $0x22] sm:$0xff]
        %v3221 = vld [vmem:[#allocation4 + $0x2a] sm:$0xff]
        %v3222 = vld [vmem:[#allocation4 + $0x32] sm:$0xff]
        %v3223 = vld [vmem:[#allocation4 + $0x3a] sm:$0xff]
        %v3224 = vld [vmem:[#allocation4 + $0x42] sm:$0xff]
        %v3225 = vld [vmem:[#allocation4 + $0x4a] sm:$0xff]
        %v3226 = vld [vmem:[#allocation4 + $0x52] sm:$0xff]
        %s3227 = scalar_lea.vmem [#allocation12], 96
        %v3228 = vld [vmem:[%s3227] sm:$0xf]
        %v3229 = vld [vmem:[%s3227 + $0x4] sm:$0xf]
        %v3230 = vld [vmem:[%s3227 + $0x8] sm:$0xf]
        %v3231 = vld [vmem:[%s3227 + $0xc] sm:$0xf]
        %v3232 = vld [vmem:[%s3227 + $0x10] sm:$0xf]
        %v3233 = vld [vmem:[%s3227 + $0x14] sm:$0xf]
        %v3234 = vld [vmem:[%s3227 + $0x18] sm:$0xf]
        %v3235 = vld [vmem:[%s3227 + $0x1c] sm:$0xf]
        %v3236 = vpack.c.bf16 %v3218, %v3217
        %v3237 = vpack.c.bf16 %v3220, %v3219
        %v3238 = vpack.c.bf16 %v3222, %v3221
        %v3239 = vpack.c.bf16 %v3224, %v3223
        %v3240 = vpack.c.bf16 %v3226, %v3225
        %v3249 = vunpack.c.l.b16 %v3228
        %v3250 = vunpack.c.l.b16 %v3229
        %v3251 = vunpack.c.l.b16 %v3230
        %v3252 = vunpack.c.l.b16 %v3231
        %v3253 = vunpack.c.l.b16 %v3232
        %v3254 = vunpack.c.l.b16 %v3233
        %v3255 = vunpack.c.l.b16 %v3234
        %v3256 = vunpack.c.l.b16 %v3235
        %v3257 = vpack.c.b16 %v3250, %v3249
        %v3258 = vpack.c.b16 %v3252, %v3251
        %v3259 = vpack.c.b16 %v3254, %v3253
        %v3260 = vpack.c.b16 %v3256, %v3255
        %v3266 = vsel %vm568, %v3236, 0
        %v3269 = vsel %vm568, %v3237, 0
        %v3272 = vsel %vm568, %v3238, 0
        %v3275 = vsel %vm568, %v3239, 0
        %v3278 = vsel %vm568, %v3240, 0
        %3280 = vmatprep.subr.bf16.mxu0 0
        %3281 = vmatpush1.bf16.msra.mxu0 %v3257
        %3282 = vmatprep.subr.bf16.mxu0 0
        %3283 = vmatpush1.bf16.msra.mxu0 %v3258
        %3284 = vmatprep.subr.bf16.mxu0 0
        %3285 = vmatpush1.bf16.msra.mxu0 %v3259
        %3286 = vmatprep.subr.bf16.mxu0 0
        %3287 = vmatpush1.bf16.msra.mxu0 %v3260
        %3288 = vmatprep.subr.bf16.mxu0 0
        %3289 = vmatpush1.bf16.msra.mxu0 0
        %3290 = vmatprep.subr.bf16.mxu0 0
        %3291 = vmatpush1.bf16.msra.mxu0 0
        %3292 = vmatprep.subr.bf16.mxu0 0
        %3293 = vmatpush1.bf16.msra.mxu0 0
        %3294 = vmatprep.subr.bf16.mxu0 0
        %3295 = vmatpush1.bf16.msra.mxu0 0
        %3296 = vmatprep.subr.bf16.mxu0 0
        %3297 = vmatpush1.bf16.msra.mxu0 0
        %3298 = vmatprep.subr.bf16.mxu0 0
        %3299 = vmatpush1.bf16.msra.mxu0 0
        %3300 = vmatprep.subr.bf16.mxu0 0
        %3301 = vmatpush1.bf16.msra.mxu0 0
        %3302 = vmatprep.subr.bf16.mxu0 0
        %3303 = vmatpush1.bf16.msra.mxu0 0
        %3304 = vmatprep.subr.bf16.mxu0 0
        %3305 = vmatpush1.bf16.msra.mxu0 0
        %3306 = vmatprep.subr.bf16.mxu0 0
        %3307 = vmatpush1.bf16.msra.mxu0 0
        %3308 = vmatprep.subr.bf16.mxu0 0
        %3309 = vmatpush1.bf16.msra.mxu0 0
        %3310 = vmatprep.subr.bf16.mxu0 0
        %3311 = vmatpush1.bf16.msra.mxu0 0
        %3312 = vmatprep.mubr.bf16.mxu0 0
        %3313 = vmatmul.mubr.bf16.gmra.mrb[0].mxu0 %v3266
        %v3314 = vpop.f32.mrb[0].mxu0
        %v3315 = vadd.f32 0.0, %v3314
        %v3316 = vpop.f32.mrb[0].mxu0
        %v3317 = vpop.f32.mrb[0].mxu0
        %v3318 = vpop.f32.mrb[0].mxu0
        %3319 = vmatprep.mubr.bf16.mxu0 0
        %3320 = vmatmul.mubr.bf16.gmra.mrb[0].mxu0 %v3269
        %v3321 = vpop.f32.mrb[0].mxu0
        %v3322 = vadd.f32 0.0, %v3321
        %v3323 = vpop.f32.mrb[0].mxu0
        %v3324 = vpop.f32.mrb[0].mxu0
        %v3325 = vadd.f32 0.0, %v3324
        %v3326 = vpop.f32.mrb[0].mxu0
        %3327 = vmatprep.mubr.bf16.mxu0 0
        %3328 = vmatmul.mubr.bf16.gmra.mrb[0].mxu0 %v3272
        %v3329 = vpop.f32.mrb[0].mxu0
        %v3330 = vpop.f32.mrb[0].mxu0
        %v3331 = vpop.f32.mrb[0].mxu0
        %v3332 = vadd.f32 0.0, %v3331
        %v3333 = vpop.f32.mrb[0].mxu0
        %3334 = vmatprep.mubr.bf16.mxu0 0
        %3335 = vmatmul.mubr.bf16.gmra.mrb[0].mxu0 %v3275
        %v3336 = vpop.f32.mrb[0].mxu0
        %v3337 = vpop.f32.mrb[0].mxu0
        %v3338 = vpop.f32.mrb[0].mxu0
        %v3339 = vadd.f32 0.0, %v3338
        %v3340 = vpop.f32.mrb[0].mxu0
        %3341 = vmatprep.mubr.bf16.mxu0 0
        %3342 = vmatmul.mubr.bf16.gmra.mrb[0].mxu0 %v3278
        %v3343 = vpop.f32.mrb[0].mxu0
        %v3344 = vadd.f32 0.0, %v3343
        %v3345 = vpop.f32.mrb[0].mxu0
        %v3346 = vpop.f32.mrb[0].mxu0
        %v3347 = vpop.f32.mrb[0].mxu0
        %3348 = vdwg.mxu0
        %v3349 = vadd.f32 %v3211, %v3315
        %v3350 = vadd.f32 %v3212, %v3322
        %v3351 = vadd.f32 %v3213, %v3325
        %v3352 = vadd.f32 %v3214, %v3332
        %v3353 = vadd.f32 %v3215, %v3339
        %v3354 = vadd.f32 %v3216, %v3344
        %v3355 = vld [vmem:[#allocation4 + $0xb] sm:$0xff]
        %v3356 = vld [vmem:[#allocation4 + $0x13] sm:$0xff]
        %v3357 = vld [vmem:[#allocation4 + $0x1b] sm:$0xff]
        %v3358 = vld [vmem:[#allocation4 + $0x23] sm:$0xff]
        %v3359 = vld [vmem:[#allocation4 + $0x2b] sm:$0xff]
        %v3360 = vld [vmem:[#allocation4 + $0x33] sm:$0xff]
        %v3361 = vld [vmem:[#allocation4 + $0x3b] sm:$0xff]
        %v3362 = vld [vmem:[#allocation4 + $0x43] sm:$0xff]
        %v3363 = vld [vmem:[#allocation4 + $0x4b] sm:$0xff]
        %v3364 = vld [vmem:[#allocation4 + $0x53] sm:$0xff]
        %s3365 = scalar_lea.vmem [#allocation12], 128
        %v3366 = vld [vmem:[%s3365] sm:$0xf]
        %v3367 = vld [vmem:[%s3365 + $0x4] sm:$0xf]
        %v3368 = vld [vmem:[%s3365 + $0x8] sm:$0xf]
        %v3369 = vld [vmem:[%s3365 + $0xc] sm:$0xf]
        %v3370 = vld [vmem:[%s3365 + $0x10] sm:$0xf]
        %v3371 = vld [vmem:[%s3365 + $0x14] sm:$0xf]
        %v3372 = vld [vmem:[%s3365 + $0x18] sm:$0xf]
        %v3373 = vld [vmem:[%s3365 + $0x1c] sm:$0xf]
        %v3374 = vpack.c.bf16 %v3356, %v3355
        %v3375 = vpack.c.bf16 %v3358, %v3357
        %v3376 = vpack.c.bf16 %v3360, %v3359
        %v3377 = vpack.c.bf16 %v3362, %v3361
        %v3378 = vpack.c.bf16 %v3364, %v3363
        %v3387 = vunpack.c.l.b16 %v3366
        %v3388 = vunpack.c.l.b16 %v3367
        %v3389 = vunpack.c.l.b16 %v3368
        %v3390 = vunpack.c.l.b16 %v3369
        %v3391 = vunpack.c.l.b16 %v3370
        %v3392 = vunpack.c.l.b16 %v3371
        %v3393 = vunpack.c.l.b16 %v3372
        %v3394 = vunpack.c.l.b16 %v3373
        %v3395 = vpack.c.b16 %v3388, %v3387
        %v3396 = vpack.c.b16 %v3390, %v3389
        %v3397 = vpack.c.b16 %v3392, %v3391
        %v3398 = vpack.c.b16 %v3394, %v3393
        %v3404 = vsel %vm568, %v3374, 0
        %v3407 = vsel %vm568, %v3375, 0
        %v3410 = vsel %vm568, %v3376, 0
        %v3413 = vsel %vm568, %v3377, 0
        %v3416 = vsel %vm568, %v3378, 0
        %3418 = vmatprep.subr.bf16.mxu0 0
        %3419 = vmatpush1.bf16.msra.mxu0 %v3395
        %3420 = vmatprep.subr.bf16.mxu0 0
        %3421 = vmatpush1.bf16.msra.mxu0 %v3396
        %3422 = vmatprep.subr.bf16.mxu0 0
        %3423 = vmatpush1.bf16.msra.mxu0 %v3397
        %3424 = vmatprep.subr.bf16.mxu0 0
        %3425 = vmatpush1.bf16.msra.mxu0 %v3398
        %3426 = vmatprep.subr.bf16.mxu0 0
        %3427 = vmatpush1.bf16.msra.mxu0 0
        %3428 = vmatprep.subr.bf16.mxu0 0
        %3429 = vmatpush1.bf16.msra.mxu0 0
        %3430 = vmatprep.subr.bf16.mxu0 0
        %3431 = vmatpush1.bf16.msra.mxu0 0
        %3432 = vmatprep.subr.bf16.mxu0 0
        %3433 = vmatpush1.bf16.msra.mxu0 0
        %3434 = vmatprep.subr.bf16.mxu0 0
        %3435 = vmatpush1.bf16.msra.mxu0 0
        %3436 = vmatprep.subr.bf16.mxu0 0
        %3437 = vmatpush1.bf16.msra.mxu0 0
        %3438 = vmatprep.subr.bf16.mxu0 0
        %3439 = vmatpush1.bf16.msra.mxu0 0
        %3440 = vmatprep.subr.bf16.mxu0 0
        %3441 = vmatpush1.bf16.msra.mxu0 0
        %3442 = vmatprep.subr.bf16.mxu0 0
        %3443 = vmatpush1.bf16.msra.mxu0 0
        %3444 = vmatprep.subr.bf16.mxu0 0
        %3445 = vmatpush1.bf16.msra.mxu0 0
        %3446 = vmatprep.subr.bf16.mxu0 0
        %3447 = vmatpush1.bf16.msra.mxu0 0
        %3448 = vmatprep.subr.bf16.mxu0 0
        %3449 = vmatpush1.bf16.msra.mxu0 0
        %3450 = vmatprep.mubr.bf16.mxu0 0
        %3451 = vmatmul.mubr.bf16.gmra.mrb[0].mxu0 %v3404
        %v3452 = vpop.f32.mrb[0].mxu0
        %v3453 = vadd.f32 0.0, %v3452
        %v3454 = vpop.f32.mrb[0].mxu0
        %v3455 = vpop.f32.mrb[0].mxu0
        %v3456 = vpop.f32.mrb[0].mxu0
        %3457 = vmatprep.mubr.bf16.mxu0 0
        %3458 = vmatmul.mubr.bf16.gmra.mrb[0].mxu0 %v3407
        %v3459 = vpop.f32.mrb[0].mxu0
        %v3460 = vadd.f32 0.0, %v3459
        %v3461 = vpop.f32.mrb[0].mxu0
        %v3462 = vpop.f32.mrb[0].mxu0
        %v3463 = vadd.f32 0.0, %v3462
        %v3464 = vpop.f32.mrb[0].mxu0
        %3465 = vmatprep.mubr.bf16.mxu0 0
        %3466 = vmatmul.mubr.bf16.gmra.mrb[0].mxu0 %v3410
        %v3467 = vpop.f32.mrb[0].mxu0
        %v3468 = vpop.f32.mrb[0].mxu0
        %v3469 = vpop.f32.mrb[0].mxu0
        %v3470 = vadd.f32 0.0, %v3469
        %v3471 = vpop.f32.mrb[0].mxu0
        %3472 = vmatprep.mubr.bf16.mxu0 0
        %3473 = vmatmul.mubr.bf16.gmra.mrb[0].mxu0 %v3413
        %v3474 = vpop.f32.mrb[0].mxu0
        %v3475 = vpop.f32.mrb[0].mxu0
        %v3476 = vpop.f32.mrb[0].mxu0
        %v3477 = vadd.f32 0.0, %v3476
        %v3478 = vpop.f32.mrb[0].mxu0
        %3479 = vmatprep.mubr.bf16.mxu0 0
        %3480 = vmatmul.mubr.bf16.gmra.mrb[0].mxu0 %v3416
        %v3481 = vpop.f32.mrb[0].mxu0
        %v3482 = vadd.f32 0.0, %v3481
        %v3483 = vpop.f32.mrb[0].mxu0
        %v3484 = vpop.f32.mrb[0].mxu0
        %v3485 = vpop.f32.mrb[0].mxu0
        %3486 = vdwg.mxu0
        %v3487 = vadd.f32 %v3349, %v3453
        %v3488 = vadd.f32 %v3350, %v3460
        %v3489 = vadd.f32 %v3351, %v3463
        %v3490 = vadd.f32 %v3352, %v3470
        %v3491 = vadd.f32 %v3353, %v3477
        %v3492 = vadd.f32 %v3354, %v3482
        %v3493 = vld [vmem:[#allocation4 + $0xc] sm:$0xff]
        %v3494 = vld [vmem:[#allocation4 + $0x14] sm:$0xff]
        %v3495 = vld [vmem:[#allocation4 + $0x1c] sm:$0xff]
        %v3496 = vld [vmem:[#allocation4 + $0x24] sm:$0xff]
        %v3497 = vld [vmem:[#allocation4 + $0x2c] sm:$0xff]
        %v3498 = vld [vmem:[#allocation4 + $0x34] sm:$0xff]
        %v3499 = vld [vmem:[#allocation4 + $0x3c] sm:$0xff]
        %v3500 = vld [vmem:[#allocation4 + $0x44] sm:$0xff]
        %v3501 = vld [vmem:[#allocation4 + $0x4c] sm:$0xff]
        %v3502 = vld [vmem:[#allocation4 + $0x54] sm:$0xff]
        %s3503 = scalar_lea.vmem [#allocation12], 160
        %v3504 = vld [vmem:[%s3503] sm:$0xf]
        %v3505 = vld [vmem:[%s3503 + $0x4] sm:$0xf]
        %v3506 = vld [vmem:[%s3503 + $0x8] sm:$0xf]
        %v3507 = vld [vmem:[%s3503 + $0xc] sm:$0xf]
        %v3508 = vld [vmem:[%s3503 + $0x10] sm:$0xf]
        %v3509 = vld [vmem:[%s3503 + $0x14] sm:$0xf]
        %v3510 = vld [vmem:[%s3503 + $0x18] sm:$0xf]
        %v3511 = vld [vmem:[%s3503 + $0x1c] sm:$0xf]
        %v3512 = vpack.c.bf16 %v3494, %v3493
        %v3513 = vpack.c.bf16 %v3496, %v3495
        %v3514 = vpack.c.bf16 %v3498, %v3497
        %v3515 = vpack.c.bf16 %v3500, %v3499
        %v3516 = vpack.c.bf16 %v3502, %v3501
        %v3525 = vunpack.c.l.b16 %v3504
        %v3526 = vunpack.c.l.b16 %v3505
        %v3527 = vunpack.c.l.b16 %v3506
        %v3528 = vunpack.c.l.b16 %v3507
        %v3529 = vunpack.c.l.b16 %v3508
        %v3530 = vunpack.c.l.b16 %v3509
        %v3531 = vunpack.c.l.b16 %v3510
        %v3532 = vunpack.c.l.b16 %v3511
        %v3533 = vpack.c.b16 %v3526, %v3525
        %v3534 = vpack.c.b16 %v3528, %v3527
        %v3535 = vpack.c.b16 %v3530, %v3529
        %v3536 = vpack.c.b16 %v3532, %v3531
        %v3542 = vsel %vm568, %v3512, 0
        %v3545 = vsel %vm568, %v3513, 0
        %v3548 = vsel %vm568, %v3514, 0
        %v3551 = vsel %vm568, %v3515, 0
        %v3554 = vsel %vm568, %v3516, 0
        %3556 = vmatprep.subr.bf16.mxu0 0
        %3557 = vmatpush1.bf16.msra.mxu0 %v3533
        %3558 = vmatprep.subr.bf16.mxu0 0
        %3559 = vmatpush1.bf16.msra.mxu0 %v3534
        %3560 = vmatprep.subr.bf16.mxu0 0
        %3561 = vmatpush1.bf16.msra.mxu0 %v3535
        %3562 = vmatprep.subr.bf16.mxu0 0
        %3563 = vmatpush1.bf16.msra.mxu0 %v3536
        %3564 = vmatprep.subr.bf16.mxu0 0
        %3565 = vmatpush1.bf16.msra.mxu0 0
        %3566 = vmatprep.subr.bf16.mxu0 0
        %3567 = vmatpush1.bf16.msra.mxu0 0
        %3568 = vmatprep.subr.bf16.mxu0 0
        %3569 = vmatpush1.bf16.msra.mxu0 0
        %3570 = vmatprep.subr.bf16.mxu0 0
        %3571 = vmatpush1.bf16.msra.mxu0 0
        %3572 = vmatprep.subr.bf16.mxu0 0
        %3573 = vmatpush1.bf16.msra.mxu0 0
        %3574 = vmatprep.subr.bf16.mxu0 0
        %3575 = vmatpush1.bf16.msra.mxu0 0
        %3576 = vmatprep.subr.bf16.mxu0 0
        %3577 = vmatpush1.bf16.msra.mxu0 0
        %3578 = vmatprep.subr.bf16.mxu0 0
        %3579 = vmatpush1.bf16.msra.mxu0 0
        %3580 = vmatprep.subr.bf16.mxu0 0
        %3581 = vmatpush1.bf16.msra.mxu0 0
        %3582 = vmatprep.subr.bf16.mxu0 0
        %3583 = vmatpush1.bf16.msra.mxu0 0
        %3584 = vmatprep.subr.bf16.mxu0 0
        %3585 = vmatpush1.bf16.msra.mxu0 0
        %3586 = vmatprep.subr.bf16.mxu0 0
        %3587 = vmatpush1.bf16.msra.mxu0 0
        %3588 = vmatprep.mubr.bf16.mxu0 0
        %3589 = vmatmul.mubr.bf16.gmra.mrb[0].mxu0 %v3542
        %v3590 = vpop.f32.mrb[0].mxu0
        %v3591 = vadd.f32 0.0, %v3590
        %v3592 = vpop.f32.mrb[0].mxu0
        %v3593 = vpop.f32.mrb[0].mxu0
        %v3594 = vpop.f32.mrb[0].mxu0
        %3595 = vmatprep.mubr.bf16.mxu0 0
        %3596 = vmatmul.mubr.bf16.gmra.mrb[0].mxu0 %v3545
        %v3597 = vpop.f32.mrb[0].mxu0
        %v3598 = vadd.f32 0.0, %v3597
        %v3599 = vpop.f32.mrb[0].mxu0
        %v3600 = vpop.f32.mrb[0].mxu0
        %v3601 = vadd.f32 0.0, %v3600
        %v3602 = vpop.f32.mrb[0].mxu0
        %3603 = vmatprep.mubr.bf16.mxu0 0
        %3604 = vmatmul.mubr.bf16.gmra.mrb[0].mxu0 %v3548
        %v3605 = vpop.f32.mrb[0].mxu0
        %v3606 = vpop.f32.mrb[0].mxu0
        %v3607 = vpop.f32.mrb[0].mxu0
        %v3608 = vadd.f32 0.0, %v3607
        %v3609 = vpop.f32.mrb[0].mxu0
        %3610 = vmatprep.mubr.bf16.mxu0 0
        %3611 = vmatmul.mubr.bf16.gmra.mrb[0].mxu0 %v3551
        %v3612 = vpop.f32.mrb[0].mxu0
        %v3613 = vpop.f32.mrb[0].mxu0
        %v3614 = vpop.f32.mrb[0].mxu0
        %v3615 = vadd.f32 0.0, %v3614
        %v3616 = vpop.f32.mrb[0].mxu0
        %3617 = vmatprep.mubr.bf16.mxu0 0
        %3618 = vmatmul.mubr.bf16.gmra.mrb[0].mxu0 %v3554
        %v3619 = vpop.f32.mrb[0].mxu0
        %v3620 = vadd.f32 0.0, %v3619
        %v3621 = vpop.f32.mrb[0].mxu0
        %v3622 = vpop.f32.mrb[0].mxu0
        %v3623 = vpop.f32.mrb[0].mxu0
        %3624 = vdwg.mxu0
        %v3625 = vadd.f32 %v3487, %v3591
        %v3626 = vadd.f32 %v3488, %v3598
        %v3627 = vadd.f32 %v3489, %v3601
        %v3628 = vadd.f32 %v3490, %v3608
        %v3629 = vadd.f32 %v3491, %v3615
        %v3630 = vadd.f32 %v3492, %v3620
        %v3631 = vld [vmem:[#allocation4 + $0x14] sm:$0xff]
        %v3632 = vld [vmem:[#allocation4 + $0x1c] sm:$0xff]
        %v3633 = vld [vmem:[#allocation4 + $0x24] sm:$0xff]
        %v3634 = vld [vmem:[#allocation4 + $0x2c] sm:$0xff]
        %v3635 = vld [vmem:[#allocation4 + $0x34] sm:$0xff]
        %v3636 = vld [vmem:[#allocation4 + $0x3c] sm:$0xff]
        %v3637 = vld [vmem:[#allocation4 + $0x44] sm:$0xff]
        %v3638 = vld [vmem:[#allocation4 + $0x4c] sm:$0xff]
        %v3639 = vld [vmem:[#allocation4 + $0x54] sm:$0xff]
        %v3640 = vld [vmem:[#allocation4 + $0x5c] sm:$0xff]
        %s3641 = scalar_lea.vmem [#allocation12], 192
        %v3642 = vld [vmem:[%s3641] sm:$0xf]
        %v3643 = vld [vmem:[%s3641 + $0x4] sm:$0xf]
        %v3644 = vld [vmem:[%s3641 + $0x8] sm:$0xf]
        %v3645 = vld [vmem:[%s3641 + $0xc] sm:$0xf]
        %v3646 = vld [vmem:[%s3641 + $0x10] sm:$0xf]
        %v3647 = vld [vmem:[%s3641 + $0x14] sm:$0xf]
        %v3648 = vld [vmem:[%s3641 + $0x18] sm:$0xf]
        %v3649 = vld [vmem:[%s3641 + $0x1c] sm:$0xf]
        %v3650 = vpack.c.bf16 %v3632, %v3631
        %v3651 = vpack.c.bf16 %v3634, %v3633
        %v3652 = vpack.c.bf16 %v3636, %v3635
        %v3653 = vpack.c.bf16 %v3638, %v3637
        %v3654 = vpack.c.bf16 %v3640, %v3639
        %v3663 = vunpack.c.l.b16 %v3642
        %v3664 = vunpack.c.l.b16 %v3643
        %v3665 = vunpack.c.l.b16 %v3644
        %v3666 = vunpack.c.l.b16 %v3645
        %v3667 = vunpack.c.l.b16 %v3646
        %v3668 = vunpack.c.l.b16 %v3647
        %v3669 = vunpack.c.l.b16 %v3648
        %v3670 = vunpack.c.l.b16 %v3649
        %v3671 = vpack.c.b16 %v3664, %v3663
        %v3672 = vpack.c.b16 %v3666, %v3665
        %v3673 = vpack.c.b16 %v3668, %v3667
        %v3674 = vpack.c.b16 %v3670, %v3669
        %v3680 = vsel %vm568, %v3650, 0
        %v3683 = vsel %vm568, %v3651, 0
        %v3686 = vsel %vm568, %v3652, 0
        %v3689 = vsel %vm568, %v3653, 0
        %v3692 = vsel %vm568, %v3654, 0
        %3694 = vmatprep.subr.bf16.mxu0 0
        %3695 = vmatpush1.bf16.msra.mxu0 %v3671
        %3696 = vmatprep.subr.bf16.mxu0 0
        %3697 = vmatpush1.bf16.msra.mxu0 %v3672
        %3698 = vmatprep.subr.bf16.mxu0 0
        %3699 = vmatpush1.bf16.msra.mxu0 %v3673
        %3700 = vmatprep.subr.bf16.mxu0 0
        %3701 = vmatpush1.bf16.msra.mxu0 %v3674
        %3702 = vmatprep.subr.bf16.mxu0 0
        %3703 = vmatpush1.bf16.msra.mxu0 0
        %3704 = vmatprep.subr.bf16.mxu0 0
        %3705 = vmatpush1.bf16.msra.mxu0 0
        %3706 = vmatprep.subr.bf16.mxu0 0
        %3707 = vmatpush1.bf16.msra.mxu0 0
        %3708 = vmatprep.subr.bf16.mxu0 0
        %3709 = vmatpush1.bf16.msra.mxu0 0
        %3710 = vmatprep.subr.bf16.mxu0 0
        %3711 = vmatpush1.bf16.msra.mxu0 0
        %3712 = vmatprep.subr.bf16.mxu0 0
        %3713 = vmatpush1.bf16.msra.mxu0 0
        %3714 = vmatprep.subr.bf16.mxu0 0
        %3715 = vmatpush1.bf16.msra.mxu0 0
        %3716 = vmatprep.subr.bf16.mxu0 0
        %3717 = vmatpush1.bf16.msra.mxu0 0
        %3718 = vmatprep.subr.bf16.mxu0 0
        %3719 = vmatpush1.bf16.msra.mxu0 0
        %3720 = vmatprep.subr.bf16.mxu0 0
        %3721 = vmatpush1.bf16.msra.mxu0 0
        %3722 = vmatprep.subr.bf16.mxu0 0
        %3723 = vmatpush1.bf16.msra.mxu0 0
        %3724 = vmatprep.subr.bf16.mxu0 0
        %3725 = vmatpush1.bf16.msra.mxu0 0
        %3726 = vmatprep.mubr.bf16.mxu0 0
        %3727 = vmatmul.mubr.bf16.gmra.mrb[0].mxu0 %v3680
        %v3728 = vpop.f32.mrb[0].mxu0
        %v3729 = vadd.f32 0.0, %v3728
        %v3730 = vpop.f32.mrb[0].mxu0
        %v3731 = vpop.f32.mrb[0].mxu0
        %v3732 = vpop.f32.mrb[0].mxu0
        %3733 = vmatprep.mubr.bf16.mxu0 0
        %3734 = vmatmul.mubr.bf16.gmra.mrb[0].mxu0 %v3683
        %v3735 = vpop.f32.mrb[0].mxu0
        %v3736 = vadd.f32 0.0, %v3735
        %v3737 = vpop.f32.mrb[0].mxu0
        %v3738 = vpop.f32.mrb[0].mxu0
        %v3739 = vadd.f32 0.0, %v3738
        %v3740 = vpop.f32.mrb[0].mxu0
        %3741 = vmatprep.mubr.bf16.mxu0 0
        %3742 = vmatmul.mubr.bf16.gmra.mrb[0].mxu0 %v3686
        %v3743 = vpop.f32.mrb[0].mxu0
        %v3744 = vpop.f32.mrb[0].mxu0
        %v3745 = vpop.f32.mrb[0].mxu0
        %v3746 = vadd.f32 0.0, %v3745
        %v3747 = vpop.f32.mrb[0].mxu0
        %3748 = vmatprep.mubr.bf16.mxu0 0
        %3749 = vmatmul.mubr.bf16.gmra.mrb[0].mxu0 %v3689
        %v3750 = vpop.f32.mrb[0].mxu0
        %v3751 = vpop.f32.mrb[0].mxu0
        %v3752 = vpop.f32.mrb[0].mxu0
        %v3753 = vadd.f32 0.0, %v3752
        %v3754 = vpop.f32.mrb[0].mxu0
        %3755 = vmatprep.mubr.bf16.mxu0 0
        %3756 = vmatmul.mubr.bf16.gmra.mrb[0].mxu0 %v3692
        %v3757 = vpop.f32.mrb[0].mxu0
        %v3758 = vadd.f32 0.0, %v3757
        %v3759 = vpop.f32.mrb[0].mxu0
        %v3760 = vpop.f32.mrb[0].mxu0
        %v3761 = vpop.f32.mrb[0].mxu0
        %3762 = vdwg.mxu0
        %v3763 = vadd.f32 %v3625, %v3729
        %v3764 = vadd.f32 %v3626, %v3736
        %v3765 = vadd.f32 %v3627, %v3739
        %v3766 = vadd.f32 %v3628, %v3746
        %v3767 = vadd.f32 %v3629, %v3753
        %v3768 = vadd.f32 %v3630, %v3758
        %v3769 = vld [vmem:[#allocation4 + $0x15] sm:$0xff]
        %v3770 = vld [vmem:[#allocation4 + $0x1d] sm:$0xff]
        %v3771 = vld [vmem:[#allocation4 + $0x25] sm:$0xff]
        %v3772 = vld [vmem:[#allocation4 + $0x2d] sm:$0xff]
        %v3773 = vld [vmem:[#allocation4 + $0x35] sm:$0xff]
        %v3774 = vld [vmem:[#allocation4 + $0x3d] sm:$0xff]
        %v3775 = vld [vmem:[#allocation4 + $0x45] sm:$0xff]
        %v3776 = vld [vmem:[#allocation4 + $0x4d] sm:$0xff]
        %v3777 = vld [vmem:[#allocation4 + $0x55] sm:$0xff]
        %v3778 = vld [vmem:[#allocation4 + $0x5d] sm:$0xff]
        %s3779 = scalar_lea.vmem [#allocation12], 224
        %v3780 = vld [vmem:[%s3779] sm:$0xf]
        %v3781 = vld [vmem:[%s3779 + $0x4] sm:$0xf]
        %v3782 = vld [vmem:[%s3779 + $0x8] sm:$0xf]
        %v3783 = vld [vmem:[%s3779 + $0xc] sm:$0xf]
        %v3784 = vld [vmem:[%s3779 + $0x10] sm:$0xf]
        %v3785 = vld [vmem:[%s3779 + $0x14] sm:$0xf]
        %v3786 = vld [vmem:[%s3779 + $0x18] sm:$0xf]
        %v3787 = vld [vmem:[%s3779 + $0x1c] sm:$0xf]
        %v3788 = vpack.c.bf16 %v3770, %v3769
        %v3789 = vpack.c.bf16 %v3772, %v3771
        %v3790 = vpack.c.bf16 %v3774, %v3773
        %v3791 = vpack.c.bf16 %v3776, %v3775
        %v3792 = vpack.c.bf16 %v3778, %v3777
        %v3801 = vunpack.c.l.b16 %v3780
        %v3802 = vunpack.c.l.b16 %v3781
        %v3803 = vunpack.c.l.b16 %v3782
        %v3804 = vunpack.c.l.b16 %v3783
        %v3805 = vunpack.c.l.b16 %v3784
        %v3806 = vunpack.c.l.b16 %v3785
        %v3807 = vunpack.c.l.b16 %v3786
        %v3808 = vunpack.c.l.b16 %v3787
        %v3809 = vpack.c.b16 %v3802, %v3801
        %v3810 = vpack.c.b16 %v3804, %v3803
        %v3811 = vpack.c.b16 %v3806, %v3805
        %v3812 = vpack.c.b16 %v3808, %v3807
        %v3818 = vsel %vm568, %v3788, 0
        %v3821 = vsel %vm568, %v3789, 0
        %v3824 = vsel %vm568, %v3790, 0
        %v3827 = vsel %vm568, %v3791, 0
        %v3830 = vsel %vm568, %v3792, 0
        %3832 = vmatprep.subr.bf16.mxu0 0
        %3833 = vmatpush1.bf16.msra.mxu0 %v3809
        %3834 = vmatprep.subr.bf16.mxu0 0
        %3835 = vmatpush1.bf16.msra.mxu0 %v3810
        %3836 = vmatprep.subr.bf16.mxu0 0
        %3837 = vmatpush1.bf16.msra.mxu0 %v3811
        %3838 = vmatprep.subr.bf16.mxu0 0
        %3839 = vmatpush1.bf16.msra.mxu0 %v3812
        %3840 = vmatprep.subr.bf16.mxu0 0
        %3841 = vmatpush1.bf16.msra.mxu0 0
        %3842 = vmatprep.subr.bf16.mxu0 0
        %3843 = vmatpush1.bf16.msra.mxu0 0
        %3844 = vmatprep.subr.bf16.mxu0 0
        %3845 = vmatpush1.bf16.msra.mxu0 0
        %3846 = vmatprep.subr.bf16.mxu0 0
        %3847 = vmatpush1.bf16.msra.mxu0 0
        %3848 = vmatprep.subr.bf16.mxu0 0
        %3849 = vmatpush1.bf16.msra.mxu0 0
        %3850 = vmatprep.subr.bf16.mxu0 0
        %3851 = vmatpush1.bf16.msra.mxu0 0
        %3852 = vmatprep.subr.bf16.mxu0 0
        %3853 = vmatpush1.bf16.msra.mxu0 0
        %3854 = vmatprep.subr.bf16.mxu0 0
        %3855 = vmatpush1.bf16.msra.mxu0 0
        %3856 = vmatprep.subr.bf16.mxu0 0
        %3857 = vmatpush1.bf16.msra.mxu0 0
        %3858 = vmatprep.subr.bf16.mxu0 0
        %3859 = vmatpush1.bf16.msra.mxu0 0
        %3860 = vmatprep.subr.bf16.mxu0 0
        %3861 = vmatpush1.bf16.msra.mxu0 0
        %3862 = vmatprep.subr.bf16.mxu0 0
        %3863 = vmatpush1.bf16.msra.mxu0 0
        %3864 = vmatprep.mubr.bf16.mxu0 0
        %3865 = vmatmul.mubr.bf16.gmra.mrb[0].mxu0 %v3818
        %v3866 = vpop.f32.mrb[0].mxu0
        %v3867 = vadd.f32 0.0, %v3866
        %v3868 = vpop.f32.mrb[0].mxu0
        %v3869 = vpop.f32.mrb[0].mxu0
        %v3870 = vpop.f32.mrb[0].mxu0
        %3871 = vmatprep.mubr.bf16.mxu0 0
        %3872 = vmatmul.mubr.bf16.gmra.mrb[0].mxu0 %v3821
        %v3873 = vpop.f32.mrb[0].mxu0
        %v3874 = vadd.f32 0.0, %v3873
        %v3875 = vpop.f32.mrb[0].mxu0
        %v3876 = vpop.f32.mrb[0].mxu0
        %v3877 = vadd.f32 0.0, %v3876
        %v3878 = vpop.f32.mrb[0].mxu0
        %3879 = vmatprep.mubr.bf16.mxu0 0
        %3880 = vmatmul.mubr.bf16.gmra.mrb[0].mxu0 %v3824
        %v3881 = vpop.f32.mrb[0].mxu0
        %v3882 = vpop.f32.mrb[0].mxu0
        %v3883 = vpop.f32.mrb[0].mxu0
        %v3884 = vadd.f32 0.0, %v3883
        %v3885 = vpop.f32.mrb[0].mxu0
        %3886 = vmatprep.mubr.bf16.mxu0 0
        %3887 = vmatmul.mubr.bf16.gmra.mrb[0].mxu0 %v3827
        %v3888 = vpop.f32.mrb[0].mxu0
        %v3889 = vpop.f32.mrb[0].mxu0
        %v3890 = vpop.f32.mrb[0].mxu0
        %v3891 = vadd.f32 0.0, %v3890
        %v3892 = vpop.f32.mrb[0].mxu0
        %3893 = vmatprep.mubr.bf16.mxu0 0
        %3894 = vmatmul.mubr.bf16.gmra.mrb[0].mxu0 %v3830
        %v3895 = vpop.f32.mrb[0].mxu0
        %v3896 = vadd.f32 0.0, %v3895
        %v3897 = vpop.f32.mrb[0].mxu0
        %v3898 = vpop.f32.mrb[0].mxu0
        %v3899 = vpop.f32.mrb[0].mxu0
        %3900 = vdwg.mxu0
        %v3901 = vadd.f32 %v3763, %v3867
        %v3902 = vadd.f32 %v3764, %v3874
        %v3903 = vadd.f32 %v3765, %v3877
        %v3904 = vadd.f32 %v3766, %v3884
        %v3905 = vadd.f32 %v3767, %v3891
        %v3906 = vadd.f32 %v3768, %v3896
        %v3907 = vld [vmem:[#allocation4 + $0x16] sm:$0xff]
        %v3908 = vld [vmem:[#allocation4 + $0x1e] sm:$0xff]
        %v3909 = vld [vmem:[#allocation4 + $0x26] sm:$0xff]
        %v3910 = vld [vmem:[#allocation4 + $0x2e] sm:$0xff]
        %v3911 = vld [vmem:[#allocation4 + $0x36] sm:$0xff]
        %v3912 = vld [vmem:[#allocation4 + $0x3e] sm:$0xff]
        %v3913 = vld [vmem:[#allocation4 + $0x46] sm:$0xff]
        %v3914 = vld [vmem:[#allocation4 + $0x4e] sm:$0xff]
        %v3915 = vld [vmem:[#allocation4 + $0x56] sm:$0xff]
        %v3916 = vld [vmem:[#allocation4 + $0x5e] sm:$0xff]
        %s3917 = scalar_lea.vmem [#allocation12], 256
        %v3918 = vld [vmem:[%s3917] sm:$0xf]
        %v3919 = vld [vmem:[%s3917 + $0x4] sm:$0xf]
        %v3920 = vld [vmem:[%s3917 + $0x8] sm:$0xf]
        %v3921 = vld [vmem:[%s3917 + $0xc] sm:$0xf]
        %v3922 = vld [vmem:[%s3917 + $0x10] sm:$0xf]
        %v3923 = vld [vmem:[%s3917 + $0x14] sm:$0xf]
        %v3924 = vld [vmem:[%s3917 + $0x18] sm:$0xf]
        %v3925 = vld [vmem:[%s3917 + $0x1c] sm:$0xf]
        %v3926 = vpack.c.bf16 %v3908, %v3907
        %v3927 = vpack.c.bf16 %v3910, %v3909
        %v3928 = vpack.c.bf16 %v3912, %v3911
        %v3929 = vpack.c.bf16 %v3914, %v3913
        %v3930 = vpack.c.bf16 %v3916, %v3915
        %v3939 = vunpack.c.l.b16 %v3918
        %v3940 = vunpack.c.l.b16 %v3919
        %v3941 = vunpack.c.l.b16 %v3920
        %v3942 = vunpack.c.l.b16 %v3921
        %v3943 = vunpack.c.l.b16 %v3922
        %v3944 = vunpack.c.l.b16 %v3923
        %v3945 = vunpack.c.l.b16 %v3924
        %v3946 = vunpack.c.l.b16 %v3925
        %v3947 = vpack.c.b16 %v3940, %v3939
        %v3948 = vpack.c.b16 %v3942, %v3941
        %v3949 = vpack.c.b16 %v3944, %v3943
        %v3950 = vpack.c.b16 %v3946, %v3945
        %v3956 = vsel %vm568, %v3926, 0
        %v3959 = vsel %vm568, %v3927, 0
        %v3962 = vsel %vm568, %v3928, 0
        %v3965 = vsel %vm568, %v3929, 0
        %v3968 = vsel %vm568, %v3930, 0
        %3970 = vmatprep.subr.bf16.mxu0 0
        %3971 = vmatpush1.bf16.msra.mxu0 %v3947
        %3972 = vmatprep.subr.bf16.mxu0 0
        %3973 = vmatpush1.bf16.msra.mxu0 %v3948
        %3974 = vmatprep.subr.bf16.mxu0 0
        %3975 = vmatpush1.bf16.msra.mxu0 %v3949
        %3976 = vmatprep.subr.bf16.mxu0 0
        %3977 = vmatpush1.bf16.msra.mxu0 %v3950
        %3978 = vmatprep.subr.bf16.mxu0 0
        %3979 = vmatpush1.bf16.msra.mxu0 0
        %3980 = vmatprep.subr.bf16.mxu0 0
        %3981 = vmatpush1.bf16.msra.mxu0 0
        %3982 = vmatprep.subr.bf16.mxu0 0
        %3983 = vmatpush1.bf16.msra.mxu0 0
        %3984 = vmatprep.subr.bf16.mxu0 0
        %3985 = vmatpush1.bf16.msra.mxu0 0
        %3986 = vmatprep.subr.bf16.mxu0 0
        %3987 = vmatpush1.bf16.msra.mxu0 0
        %3988 = vmatprep.subr.bf16.mxu0 0
        %3989 = vmatpush1.bf16.msra.mxu0 0
        %3990 = vmatprep.subr.bf16.mxu0 0
        %3991 = vmatpush1.bf16.msra.mxu0 0
        %3992 = vmatprep.subr.bf16.mxu0 0
        %3993 = vmatpush1.bf16.msra.mxu0 0
        %3994 = vmatprep.subr.bf16.mxu0 0
        %3995 = vmatpush1.bf16.msra.mxu0 0
        %3996 = vmatprep.subr.bf16.mxu0 0
        %3997 = vmatpush1.bf16.msra.mxu0 0
        %3998 = vmatprep.subr.bf16.mxu0 0
        %3999 = vmatpush1.bf16.msra.mxu0 0
        %4000 = vmatprep.subr.bf16.mxu0 0
        %4001 = vmatpush1.bf16.msra.mxu0 0
        %4002 = vmatprep.mubr.bf16.mxu0 0
        %4003 = vmatmul.mubr.bf16.gmra.mrb[0].mxu0 %v3956
        %v4004 = vpop.f32.mrb[0].mxu0
        %v4005 = vadd.f32 0.0, %v4004
        %v4006 = vpop.f32.mrb[0].mxu0
        %v4007 = vpop.f32.mrb[0].mxu0
        %v4008 = vpop.f32.mrb[0].mxu0
        %4009 = vmatprep.mubr.bf16.mxu0 0
        %4010 = vmatmul.mubr.bf16.gmra.mrb[0].mxu0 %v3959
        %v4011 = vpop.f32.mrb[0].mxu0
        %v4012 = vadd.f32 0.0, %v4011
        %v4013 = vpop.f32.mrb[0].mxu0
        %v4014 = vpop.f32.mrb[0].mxu0
        %v4015 = vadd.f32 0.0, %v4014
        %v4016 = vpop.f32.mrb[0].mxu0
        %4017 = vmatprep.mubr.bf16.mxu0 0
        %4018 = vmatmul.mubr.bf16.gmra.mrb[0].mxu0 %v3962
        %v4019 = vpop.f32.mrb[0].mxu0
        %v4020 = vpop.f32.mrb[0].mxu0
        %v4021 = vpop.f32.mrb[0].mxu0
        %v4022 = vadd.f32 0.0, %v4021
        %v4023 = vpop.f32.mrb[0].mxu0
        %4024 = vmatprep.mubr.bf16.mxu0 0
        %4025 = vmatmul.mubr.bf16.gmra.mrb[0].mxu0 %v3965
        %v4026 = vpop.f32.mrb[0].mxu0
        %v4027 = vpop.f32.mrb[0].mxu0
        %v4028 = vpop.f32.mrb[0].mxu0
        %v4029 = vadd.f32 0.0, %v4028
        %v4030 = vpop.f32.mrb[0].mxu0
        %4031 = vmatprep.mubr.bf16.mxu0 0
        %4032 = vmatmul.mubr.bf16.gmra.mrb[0].mxu0 %v3968
        %v4033 = vpop.f32.mrb[0].mxu0
        %v4034 = vadd.f32 0.0, %v4033
        %v4035 = vpop.f32.mrb[0].mxu0
        %v4036 = vpop.f32.mrb[0].mxu0
        %v4037 = vpop.f32.mrb[0].mxu0
        %4038 = vdwg.mxu0
        %v4039 = vadd.f32 %v3901, %v4005
        %v4040 = vadd.f32 %v3902, %v4012
        %v4041 = vadd.f32 %v3903, %v4015
        %v4042 = vadd.f32 %v3904, %v4022
        %v4043 = vadd.f32 %v3905, %v4029
        %v4044 = vadd.f32 %v3906, %v4034
        %vm4045 = vcmp.ge.f32.partialorder %v4039, 0.0
        %v4046 = vmul.f32 %v4039, 0.2
        %v4047 = vsel %vm4045, %v4039, %v4046
        %vm4048 = vcmask 516096
        %4049 = vst.msk [vmem:[#allocation5 + $0x7] sm:$0x1] %vm4048, %v4047
        %vm4050 = vcmask 518146
        %4051 = vst.msk [vmem:[#allocation5 + $0x6] sm:$0x4] %vm4050, %v4047
        %vm4052 = vcmask 520196
        %4053 = vst.msk [vmem:[#allocation5 + $0x5] sm:$0x10] %vm4052, %v4047
        %vm4054 = vcmask 522246
        %4055 = vst.msk [vmem:[#allocation5 + $0x4] sm:$0x40] %vm4054, %v4047
        %vm4056 = vcmp.ge.f32.partialorder %v4040, 0.0
        %vm4057 = vcmp.ge.f32.partialorder %v4041, 0.0
        %v4058 = vmul.f32 %v4040, 0.2
        %v4059 = vmul.f32 %v4041, 0.2
        %v4060 = vsel %vm4056, %v4040, %v4058
        %v4061 = vsel %vm4057, %v4041, %v4059
        %4062 = vst.msk [vmem:[#allocation5 + $0x9] sm:$0x10] %vm4052, %v4060
        %4063 = vst.msk [vmem:[#allocation5 + $0x8] sm:$0x40] %vm4054, %v4060
        %4064 = vst.msk [vmem:[#allocation5 + $0xf] sm:$0x1] %vm4048, %v4061
        %4065 = vst.msk [vmem:[#allocation5 + $0xe] sm:$0x4] %vm4050, %v4061
        %vm4066 = vcmp.ge.f32.partialorder %v4042, 0.0
        %v4067 = vmul.f32 %v4042, 0.2
        %v4068 = vsel %vm4066, %v4042, %v4067
        %4069 = vst.msk [vmem:[#allocation5 + $0x13] sm:$0x1] %vm4048, %v4068
        %4070 = vst.msk [vmem:[#allocation5 + $0x12] sm:$0x4] %vm4050, %v4068
        %4071 = vst.msk [vmem:[#allocation5 + $0x11] sm:$0x10] %vm4052, %v4068
        %4072 = vst.msk [vmem:[#allocation5 + $0x10] sm:$0x40] %vm4054, %v4068
        %vm4073 = vcmp.ge.f32.partialorder %v4043, 0.0
        %vm4074 = vcmp.ge.f32.partialorder %v4044, 0.0
        %v4075 = vmul.f32 %v4043, 0.2
        %v4076 = vmul.f32 %v4044, 0.2
        %v4077 = vsel %vm4073, %v4043, %v4075
        %v4078 = vsel %vm4074, %v4044, %v4076
        %4079 = vst.msk [vmem:[#allocation5 + $0x15] sm:$0x10] %vm4052, %v4077
        %4080 = vst.msk [vmem:[#allocation5 + $0x14] sm:$0x40] %vm4054, %v4077
        %4081 = vst.msk [vmem:[#allocation5 + $0x1b] sm:$0x1] %vm4048, %v4078
        %4082 = vst.msk [vmem:[#allocation5 + $0x1a] sm:$0x4] %vm4050, %v4078
        %v4083 = vld [vmem:[#allocation5] sm:$0xff]
        %v4084 = vld [vmem:[#allocation5 + $0x8] sm:$0xff]
        %v4085 = vld [vmem:[#allocation5 + $0x10] sm:$0xff]
        %v4086 = vld [vmem:[#allocation15] sm:$0xf]
        %v4087 = vld [vmem:[#allocation15 + $0x4] sm:$0xf]
        %v4088 = vld [vmem:[#allocation15 + $0x8] sm:$0xf]
        %v4089 = vld [vmem:[#allocation15 + $0xc] sm:$0xf]
        %v4090 = vld [vmem:[#allocation15 + $0x10] sm:$0xf]
        %v4091 = vld [vmem:[#allocation15 + $0x14] sm:$0xf]
        %v4092 = vld [vmem:[#allocation15 + $0x18] sm:$0xf]
        %v4093 = vld [vmem:[#allocation15 + $0x1c] sm:$0xf]
        %v4094 = vpack.c.bf16 %v4084, %v4083
        %v4095 = vpack.c.bf16 %v4085, %v4085
        %v4096 = vld [vmem:[#allocation5 + $0x1] sm:$0xff]
        %v4097 = vld [vmem:[#allocation5 + $0x9] sm:$0xff]
        %v4098 = vld [vmem:[#allocation5 + $0x11] sm:$0xff]
        %s4099 = scalar_lea.vmem [#allocation15], 32
        %v4100 = vld [vmem:[%s4099] sm:$0xf]
        %v4101 = vld [vmem:[%s4099 + $0x4] sm:$0xf]
        %v4102 = vld [vmem:[%s4099 + $0x8] sm:$0xf]
        %v4103 = vld [vmem:[%s4099 + $0xc] sm:$0xf]
        %v4104 = vld [vmem:[%s4099 + $0x10] sm:$0xf]
        %v4105 = vld [vmem:[%s4099 + $0x14] sm:$0xf]
        %v4106 = vld [vmem:[%s4099 + $0x18] sm:$0xf]
        %v4107 = vld [vmem:[%s4099 + $0x1c] sm:$0xf]
        %v4108 = vpack.c.bf16 %v4097, %v4096
        %v4109 = vpack.c.bf16 %v4098, %v4098
        %v4118 = vunpack.c.l.b16 %v4100
        %v4119 = vunpack.c.l.b16 %v4101
        %v4120 = vunpack.c.l.b16 %v4102
        %v4121 = vunpack.c.l.b16 %v4103
        %v4122 = vunpack.c.l.b16 %v4104
        %v4123 = vunpack.c.l.b16 %v4105
        %v4124 = vunpack.c.l.b16 %v4106
        %v4125 = vunpack.c.l.b16 %v4107
        %v4126 = vpack.c.b16 %v4119, %v4118
        %v4127 = vpack.c.b16 %v4121, %v4120
        %v4128 = vpack.c.b16 %v4123, %v4122
        %v4129 = vpack.c.b16 %v4125, %v4124
        %v4135 = vsel %vm568, %v4108, 0
        %v4138 = vsel %vm568, %v4109, 0
        %4140 = vmatprep.subr.bf16.mxu0 0
        %4141 = vmatpush1.bf16.msra.mxu0 %v4126
        %4142 = vmatprep.subr.bf16.mxu0 0
        %4143 = vmatpush1.bf16.msra.mxu0 %v4127
        %4144 = vmatprep.subr.bf16.mxu0 0
        %4145 = vmatpush1.bf16.msra.mxu0 %v4128
        %4146 = vmatprep.subr.bf16.mxu0 0
        %4147 = vmatpush1.bf16.msra.mxu0 %v4129
        %4148 = vmatprep.subr.bf16.mxu0 0
        %4149 = vmatpush1.bf16.msra.mxu0 0
        %4150 = vmatprep.subr.bf16.mxu0 0
        %4151 = vmatpush1.bf16.msra.mxu0 0
        %4152 = vmatprep.subr.bf16.mxu0 0
        %4153 = vmatpush1.bf16.msra.mxu0 0
        %4154 = vmatprep.subr.bf16.mxu0 0
        %4155 = vmatpush1.bf16.msra.mxu0 0
        %4156 = vmatprep.subr.bf16.mxu0 0
        %4157 = vmatpush1.bf16.msra.mxu0 0
        %4158 = vmatprep.subr.bf16.mxu0 0
        %4159 = vmatpush1.bf16.msra.mxu0 0
        %4160 = vmatprep.subr.bf16.mxu0 0
        %4161 = vmatpush1.bf16.msra.mxu0 0
        %4162 = vmatprep.subr.bf16.mxu0 0
        %4163 = vmatpush1.bf16.msra.mxu0 0
        %4164 = vmatprep.subr.bf16.mxu0 0
        %4165 = vmatpush1.bf16.msra.mxu0 0
        %4166 = vmatprep.subr.bf16.mxu0 0
        %4167 = vmatpush1.bf16.msra.mxu0 0
        %4168 = vmatprep.subr.bf16.mxu0 0
        %4169 = vmatpush1.bf16.msra.mxu0 0
        %4170 = vmatprep.subr.bf16.mxu0 0
        %4171 = vmatpush1.bf16.msra.mxu0 0
        %4172 = vmatprep.mubr.bf16.mxu0 0
        %4173 = vmatmul.mubr.bf16.gmra.mrb[0].mxu0 %v4135
        %v4174 = vpop.f32.mrb[0].mxu0
        %v4175 = vadd.f32 0.0, %v4174
        %v4176 = vpop.f32.mrb[0].mxu0
        %v4177 = vpop.f32.mrb[0].mxu0
        %v4178 = vadd.f32 0.0, %v4177
        %v4179 = vpop.f32.mrb[0].mxu0
        %4180 = vmatprep.mubr.bf16.mxu0 0
        %4181 = vmatmul.mubr.bf16.gmra.mrb[0].mxu0 %v4138
        %v4182 = vpop.f32.mrb[0].mxu0
        %v4183 = vadd.f32 0.0, %v4182
        %v4184 = vpop.f32.mrb[0].mxu0
        %v4185 = vpop.f32.mrb[0].mxu0
        %v4186 = vpop.f32.mrb[0].mxu0
        %4187 = vdwg.mxu0
        %v4196 = vunpack.c.l.b16 %v4086
        %v4197 = vunpack.c.l.b16 %v4087
        %v4198 = vunpack.c.l.b16 %v4088
        %v4199 = vunpack.c.l.b16 %v4089
        %v4200 = vunpack.c.l.b16 %v4090
        %v4201 = vunpack.c.l.b16 %v4091
        %v4202 = vunpack.c.l.b16 %v4092
        %v4203 = vunpack.c.l.b16 %v4093
        %v4204 = vpack.c.b16 %v4197, %v4196
        %v4205 = vpack.c.b16 %v4199, %v4198
        %v4206 = vpack.c.b16 %v4201, %v4200
        %v4207 = vpack.c.b16 %v4203, %v4202
        %v4213 = vsel %vm568, %v4094, 0
        %v4216 = vsel %vm568, %v4095, 0
        %4218 = vmatprep.subr.bf16.mxu0 0
        %4219 = vmatpush1.bf16.msra.mxu0 %v4204
        %4220 = vmatprep.subr.bf16.mxu0 0
        %4221 = vmatpush1.bf16.msra.mxu0 %v4205
        %4222 = vmatprep.subr.bf16.mxu0 0
        %4223 = vmatpush1.bf16.msra.mxu0 %v4206
        %4224 = vmatprep.subr.bf16.mxu0 0
        %4225 = vmatpush1.bf16.msra.mxu0 %v4207
        %4226 = vmatprep.subr.bf16.mxu0 0
        %4227 = vmatpush1.bf16.msra.mxu0 0
        %4228 = vmatprep.subr.bf16.mxu0 0
        %4229 = vmatpush1.bf16.msra.mxu0 0
        %4230 = vmatprep.subr.bf16.mxu0 0
        %4231 = vmatpush1.bf16.msra.mxu0 0
        %4232 = vmatprep.subr.bf16.mxu0 0
        %4233 = vmatpush1.bf16.msra.mxu0 0
        %4234 = vmatprep.subr.bf16.mxu0 0
        %4235 = vmatpush1.bf16.msra.mxu0 0
        %4236 = vmatprep.subr.bf16.mxu0 0
        %4237 = vmatpush1.bf16.msra.mxu0 0
        %4238 = vmatprep.subr.bf16.mxu0 0
        %4239 = vmatpush1.bf16.msra.mxu0 0
        %4240 = vmatprep.subr.bf16.mxu0 0
        %4241 = vmatpush1.bf16.msra.mxu0 0
        %4242 = vmatprep.subr.bf16.mxu0 0
        %4243 = vmatpush1.bf16.msra.mxu0 0
        %4244 = vmatprep.subr.bf16.mxu0 0
        %4245 = vmatpush1.bf16.msra.mxu0 0
        %4246 = vmatprep.subr.bf16.mxu0 0
        %4247 = vmatpush1.bf16.msra.mxu0 0
        %4248 = vmatprep.subr.bf16.mxu0 0
        %4249 = vmatpush1.bf16.msra.mxu0 0
        %4250 = vmatprep.mubr.bf16.mxu0 0
        %4251 = vmatmul.mubr.bf16.gmra.mrb[0].mxu0 %v4213
        %v4252 = vpop.f32.mrb[0].mxu0
        %v4253 = vadd.f32 %v4175, %v4252
        %v4254 = vpop.f32.mrb[0].mxu0
        %v4255 = vpop.f32.mrb[0].mxu0
        %v4256 = vadd.f32 %v4178, %v4255
        %v4257 = vpop.f32.mrb[0].mxu0
        %4258 = vmatprep.mubr.bf16.mxu0 0
        %4259 = vmatmul.mubr.bf16.gmra.mrb[0].mxu0 %v4216
        %v4260 = vpop.f32.mrb[0].mxu0
        %v4261 = vadd.f32 %v4183, %v4260
        %v4262 = vpop.f32.mrb[0].mxu0
        %v4263 = vpop.f32.mrb[0].mxu0
        %v4264 = vpop.f32.mrb[0].mxu0
        %4265 = vdwg.mxu0
        %v4266 = vld [vmem:[#allocation5 + $0x2] sm:$0xff]
        %v4267 = vld [vmem:[#allocation5 + $0xa] sm:$0xff]
        %v4268 = vld [vmem:[#allocation5 + $0x12] sm:$0xff]
        %s4269 = scalar_lea.vmem [#allocation15], 64
        %v4270 = vld [vmem:[%s4269] sm:$0xf]
        %v4271 = vld [vmem:[%s4269 + $0x4] sm:$0xf]
        %v4272 = vld [vmem:[%s4269 + $0x8] sm:$0xf]
        %v4273 = vld [vmem:[%s4269 + $0xc] sm:$0xf]
        %v4274 = vld [vmem:[%s4269 + $0x10] sm:$0xf]
        %v4275 = vld [vmem:[%s4269 + $0x14] sm:$0xf]
        %v4276 = vld [vmem:[%s4269 + $0x18] sm:$0xf]
        %v4277 = vld [vmem:[%s4269 + $0x1c] sm:$0xf]
        %v4278 = vpack.c.bf16 %v4267, %v4266
        %v4279 = vpack.c.bf16 %v4268, %v4268
        %v4288 = vunpack.c.l.b16 %v4270
        %v4289 = vunpack.c.l.b16 %v4271
        %v4290 = vunpack.c.l.b16 %v4272
        %v4291 = vunpack.c.l.b16 %v4273
        %v4292 = vunpack.c.l.b16 %v4274
        %v4293 = vunpack.c.l.b16 %v4275
        %v4294 = vunpack.c.l.b16 %v4276
        %v4295 = vunpack.c.l.b16 %v4277
        %v4296 = vpack.c.b16 %v4289, %v4288
        %v4297 = vpack.c.b16 %v4291, %v4290
        %v4298 = vpack.c.b16 %v4293, %v4292
        %v4299 = vpack.c.b16 %v4295, %v4294
        %v4305 = vsel %vm568, %v4278, 0
        %v4308 = vsel %vm568, %v4279, 0
        %4310 = vmatprep.subr.bf16.mxu0 0
        %4311 = vmatpush1.bf16.msra.mxu0 %v4296
        %4312 = vmatprep.subr.bf16.mxu0 0
        %4313 = vmatpush1.bf16.msra.mxu0 %v4297
        %4314 = vmatprep.subr.bf16.mxu0 0
        %4315 = vmatpush1.bf16.msra.mxu0 %v4298
        %4316 = vmatprep.subr.bf16.mxu0 0
        %4317 = vmatpush1.bf16.msra.mxu0 %v4299
        %4318 = vmatprep.subr.bf16.mxu0 0
        %4319 = vmatpush1.bf16.msra.mxu0 0
        %4320 = vmatprep.subr.bf16.mxu0 0
        %4321 = vmatpush1.bf16.msra.mxu0 0
        %4322 = vmatprep.subr.bf16.mxu0 0
        %4323 = vmatpush1.bf16.msra.mxu0 0
        %4324 = vmatprep.subr.bf16.mxu0 0
        %4325 = vmatpush1.bf16.msra.mxu0 0
        %4326 = vmatprep.subr.bf16.mxu0 0
        %4327 = vmatpush1.bf16.msra.mxu0 0
        %4328 = vmatprep.subr.bf16.mxu0 0
        %4329 = vmatpush1.bf16.msra.mxu0 0
        %4330 = vmatprep.subr.bf16.mxu0 0
        %4331 = vmatpush1.bf16.msra.mxu0 0
        %4332 = vmatprep.subr.bf16.mxu0 0
        %4333 = vmatpush1.bf16.msra.mxu0 0
        %4334 = vmatprep.subr.bf16.mxu0 0
        %4335 = vmatpush1.bf16.msra.mxu0 0
        %4336 = vmatprep.subr.bf16.mxu0 0
        %4337 = vmatpush1.bf16.msra.mxu0 0
        %4338 = vmatprep.subr.bf16.mxu0 0
        %4339 = vmatpush1.bf16.msra.mxu0 0
        %4340 = vmatprep.subr.bf16.mxu0 0
        %4341 = vmatpush1.bf16.msra.mxu0 0
        %4342 = vmatprep.mubr.bf16.mxu0 0
        %4343 = vmatmul.mubr.bf16.gmra.mrb[0].mxu0 %v4305
        %v4344 = vpop.f32.mrb[0].mxu0
        %v4345 = vadd.f32 0.0, %v4344
        %v4346 = vpop.f32.mrb[0].mxu0
        %v4347 = vpop.f32.mrb[0].mxu0
        %v4348 = vadd.f32 0.0, %v4347
        %v4349 = vpop.f32.mrb[0].mxu0
        %4350 = vmatprep.mubr.bf16.mxu0 0
        %4351 = vmatmul.mubr.bf16.gmra.mrb[0].mxu0 %v4308
        %v4352 = vpop.f32.mrb[0].mxu0
        %v4353 = vadd.f32 0.0, %v4352
        %v4354 = vpop.f32.mrb[0].mxu0
        %v4355 = vpop.f32.mrb[0].mxu0
        %v4356 = vpop.f32.mrb[0].mxu0
        %4357 = vdwg.mxu0
        %v4358 = vadd.f32 %v4253, %v4345
        %v4359 = vadd.f32 %v4256, %v4348
        %v4360 = vadd.f32 %v4261, %v4353
        %v4361 = vld [vmem:[#allocation5 + $0x6] sm:$0xff]
        %v4362 = vld [vmem:[#allocation5 + $0xe] sm:$0xff]
        %v4363 = vld [vmem:[#allocation5 + $0x16] sm:$0xff]
        %s4364 = scalar_lea.vmem [#allocation15], 96
        %v4365 = vld [vmem:[%s4364] sm:$0xf]
        %v4366 = vld [vmem:[%s4364 + $0x4] sm:$0xf]
        %v4367 = vld [vmem:[%s4364 + $0x8] sm:$0xf]
        %v4368 = vld [vmem:[%s4364 + $0xc] sm:$0xf]
        %v4369 = vld [vmem:[%s4364 + $0x10] sm:$0xf]
        %v4370 = vld [vmem:[%s4364 + $0x14] sm:$0xf]
        %v4371 = vld [vmem:[%s4364 + $0x18] sm:$0xf]
        %v4372 = vld [vmem:[%s4364 + $0x1c] sm:$0xf]
        %v4373 = vpack.c.bf16 %v4362, %v4361
        %v4374 = vpack.c.bf16 %v4363, %v4363
        %v4383 = vunpack.c.l.b16 %v4365
        %v4384 = vunpack.c.l.b16 %v4366
        %v4385 = vunpack.c.l.b16 %v4367
        %v4386 = vunpack.c.l.b16 %v4368
        %v4387 = vunpack.c.l.b16 %v4369
        %v4388 = vunpack.c.l.b16 %v4370
        %v4389 = vunpack.c.l.b16 %v4371
        %v4390 = vunpack.c.l.b16 %v4372
        %v4391 = vpack.c.b16 %v4384, %v4383
        %v4392 = vpack.c.b16 %v4386, %v4385
        %v4393 = vpack.c.b16 %v4388, %v4387
        %v4394 = vpack.c.b16 %v4390, %v4389
        %v4400 = vsel %vm568, %v4373, 0
        %v4403 = vsel %vm568, %v4374, 0
        %4405 = vmatprep.subr.bf16.mxu0 0
        %4406 = vmatpush1.bf16.msra.mxu0 %v4391
        %4407 = vmatprep.subr.bf16.mxu0 0
        %4408 = vmatpush1.bf16.msra.mxu0 %v4392
        %4409 = vmatprep.subr.bf16.mxu0 0
        %4410 = vmatpush1.bf16.msra.mxu0 %v4393
        %4411 = vmatprep.subr.bf16.mxu0 0
        %4412 = vmatpush1.bf16.msra.mxu0 %v4394
        %4413 = vmatprep.subr.bf16.mxu0 0
        %4414 = vmatpush1.bf16.msra.mxu0 0
        %4415 = vmatprep.subr.bf16.mxu0 0
        %4416 = vmatpush1.bf16.msra.mxu0 0
        %4417 = vmatprep.subr.bf16.mxu0 0
        %4418 = vmatpush1.bf16.msra.mxu0 0
        %4419 = vmatprep.subr.bf16.mxu0 0
        %4420 = vmatpush1.bf16.msra.mxu0 0
        %4421 = vmatprep.subr.bf16.mxu0 0
        %4422 = vmatpush1.bf16.msra.mxu0 0
        %4423 = vmatprep.subr.bf16.mxu0 0
        %4424 = vmatpush1.bf16.msra.mxu0 0
        %4425 = vmatprep.subr.bf16.mxu0 0
        %4426 = vmatpush1.bf16.msra.mxu0 0
        %4427 = vmatprep.subr.bf16.mxu0 0
        %4428 = vmatpush1.bf16.msra.mxu0 0
        %4429 = vmatprep.subr.bf16.mxu0 0
        %4430 = vmatpush1.bf16.msra.mxu0 0
        %4431 = vmatprep.subr.bf16.mxu0 0
        %4432 = vmatpush1.bf16.msra.mxu0 0
        %4433 = vmatprep.subr.bf16.mxu0 0
        %4434 = vmatpush1.bf16.msra.mxu0 0
        %4435 = vmatprep.subr.bf16.mxu0 0
        %4436 = vmatpush1.bf16.msra.mxu0 0
        %4437 = vmatprep.mubr.bf16.mxu0 0
        %4438 = vmatmul.mubr.bf16.gmra.mrb[0].mxu0 %v4400
        %v4439 = vpop.f32.mrb[0].mxu0
        %v4440 = vadd.f32 0.0, %v4439
        %v4441 = vpop.f32.mrb[0].mxu0
        %v4442 = vpop.f32.mrb[0].mxu0
        %v4443 = vadd.f32 0.0, %v4442
        %v4444 = vpop.f32.mrb[0].mxu0
        %4445 = vmatprep.mubr.bf16.mxu0 0
        %4446 = vmatmul.mubr.bf16.gmra.mrb[0].mxu0 %v4403
        %v4447 = vpop.f32.mrb[0].mxu0
        %v4448 = vadd.f32 0.0, %v4447
        %v4449 = vpop.f32.mrb[0].mxu0
        %v4450 = vpop.f32.mrb[0].mxu0
        %v4451 = vpop.f32.mrb[0].mxu0
        %4452 = vdwg.mxu0
        %v4453 = vadd.f32 %v4358, %v4440
        %v4454 = vadd.f32 %v4359, %v4443
        %v4455 = vadd.f32 %v4360, %v4448
        %v4456 = vld [vmem:[#allocation5 + $0x7] sm:$0xff]
        %v4457 = vld [vmem:[#allocation5 + $0xf] sm:$0xff]
        %v4458 = vld [vmem:[#allocation5 + $0x17] sm:$0xff]
        %s4459 = scalar_lea.vmem [#allocation15], 128
        %v4460 = vld [vmem:[%s4459] sm:$0xf]
        %v4461 = vld [vmem:[%s4459 + $0x4] sm:$0xf]
        %v4462 = vld [vmem:[%s4459 + $0x8] sm:$0xf]
        %v4463 = vld [vmem:[%s4459 + $0xc] sm:$0xf]
        %v4464 = vld [vmem:[%s4459 + $0x10] sm:$0xf]
        %v4465 = vld [vmem:[%s4459 + $0x14] sm:$0xf]
        %v4466 = vld [vmem:[%s4459 + $0x18] sm:$0xf]
        %v4467 = vld [vmem:[%s4459 + $0x1c] sm:$0xf]
        %v4468 = vpack.c.bf16 %v4457, %v4456
        %v4469 = vpack.c.bf16 %v4458, %v4458
        %v4478 = vunpack.c.l.b16 %v4460
        %v4479 = vunpack.c.l.b16 %v4461
        %v4480 = vunpack.c.l.b16 %v4462
        %v4481 = vunpack.c.l.b16 %v4463
        %v4482 = vunpack.c.l.b16 %v4464
        %v4483 = vunpack.c.l.b16 %v4465
        %v4484 = vunpack.c.l.b16 %v4466
        %v4485 = vunpack.c.l.b16 %v4467
        %v4486 = vpack.c.b16 %v4479, %v4478
        %v4487 = vpack.c.b16 %v4481, %v4480
        %v4488 = vpack.c.b16 %v4483, %v4482
        %v4489 = vpack.c.b16 %v4485, %v4484
        %v4495 = vsel %vm568, %v4468, 0
        %v4498 = vsel %vm568, %v4469, 0
        %4500 = vmatprep.subr.bf16.mxu0 0
        %4501 = vmatpush1.bf16.msra.mxu0 %v4486
        %4502 = vmatprep.subr.bf16.mxu0 0
        %4503 = vmatpush1.bf16.msra.mxu0 %v4487
        %4504 = vmatprep.subr.bf16.mxu0 0
        %4505 = vmatpush1.bf16.msra.mxu0 %v4488
        %4506 = vmatprep.subr.bf16.mxu0 0
        %4507 = vmatpush1.bf16.msra.mxu0 %v4489
        %4508 = vmatprep.subr.bf16.mxu0 0
        %4509 = vmatpush1.bf16.msra.mxu0 0
        %4510 = vmatprep.subr.bf16.mxu0 0
        %4511 = vmatpush1.bf16.msra.mxu0 0
        %4512 = vmatprep.subr.bf16.mxu0 0
        %4513 = vmatpush1.bf16.msra.mxu0 0
        %4514 = vmatprep.subr.bf16.mxu0 0
        %4515 = vmatpush1.bf16.msra.mxu0 0
        %4516 = vmatprep.subr.bf16.mxu0 0
        %4517 = vmatpush1.bf16.msra.mxu0 0
        %4518 = vmatprep.subr.bf16.mxu0 0
        %4519 = vmatpush1.bf16.msra.mxu0 0
        %4520 = vmatprep.subr.bf16.mxu0 0
        %4521 = vmatpush1.bf16.msra.mxu0 0
        %4522 = vmatprep.subr.bf16.mxu0 0
        %4523 = vmatpush1.bf16.msra.mxu0 0
        %4524 = vmatprep.subr.bf16.mxu0 0
        %4525 = vmatpush1.bf16.msra.mxu0 0
        %4526 = vmatprep.subr.bf16.mxu0 0
        %4527 = vmatpush1.bf16.msra.mxu0 0
        %4528 = vmatprep.subr.bf16.mxu0 0
        %4529 = vmatpush1.bf16.msra.mxu0 0
        %4530 = vmatprep.subr.bf16.mxu0 0
        %4531 = vmatpush1.bf16.msra.mxu0 0
        %4532 = vmatprep.mubr.bf16.mxu0 0
        %4533 = vmatmul.mubr.bf16.gmra.mrb[0].mxu0 %v4495
        %v4534 = vpop.f32.mrb[0].mxu0
        %v4535 = vadd.f32 0.0, %v4534
        %v4536 = vpop.f32.mrb[0].mxu0
        %v4537 = vpop.f32.mrb[0].mxu0
        %v4538 = vadd.f32 0.0, %v4537
        %v4539 = vpop.f32.mrb[0].mxu0
        %4540 = vmatprep.mubr.bf16.mxu0 0
        %4541 = vmatmul.mubr.bf16.gmra.mrb[0].mxu0 %v4498
        %v4542 = vpop.f32.mrb[0].mxu0
        %v4543 = vadd.f32 0.0, %v4542
        %v4544 = vpop.f32.mrb[0].mxu0
        %v4545 = vpop.f32.mrb[0].mxu0
        %v4546 = vpop.f32.mrb[0].mxu0
        %4547 = vdwg.mxu0
        %v4548 = vadd.f32 %v4453, %v4535
        %v4549 = vadd.f32 %v4454, %v4538
        %v4550 = vadd.f32 %v4455, %v4543
        %v4551 = vld [vmem:[#allocation5 + $0x8] sm:$0xff]
        %v4552 = vld [vmem:[#allocation5 + $0x10] sm:$0xff]
        %v4553 = vld [vmem:[#allocation5 + $0x18] sm:$0xff]
        %s4554 = scalar_lea.vmem [#allocation15], 160
        %v4555 = vld [vmem:[%s4554] sm:$0xf]
        %v4556 = vld [vmem:[%s4554 + $0x4] sm:$0xf]
        %v4557 = vld [vmem:[%s4554 + $0x8] sm:$0xf]
        %v4558 = vld [vmem:[%s4554 + $0xc] sm:$0xf]
        %v4559 = vld [vmem:[%s4554 + $0x10] sm:$0xf]
        %v4560 = vld [vmem:[%s4554 + $0x14] sm:$0xf]
        %v4561 = vld [vmem:[%s4554 + $0x18] sm:$0xf]
        %v4562 = vld [vmem:[%s4554 + $0x1c] sm:$0xf]
        %v4563 = vpack.c.bf16 %v4552, %v4551
        %v4564 = vpack.c.bf16 %v4553, %v4553
        %v4573 = vunpack.c.l.b16 %v4555
        %v4574 = vunpack.c.l.b16 %v4556
        %v4575 = vunpack.c.l.b16 %v4557
        %v4576 = vunpack.c.l.b16 %v4558
        %v4577 = vunpack.c.l.b16 %v4559
        %v4578 = vunpack.c.l.b16 %v4560
        %v4579 = vunpack.c.l.b16 %v4561
        %v4580 = vunpack.c.l.b16 %v4562
        %v4581 = vpack.c.b16 %v4574, %v4573
        %v4582 = vpack.c.b16 %v4576, %v4575
        %v4583 = vpack.c.b16 %v4578, %v4577
        %v4584 = vpack.c.b16 %v4580, %v4579
        %v4590 = vsel %vm568, %v4563, 0
        %v4593 = vsel %vm568, %v4564, 0
        %4595 = vmatprep.subr.bf16.mxu0 0
        %4596 = vmatpush1.bf16.msra.mxu0 %v4581
        %4597 = vmatprep.subr.bf16.mxu0 0
        %4598 = vmatpush1.bf16.msra.mxu0 %v4582
        %4599 = vmatprep.subr.bf16.mxu0 0
        %4600 = vmatpush1.bf16.msra.mxu0 %v4583
        %4601 = vmatprep.subr.bf16.mxu0 0
        %4602 = vmatpush1.bf16.msra.mxu0 %v4584
        %4603 = vmatprep.subr.bf16.mxu0 0
        %4604 = vmatpush1.bf16.msra.mxu0 0
        %4605 = vmatprep.subr.bf16.mxu0 0
        %4606 = vmatpush1.bf16.msra.mxu0 0
        %4607 = vmatprep.subr.bf16.mxu0 0
        %4608 = vmatpush1.bf16.msra.mxu0 0
        %4609 = vmatprep.subr.bf16.mxu0 0
        %4610 = vmatpush1.bf16.msra.mxu0 0
        %4611 = vmatprep.subr.bf16.mxu0 0
        %4612 = vmatpush1.bf16.msra.mxu0 0
        %4613 = vmatprep.subr.bf16.mxu0 0
        %4614 = vmatpush1.bf16.msra.mxu0 0
        %4615 = vmatprep.subr.bf16.mxu0 0
        %4616 = vmatpush1.bf16.msra.mxu0 0
        %4617 = vmatprep.subr.bf16.mxu0 0
        %4618 = vmatpush1.bf16.msra.mxu0 0
        %4619 = vmatprep.subr.bf16.mxu0 0
        %4620 = vmatpush1.bf16.msra.mxu0 0
        %4621 = vmatprep.subr.bf16.mxu0 0
        %4622 = vmatpush1.bf16.msra.mxu0 0
        %4623 = vmatprep.subr.bf16.mxu0 0
        %4624 = vmatpush1.bf16.msra.mxu0 0
        %4625 = vmatprep.subr.bf16.mxu0 0
        %4626 = vmatpush1.bf16.msra.mxu0 0
        %4627 = vmatprep.mubr.bf16.mxu0 0
        %4628 = vmatmul.mubr.bf16.gmra.mrb[0].mxu0 %v4590
        %v4629 = vpop.f32.mrb[0].mxu0
        %v4630 = vadd.f32 0.0, %v4629
        %v4631 = vpop.f32.mrb[0].mxu0
        %v4632 = vpop.f32.mrb[0].mxu0
        %v4633 = vadd.f32 0.0, %v4632
        %v4634 = vpop.f32.mrb[0].mxu0
        %4635 = vmatprep.mubr.bf16.mxu0 0
        %4636 = vmatmul.mubr.bf16.gmra.mrb[0].mxu0 %v4593
        %v4637 = vpop.f32.mrb[0].mxu0
        %v4638 = vadd.f32 0.0, %v4637
        %v4639 = vpop.f32.mrb[0].mxu0
        %v4640 = vpop.f32.mrb[0].mxu0
        %v4641 = vpop.f32.mrb[0].mxu0
        %4642 = vdwg.mxu0
        %v4643 = vadd.f32 %v4548, %v4630
        %v4644 = vadd.f32 %v4549, %v4633
        %v4645 = vadd.f32 %v4550, %v4638
        %v4646 = vld [vmem:[#allocation5 + $0xc] sm:$0xff]
        %v4647 = vld [vmem:[#allocation5 + $0x14] sm:$0xff]
        %v4648 = vld [vmem:[#allocation5 + $0x1c] sm:$0xff]
        %s4649 = scalar_lea.vmem [#allocation15], 192
        %v4650 = vld [vmem:[%s4649] sm:$0xf]
        %v4651 = vld [vmem:[%s4649 + $0x4] sm:$0xf]
        %v4652 = vld [vmem:[%s4649 + $0x8] sm:$0xf]
        %v4653 = vld [vmem:[%s4649 + $0xc] sm:$0xf]
        %v4654 = vld [vmem:[%s4649 + $0x10] sm:$0xf]
        %v4655 = vld [vmem:[%s4649 + $0x14] sm:$0xf]
        %v4656 = vld [vmem:[%s4649 + $0x18] sm:$0xf]
        %v4657 = vld [vmem:[%s4649 + $0x1c] sm:$0xf]
        %v4658 = vpack.c.bf16 %v4647, %v4646
        %v4659 = vpack.c.bf16 %v4648, %v4648
        %v4668 = vunpack.c.l.b16 %v4650
        %v4669 = vunpack.c.l.b16 %v4651
        %v4670 = vunpack.c.l.b16 %v4652
        %v4671 = vunpack.c.l.b16 %v4653
        %v4672 = vunpack.c.l.b16 %v4654
        %v4673 = vunpack.c.l.b16 %v4655
        %v4674 = vunpack.c.l.b16 %v4656
        %v4675 = vunpack.c.l.b16 %v4657
        %v4676 = vpack.c.b16 %v4669, %v4668
        %v4677 = vpack.c.b16 %v4671, %v4670
        %v4678 = vpack.c.b16 %v4673, %v4672
        %v4679 = vpack.c.b16 %v4675, %v4674
        %v4685 = vsel %vm568, %v4658, 0
        %v4688 = vsel %vm568, %v4659, 0
        %4690 = vmatprep.subr.bf16.mxu0 0
        %4691 = vmatpush1.bf16.msra.mxu0 %v4676
        %4692 = vmatprep.subr.bf16.mxu0 0
        %4693 = vmatpush1.bf16.msra.mxu0 %v4677
        %4694 = vmatprep.subr.bf16.mxu0 0
        %4695 = vmatpush1.bf16.msra.mxu0 %v4678
        %4696 = vmatprep.subr.bf16.mxu0 0
        %4697 = vmatpush1.bf16.msra.mxu0 %v4679
        %4698 = vmatprep.subr.bf16.mxu0 0
        %4699 = vmatpush1.bf16.msra.mxu0 0
        %4700 = vmatprep.subr.bf16.mxu0 0
        %4701 = vmatpush1.bf16.msra.mxu0 0
        %4702 = vmatprep.subr.bf16.mxu0 0
        %4703 = vmatpush1.bf16.msra.mxu0 0
        %4704 = vmatprep.subr.bf16.mxu0 0
        %4705 = vmatpush1.bf16.msra.mxu0 0
        %4706 = vmatprep.subr.bf16.mxu0 0
        %4707 = vmatpush1.bf16.msra.mxu0 0
        %4708 = vmatprep.subr.bf16.mxu0 0
        %4709 = vmatpush1.bf16.msra.mxu0 0
        %4710 = vmatprep.subr.bf16.mxu0 0
        %4711 = vmatpush1.bf16.msra.mxu0 0
        %4712 = vmatprep.subr.bf16.mxu0 0
        %4713 = vmatpush1.bf16.msra.mxu0 0
        %4714 = vmatprep.subr.bf16.mxu0 0
        %4715 = vmatpush1.bf16.msra.mxu0 0
        %4716 = vmatprep.subr.bf16.mxu0 0
        %4717 = vmatpush1.bf16.msra.mxu0 0
        %4718 = vmatprep.subr.bf16.mxu0 0
        %4719 = vmatpush1.bf16.msra.mxu0 0
        %4720 = vmatprep.subr.bf16.mxu0 0
        %4721 = vmatpush1.bf16.msra.mxu0 0
        %4722 = vmatprep.mubr.bf16.mxu0 0
        %4723 = vmatmul.mubr.bf16.gmra.mrb[0].mxu0 %v4685
        %v4724 = vpop.f32.mrb[0].mxu0
        %v4725 = vadd.f32 0.0, %v4724
        %v4726 = vpop.f32.mrb[0].mxu0
        %v4727 = vpop.f32.mrb[0].mxu0
        %v4728 = vadd.f32 0.0, %v4727
        %v4729 = vpop.f32.mrb[0].mxu0
        %4730 = vmatprep.mubr.bf16.mxu0 0
        %4731 = vmatmul.mubr.bf16.gmra.mrb[0].mxu0 %v4688
        %v4732 = vpop.f32.mrb[0].mxu0
        %v4733 = vadd.f32 0.0, %v4732
        %v4734 = vpop.f32.mrb[0].mxu0
        %v4735 = vpop.f32.mrb[0].mxu0
        %v4736 = vpop.f32.mrb[0].mxu0
        %4737 = vdwg.mxu0
        %v4738 = vadd.f32 %v4643, %v4725
        %v4739 = vadd.f32 %v4644, %v4728
        %v4740 = vadd.f32 %v4645, %v4733
        %v4741 = vld [vmem:[#allocation5 + $0xd] sm:$0xff]
        %v4742 = vld [vmem:[#allocation5 + $0x15] sm:$0xff]
        %v4743 = vld [vmem:[#allocation5 + $0x1d] sm:$0xff]
        %s4744 = scalar_lea.vmem [#allocation15], 224
        %v4745 = vld [vmem:[%s4744] sm:$0xf]
        %v4746 = vld [vmem:[%s4744 + $0x4] sm:$0xf]
        %v4747 = vld [vmem:[%s4744 + $0x8] sm:$0xf]
        %v4748 = vld [vmem:[%s4744 + $0xc] sm:$0xf]
        %v4749 = vld [vmem:[%s4744 + $0x10] sm:$0xf]
        %v4750 = vld [vmem:[%s4744 + $0x14] sm:$0xf]
        %v4751 = vld [vmem:[%s4744 + $0x18] sm:$0xf]
        %v4752 = vld [vmem:[%s4744 + $0x1c] sm:$0xf]
        %v4753 = vpack.c.bf16 %v4742, %v4741
        %v4754 = vpack.c.bf16 %v4743, %v4743
        %v4763 = vunpack.c.l.b16 %v4745
        %v4764 = vunpack.c.l.b16 %v4746
        %v4765 = vunpack.c.l.b16 %v4747
        %v4766 = vunpack.c.l.b16 %v4748
        %v4767 = vunpack.c.l.b16 %v4749
        %v4768 = vunpack.c.l.b16 %v4750
        %v4769 = vunpack.c.l.b16 %v4751
        %v4770 = vunpack.c.l.b16 %v4752
        %v4771 = vpack.c.b16 %v4764, %v4763
        %v4772 = vpack.c.b16 %v4766, %v4765
        %v4773 = vpack.c.b16 %v4768, %v4767
        %v4774 = vpack.c.b16 %v4770, %v4769
        %v4780 = vsel %vm568, %v4753, 0
        %v4783 = vsel %vm568, %v4754, 0
        %4785 = vmatprep.subr.bf16.mxu0 0
        %4786 = vmatpush1.bf16.msra.mxu0 %v4771
        %4787 = vmatprep.subr.bf16.mxu0 0
        %4788 = vmatpush1.bf16.msra.mxu0 %v4772
        %4789 = vmatprep.subr.bf16.mxu0 0
        %4790 = vmatpush1.bf16.msra.mxu0 %v4773
        %4791 = vmatprep.subr.bf16.mxu0 0
        %4792 = vmatpush1.bf16.msra.mxu0 %v4774
        %4793 = vmatprep.subr.bf16.mxu0 0
        %4794 = vmatpush1.bf16.msra.mxu0 0
        %4795 = vmatprep.subr.bf16.mxu0 0
        %4796 = vmatpush1.bf16.msra.mxu0 0
        %4797 = vmatprep.subr.bf16.mxu0 0
        %4798 = vmatpush1.bf16.msra.mxu0 0
        %4799 = vmatprep.subr.bf16.mxu0 0
        %4800 = vmatpush1.bf16.msra.mxu0 0
        %4801 = vmatprep.subr.bf16.mxu0 0
        %4802 = vmatpush1.bf16.msra.mxu0 0
        %4803 = vmatprep.subr.bf16.mxu0 0
        %4804 = vmatpush1.bf16.msra.mxu0 0
        %4805 = vmatprep.subr.bf16.mxu0 0
        %4806 = vmatpush1.bf16.msra.mxu0 0
        %4807 = vmatprep.subr.bf16.mxu0 0
        %4808 = vmatpush1.bf16.msra.mxu0 0
        %4809 = vmatprep.subr.bf16.mxu0 0
        %4810 = vmatpush1.bf16.msra.mxu0 0
        %4811 = vmatprep.subr.bf16.mxu0 0
        %4812 = vmatpush1.bf16.msra.mxu0 0
        %4813 = vmatprep.subr.bf16.mxu0 0
        %4814 = vmatpush1.bf16.msra.mxu0 0
        %4815 = vmatprep.subr.bf16.mxu0 0
        %4816 = vmatpush1.bf16.msra.mxu0 0
        %4817 = vmatprep.mubr.bf16.mxu0 0
        %4818 = vmatmul.mubr.bf16.gmra.mrb[0].mxu0 %v4780
        %v4819 = vpop.f32.mrb[0].mxu0
        %v4820 = vadd.f32 0.0, %v4819
        %v4821 = vpop.f32.mrb[0].mxu0
        %v4822 = vpop.f32.mrb[0].mxu0
        %v4823 = vadd.f32 0.0, %v4822
        %v4824 = vpop.f32.mrb[0].mxu0
        %4825 = vmatprep.mubr.bf16.mxu0 0
        %4826 = vmatmul.mubr.bf16.gmra.mrb[0].mxu0 %v4783
        %v4827 = vpop.f32.mrb[0].mxu0
        %v4828 = vadd.f32 0.0, %v4827
        %v4829 = vpop.f32.mrb[0].mxu0
        %v4830 = vpop.f32.mrb[0].mxu0
        %v4831 = vpop.f32.mrb[0].mxu0
        %4832 = vdwg.mxu0
        %v4833 = vadd.f32 %v4738, %v4820
        %v4834 = vadd.f32 %v4739, %v4823
        %v4835 = vadd.f32 %v4740, %v4828
        %v4836 = vld [vmem:[#allocation5 + $0xe] sm:$0xff]
        %v4837 = vld [vmem:[#allocation5 + $0x16] sm:$0xff]
        %v4838 = vld [vmem:[#allocation5 + $0x1e] sm:$0xff]
        %s4839 = scalar_lea.vmem [#allocation15], 256
        %v4840 = vld [vmem:[%s4839] sm:$0xf]
        %v4841 = vld [vmem:[%s4839 + $0x4] sm:$0xf]
        %v4842 = vld [vmem:[%s4839 + $0x8] sm:$0xf]
        %v4843 = vld [vmem:[%s4839 + $0xc] sm:$0xf]
        %v4844 = vld [vmem:[%s4839 + $0x10] sm:$0xf]
        %v4845 = vld [vmem:[%s4839 + $0x14] sm:$0xf]
        %v4846 = vld [vmem:[%s4839 + $0x18] sm:$0xf]
        %v4847 = vld [vmem:[%s4839 + $0x1c] sm:$0xf]
        %v4848 = vpack.c.bf16 %v4837, %v4836
        %v4849 = vpack.c.bf16 %v4838, %v4838
        %v4858 = vunpack.c.l.b16 %v4840
        %v4859 = vunpack.c.l.b16 %v4841
        %v4860 = vunpack.c.l.b16 %v4842
        %v4861 = vunpack.c.l.b16 %v4843
        %v4862 = vunpack.c.l.b16 %v4844
        %v4863 = vunpack.c.l.b16 %v4845
        %v4864 = vunpack.c.l.b16 %v4846
        %v4865 = vunpack.c.l.b16 %v4847
        %v4866 = vpack.c.b16 %v4859, %v4858
        %v4867 = vpack.c.b16 %v4861, %v4860
        %v4868 = vpack.c.b16 %v4863, %v4862
        %v4869 = vpack.c.b16 %v4865, %v4864
        %v4875 = vsel %vm568, %v4848, 0
        %v4878 = vsel %vm568, %v4849, 0
        %4880 = vmatprep.subr.bf16.mxu0 0
        %4881 = vmatpush1.bf16.msra.mxu0 %v4866
        %4882 = vmatprep.subr.bf16.mxu0 0
        %4883 = vmatpush1.bf16.msra.mxu0 %v4867
        %4884 = vmatprep.subr.bf16.mxu0 0
        %4885 = vmatpush1.bf16.msra.mxu0 %v4868
        %4886 = vmatprep.subr.bf16.mxu0 0
        %4887 = vmatpush1.bf16.msra.mxu0 %v4869
        %4888 = vmatprep.subr.bf16.mxu0 0
        %4889 = vmatpush1.bf16.msra.mxu0 0
        %4890 = vmatprep.subr.bf16.mxu0 0
        %4891 = vmatpush1.bf16.msra.mxu0 0
        %4892 = vmatprep.subr.bf16.mxu0 0
        %4893 = vmatpush1.bf16.msra.mxu0 0
        %4894 = vmatprep.subr.bf16.mxu0 0
        %4895 = vmatpush1.bf16.msra.mxu0 0
        %4896 = vmatprep.subr.bf16.mxu0 0
        %4897 = vmatpush1.bf16.msra.mxu0 0
        %4898 = vmatprep.subr.bf16.mxu0 0
        %4899 = vmatpush1.bf16.msra.mxu0 0
        %4900 = vmatprep.subr.bf16.mxu0 0
        %4901 = vmatpush1.bf16.msra.mxu0 0
        %4902 = vmatprep.subr.bf16.mxu0 0
        %4903 = vmatpush1.bf16.msra.mxu0 0
        %4904 = vmatprep.subr.bf16.mxu0 0
        %4905 = vmatpush1.bf16.msra.mxu0 0
        %4906 = vmatprep.subr.bf16.mxu0 0
        %4907 = vmatpush1.bf16.msra.mxu0 0
        %4908 = vmatprep.subr.bf16.mxu0 0
        %4909 = vmatpush1.bf16.msra.mxu0 0
        %4910 = vmatprep.subr.bf16.mxu0 0
        %4911 = vmatpush1.bf16.msra.mxu0 0
        %4912 = vmatprep.mubr.bf16.mxu0 0
        %4913 = vmatmul.mubr.bf16.gmra.mrb[0].mxu0 %v4875
        %v4914 = vpop.f32.mrb[0].mxu0
        %v4915 = vadd.f32 0.0, %v4914
        %v4916 = vpop.f32.mrb[0].mxu0
        %v4917 = vpop.f32.mrb[0].mxu0
        %v4918 = vadd.f32 0.0, %v4917
        %v4919 = vpop.f32.mrb[0].mxu0
        %4920 = vmatprep.mubr.bf16.mxu0 0
        %4921 = vmatmul.mubr.bf16.gmra.mrb[0].mxu0 %v4878
        %v4922 = vpop.f32.mrb[0].mxu0
        %v4923 = vadd.f32 0.0, %v4922
        %v4924 = vpop.f32.mrb[0].mxu0
        %v4925 = vpop.f32.mrb[0].mxu0
        %v4926 = vpop.f32.mrb[0].mxu0
        %4927 = vdwg.mxu0
        %v4928 = vadd.f32 %v4833, %v4915
        %v4929 = vadd.f32 %v4834, %v4918
        %v4930 = vadd.f32 %v4835, %v4923
        %vm4931 = vcmp.ge.f32.partialorder %v4928, 0.0
        %v4932 = vmul.f32 %v4928, 0.2
        %v4933 = vsel %vm4931, %v4928, %v4932
        %4934 = vst [vmem:[#allocation6 + $0x7] sm:$0xf] %v4933
        %vm4935 = vcmp.ge.f32.partialorder %v4929, 0.0
        %v4936 = vmul.f32 %v4929, 0.2
        %v4937 = vsel %vm4935, %v4929, %v4936
        %4938 = vst [vmem:[#allocation6 + $0x7] sm:$0xc0] %v4933
        %4939 = vst [vmem:[#allocation6 + $0xf] sm:$0x3] %v4937
        %4940 = vst [vmem:[#allocation6 + $0xf] sm:$0xf0] %v4937
        %vm4941 = vcmp.ge.f32.partialorder %v4930, 0.0
        %v4942 = vmul.f32 %v4930, 0.2
        %v4943 = vsel %vm4941, %v4930, %v4942
        %4944 = vst [vmem:[#allocation6 + $0x17] sm:$0x3c] %v4943
        %v4945 = vld [vmem:[#allocation6] sm:$0xff]
        %v4946 = vld [vmem:[#allocation6 + $0x8] sm:$0xff]
        %v4947 = vld [vmem:[#allocation6 + $0x10] sm:$0xff]
        %v4948 = vld [vmem:[#allocation6 + $0x18] sm:$0xff]
        %v4949 = vld [vmem:[#allocation6 + $0x20] sm:$0xf]
        %v4950 = vld [vmem:[#allocation17] sm:$0xf]
        %v4951 = vld [vmem:[#allocation17 + $0x4] sm:$0xf]
        %v4952 = vld [vmem:[#allocation17 + $0x8] sm:$0xf]
        %v4953 = vld [vmem:[#allocation17 + $0xc] sm:$0xf]
        %v4954 = vld [vmem:[#allocation17 + $0x10] sm:$0xf]
        %v4955 = vld [vmem:[#allocation17 + $0x14] sm:$0xf]
        %v4956 = vld [vmem:[#allocation17 + $0x18] sm:$0xf]
        %v4957 = vld [vmem:[#allocation17 + $0x1c] sm:$0xf]
        %v4958 = vld [vmem:[#allocation17 + $0x20] sm:$0xf]
        %v4959 = vld [vmem:[#allocation17 + $0x24] sm:$0xf]
        %v4960 = vld [vmem:[#allocation17 + $0x28] sm:$0xf]
        %v4961 = vld [vmem:[#allocation17 + $0x2c] sm:$0xf]
        %v4962 = vld [vmem:[#allocation17 + $0x30] sm:$0xf]
        %v4963 = vld [vmem:[#allocation17 + $0x34] sm:$0xf]
        %v4964 = vld [vmem:[#allocation17 + $0x38] sm:$0xf]
        %v4965 = vld [vmem:[#allocation17 + $0x3c] sm:$0xf]
        %v4966 = vpack.c.bf16 %v4946, %v4945
        %v4967 = vpack.c.bf16 %v4948, %v4947
        %v4968 = vpack.c.bf16 %v4949, %v4949
        %v4969 = vld [vmem:[#allocation6 + $0x1] sm:$0xff]
        %v4970 = vld [vmem:[#allocation6 + $0x9] sm:$0xff]
        %v4971 = vld [vmem:[#allocation6 + $0x11] sm:$0xff]
        %v4972 = vld [vmem:[#allocation6 + $0x19] sm:$0xff]
        %v4973 = vld [vmem:[#allocation6 + $0x21] sm:$0xf]
        %s4974 = scalar_lea.vmem [#allocation17], 64
        %v4975 = vld [vmem:[%s4974] sm:$0xf]
        %v4976 = vld [vmem:[%s4974 + $0x4] sm:$0xf]
        %v4977 = vld [vmem:[%s4974 + $0x8] sm:$0xf]
        %v4978 = vld [vmem:[%s4974 + $0xc] sm:$0xf]
        %v4979 = vld [vmem:[%s4974 + $0x10] sm:$0xf]
        %v4980 = vld [vmem:[%s4974 + $0x14] sm:$0xf]
        %v4981 = vld [vmem:[%s4974 + $0x18] sm:$0xf]
        %v4982 = vld [vmem:[%s4974 + $0x1c] sm:$0xf]
        %v4983 = vld [vmem:[%s4974 + $0x20] sm:$0xf]
        %v4984 = vld [vmem:[%s4974 + $0x24] sm:$0xf]
        %v4985 = vld [vmem:[%s4974 + $0x28] sm:$0xf]
        %v4986 = vld [vmem:[%s4974 + $0x2c] sm:$0xf]
        %v4987 = vld [vmem:[%s4974 + $0x30] sm:$0xf]
        %v4988 = vld [vmem:[%s4974 + $0x34] sm:$0xf]
        %v4989 = vld [vmem:[%s4974 + $0x38] sm:$0xf]
        %v4990 = vld [vmem:[%s4974 + $0x3c] sm:$0xf]
        %v4991 = vpack.c.bf16 %v4970, %v4969
        %v4992 = vpack.c.bf16 %v4972, %v4971
        %v4993 = vpack.c.bf16 %v4973, %v4973
        %v5010 = vunpack.c.l.b16 %v4975
        %v5011 = vunpack.c.l.b16 %v4976
        %v5012 = vunpack.c.l.b16 %v4977
        %v5013 = vunpack.c.l.b16 %v4978
        %v5014 = vunpack.c.l.b16 %v4979
        %v5015 = vunpack.c.l.b16 %v4980
        %v5016 = vunpack.c.l.b16 %v4981
        %v5017 = vunpack.c.l.b16 %v4982
        %v5018 = vunpack.c.l.b16 %v4983
        %v5019 = vunpack.c.l.b16 %v4984
        %v5020 = vunpack.c.l.b16 %v4985
        %v5021 = vunpack.c.l.b16 %v4986
        %v5022 = vunpack.c.l.b16 %v4987
        %v5023 = vunpack.c.l.b16 %v4988
        %v5024 = vunpack.c.l.b16 %v4989
        %v5025 = vunpack.c.l.b16 %v4990
        %v5026 = vpack.c.b16 %v5011, %v5010
        %v5027 = vpack.c.b16 %v5013, %v5012
        %v5028 = vpack.c.b16 %v5015, %v5014
        %v5029 = vpack.c.b16 %v5017, %v5016
        %v5030 = vpack.c.b16 %v5019, %v5018
        %v5031 = vpack.c.b16 %v5021, %v5020
        %v5032 = vpack.c.b16 %v5023, %v5022
        %v5033 = vpack.c.b16 %v5025, %v5024
        %5042 = vmatprep.subr.bf16.mxu0 0
        %5043 = vmatpush1.bf16.msra.mxu0 %v5026
        %5044 = vmatprep.subr.bf16.mxu0 0
        %5045 = vmatpush1.bf16.msra.mxu0 %v5027
        %5046 = vmatprep.subr.bf16.mxu0 0
        %5047 = vmatpush1.bf16.msra.mxu0 %v5028
        %5048 = vmatprep.subr.bf16.mxu0 0
        %5049 = vmatpush1.bf16.msra.mxu0 %v5029
        %5050 = vmatprep.subr.bf16.mxu0 0
        %5051 = vmatpush1.bf16.msra.mxu0 %v5030
        %5052 = vmatprep.subr.bf16.mxu0 0
        %5053 = vmatpush1.bf16.msra.mxu0 %v5031
        %5054 = vmatprep.subr.bf16.mxu0 0
        %5055 = vmatpush1.bf16.msra.mxu0 %v5032
        %5056 = vmatprep.subr.bf16.mxu0 0
        %5057 = vmatpush1.bf16.msra.mxu0 %v5033
        %5058 = vmatprep.subr.bf16.mxu0 0
        %5059 = vmatpush1.bf16.msra.mxu0 0
        %5060 = vmatprep.subr.bf16.mxu0 0
        %5061 = vmatpush1.bf16.msra.mxu0 0
        %5062 = vmatprep.subr.bf16.mxu0 0
        %5063 = vmatpush1.bf16.msra.mxu0 0
        %5064 = vmatprep.subr.bf16.mxu0 0
        %5065 = vmatpush1.bf16.msra.mxu0 0
        %5066 = vmatprep.subr.bf16.mxu0 0
        %5067 = vmatpush1.bf16.msra.mxu0 0
        %5068 = vmatprep.subr.bf16.mxu0 0
        %5069 = vmatpush1.bf16.msra.mxu0 0
        %5070 = vmatprep.subr.bf16.mxu0 0
        %5071 = vmatpush1.bf16.msra.mxu0 0
        %5072 = vmatprep.subr.bf16.mxu0 0
        %5073 = vmatpush1.bf16.msra.mxu0 0
        %5074 = vmatprep.mubr.bf16.mxu0 0
        %5075 = vmatmul.mubr.bf16.gmra.mrb[0].mxu0 %v4991
        %v5076 = vpop.f32.mrb[0].mxu0
        %v5077 = vadd.f32 0.0, %v5076
        %v5078 = vpop.f32.mrb[0].mxu0
        %v5079 = vpop.f32.mrb[0].mxu0
        %v5080 = vadd.f32 0.0, %v5079
        %v5081 = vpop.f32.mrb[0].mxu0
        %5082 = vmatprep.mubr.bf16.mxu0 0
        %5083 = vmatmul.mubr.bf16.gmra.mrb[0].mxu0 %v4992
        %v5084 = vpop.f32.mrb[0].mxu0
        %v5085 = vadd.f32 0.0, %v5084
        %v5086 = vpop.f32.mrb[0].mxu0
        %v5087 = vpop.f32.mrb[0].mxu0
        %v5088 = vadd.f32 0.0, %v5087
        %v5089 = vpop.f32.mrb[0].mxu0
        %5090 = vmatprep.mubr.bf16.mxu0 0
        %5091 = vmatmul.mubr.bf16.gmra.mrb[0].mxu0 %v4993
        %v5092 = vpop.f32.mrb[0].mxu0
        %v5093 = vadd.f32 0.0, %v5092
        %v5094 = vpop.f32.mrb[0].mxu0
        %v5095 = vpop.f32.mrb[0].mxu0
        %v5096 = vpop.f32.mrb[0].mxu0
        %5097 = vdwg.mxu0
        %v5114 = vunpack.c.l.b16 %v4950
        %v5115 = vunpack.c.l.b16 %v4951
        %v5116 = vunpack.c.l.b16 %v4952
        %v5117 = vunpack.c.l.b16 %v4953
        %v5118 = vunpack.c.l.b16 %v4954
        %v5119 = vunpack.c.l.b16 %v4955
        %v5120 = vunpack.c.l.b16 %v4956
        %v5121 = vunpack.c.l.b16 %v4957
        %v5122 = vunpack.c.l.b16 %v4958
        %v5123 = vunpack.c.l.b16 %v4959
        %v5124 = vunpack.c.l.b16 %v4960
        %v5125 = vunpack.c.l.b16 %v4961
        %v5126 = vunpack.c.l.b16 %v4962
        %v5127 = vunpack.c.l.b16 %v4963
        %v5128 = vunpack.c.l.b16 %v4964
        %v5129 = vunpack.c.l.b16 %v4965
        %v5130 = vpack.c.b16 %v5115, %v5114
        %v5131 = vpack.c.b16 %v5117, %v5116
        %v5132 = vpack.c.b16 %v5119, %v5118
        %v5133 = vpack.c.b16 %v5121, %v5120
        %v5134 = vpack.c.b16 %v5123, %v5122
        %v5135 = vpack.c.b16 %v5125, %v5124
        %v5136 = vpack.c.b16 %v5127, %v5126
        %v5137 = vpack.c.b16 %v5129, %v5128
        %5146 = vmatprep.subr.bf16.mxu0 0
        %5147 = vmatpush1.bf16.msra.mxu0 %v5130
        %5148 = vmatprep.subr.bf16.mxu0 0
        %5149 = vmatpush1.bf16.msra.mxu0 %v5131
        %5150 = vmatprep.subr.bf16.mxu0 0
        %5151 = vmatpush1.bf16.msra.mxu0 %v5132
        %5152 = vmatprep.subr.bf16.mxu0 0
        %5153 = vmatpush1.bf16.msra.mxu0 %v5133
        %5154 = vmatprep.subr.bf16.mxu0 0
        %5155 = vmatpush1.bf16.msra.mxu0 %v5134
        %5156 = vmatprep.subr.bf16.mxu0 0
        %5157 = vmatpush1.bf16.msra.mxu0 %v5135
        %5158 = vmatprep.subr.bf16.mxu0 0
        %5159 = vmatpush1.bf16.msra.mxu0 %v5136
        %5160 = vmatprep.subr.bf16.mxu0 0
        %5161 = vmatpush1.bf16.msra.mxu0 %v5137
        %5162 = vmatprep.subr.bf16.mxu0 0
        %5163 = vmatpush1.bf16.msra.mxu0 0
        %5164 = vmatprep.subr.bf16.mxu0 0
        %5165 = vmatpush1.bf16.msra.mxu0 0
        %5166 = vmatprep.subr.bf16.mxu0 0
        %5167 = vmatpush1.bf16.msra.mxu0 0
        %5168 = vmatprep.subr.bf16.mxu0 0
        %5169 = vmatpush1.bf16.msra.mxu0 0
        %5170 = vmatprep.subr.bf16.mxu0 0
        %5171 = vmatpush1.bf16.msra.mxu0 0
        %5172 = vmatprep.subr.bf16.mxu0 0
        %5173 = vmatpush1.bf16.msra.mxu0 0
        %5174 = vmatprep.subr.bf16.mxu0 0
        %5175 = vmatpush1.bf16.msra.mxu0 0
        %5176 = vmatprep.subr.bf16.mxu0 0
        %5177 = vmatpush1.bf16.msra.mxu0 0
        %5178 = vmatprep.mubr.bf16.mxu0 0
        %5179 = vmatmul.mubr.bf16.gmra.mrb[0].mxu0 %v4966
        %v5180 = vpop.f32.mrb[0].mxu0
        %v5181 = vadd.f32 %v5077, %v5180
        %v5182 = vpop.f32.mrb[0].mxu0
        %v5183 = vpop.f32.mrb[0].mxu0
        %v5184 = vadd.f32 %v5080, %v5183
        %v5185 = vpop.f32.mrb[0].mxu0
        %5186 = vmatprep.mubr.bf16.mxu0 0
        %5187 = vmatmul.mubr.bf16.gmra.mrb[0].mxu0 %v4967
        %v5188 = vpop.f32.mrb[0].mxu0
        %v5189 = vadd.f32 %v5085, %v5188
        %v5190 = vpop.f32.mrb[0].mxu0
        %v5191 = vpop.f32.mrb[0].mxu0
        %v5192 = vadd.f32 %v5088, %v5191
        %v5193 = vpop.f32.mrb[0].mxu0
        %5194 = vmatprep.mubr.bf16.mxu0 0
        %5195 = vmatmul.mubr.bf16.gmra.mrb[0].mxu0 %v4968
        %v5196 = vpop.f32.mrb[0].mxu0
        %v5197 = vadd.f32 %v5093, %v5196
        %v5198 = vpop.f32.mrb[0].mxu0
        %v5199 = vpop.f32.mrb[0].mxu0
        %v5200 = vpop.f32.mrb[0].mxu0
        %5201 = vdwg.mxu0
        %vm5202 = vcmp.ge.f32.partialorder %v5181, 0.0
        %v5203 = vmul.f32 %v5181, 0.2
        %v5204 = vsel %vm5202, %v5181, %v5203
        %5205 = vst [vmem:[#allocation7 + $0x8] sm:$0x1f] %v5204
        %vm5206 = vcmp.ge.f32.partialorder %v5184, 0.0
        %v5207 = vmul.f32 %v5184, 0.2
        %v5208 = vsel %vm5206, %v5184, %v5207
        %5209 = vst [vmem:[#allocation7 + $0x9] sm:$0xc0] %v5204
        %5210 = vst [vmem:[#allocation7 + $0x11] sm:$0x7] %v5208
        %vm5211 = vcmp.ge.f32.partialorder %v5189, 0.0
        %v5212 = vmul.f32 %v5189, 0.2
        %v5213 = vsel %vm5211, %v5189, %v5212
        %5214 = vst [vmem:[#allocation7 + $0x12] sm:$0xf0] %v5208
        %5215 = vst [vmem:[#allocation7 + $0x1a] sm:$0x1] %v5213
        %5216 = vst [vmem:[#allocation7 + $0x1b] sm:$0x7c] %v5213
        %vm5217 = vcmp.ge.f32.partialorder %v5192, 0.0
        %v5218 = vmul.f32 %v5192, 0.2
        %v5219 = vsel %vm5217, %v5192, %v5218
        %5220 = vst [vmem:[#allocation7 + $0x24] sm:$0x1f] %v5219
        %vm5221 = vcmp.ge.f32.partialorder %v5197, 0.0
        %v5222 = vmul.f32 %v5197, 0.2
        %v5223 = vsel %vm5221, %v5197, %v5222
        %5224 = vst [vmem:[#allocation7 + $0x25] sm:$0xc0] %v5219
        %5225 = vst [vmem:[#allocation7 + $0x2d] sm:$0x7] %v5223
        %v5226 = vld [vmem:[#allocation7] sm:$0xff]
        %v5227 = vld [vmem:[#allocation7 + $0x8] sm:$0xff]
        %v5228 = vld [vmem:[#allocation7 + $0x10] sm:$0xff]
        %v5229 = vld [vmem:[#allocation7 + $0x18] sm:$0xff]
        %v5230 = vld [vmem:[#allocation7 + $0x20] sm:$0xff]
        %v5231 = vld [vmem:[#allocation7 + $0x28] sm:$0x3]
        %v5232 = vld [vmem:[#allocation18] sm:$0xf]
        %v5233 = vld [vmem:[#allocation18 + $0x4] sm:$0xf]
        %v5234 = vld [vmem:[#allocation18 + $0x8] sm:$0xf]
        %v5235 = vld [vmem:[#allocation18 + $0xc] sm:$0xf]
        %v5236 = vld [vmem:[#allocation18 + $0x10] sm:$0xf]
        %v5237 = vld [vmem:[#allocation18 + $0x14] sm:$0xf]
        %v5238 = vld [vmem:[#allocation18 + $0x18] sm:$0xf]
        %v5239 = vld [vmem:[#allocation18 + $0x1c] sm:$0xf]
        %v5240 = vld [vmem:[#allocation18 + $0x20] sm:$0xf]
        %v5241 = vld [vmem:[#allocation18 + $0x24] sm:$0xf]
        %v5242 = vld [vmem:[#allocation18 + $0x28] sm:$0xf]
        %v5243 = vld [vmem:[#allocation18 + $0x2c] sm:$0xf]
        %v5244 = vld [vmem:[#allocation18 + $0x30] sm:$0xf]
        %v5245 = vld [vmem:[#allocation18 + $0x34] sm:$0xf]
        %v5246 = vld [vmem:[#allocation18 + $0x38] sm:$0xf]
        %v5247 = vld [vmem:[#allocation18 + $0x3c] sm:$0xf]
        %v5248 = vpack.c.bf16 %v5227, %v5226
        %v5249 = vpack.c.bf16 %v5229, %v5228
        %v5250 = vpack.c.bf16 %v5231, %v5230
        %v5251 = vld [vmem:[#allocation7 + $0x1] sm:$0xff]
        %v5252 = vld [vmem:[#allocation7 + $0x9] sm:$0xff]
        %v5253 = vld [vmem:[#allocation7 + $0x11] sm:$0xff]
        %v5254 = vld [vmem:[#allocation7 + $0x19] sm:$0xff]
        %v5255 = vld [vmem:[#allocation7 + $0x21] sm:$0xff]
        %v5256 = vld [vmem:[#allocation7 + $0x29] sm:$0x3]
        %s5257 = scalar_lea.vmem [#allocation18], 64
        %v5258 = vld [vmem:[%s5257] sm:$0xf]
        %v5259 = vld [vmem:[%s5257 + $0x4] sm:$0xf]
        %v5260 = vld [vmem:[%s5257 + $0x8] sm:$0xf]
        %v5261 = vld [vmem:[%s5257 + $0xc] sm:$0xf]
        %v5262 = vld [vmem:[%s5257 + $0x10] sm:$0xf]
        %v5263 = vld [vmem:[%s5257 + $0x14] sm:$0xf]
        %v5264 = vld [vmem:[%s5257 + $0x18] sm:$0xf]
        %v5265 = vld [vmem:[%s5257 + $0x1c] sm:$0xf]
        %v5266 = vld [vmem:[%s5257 + $0x20] sm:$0xf]
        %v5267 = vld [vmem:[%s5257 + $0x24] sm:$0xf]
        %v5268 = vld [vmem:[%s5257 + $0x28] sm:$0xf]
        %v5269 = vld [vmem:[%s5257 + $0x2c] sm:$0xf]
        %v5270 = vld [vmem:[%s5257 + $0x30] sm:$0xf]
        %v5271 = vld [vmem:[%s5257 + $0x34] sm:$0xf]
        %v5272 = vld [vmem:[%s5257 + $0x38] sm:$0xf]
        %v5273 = vld [vmem:[%s5257 + $0x3c] sm:$0xf]
        %v5274 = vpack.c.bf16 %v5252, %v5251
        %v5275 = vpack.c.bf16 %v5254, %v5253
        %v5276 = vpack.c.bf16 %v5256, %v5255
        %v5293 = vunpack.c.l.b16 %v5258
        %v5294 = vunpack.c.l.b16 %v5259
        %v5295 = vunpack.c.l.b16 %v5260
        %v5296 = vunpack.c.l.b16 %v5261
        %v5297 = vunpack.c.l.b16 %v5262
        %v5298 = vunpack.c.l.b16 %v5263
        %v5299 = vunpack.c.l.b16 %v5264
        %v5300 = vunpack.c.l.b16 %v5265
        %v5301 = vunpack.c.l.b16 %v5266
        %v5302 = vunpack.c.l.b16 %v5267
        %v5303 = vunpack.c.l.b16 %v5268
        %v5304 = vunpack.c.l.b16 %v5269
        %v5305 = vunpack.c.l.b16 %v5270
        %v5306 = vunpack.c.l.b16 %v5271
        %v5307 = vunpack.c.l.b16 %v5272
        %v5308 = vunpack.c.l.b16 %v5273
        %v5309 = vpack.c.b16 %v5294, %v5293
        %v5310 = vpack.c.b16 %v5296, %v5295
        %v5311 = vpack.c.b16 %v5298, %v5297
        %v5312 = vpack.c.b16 %v5300, %v5299
        %v5313 = vpack.c.b16 %v5302, %v5301
        %v5314 = vpack.c.b16 %v5304, %v5303
        %v5315 = vpack.c.b16 %v5306, %v5305
        %v5316 = vpack.c.b16 %v5308, %v5307
        %5325 = vmatprep.subr.bf16.mxu0 0
        %5326 = vmatpush1.bf16.msra.mxu0 %v5309
        %5327 = vmatprep.subr.bf16.mxu0 0
        %5328 = vmatpush1.bf16.msra.mxu0 %v5310
        %5329 = vmatprep.subr.bf16.mxu0 0
        %5330 = vmatpush1.bf16.msra.mxu0 %v5311
        %5331 = vmatprep.subr.bf16.mxu0 0
        %5332 = vmatpush1.bf16.msra.mxu0 %v5312
        %5333 = vmatprep.subr.bf16.mxu0 0
        %5334 = vmatpush1.bf16.msra.mxu0 %v5313
        %5335 = vmatprep.subr.bf16.mxu0 0
        %5336 = vmatpush1.bf16.msra.mxu0 %v5314
        %5337 = vmatprep.subr.bf16.mxu0 0
        %5338 = vmatpush1.bf16.msra.mxu0 %v5315
        %5339 = vmatprep.subr.bf16.mxu0 0
        %5340 = vmatpush1.bf16.msra.mxu0 %v5316
        %5341 = vmatprep.subr.bf16.mxu0 0
        %5342 = vmatpush1.bf16.msra.mxu0 0
        %5343 = vmatprep.subr.bf16.mxu0 0
        %5344 = vmatpush1.bf16.msra.mxu0 0
        %5345 = vmatprep.subr.bf16.mxu0 0
        %5346 = vmatpush1.bf16.msra.mxu0 0
        %5347 = vmatprep.subr.bf16.mxu0 0
        %5348 = vmatpush1.bf16.msra.mxu0 0
        %5349 = vmatprep.subr.bf16.mxu0 0
        %5350 = vmatpush1.bf16.msra.mxu0 0
        %5351 = vmatprep.subr.bf16.mxu0 0
        %5352 = vmatpush1.bf16.msra.mxu0 0
        %5353 = vmatprep.subr.bf16.mxu0 0
        %5354 = vmatpush1.bf16.msra.mxu0 0
        %5355 = vmatprep.subr.bf16.mxu0 0
        %5356 = vmatpush1.bf16.msra.mxu0 0
        %5357 = vmatprep.mubr.bf16.mxu0 0
        %5358 = vmatmul.mubr.bf16.gmra.mrb[0].mxu0 %v5274
        %v5359 = vpop.f32.mrb[0].mxu0
        %v5360 = vadd.f32 0.0, %v5359
        %v5361 = vpop.f32.mrb[0].mxu0
        %v5362 = vpop.f32.mrb[0].mxu0
        %v5363 = vadd.f32 0.0, %v5362
        %v5364 = vpop.f32.mrb[0].mxu0
        %5365 = vmatprep.mubr.bf16.mxu0 0
        %5366 = vmatmul.mubr.bf16.gmra.mrb[0].mxu0 %v5275
        %v5367 = vpop.f32.mrb[0].mxu0
        %v5368 = vadd.f32 0.0, %v5367
        %v5369 = vpop.f32.mrb[0].mxu0
        %v5370 = vpop.f32.mrb[0].mxu0
        %v5371 = vadd.f32 0.0, %v5370
        %v5372 = vpop.f32.mrb[0].mxu0
        %5373 = vmatprep.mubr.bf16.mxu0 0
        %5374 = vmatmul.mubr.bf16.gmra.mrb[0].mxu0 %v5276
        %v5375 = vpop.f32.mrb[0].mxu0
        %v5376 = vadd.f32 0.0, %v5375
        %v5377 = vpop.f32.mrb[0].mxu0
        %v5378 = vpop.f32.mrb[0].mxu0
        %v5379 = vpop.f32.mrb[0].mxu0
        %5380 = vdwg.mxu0
        %v5397 = vunpack.c.l.b16 %v5232
        %v5398 = vunpack.c.l.b16 %v5233
        %v5399 = vunpack.c.l.b16 %v5234
        %v5400 = vunpack.c.l.b16 %v5235
        %v5401 = vunpack.c.l.b16 %v5236
        %v5402 = vunpack.c.l.b16 %v5237
        %v5403 = vunpack.c.l.b16 %v5238
        %v5404 = vunpack.c.l.b16 %v5239
        %v5405 = vunpack.c.l.b16 %v5240
        %v5406 = vunpack.c.l.b16 %v5241
        %v5407 = vunpack.c.l.b16 %v5242
        %v5408 = vunpack.c.l.b16 %v5243
        %v5409 = vunpack.c.l.b16 %v5244
        %v5410 = vunpack.c.l.b16 %v5245
        %v5411 = vunpack.c.l.b16 %v5246
        %v5412 = vunpack.c.l.b16 %v5247
        %v5413 = vpack.c.b16 %v5398, %v5397
        %v5414 = vpack.c.b16 %v5400, %v5399
        %v5415 = vpack.c.b16 %v5402, %v5401
        %v5416 = vpack.c.b16 %v5404, %v5403
        %v5417 = vpack.c.b16 %v5406, %v5405
        %v5418 = vpack.c.b16 %v5408, %v5407
        %v5419 = vpack.c.b16 %v5410, %v5409
        %v5420 = vpack.c.b16 %v5412, %v5411
        %5429 = vmatprep.subr.bf16.mxu0 0
        %5430 = vmatpush1.bf16.msra.mxu0 %v5413
        %5431 = vmatprep.subr.bf16.mxu0 0
        %5432 = vmatpush1.bf16.msra.mxu0 %v5414
        %5433 = vmatprep.subr.bf16.mxu0 0
        %5434 = vmatpush1.bf16.msra.mxu0 %v5415
        %5435 = vmatprep.subr.bf16.mxu0 0
        %5436 = vmatpush1.bf16.msra.mxu0 %v5416
        %5437 = vmatprep.subr.bf16.mxu0 0
        %5438 = vmatpush1.bf16.msra.mxu0 %v5417
        %5439 = vmatprep.subr.bf16.mxu0 0
        %5440 = vmatpush1.bf16.msra.mxu0 %v5418
        %5441 = vmatprep.subr.bf16.mxu0 0
        %5442 = vmatpush1.bf16.msra.mxu0 %v5419
        %5443 = vmatprep.subr.bf16.mxu0 0
        %5444 = vmatpush1.bf16.msra.mxu0 %v5420
        %5445 = vmatprep.subr.bf16.mxu0 0
        %5446 = vmatpush1.bf16.msra.mxu0 0
        %5447 = vmatprep.subr.bf16.mxu0 0
        %5448 = vmatpush1.bf16.msra.mxu0 0
        %5449 = vmatprep.subr.bf16.mxu0 0
        %5450 = vmatpush1.bf16.msra.mxu0 0
        %5451 = vmatprep.subr.bf16.mxu0 0
        %5452 = vmatpush1.bf16.msra.mxu0 0
        %5453 = vmatprep.subr.bf16.mxu0 0
        %5454 = vmatpush1.bf16.msra.mxu0 0
        %5455 = vmatprep.subr.bf16.mxu0 0
        %5456 = vmatpush1.bf16.msra.mxu0 0
        %5457 = vmatprep.subr.bf16.mxu0 0
        %5458 = vmatpush1.bf16.msra.mxu0 0
        %5459 = vmatprep.subr.bf16.mxu0 0
        %5460 = vmatpush1.bf16.msra.mxu0 0
        %5461 = vmatprep.mubr.bf16.mxu0 0
        %5462 = vmatmul.mubr.bf16.gmra.mrb[0].mxu0 %v5248
        %v5463 = vpop.f32.mrb[0].mxu0
        %v5464 = vadd.f32 %v5360, %v5463
        %v5465 = vpop.f32.mrb[0].mxu0
        %v5466 = vpop.f32.mrb[0].mxu0
        %v5467 = vadd.f32 %v5363, %v5466
        %v5468 = vpop.f32.mrb[0].mxu0
        %5469 = vmatprep.mubr.bf16.mxu0 0
        %5470 = vmatmul.mubr.bf16.gmra.mrb[0].mxu0 %v5249
        %v5471 = vpop.f32.mrb[0].mxu0
        %v5472 = vadd.f32 %v5368, %v5471
        %v5473 = vpop.f32.mrb[0].mxu0
        %v5474 = vpop.f32.mrb[0].mxu0
        %v5475 = vadd.f32 %v5371, %v5474
        %v5476 = vpop.f32.mrb[0].mxu0
        %5477 = vmatprep.mubr.bf16.mxu0 0
        %5478 = vmatmul.mubr.bf16.gmra.mrb[0].mxu0 %v5250
        %v5479 = vpop.f32.mrb[0].mxu0
        %v5480 = vadd.f32 %v5376, %v5479
        %v5481 = vpop.f32.mrb[0].mxu0
        %v5482 = vpop.f32.mrb[0].mxu0
        %v5483 = vpop.f32.mrb[0].mxu0
        %5484 = vdwg.mxu0
        %v5485 = vld [vmem:[#allocation7 + $0x2] sm:$0xff]
        %v5486 = vld [vmem:[#allocation7 + $0xa] sm:$0xff]
        %v5487 = vld [vmem:[#allocation7 + $0x12] sm:$0xff]
        %v5488 = vld [vmem:[#allocation7 + $0x1a] sm:$0xff]
        %v5489 = vld [vmem:[#allocation7 + $0x22] sm:$0xff]
        %v5490 = vld [vmem:[#allocation7 + $0x2a] sm:$0x3]
        %s5491 = scalar_lea.vmem [#allocation18], 128
        %v5492 = vld [vmem:[%s5491] sm:$0xf]
        %v5493 = vld [vmem:[%s5491 + $0x4] sm:$0xf]
        %v5494 = vld [vmem:[%s5491 + $0x8] sm:$0xf]
        %v5495 = vld [vmem:[%s5491 + $0xc] sm:$0xf]
        %v5496 = vld [vmem:[%s5491 + $0x10] sm:$0xf]
        %v5497 = vld [vmem:[%s5491 + $0x14] sm:$0xf]
        %v5498 = vld [vmem:[%s5491 + $0x18] sm:$0xf]
        %v5499 = vld [vmem:[%s5491 + $0x1c] sm:$0xf]
        %v5500 = vld [vmem:[%s5491 + $0x20] sm:$0xf]
        %v5501 = vld [vmem:[%s5491 + $0x24] sm:$0xf]
        %v5502 = vld [vmem:[%s5491 + $0x28] sm:$0xf]
        %v5503 = vld [vmem:[%s5491 + $0x2c] sm:$0xf]
        %v5504 = vld [vmem:[%s5491 + $0x30] sm:$0xf]
        %v5505 = vld [vmem:[%s5491 + $0x34] sm:$0xf]
        %v5506 = vld [vmem:[%s5491 + $0x38] sm:$0xf]
        %v5507 = vld [vmem:[%s5491 + $0x3c] sm:$0xf]
        %v5508 = vpack.c.bf16 %v5486, %v5485
        %v5509 = vpack.c.bf16 %v5488, %v5487
        %v5510 = vpack.c.bf16 %v5490, %v5489
        %v5527 = vunpack.c.l.b16 %v5492
        %v5528 = vunpack.c.l.b16 %v5493
        %v5529 = vunpack.c.l.b16 %v5494
        %v5530 = vunpack.c.l.b16 %v5495
        %v5531 = vunpack.c.l.b16 %v5496
        %v5532 = vunpack.c.l.b16 %v5497
        %v5533 = vunpack.c.l.b16 %v5498
        %v5534 = vunpack.c.l.b16 %v5499
        %v5535 = vunpack.c.l.b16 %v5500
        %v5536 = vunpack.c.l.b16 %v5501
        %v5537 = vunpack.c.l.b16 %v5502
        %v5538 = vunpack.c.l.b16 %v5503
        %v5539 = vunpack.c.l.b16 %v5504
        %v5540 = vunpack.c.l.b16 %v5505
        %v5541 = vunpack.c.l.b16 %v5506
        %v5542 = vunpack.c.l.b16 %v5507
        %v5543 = vpack.c.b16 %v5528, %v5527
        %v5544 = vpack.c.b16 %v5530, %v5529
        %v5545 = vpack.c.b16 %v5532, %v5531
        %v5546 = vpack.c.b16 %v5534, %v5533
        %v5547 = vpack.c.b16 %v5536, %v5535
        %v5548 = vpack.c.b16 %v5538, %v5537
        %v5549 = vpack.c.b16 %v5540, %v5539
        %v5550 = vpack.c.b16 %v5542, %v5541
        %5559 = vmatprep.subr.bf16.mxu0 0
        %5560 = vmatpush1.bf16.msra.mxu0 %v5543
        %5561 = vmatprep.subr.bf16.mxu0 0
        %5562 = vmatpush1.bf16.msra.mxu0 %v5544
        %5563 = vmatprep.subr.bf16.mxu0 0
        %5564 = vmatpush1.bf16.msra.mxu0 %v5545
        %5565 = vmatprep.subr.bf16.mxu0 0
        %5566 = vmatpush1.bf16.msra.mxu0 %v5546
        %5567 = vmatprep.subr.bf16.mxu0 0
        %5568 = vmatpush1.bf16.msra.mxu0 %v5547
        %5569 = vmatprep.subr.bf16.mxu0 0
        %5570 = vmatpush1.bf16.msra.mxu0 %v5548
        %5571 = vmatprep.subr.bf16.mxu0 0
        %5572 = vmatpush1.bf16.msra.mxu0 %v5549
        %5573 = vmatprep.subr.bf16.mxu0 0
        %5574 = vmatpush1.bf16.msra.mxu0 %v5550
        %5575 = vmatprep.subr.bf16.mxu0 0
        %5576 = vmatpush1.bf16.msra.mxu0 0
        %5577 = vmatprep.subr.bf16.mxu0 0
        %5578 = vmatpush1.bf16.msra.mxu0 0
        %5579 = vmatprep.subr.bf16.mxu0 0
        %5580 = vmatpush1.bf16.msra.mxu0 0
        %5581 = vmatprep.subr.bf16.mxu0 0
        %5582 = vmatpush1.bf16.msra.mxu0 0
        %5583 = vmatprep.subr.bf16.mxu0 0
        %5584 = vmatpush1.bf16.msra.mxu0 0
        %5585 = vmatprep.subr.bf16.mxu0 0
        %5586 = vmatpush1.bf16.msra.mxu0 0
        %5587 = vmatprep.subr.bf16.mxu0 0
        %5588 = vmatpush1.bf16.msra.mxu0 0
        %5589 = vmatprep.subr.bf16.mxu0 0
        %5590 = vmatpush1.bf16.msra.mxu0 0
        %5591 = vmatprep.mubr.bf16.mxu0 0
        %5592 = vmatmul.mubr.bf16.gmra.mrb[0].mxu0 %v5508
        %v5593 = vpop.f32.mrb[0].mxu0
        %v5594 = vadd.f32 0.0, %v5593
        %v5595 = vpop.f32.mrb[0].mxu0
        %v5596 = vpop.f32.mrb[0].mxu0
        %v5597 = vadd.f32 0.0, %v5596
        %v5598 = vpop.f32.mrb[0].mxu0
        %5599 = vmatprep.mubr.bf16.mxu0 0
        %5600 = vmatmul.mubr.bf16.gmra.mrb[0].mxu0 %v5509
        %v5601 = vpop.f32.mrb[0].mxu0
        %v5602 = vadd.f32 0.0, %v5601
        %v5603 = vpop.f32.mrb[0].mxu0
        %v5604 = vpop.f32.mrb[0].mxu0
        %v5605 = vadd.f32 0.0, %v5604
        %v5606 = vpop.f32.mrb[0].mxu0
        %5607 = vmatprep.mubr.bf16.mxu0 0
        %5608 = vmatmul.mubr.bf16.gmra.mrb[0].mxu0 %v5510
        %v5609 = vpop.f32.mrb[0].mxu0
        %v5610 = vadd.f32 0.0, %v5609
        %v5611 = vpop.f32.mrb[0].mxu0
        %v5612 = vpop.f32.mrb[0].mxu0
        %v5613 = vpop.f32.mrb[0].mxu0
        %5614 = vdwg.mxu0
        %v5615 = vadd.f32 %v5464, %v5594
        %v5616 = vadd.f32 %v5467, %v5597
        %v5617 = vadd.f32 %v5472, %v5602
        %v5618 = vadd.f32 %v5475, %v5605
        %v5619 = vadd.f32 %v5480, %v5610
        %v5620 = vld [vmem:[#allocation7 + $0x7] sm:$0xff]
        %v5621 = vld [vmem:[#allocation7 + $0xf] sm:$0xff]
        %v5622 = vld [vmem:[#allocation7 + $0x17] sm:$0xff]
        %v5623 = vld [vmem:[#allocation7 + $0x1f] sm:$0xff]
        %v5624 = vld [vmem:[#allocation7 + $0x27] sm:$0xff]
        %v5625 = vld [vmem:[#allocation7 + $0x2f] sm:$0x3]
        %s5626 = scalar_lea.vmem [#allocation18], 192
        %v5627 = vld [vmem:[%s5626] sm:$0xf]
        %v5628 = vld [vmem:[%s5626 + $0x4] sm:$0xf]
        %v5629 = vld [vmem:[%s5626 + $0x8] sm:$0xf]
        %v5630 = vld [vmem:[%s5626 + $0xc] sm:$0xf]
        %v5631 = vld [vmem:[%s5626 + $0x10] sm:$0xf]
        %v5632 = vld [vmem:[%s5626 + $0x14] sm:$0xf]
        %v5633 = vld [vmem:[%s5626 + $0x18] sm:$0xf]
        %v5634 = vld [vmem:[%s5626 + $0x1c] sm:$0xf]
        %v5635 = vld [vmem:[%s5626 + $0x20] sm:$0xf]
        %v5636 = vld [vmem:[%s5626 + $0x24] sm:$0xf]
        %v5637 = vld [vmem:[%s5626 + $0x28] sm:$0xf]
        %v5638 = vld [vmem:[%s5626 + $0x2c] sm:$0xf]
        %v5639 = vld [vmem:[%s5626 + $0x30] sm:$0xf]
        %v5640 = vld [vmem:[%s5626 + $0x34] sm:$0xf]
        %v5641 = vld [vmem:[%s5626 + $0x38] sm:$0xf]
        %v5642 = vld [vmem:[%s5626 + $0x3c] sm:$0xf]
        %v5643 = vpack.c.bf16 %v5621, %v5620
        %v5644 = vpack.c.bf16 %v5623, %v5622
        %v5645 = vpack.c.bf16 %v5625, %v5624
        %v5662 = vunpack.c.l.b16 %v5627
        %v5663 = vunpack.c.l.b16 %v5628
        %v5664 = vunpack.c.l.b16 %v5629
        %v5665 = vunpack.c.l.b16 %v5630
        %v5666 = vunpack.c.l.b16 %v5631
        %v5667 = vunpack.c.l.b16 %v5632
        %v5668 = vunpack.c.l.b16 %v5633
        %v5669 = vunpack.c.l.b16 %v5634
        %v5670 = vunpack.c.l.b16 %v5635
        %v5671 = vunpack.c.l.b16 %v5636
        %v5672 = vunpack.c.l.b16 %v5637
        %v5673 = vunpack.c.l.b16 %v5638
        %v5674 = vunpack.c.l.b16 %v5639
        %v5675 = vunpack.c.l.b16 %v5640
        %v5676 = vunpack.c.l.b16 %v5641
        %v5677 = vunpack.c.l.b16 %v5642
        %v5678 = vpack.c.b16 %v5663, %v5662
        %v5679 = vpack.c.b16 %v5665, %v5664
        %v5680 = vpack.c.b16 %v5667, %v5666
        %v5681 = vpack.c.b16 %v5669, %v5668
        %v5682 = vpack.c.b16 %v5671, %v5670
        %v5683 = vpack.c.b16 %v5673, %v5672
        %v5684 = vpack.c.b16 %v5675, %v5674
        %v5685 = vpack.c.b16 %v5677, %v5676
        %5694 = vmatprep.subr.bf16.mxu0 0
        %5695 = vmatpush1.bf16.msra.mxu0 %v5678
        %5696 = vmatprep.subr.bf16.mxu0 0
        %5697 = vmatpush1.bf16.msra.mxu0 %v5679
        %5698 = vmatprep.subr.bf16.mxu0 0
        %5699 = vmatpush1.bf16.msra.mxu0 %v5680
        %5700 = vmatprep.subr.bf16.mxu0 0
        %5701 = vmatpush1.bf16.msra.mxu0 %v5681
        %5702 = vmatprep.subr.bf16.mxu0 0
        %5703 = vmatpush1.bf16.msra.mxu0 %v5682
        %5704 = vmatprep.subr.bf16.mxu0 0
        %5705 = vmatpush1.bf16.msra.mxu0 %v5683
        %5706 = vmatprep.subr.bf16.mxu0 0
        %5707 = vmatpush1.bf16.msra.mxu0 %v5684
        %5708 = vmatprep.subr.bf16.mxu0 0
        %5709 = vmatpush1.bf16.msra.mxu0 %v5685
        %5710 = vmatprep.subr.bf16.mxu0 0
        %5711 = vmatpush1.bf16.msra.mxu0 0
        %5712 = vmatprep.subr.bf16.mxu0 0
        %5713 = vmatpush1.bf16.msra.mxu0 0
        %5714 = vmatprep.subr.bf16.mxu0 0
        %5715 = vmatpush1.bf16.msra.mxu0 0
        %5716 = vmatprep.subr.bf16.mxu0 0
        %5717 = vmatpush1.bf16.msra.mxu0 0
        %5718 = vmatprep.subr.bf16.mxu0 0
        %5719 = vmatpush1.bf16.msra.mxu0 0
        %5720 = vmatprep.subr.bf16.mxu0 0
        %5721 = vmatpush1.bf16.msra.mxu0 0
        %5722 = vmatprep.subr.bf16.mxu0 0
        %5723 = vmatpush1.bf16.msra.mxu0 0
        %5724 = vmatprep.subr.bf16.mxu0 0
        %5725 = vmatpush1.bf16.msra.mxu0 0
        %5726 = vmatprep.mubr.bf16.mxu0 0
        %5727 = vmatmul.mubr.bf16.gmra.mrb[0].mxu0 %v5643
        %v5728 = vpop.f32.mrb[0].mxu0
        %v5729 = vadd.f32 0.0, %v5728
        %v5730 = vpop.f32.mrb[0].mxu0
        %v5731 = vpop.f32.mrb[0].mxu0
        %v5732 = vadd.f32 0.0, %v5731
        %v5733 = vpop.f32.mrb[0].mxu0
        %5734 = vmatprep.mubr.bf16.mxu0 0
        %5735 = vmatmul.mubr.bf16.gmra.mrb[0].mxu0 %v5644
        %v5736 = vpop.f32.mrb[0].mxu0
        %v5737 = vadd.f32 0.0, %v5736
        %v5738 = vpop.f32.mrb[0].mxu0
        %v5739 = vpop.f32.mrb[0].mxu0
        %v5740 = vadd.f32 0.0, %v5739
        %v5741 = vpop.f32.mrb[0].mxu0
        %5742 = vmatprep.mubr.bf16.mxu0 0
        %5743 = vmatmul.mubr.bf16.gmra.mrb[0].mxu0 %v5645
        %v5744 = vpop.f32.mrb[0].mxu0
        %v5745 = vadd.f32 0.0, %v5744
        %v5746 = vpop.f32.mrb[0].mxu0
        %v5747 = vpop.f32.mrb[0].mxu0
        %v5748 = vpop.f32.mrb[0].mxu0
        %5749 = vdwg.mxu0
        %v5750 = vadd.f32 %v5615, %v5729
        %v5751 = vadd.f32 %v5616, %v5732
        %v5752 = vadd.f32 %v5617, %v5737
        %v5753 = vadd.f32 %v5618, %v5740
        %v5754 = vadd.f32 %v5619, %v5745
        %v5755 = vld [vmem:[#allocation7 + $0x8] sm:$0xff]
        %v5756 = vld [vmem:[#allocation7 + $0x10] sm:$0xff]
        %v5757 = vld [vmem:[#allocation7 + $0x18] sm:$0xff]
        %v5758 = vld [vmem:[#allocation7 + $0x20] sm:$0xff]
        %v5759 = vld [vmem:[#allocation7 + $0x28] sm:$0xff]
        %v5760 = vld [vmem:[#allocation7 + $0x30] sm:$0x3]
        %s5761 = scalar_lea.vmem [#allocation18], 256
        %v5762 = vld [vmem:[%s5761] sm:$0xf]
        %v5763 = vld [vmem:[%s5761 + $0x4] sm:$0xf]
        %v5764 = vld [vmem:[%s5761 + $0x8] sm:$0xf]
        %v5765 = vld [vmem:[%s5761 + $0xc] sm:$0xf]
        %v5766 = vld [vmem:[%s5761 + $0x10] sm:$0xf]
        %v5767 = vld [vmem:[%s5761 + $0x14] sm:$0xf]
        %v5768 = vld [vmem:[%s5761 + $0x18] sm:$0xf]
        %v5769 = vld [vmem:[%s5761 + $0x1c] sm:$0xf]
        %v5770 = vld [vmem:[%s5761 + $0x20] sm:$0xf]
        %v5771 = vld [vmem:[%s5761 + $0x24] sm:$0xf]
        %v5772 = vld [vmem:[%s5761 + $0x28] sm:$0xf]
        %v5773 = vld [vmem:[%s5761 + $0x2c] sm:$0xf]
        %v5774 = vld [vmem:[%s5761 + $0x30] sm:$0xf]
        %v5775 = vld [vmem:[%s5761 + $0x34] sm:$0xf]
        %v5776 = vld [vmem:[%s5761 + $0x38] sm:$0xf]
        %v5777 = vld [vmem:[%s5761 + $0x3c] sm:$0xf]
        %v5778 = vpack.c.bf16 %v5756, %v5755
        %v5779 = vpack.c.bf16 %v5758, %v5757
        %v5780 = vpack.c.bf16 %v5760, %v5759
        %v5797 = vunpack.c.l.b16 %v5762
        %v5798 = vunpack.c.l.b16 %v5763
        %v5799 = vunpack.c.l.b16 %v5764
        %v5800 = vunpack.c.l.b16 %v5765
        %v5801 = vunpack.c.l.b16 %v5766
        %v5802 = vunpack.c.l.b16 %v5767
        %v5803 = vunpack.c.l.b16 %v5768
        %v5804 = vunpack.c.l.b16 %v5769
        %v5805 = vunpack.c.l.b16 %v5770
        %v5806 = vunpack.c.l.b16 %v5771
        %v5807 = vunpack.c.l.b16 %v5772
        %v5808 = vunpack.c.l.b16 %v5773
        %v5809 = vunpack.c.l.b16 %v5774
        %v5810 = vunpack.c.l.b16 %v5775
        %v5811 = vunpack.c.l.b16 %v5776
        %v5812 = vunpack.c.l.b16 %v5777
        %v5813 = vpack.c.b16 %v5798, %v5797
        %v5814 = vpack.c.b16 %v5800, %v5799
        %v5815 = vpack.c.b16 %v5802, %v5801
        %v5816 = vpack.c.b16 %v5804, %v5803
        %v5817 = vpack.c.b16 %v5806, %v5805
        %v5818 = vpack.c.b16 %v5808, %v5807
        %v5819 = vpack.c.b16 %v5810, %v5809
        %v5820 = vpack.c.b16 %v5812, %v5811
        %5829 = vmatprep.subr.bf16.mxu0 0
        %5830 = vmatpush1.bf16.msra.mxu0 %v5813
        %5831 = vmatprep.subr.bf16.mxu0 0
        %5832 = vmatpush1.bf16.msra.mxu0 %v5814
        %5833 = vmatprep.subr.bf16.mxu0 0
        %5834 = vmatpush1.bf16.msra.mxu0 %v5815
        %5835 = vmatprep.subr.bf16.mxu0 0
        %5836 = vmatpush1.bf16.msra.mxu0 %v5816
        %5837 = vmatprep.subr.bf16.mxu0 0
        %5838 = vmatpush1.bf16.msra.mxu0 %v5817
        %5839 = vmatprep.subr.bf16.mxu0 0
        %5840 = vmatpush1.bf16.msra.mxu0 %v5818
        %5841 = vmatprep.subr.bf16.mxu0 0
        %5842 = vmatpush1.bf16.msra.mxu0 %v5819
        %5843 = vmatprep.subr.bf16.mxu0 0
        %5844 = vmatpush1.bf16.msra.mxu0 %v5820
        %5845 = vmatprep.subr.bf16.mxu0 0
        %5846 = vmatpush1.bf16.msra.mxu0 0
        %5847 = vmatprep.subr.bf16.mxu0 0
        %5848 = vmatpush1.bf16.msra.mxu0 0
        %5849 = vmatprep.subr.bf16.mxu0 0
        %5850 = vmatpush1.bf16.msra.mxu0 0
        %5851 = vmatprep.subr.bf16.mxu0 0
        %5852 = vmatpush1.bf16.msra.mxu0 0
        %5853 = vmatprep.subr.bf16.mxu0 0
        %5854 = vmatpush1.bf16.msra.mxu0 0
        %5855 = vmatprep.subr.bf16.mxu0 0
        %5856 = vmatpush1.bf16.msra.mxu0 0
        %5857 = vmatprep.subr.bf16.mxu0 0
        %5858 = vmatpush1.bf16.msra.mxu0 0
        %5859 = vmatprep.subr.bf16.mxu0 0
        %5860 = vmatpush1.bf16.msra.mxu0 0
        %5861 = vmatprep.mubr.bf16.mxu0 0
        %5862 = vmatmul.mubr.bf16.gmra.mrb[0].mxu0 %v5778
        %v5863 = vpop.f32.mrb[0].mxu0
        %v5864 = vadd.f32 0.0, %v5863
        %v5865 = vpop.f32.mrb[0].mxu0
        %v5866 = vpop.f32.mrb[0].mxu0
        %v5867 = vadd.f32 0.0, %v5866
        %v5868 = vpop.f32.mrb[0].mxu0
        %5869 = vmatprep.mubr.bf16.mxu0 0
        %5870 = vmatmul.mubr.bf16.gmra.mrb[0].mxu0 %v5779
        %v5871 = vpop.f32.mrb[0].mxu0
        %v5872 = vadd.f32 0.0, %v5871
        %v5873 = vpop.f32.mrb[0].mxu0
        %v5874 = vpop.f32.mrb[0].mxu0
        %v5875 = vadd.f32 0.0, %v5874
        %v5876 = vpop.f32.mrb[0].mxu0
        %5877 = vmatprep.mubr.bf16.mxu0 0
        %5878 = vmatmul.mubr.bf16.gmra.mrb[0].mxu0 %v5780
        %v5879 = vpop.f32.mrb[0].mxu0
        %v5880 = vadd.f32 0.0, %v5879
        %v5881 = vpop.f32.mrb[0].mxu0
        %v5882 = vpop.f32.mrb[0].mxu0
        %v5883 = vpop.f32.mrb[0].mxu0
        %5884 = vdwg.mxu0
        %v5885 = vadd.f32 %v5750, %v5864
        %v5886 = vadd.f32 %v5751, %v5867
        %v5887 = vadd.f32 %v5752, %v5872
        %v5888 = vadd.f32 %v5753, %v5875
        %v5889 = vadd.f32 %v5754, %v5880
        %v5890 = vld [vmem:[#allocation7 + $0x9] sm:$0xff]
        %v5891 = vld [vmem:[#allocation7 + $0x11] sm:$0xff]
        %v5892 = vld [vmem:[#allocation7 + $0x19] sm:$0xff]
        %v5893 = vld [vmem:[#allocation7 + $0x21] sm:$0xff]
        %v5894 = vld [vmem:[#allocation7 + $0x29] sm:$0xff]
        %v5895 = vld [vmem:[#allocation7 + $0x31] sm:$0x3]
        %s5896 = scalar_lea.vmem [#allocation18], 320
        %v5897 = vld [vmem:[%s5896] sm:$0xf]
        %v5898 = vld [vmem:[%s5896 + $0x4] sm:$0xf]
        %v5899 = vld [vmem:[%s5896 + $0x8] sm:$0xf]
        %v5900 = vld [vmem:[%s5896 + $0xc] sm:$0xf]
        %v5901 = vld [vmem:[%s5896 + $0x10] sm:$0xf]
        %v5902 = vld [vmem:[%s5896 + $0x14] sm:$0xf]
        %v5903 = vld [vmem:[%s5896 + $0x18] sm:$0xf]
        %v5904 = vld [vmem:[%s5896 + $0x1c] sm:$0xf]
        %v5905 = vld [vmem:[%s5896 + $0x20] sm:$0xf]
        %v5906 = vld [vmem:[%s5896 + $0x24] sm:$0xf]
        %v5907 = vld [vmem:[%s5896 + $0x28] sm:$0xf]
        %v5908 = vld [vmem:[%s5896 + $0x2c] sm:$0xf]
        %v5909 = vld [vmem:[%s5896 + $0x30] sm:$0xf]
        %v5910 = vld [vmem:[%s5896 + $0x34] sm:$0xf]
        %v5911 = vld [vmem:[%s5896 + $0x38] sm:$0xf]
        %v5912 = vld [vmem:[%s5896 + $0x3c] sm:$0xf]
        %v5913 = vpack.c.bf16 %v5891, %v5890
        %v5914 = vpack.c.bf16 %v5893, %v5892
        %v5915 = vpack.c.bf16 %v5895, %v5894
        %v5932 = vunpack.c.l.b16 %v5897
        %v5933 = vunpack.c.l.b16 %v5898
        %v5934 = vunpack.c.l.b16 %v5899
        %v5935 = vunpack.c.l.b16 %v5900
        %v5936 = vunpack.c.l.b16 %v5901
        %v5937 = vunpack.c.l.b16 %v5902
        %v5938 = vunpack.c.l.b16 %v5903
        %v5939 = vunpack.c.l.b16 %v5904
        %v5940 = vunpack.c.l.b16 %v5905
        %v5941 = vunpack.c.l.b16 %v5906
        %v5942 = vunpack.c.l.b16 %v5907
        %v5943 = vunpack.c.l.b16 %v5908
        %v5944 = vunpack.c.l.b16 %v5909
        %v5945 = vunpack.c.l.b16 %v5910
        %v5946 = vunpack.c.l.b16 %v5911
        %v5947 = vunpack.c.l.b16 %v5912
        %v5948 = vpack.c.b16 %v5933, %v5932
        %v5949 = vpack.c.b16 %v5935, %v5934
        %v5950 = vpack.c.b16 %v5937, %v5936
        %v5951 = vpack.c.b16 %v5939, %v5938
        %v5952 = vpack.c.b16 %v5941, %v5940
        %v5953 = vpack.c.b16 %v5943, %v5942
        %v5954 = vpack.c.b16 %v5945, %v5944
        %v5955 = vpack.c.b16 %v5947, %v5946
        %5964 = vmatprep.subr.bf16.mxu0 0
        %5965 = vmatpush1.bf16.msra.mxu0 %v5948
        %5966 = vmatprep.subr.bf16.mxu0 0
        %5967 = vmatpush1.bf16.msra.mxu0 %v5949
        %5968 = vmatprep.subr.bf16.mxu0 0
        %5969 = vmatpush1.bf16.msra.mxu0 %v5950
        %5970 = vmatprep.subr.bf16.mxu0 0
        %5971 = vmatpush1.bf16.msra.mxu0 %v5951
        %5972 = vmatprep.subr.bf16.mxu0 0
        %5973 = vmatpush1.bf16.msra.mxu0 %v5952
        %5974 = vmatprep.subr.bf16.mxu0 0
        %5975 = vmatpush1.bf16.msra.mxu0 %v5953
        %5976 = vmatprep.subr.bf16.mxu0 0
        %5977 = vmatpush1.bf16.msra.mxu0 %v5954
        %5978 = vmatprep.subr.bf16.mxu0 0
        %5979 = vmatpush1.bf16.msra.mxu0 %v5955
        %5980 = vmatprep.subr.bf16.mxu0 0
        %5981 = vmatpush1.bf16.msra.mxu0 0
        %5982 = vmatprep.subr.bf16.mxu0 0
        %5983 = vmatpush1.bf16.msra.mxu0 0
        %5984 = vmatprep.subr.bf16.mxu0 0
        %5985 = vmatpush1.bf16.msra.mxu0 0
        %5986 = vmatprep.subr.bf16.mxu0 0
        %5987 = vmatpush1.bf16.msra.mxu0 0
        %5988 = vmatprep.subr.bf16.mxu0 0
        %5989 = vmatpush1.bf16.msra.mxu0 0
        %5990 = vmatprep.subr.bf16.mxu0 0
        %5991 = vmatpush1.bf16.msra.mxu0 0
        %5992 = vmatprep.subr.bf16.mxu0 0
        %5993 = vmatpush1.bf16.msra.mxu0 0
        %5994 = vmatprep.subr.bf16.mxu0 0
        %5995 = vmatpush1.bf16.msra.mxu0 0
        %5996 = vmatprep.mubr.bf16.mxu0 0
        %5997 = vmatmul.mubr.bf16.gmra.mrb[0].mxu0 %v5913
        %v5998 = vpop.f32.mrb[0].mxu0
        %v5999 = vadd.f32 0.0, %v5998
        %v6000 = vpop.f32.mrb[0].mxu0
        %v6001 = vpop.f32.mrb[0].mxu0
        %v6002 = vadd.f32 0.0, %v6001
        %v6003 = vpop.f32.mrb[0].mxu0
        %6004 = vmatprep.mubr.bf16.mxu0 0
        %6005 = vmatmul.mubr.bf16.gmra.mrb[0].mxu0 %v5914
        %v6006 = vpop.f32.mrb[0].mxu0
        %v6007 = vadd.f32 0.0, %v6006
        %v6008 = vpop.f32.mrb[0].mxu0
        %v6009 = vpop.f32.mrb[0].mxu0
        %v6010 = vadd.f32 0.0, %v6009
        %v6011 = vpop.f32.mrb[0].mxu0
        %6012 = vmatprep.mubr.bf16.mxu0 0
        %6013 = vmatmul.mubr.bf16.gmra.mrb[0].mxu0 %v5915
        %v6014 = vpop.f32.mrb[0].mxu0
        %v6015 = vadd.f32 0.0, %v6014
        %v6016 = vpop.f32.mrb[0].mxu0
        %v6017 = vpop.f32.mrb[0].mxu0
        %v6018 = vpop.f32.mrb[0].mxu0
        %6019 = vdwg.mxu0
        %v6020 = vadd.f32 %v5885, %v5999
        %v6021 = vadd.f32 %v5886, %v6002
        %v6022 = vadd.f32 %v5887, %v6007
        %v6023 = vadd.f32 %v5888, %v6010
        %v6024 = vadd.f32 %v5889, %v6015
        %v6025 = vld [vmem:[#allocation7 + $0xe] sm:$0xff]
        %v6026 = vld [vmem:[#allocation7 + $0x16] sm:$0xff]
        %v6027 = vld [vmem:[#allocation7 + $0x1e] sm:$0xff]
        %v6028 = vld [vmem:[#allocation7 + $0x26] sm:$0xff]
        %v6029 = vld [vmem:[#allocation7 + $0x2e] sm:$0xff]
        %v6030 = vld [vmem:[#allocation7 + $0x36] sm:$0x3]
        %s6031 = scalar_lea.vmem [#allocation18], 384
        %v6032 = vld [vmem:[%s6031] sm:$0xf]
        %v6033 = vld [vmem:[%s6031 + $0x4] sm:$0xf]
        %v6034 = vld [vmem:[%s6031 + $0x8] sm:$0xf]
        %v6035 = vld [vmem:[%s6031 + $0xc] sm:$0xf]
        %v6036 = vld [vmem:[%s6031 + $0x10] sm:$0xf]
        %v6037 = vld [vmem:[%s6031 + $0x14] sm:$0xf]
        %v6038 = vld [vmem:[%s6031 + $0x18] sm:$0xf]
        %v6039 = vld [vmem:[%s6031 + $0x1c] sm:$0xf]
        %v6040 = vld [vmem:[%s6031 + $0x20] sm:$0xf]
        %v6041 = vld [vmem:[%s6031 + $0x24] sm:$0xf]
        %v6042 = vld [vmem:[%s6031 + $0x28] sm:$0xf]
        %v6043 = vld [vmem:[%s6031 + $0x2c] sm:$0xf]
        %v6044 = vld [vmem:[%s6031 + $0x30] sm:$0xf]
        %v6045 = vld [vmem:[%s6031 + $0x34] sm:$0xf]
        %v6046 = vld [vmem:[%s6031 + $0x38] sm:$0xf]
        %v6047 = vld [vmem:[%s6031 + $0x3c] sm:$0xf]
        %v6048 = vpack.c.bf16 %v6026, %v6025
        %v6049 = vpack.c.bf16 %v6028, %v6027
        %v6050 = vpack.c.bf16 %v6030, %v6029
        %v6067 = vunpack.c.l.b16 %v6032
        %v6068 = vunpack.c.l.b16 %v6033
        %v6069 = vunpack.c.l.b16 %v6034
        %v6070 = vunpack.c.l.b16 %v6035
        %v6071 = vunpack.c.l.b16 %v6036
        %v6072 = vunpack.c.l.b16 %v6037
        %v6073 = vunpack.c.l.b16 %v6038
        %v6074 = vunpack.c.l.b16 %v6039
        %v6075 = vunpack.c.l.b16 %v6040
        %v6076 = vunpack.c.l.b16 %v6041
        %v6077 = vunpack.c.l.b16 %v6042
        %v6078 = vunpack.c.l.b16 %v6043
        %v6079 = vunpack.c.l.b16 %v6044
        %v6080 = vunpack.c.l.b16 %v6045
        %v6081 = vunpack.c.l.b16 %v6046
        %v6082 = vunpack.c.l.b16 %v6047
        %v6083 = vpack.c.b16 %v6068, %v6067
        %v6084 = vpack.c.b16 %v6070, %v6069
        %v6085 = vpack.c.b16 %v6072, %v6071
        %v6086 = vpack.c.b16 %v6074, %v6073
        %v6087 = vpack.c.b16 %v6076, %v6075
        %v6088 = vpack.c.b16 %v6078, %v6077
        %v6089 = vpack.c.b16 %v6080, %v6079
        %v6090 = vpack.c.b16 %v6082, %v6081
        %6099 = vmatprep.subr.bf16.mxu0 0
        %6100 = vmatpush1.bf16.msra.mxu0 %v6083
        %6101 = vmatprep.subr.bf16.mxu0 0
        %6102 = vmatpush1.bf16.msra.mxu0 %v6084
        %6103 = vmatprep.subr.bf16.mxu0 0
        %6104 = vmatpush1.bf16.msra.mxu0 %v6085
        %6105 = vmatprep.subr.bf16.mxu0 0
        %6106 = vmatpush1.bf16.msra.mxu0 %v6086
        %6107 = vmatprep.subr.bf16.mxu0 0
        %6108 = vmatpush1.bf16.msra.mxu0 %v6087
        %6109 = vmatprep.subr.bf16.mxu0 0
        %6110 = vmatpush1.bf16.msra.mxu0 %v6088
        %6111 = vmatprep.subr.bf16.mxu0 0
        %6112 = vmatpush1.bf16.msra.mxu0 %v6089
        %6113 = vmatprep.subr.bf16.mxu0 0
        %6114 = vmatpush1.bf16.msra.mxu0 %v6090
        %6115 = vmatprep.subr.bf16.mxu0 0
        %6116 = vmatpush1.bf16.msra.mxu0 0
        %6117 = vmatprep.subr.bf16.mxu0 0
        %6118 = vmatpush1.bf16.msra.mxu0 0
        %6119 = vmatprep.subr.bf16.mxu0 0
        %6120 = vmatpush1.bf16.msra.mxu0 0
        %6121 = vmatprep.subr.bf16.mxu0 0
        %6122 = vmatpush1.bf16.msra.mxu0 0
        %6123 = vmatprep.subr.bf16.mxu0 0
        %6124 = vmatpush1.bf16.msra.mxu0 0
        %6125 = vmatprep.subr.bf16.mxu0 0
        %6126 = vmatpush1.bf16.msra.mxu0 0
        %6127 = vmatprep.subr.bf16.mxu0 0
        %6128 = vmatpush1.bf16.msra.mxu0 0
        %6129 = vmatprep.subr.bf16.mxu0 0
        %6130 = vmatpush1.bf16.msra.mxu0 0
        %6131 = vmatprep.mubr.bf16.mxu0 0
        %6132 = vmatmul.mubr.bf16.gmra.mrb[0].mxu0 %v6048
        %v6133 = vpop.f32.mrb[0].mxu0
        %v6134 = vadd.f32 0.0, %v6133
        %v6135 = vpop.f32.mrb[0].mxu0
        %v6136 = vpop.f32.mrb[0].mxu0
        %v6137 = vadd.f32 0.0, %v6136
        %v6138 = vpop.f32.mrb[0].mxu0
        %6139 = vmatprep.mubr.bf16.mxu0 0
        %6140 = vmatmul.mubr.bf16.gmra.mrb[0].mxu0 %v6049
        %v6141 = vpop.f32.mrb[0].mxu0
        %v6142 = vadd.f32 0.0, %v6141
        %v6143 = vpop.f32.mrb[0].mxu0
        %v6144 = vpop.f32.mrb[0].mxu0
        %v6145 = vadd.f32 0.0, %v6144
        %v6146 = vpop.f32.mrb[0].mxu0
        %6147 = vmatprep.mubr.bf16.mxu0 0
        %6148 = vmatmul.mubr.bf16.gmra.mrb[0].mxu0 %v6050
        %v6149 = vpop.f32.mrb[0].mxu0
        %v6150 = vadd.f32 0.0, %v6149
        %v6151 = vpop.f32.mrb[0].mxu0
        %v6152 = vpop.f32.mrb[0].mxu0
        %v6153 = vpop.f32.mrb[0].mxu0
        %6154 = vdwg.mxu0
        %v6155 = vadd.f32 %v6020, %v6134
        %v6156 = vadd.f32 %v6021, %v6137
        %v6157 = vadd.f32 %v6022, %v6142
        %v6158 = vadd.f32 %v6023, %v6145
        %v6159 = vadd.f32 %v6024, %v6150
        %v6160 = vld [vmem:[#allocation7 + $0xf] sm:$0xff]
        %v6161 = vld [vmem:[#allocation7 + $0x17] sm:$0xff]
        %v6162 = vld [vmem:[#allocation7 + $0x1f] sm:$0xff]
        %v6163 = vld [vmem:[#allocation7 + $0x27] sm:$0xff]
        %v6164 = vld [vmem:[#allocation7 + $0x2f] sm:$0xff]
        %v6165 = vld [vmem:[#allocation7 + $0x37] sm:$0x3]
        %s6166 = scalar_lea.vmem [#allocation18], 448
        %v6167 = vld [vmem:[%s6166] sm:$0xf]
        %v6168 = vld [vmem:[%s6166 + $0x4] sm:$0xf]
        %v6169 = vld [vmem:[%s6166 + $0x8] sm:$0xf]
        %v6170 = vld [vmem:[%s6166 + $0xc] sm:$0xf]
        %v6171 = vld [vmem:[%s6166 + $0x10] sm:$0xf]
        %v6172 = vld [vmem:[%s6166 + $0x14] sm:$0xf]
        %v6173 = vld [vmem:[%s6166 + $0x18] sm:$0xf]
        %v6174 = vld [vmem:[%s6166 + $0x1c] sm:$0xf]
        %v6175 = vld [vmem:[%s6166 + $0x20] sm:$0xf]
        %v6176 = vld [vmem:[%s6166 + $0x24] sm:$0xf]
        %v6177 = vld [vmem:[%s6166 + $0x28] sm:$0xf]
        %v6178 = vld [vmem:[%s6166 + $0x2c] sm:$0xf]
        %v6179 = vld [vmem:[%s6166 + $0x30] sm:$0xf]
        %v6180 = vld [vmem:[%s6166 + $0x34] sm:$0xf]
        %v6181 = vld [vmem:[%s6166 + $0x38] sm:$0xf]
        %v6182 = vld [vmem:[%s6166 + $0x3c] sm:$0xf]
        %v6183 = vpack.c.bf16 %v6161, %v6160
        %v6184 = vpack.c.bf16 %v6163, %v6162
        %v6185 = vpack.c.bf16 %v6165, %v6164
        %v6202 = vunpack.c.l.b16 %v6167
        %v6203 = vunpack.c.l.b16 %v6168
        %v6204 = vunpack.c.l.b16 %v6169
        %v6205 = vunpack.c.l.b16 %v6170
        %v6206 = vunpack.c.l.b16 %v6171
        %v6207 = vunpack.c.l.b16 %v6172
        %v6208 = vunpack.c.l.b16 %v6173
        %v6209 = vunpack.c.l.b16 %v6174
        %v6210 = vunpack.c.l.b16 %v6175
        %v6211 = vunpack.c.l.b16 %v6176
        %v6212 = vunpack.c.l.b16 %v6177
        %v6213 = vunpack.c.l.b16 %v6178
        %v6214 = vunpack.c.l.b16 %v6179
        %v6215 = vunpack.c.l.b16 %v6180
        %v6216 = vunpack.c.l.b16 %v6181
        %v6217 = vunpack.c.l.b16 %v6182
        %v6218 = vpack.c.b16 %v6203, %v6202
        %v6219 = vpack.c.b16 %v6205, %v6204
        %v6220 = vpack.c.b16 %v6207, %v6206
        %v6221 = vpack.c.b16 %v6209, %v6208
        %v6222 = vpack.c.b16 %v6211, %v6210
        %v6223 = vpack.c.b16 %v6213, %v6212
        %v6224 = vpack.c.b16 %v6215, %v6214
        %v6225 = vpack.c.b16 %v6217, %v6216
        %6234 = vmatprep.subr.bf16.mxu0 0
        %6235 = vmatpush1.bf16.msra.mxu0 %v6218
        %6236 = vmatprep.subr.bf16.mxu0 0
        %6237 = vmatpush1.bf16.msra.mxu0 %v6219
        %6238 = vmatprep.subr.bf16.mxu0 0
        %6239 = vmatpush1.bf16.msra.mxu0 %v6220
        %6240 = vmatprep.subr.bf16.mxu0 0
        %6241 = vmatpush1.bf16.msra.mxu0 %v6221
        %6242 = vmatprep.subr.bf16.mxu0 0
        %6243 = vmatpush1.bf16.msra.mxu0 %v6222
        %6244 = vmatprep.subr.bf16.mxu0 0
        %6245 = vmatpush1.bf16.msra.mxu0 %v6223
        %6246 = vmatprep.subr.bf16.mxu0 0
        %6247 = vmatpush1.bf16.msra.mxu0 %v6224
        %6248 = vmatprep.subr.bf16.mxu0 0
        %6249 = vmatpush1.bf16.msra.mxu0 %v6225
        %6250 = vmatprep.subr.bf16.mxu0 0
        %6251 = vmatpush1.bf16.msra.mxu0 0
        %6252 = vmatprep.subr.bf16.mxu0 0
        %6253 = vmatpush1.bf16.msra.mxu0 0
        %6254 = vmatprep.subr.bf16.mxu0 0
        %6255 = vmatpush1.bf16.msra.mxu0 0
        %6256 = vmatprep.subr.bf16.mxu0 0
        %6257 = vmatpush1.bf16.msra.mxu0 0
        %6258 = vmatprep.subr.bf16.mxu0 0
        %6259 = vmatpush1.bf16.msra.mxu0 0
        %6260 = vmatprep.subr.bf16.mxu0 0
        %6261 = vmatpush1.bf16.msra.mxu0 0
        %6262 = vmatprep.subr.bf16.mxu0 0
        %6263 = vmatpush1.bf16.msra.mxu0 0
        %6264 = vmatprep.subr.bf16.mxu0 0
        %6265 = vmatpush1.bf16.msra.mxu0 0
        %6266 = vmatprep.mubr.bf16.mxu0 0
        %6267 = vmatmul.mubr.bf16.gmra.mrb[0].mxu0 %v6183
        %v6268 = vpop.f32.mrb[0].mxu0
        %v6269 = vadd.f32 0.0, %v6268
        %v6270 = vpop.f32.mrb[0].mxu0
        %v6271 = vpop.f32.mrb[0].mxu0
        %v6272 = vadd.f32 0.0, %v6271
        %v6273 = vpop.f32.mrb[0].mxu0
        %6274 = vmatprep.mubr.bf16.mxu0 0
        %6275 = vmatmul.mubr.bf16.gmra.mrb[0].mxu0 %v6184
        %v6276 = vpop.f32.mrb[0].mxu0
        %v6277 = vadd.f32 0.0, %v6276
        %v6278 = vpop.f32.mrb[0].mxu0
        %v6279 = vpop.f32.mrb[0].mxu0
        %v6280 = vadd.f32 0.0, %v6279
        %v6281 = vpop.f32.mrb[0].mxu0
        %6282 = vmatprep.mubr.bf16.mxu0 0
        %6283 = vmatmul.mubr.bf16.gmra.mrb[0].mxu0 %v6185
        %v6284 = vpop.f32.mrb[0].mxu0
        %v6285 = vadd.f32 0.0, %v6284
        %v6286 = vpop.f32.mrb[0].mxu0
        %v6287 = vpop.f32.mrb[0].mxu0
        %v6288 = vpop.f32.mrb[0].mxu0
        %6289 = vdwg.mxu0
        %v6290 = vadd.f32 %v6155, %v6269
        %v6291 = vadd.f32 %v6156, %v6272
        %v6292 = vadd.f32 %v6157, %v6277
        %v6293 = vadd.f32 %v6158, %v6280
        %v6294 = vadd.f32 %v6159, %v6285
        %v6295 = vld [vmem:[#allocation7 + $0x10] sm:$0xff]
        %v6296 = vld [vmem:[#allocation7 + $0x18] sm:$0xff]
        %v6297 = vld [vmem:[#allocation7 + $0x20] sm:$0xff]
        %v6298 = vld [vmem:[#allocation7 + $0x28] sm:$0xff]
        %v6299 = vld [vmem:[#allocation7 + $0x30] sm:$0xff]
        %v6300 = vld [vmem:[#allocation7 + $0x38] sm:$0x3]
        %s6301 = scalar_lea.vmem [#allocation18], 512
        %v6302 = vld [vmem:[%s6301] sm:$0xf]
        %v6303 = vld [vmem:[%s6301 + $0x4] sm:$0xf]
        %v6304 = vld [vmem:[%s6301 + $0x8] sm:$0xf]
        %v6305 = vld [vmem:[%s6301 + $0xc] sm:$0xf]
        %v6306 = vld [vmem:[%s6301 + $0x10] sm:$0xf]
        %v6307 = vld [vmem:[%s6301 + $0x14] sm:$0xf]
        %v6308 = vld [vmem:[%s6301 + $0x18] sm:$0xf]
        %v6309 = vld [vmem:[%s6301 + $0x1c] sm:$0xf]
        %v6310 = vld [vmem:[%s6301 + $0x20] sm:$0xf]
        %v6311 = vld [vmem:[%s6301 + $0x24] sm:$0xf]
        %v6312 = vld [vmem:[%s6301 + $0x28] sm:$0xf]
        %v6313 = vld [vmem:[%s6301 + $0x2c] sm:$0xf]
        %v6314 = vld [vmem:[%s6301 + $0x30] sm:$0xf]
        %v6315 = vld [vmem:[%s6301 + $0x34] sm:$0xf]
        %v6316 = vld [vmem:[%s6301 + $0x38] sm:$0xf]
        %v6317 = vld [vmem:[%s6301 + $0x3c] sm:$0xf]
        %v6318 = vpack.c.bf16 %v6296, %v6295
        %v6319 = vpack.c.bf16 %v6298, %v6297
        %v6320 = vpack.c.bf16 %v6300, %v6299
        %v6337 = vunpack.c.l.b16 %v6302
        %v6338 = vunpack.c.l.b16 %v6303
        %v6339 = vunpack.c.l.b16 %v6304
        %v6340 = vunpack.c.l.b16 %v6305
        %v6341 = vunpack.c.l.b16 %v6306
        %v6342 = vunpack.c.l.b16 %v6307
        %v6343 = vunpack.c.l.b16 %v6308
        %v6344 = vunpack.c.l.b16 %v6309
        %v6345 = vunpack.c.l.b16 %v6310
        %v6346 = vunpack.c.l.b16 %v6311
        %v6347 = vunpack.c.l.b16 %v6312
        %v6348 = vunpack.c.l.b16 %v6313
        %v6349 = vunpack.c.l.b16 %v6314
        %v6350 = vunpack.c.l.b16 %v6315
        %v6351 = vunpack.c.l.b16 %v6316
        %v6352 = vunpack.c.l.b16 %v6317
        %v6353 = vpack.c.b16 %v6338, %v6337
        %v6354 = vpack.c.b16 %v6340, %v6339
        %v6355 = vpack.c.b16 %v6342, %v6341
        %v6356 = vpack.c.b16 %v6344, %v6343
        %v6357 = vpack.c.b16 %v6346, %v6345
        %v6358 = vpack.c.b16 %v6348, %v6347
        %v6359 = vpack.c.b16 %v6350, %v6349
        %v6360 = vpack.c.b16 %v6352, %v6351
        %6369 = vmatprep.subr.bf16.mxu0 0
        %6370 = vmatpush1.bf16.msra.mxu0 %v6353
        %6371 = vmatprep.subr.bf16.mxu0 0
        %6372 = vmatpush1.bf16.msra.mxu0 %v6354
        %6373 = vmatprep.subr.bf16.mxu0 0
        %6374 = vmatpush1.bf16.msra.mxu0 %v6355
        %6375 = vmatprep.subr.bf16.mxu0 0
        %6376 = vmatpush1.bf16.msra.mxu0 %v6356
        %6377 = vmatprep.subr.bf16.mxu0 0
        %6378 = vmatpush1.bf16.msra.mxu0 %v6357
        %6379 = vmatprep.subr.bf16.mxu0 0
        %6380 = vmatpush1.bf16.msra.mxu0 %v6358
        %6381 = vmatprep.subr.bf16.mxu0 0
        %6382 = vmatpush1.bf16.msra.mxu0 %v6359
        %6383 = vmatprep.subr.bf16.mxu0 0
        %6384 = vmatpush1.bf16.msra.mxu0 %v6360
        %6385 = vmatprep.subr.bf16.mxu0 0
        %6386 = vmatpush1.bf16.msra.mxu0 0
        %6387 = vmatprep.subr.bf16.mxu0 0
        %6388 = vmatpush1.bf16.msra.mxu0 0
        %6389 = vmatprep.subr.bf16.mxu0 0
        %6390 = vmatpush1.bf16.msra.mxu0 0
        %6391 = vmatprep.subr.bf16.mxu0 0
        %6392 = vmatpush1.bf16.msra.mxu0 0
        %6393 = vmatprep.subr.bf16.mxu0 0
        %6394 = vmatpush1.bf16.msra.mxu0 0
        %6395 = vmatprep.subr.bf16.mxu0 0
        %6396 = vmatpush1.bf16.msra.mxu0 0
        %6397 = vmatprep.subr.bf16.mxu0 0
        %6398 = vmatpush1.bf16.msra.mxu0 0
        %6399 = vmatprep.subr.bf16.mxu0 0
        %6400 = vmatpush1.bf16.msra.mxu0 0
        %6401 = vmatprep.mubr.bf16.mxu0 0
        %6402 = vmatmul.mubr.bf16.gmra.mrb[0].mxu0 %v6318
        %v6403 = vpop.f32.mrb[0].mxu0
        %v6404 = vadd.f32 0.0, %v6403
        %v6405 = vpop.f32.mrb[0].mxu0
        %v6406 = vpop.f32.mrb[0].mxu0
        %v6407 = vadd.f32 0.0, %v6406
        %v6408 = vpop.f32.mrb[0].mxu0
        %6409 = vmatprep.mubr.bf16.mxu0 0
        %6410 = vmatmul.mubr.bf16.gmra.mrb[0].mxu0 %v6319
        %v6411 = vpop.f32.mrb[0].mxu0
        %v6412 = vadd.f32 0.0, %v6411
        %v6413 = vpop.f32.mrb[0].mxu0
        %v6414 = vpop.f32.mrb[0].mxu0
        %v6415 = vadd.f32 0.0, %v6414
        %v6416 = vpop.f32.mrb[0].mxu0
        %6417 = vmatprep.mubr.bf16.mxu0 0
        %6418 = vmatmul.mubr.bf16.gmra.mrb[0].mxu0 %v6320
        %v6419 = vpop.f32.mrb[0].mxu0
        %v6420 = vadd.f32 0.0, %v6419
        %v6421 = vpop.f32.mrb[0].mxu0
        %v6422 = vpop.f32.mrb[0].mxu0
        %v6423 = vpop.f32.mrb[0].mxu0
        %6424 = vdwg.mxu0
        %v6425 = vadd.f32 %v6290, %v6404
        %v6426 = vadd.f32 %v6291, %v6407
        %v6427 = vadd.f32 %v6292, %v6412
        %v6428 = vadd.f32 %v6293, %v6415
        %v6429 = vadd.f32 %v6294, %v6420
        %vm6430 = vcmp.ge.f32.partialorder %v6425, 0.0
        %v6431 = vmul.f32 %v6425, 0.2
        %v6432 = vsel %vm6430, %v6425, %v6431
        %6433 = vst [vmem:[#allocation8] sm:$0x1] %v6432
        %6434 = vst [vmem:[#allocation8 - $0x1] sm:$0x4] %v6432
        %6435 = vst [vmem:[#allocation8 - $0x2] sm:$0x10] %v6432
        %vm6436 = vcmp.ge.f32.partialorder %v6426, 0.0
        %vm6437 = vcmp.ge.f32.partialorder %v6427, 0.0
        %v6438 = vmul.f32 %v6426, 0.2
        %v6439 = vmul.f32 %v6427, 0.2
        %v6440 = vsel %vm6436, %v6426, %v6438
        %v6441 = vsel %vm6437, %v6427, %v6439
        %6442 = vst [vmem:[#allocation8 - $0x3] sm:$0x40] %v6440
        %6443 = vst [vmem:[#allocation8 + $0x4] sm:$0x1] %v6441
        %6444 = vst [vmem:[#allocation8 + $0x3] sm:$0x4] %v6441
        %vm6445 = vcmp.ge.f32.partialorder %v6428, 0.0
        %vm6446 = vcmp.ge.f32.partialorder %v6429, 0.0
        %v6447 = vmul.f32 %v6428, 0.2
        %v6448 = vmul.f32 %v6429, 0.2
        %v6449 = vsel %vm6445, %v6428, %v6447
        %v6450 = vsel %vm6446, %v6429, %v6448
        %6451 = vst [vmem:[#allocation8 + $0x2] sm:$0x10] %v6449
        %6452 = vst [vmem:[#allocation8 + $0x1] sm:$0x40] %v6449
        %6453 = vst [vmem:[#allocation8 + $0x8] sm:$0x1] %v6450
        %v6454 = vld [vmem:[#allocation8] sm:$0xff]
        %v6455 = vld [vmem:[#allocation8 + $0x8] sm:$0x1]
        %v6456 = vld [vmem:[#allocation20] sm:$0xff]
        %v6457 = vld [vmem:[#allocation20 + $0x8] sm:$0xff]
        %v6458 = vld [vmem:[#allocation20 + $0x10] sm:$0xff]
        %v6459 = vld [vmem:[#allocation20 + $0x18] sm:$0xff]
        %v6460 = vld [vmem:[#allocation20 + $0x20] sm:$0xff]
        %v6461 = vld [vmem:[#allocation20 + $0x28] sm:$0xff]
        %v6462 = vld [vmem:[#allocation20 + $0x30] sm:$0xff]
        %v6463 = vld [vmem:[#allocation20 + $0x38] sm:$0xff]
        %v6464 = vld [vmem:[#allocation20 + $0x40] sm:$0xff]
        %v6465 = vld [vmem:[#allocation20 + $0x48] sm:$0xff]
        %v6466 = vld [vmem:[#allocation20 + $0x50] sm:$0xff]
        %v6467 = vld [vmem:[#allocation20 + $0x58] sm:$0xff]
        %v6468 = vld [vmem:[#allocation20 + $0x60] sm:$0xff]
        %v6469 = vld [vmem:[#allocation20 + $0x68] sm:$0xff]
        %v6470 = vld [vmem:[#allocation20 + $0x70] sm:$0xff]
        %v6471 = vld [vmem:[#allocation20 + $0x78] sm:$0xff]
        %v6472 = vpack.c.bf16 %v6455, %v6454
        %v6489 = vunpack.c.l.b16 %v6456
        %v6490 = vunpack.c.h.b16 %v6456
        %v6491 = vunpack.c.l.b16 %v6457
        %v6492 = vunpack.c.h.b16 %v6457
        %v6493 = vunpack.c.l.b16 %v6458
        %v6494 = vunpack.c.h.b16 %v6458
        %v6495 = vunpack.c.l.b16 %v6459
        %v6496 = vunpack.c.h.b16 %v6459
        %v6497 = vunpack.c.l.b16 %v6460
        %v6498 = vunpack.c.h.b16 %v6460
        %v6499 = vunpack.c.l.b16 %v6461
        %v6500 = vunpack.c.h.b16 %v6461
        %v6501 = vunpack.c.l.b16 %v6462
        %v6502 = vunpack.c.h.b16 %v6462
        %v6503 = vunpack.c.l.b16 %v6463
        %v6504 = vunpack.c.h.b16 %v6463
        %v6505 = vunpack.c.l.b16 %v6464
        %v6506 = vunpack.c.h.b16 %v6464
        %v6507 = vunpack.c.l.b16 %v6465
        %v6508 = vunpack.c.h.b16 %v6465
        %v6509 = vunpack.c.l.b16 %v6466
        %v6510 = vunpack.c.h.b16 %v6466
        %v6511 = vunpack.c.l.b16 %v6467
        %v6512 = vunpack.c.h.b16 %v6467
        %v6513 = vunpack.c.l.b16 %v6468
        %v6514 = vunpack.c.h.b16 %v6468
        %v6515 = vunpack.c.l.b16 %v6469
        %v6516 = vunpack.c.h.b16 %v6469
        %v6517 = vunpack.c.l.b16 %v6470
        %v6518 = vunpack.c.h.b16 %v6470
        %v6519 = vunpack.c.l.b16 %v6471
        %v6520 = vunpack.c.h.b16 %v6471
        %v6521 = vpack.c.b16 %v6491, %v6489
        %v6522 = vpack.c.b16 %v6492, %v6490
        %v6523 = vpack.c.b16 %v6495, %v6493
        %v6524 = vpack.c.b16 %v6496, %v6494
        %v6525 = vpack.c.b16 %v6499, %v6497
        %v6526 = vpack.c.b16 %v6500, %v6498
        %v6527 = vpack.c.b16 %v6503, %v6501
        %v6528 = vpack.c.b16 %v6504, %v6502
        %v6529 = vpack.c.b16 %v6507, %v6505
        %v6530 = vpack.c.b16 %v6508, %v6506
        %v6531 = vpack.c.b16 %v6511, %v6509
        %v6532 = vpack.c.b16 %v6512, %v6510
        %v6533 = vpack.c.b16 %v6515, %v6513
        %v6534 = vpack.c.b16 %v6516, %v6514
        %v6535 = vpack.c.b16 %v6519, %v6517
        %v6536 = vpack.c.b16 %v6520, %v6518
        %6553 = vmatprep.subr.bf16.mxu0 %v6522
        %6554 = vmatpush1.bf16.msra.mxu0 %v6521
        %6555 = vmatprep.subr.bf16.mxu0 %v6524
        %6556 = vmatpush1.bf16.msra.mxu0 %v6523
        %6557 = vmatprep.subr.bf16.mxu0 %v6526
        %6558 = vmatpush1.bf16.msra.mxu0 %v6525
        %6559 = vmatprep.subr.bf16.mxu0 %v6528
        %6560 = vmatpush1.bf16.msra.mxu0 %v6527
        %6561 = vmatprep.subr.bf16.mxu0 %v6530
        %6562 = vmatpush1.bf16.msra.mxu0 %v6529
        %6563 = vmatprep.subr.bf16.mxu0 %v6532
        %6564 = vmatpush1.bf16.msra.mxu0 %v6531
        %6565 = vmatprep.subr.bf16.mxu0 %v6534
        %6566 = vmatpush1.bf16.msra.mxu0 %v6533
        %6567 = vmatprep.subr.bf16.mxu0 %v6536
        %6568 = vmatpush1.bf16.msra.mxu0 %v6535
        %6569 = vmatprep.subr.bf16.mxu0 0
        %6570 = vmatpush1.bf16.msra.mxu0 0
        %6571 = vmatprep.subr.bf16.mxu0 0
        %6572 = vmatpush1.bf16.msra.mxu0 0
        %6573 = vmatprep.subr.bf16.mxu0 0
        %6574 = vmatpush1.bf16.msra.mxu0 0
        %6575 = vmatprep.subr.bf16.mxu0 0
        %6576 = vmatpush1.bf16.msra.mxu0 0
        %6577 = vmatprep.subr.bf16.mxu0 0
        %6578 = vmatpush1.bf16.msra.mxu0 0
        %6579 = vmatprep.subr.bf16.mxu0 0
        %6580 = vmatpush1.bf16.msra.mxu0 0
        %6581 = vmatprep.subr.bf16.mxu0 0
        %6582 = vmatpush1.bf16.msra.mxu0 0
        %6583 = vmatprep.subr.bf16.mxu0 0
        %6584 = vmatpush1.bf16.msra.mxu0 0
        %6585 = vmatprep.mubr.bf16.mxu0 0
        %6586 = vmatmul.mubr.bf16.gmra.mrb[0].mxu0 %v6472
        %v6587 = vpop.f32.mrb[0].mxu0
        %v6588 = vadd.f32 0.0, %v6587
        %v6589 = vpop.f32.mrb[0].mxu0
        %v6590 = vadd.f32 0.0, %v6589
        %v6591 = vpop.f32.mrb[0].mxu0
        %v6592 = vadd.f32 0.0, %v6591
        %v6593 = vpop.f32.mrb[0].mxu0
        %v6594 = vadd.f32 0.0, %v6593
        %6595 = vdwg.mxu0
        %vm6596 = vcmp.ge.f32.partialorder %v6588, 0.0
        %vm6597 = vcmp.ge.f32.partialorder %v6590, 0.0
        %v6598 = vmul.f32 %v6588, 0.2
        %v6599 = vmul.f32 %v6590, 0.2
        %v6600 = vsel %vm6596, %v6588, %v6598
        %v6601 = vsel %vm6597, %v6590, %v6599
        %6602 = vst [vmem:[#allocation9] sm:$0x7] %v6600
        %6603 = vst [vmem:[#allocation9 + $0x8] sm:$0x7] %v6601
        %6604 = vst [vmem:[#allocation9] sm:$0x38] %v6600
        %6605 = vst [vmem:[#allocation9 + $0x8] sm:$0x38] %v6601
        %vm6606 = vcmp.ge.f32.partialorder %v6592, 0.0
        %vm6607 = vcmp.ge.f32.partialorder %v6594, 0.0
        %v6608 = vmul.f32 %v6592, 0.2
        %v6609 = vmul.f32 %v6594, 0.2
        %v6610 = vsel %vm6606, %v6592, %v6608
        %v6611 = vsel %vm6607, %v6594, %v6609
        %6612 = vst [vmem:[#allocation9] sm:$0xc0] %v6600
        %6613 = vst [vmem:[#allocation9 + $0x8] sm:$0xc0] %v6601
        %6614 = vst [vmem:[#allocation9 + $0x10] sm:$0x1] %v6610
        %6615 = vst [vmem:[#allocation9 + $0x18] sm:$0x1] %v6611
        %v6616 = vld [vmem:[#allocation9] sm:$0xff]
        %v6617 = vld [vmem:[#allocation9 + $0x8] sm:$0xff]
        %v6618 = vld [vmem:[#allocation9 + $0x10] sm:$0x1]
        %v6619 = vld [vmem:[#allocation9 + $0x18] sm:$0x1]
        %v6620 = vld [vmem:[#allocation21] sm:$0xff]
        %v6621 = vld [vmem:[#allocation21 + $0x8] sm:$0xff]
        %v6622 = vld [vmem:[#allocation21 + $0x10] sm:$0xff]
        %v6623 = vld [vmem:[#allocation21 + $0x18] sm:$0xff]
        %v6624 = vld [vmem:[#allocation21 + $0x20] sm:$0xff]
        %v6625 = vld [vmem:[#allocation21 + $0x28] sm:$0xff]
        %v6626 = vld [vmem:[#allocation21 + $0x30] sm:$0xff]
        %v6627 = vld [vmem:[#allocation21 + $0x38] sm:$0xff]
        %v6628 = vld [vmem:[#allocation21 + $0x40] sm:$0xff]
        %v6629 = vld [vmem:[#allocation21 + $0x48] sm:$0xff]
        %v6630 = vld [vmem:[#allocation21 + $0x50] sm:$0xff]
        %v6631 = vld [vmem:[#allocation21 + $0x58] sm:$0xff]
        %v6632 = vld [vmem:[#allocation21 + $0x60] sm:$0xff]
        %v6633 = vld [vmem:[#allocation21 + $0x68] sm:$0xff]
        %v6634 = vld [vmem:[#allocation21 + $0x70] sm:$0xff]
        %v6635 = vld [vmem:[#allocation21 + $0x78] sm:$0xff]
        %v6636 = vld [vmem:[#allocation21 + $0x80] sm:$0xff]
        %v6637 = vld [vmem:[#allocation21 + $0x88] sm:$0xff]
        %v6638 = vld [vmem:[#allocation21 + $0x90] sm:$0xff]
        %v6639 = vld [vmem:[#allocation21 + $0x98] sm:$0xff]
        %v6640 = vld [vmem:[#allocation21 + $0xa0] sm:$0xff]
        %v6641 = vld [vmem:[#allocation21 + $0xa8] sm:$0xff]
        %v6642 = vld [vmem:[#allocation21 + $0xb0] sm:$0xff]
        %v6643 = vld [vmem:[#allocation21 + $0xb8] sm:$0xff]
        %v6644 = vld [vmem:[#allocation21 + $0xc0] sm:$0xff]
        %v6645 = vld [vmem:[#allocation21 + $0xc8] sm:$0xff]
        %v6646 = vld [vmem:[#allocation21 + $0xd0] sm:$0xff]
        %v6647 = vld [vmem:[#allocation21 + $0xd8] sm:$0xff]
        %v6648 = vld [vmem:[#allocation21 + $0xe0] sm:$0xff]
        %v6649 = vld [vmem:[#allocation21 + $0xe8] sm:$0xff]
        %v6650 = vld [vmem:[#allocation21 + $0xf0] sm:$0xff]
        %v6651 = vld [vmem:[#allocation21 + $0xf8] sm:$0xff]
        %v6652 = vpack.c.bf16 %v6618, %v6616
        %v6653 = vpack.c.bf16 %v6619, %v6617
        %v6686 = vunpack.c.l.b16 %v6620
        %v6687 = vunpack.c.h.b16 %v6620
        %v6688 = vunpack.c.l.b16 %v6621
        %v6689 = vunpack.c.h.b16 %v6621
        %v6690 = vunpack.c.l.b16 %v6622
        %v6691 = vunpack.c.h.b16 %v6622
        %v6692 = vunpack.c.l.b16 %v6623
        %v6693 = vunpack.c.h.b16 %v6623
        %v6694 = vunpack.c.l.b16 %v6624
        %v6695 = vunpack.c.h.b16 %v6624
        %v6696 = vunpack.c.l.b16 %v6625
        %v6697 = vunpack.c.h.b16 %v6625
        %v6698 = vunpack.c.l.b16 %v6626
        %v6699 = vunpack.c.h.b16 %v6626
        %v6700 = vunpack.c.l.b16 %v6627
        %v6701 = vunpack.c.h.b16 %v6627
        %v6702 = vunpack.c.l.b16 %v6628
        %v6703 = vunpack.c.h.b16 %v6628
        %v6704 = vunpack.c.l.b16 %v6629
        %v6705 = vunpack.c.h.b16 %v6629
        %v6706 = vunpack.c.l.b16 %v6630
        %v6707 = vunpack.c.h.b16 %v6630
        %v6708 = vunpack.c.l.b16 %v6631
        %v6709 = vunpack.c.h.b16 %v6631
        %v6710 = vunpack.c.l.b16 %v6632
        %v6711 = vunpack.c.h.b16 %v6632
        %v6712 = vunpack.c.l.b16 %v6633
        %v6713 = vunpack.c.h.b16 %v6633
        %v6714 = vunpack.c.l.b16 %v6634
        %v6715 = vunpack.c.h.b16 %v6634
        %v6716 = vunpack.c.l.b16 %v6635
        %v6717 = vunpack.c.h.b16 %v6635
        %v6718 = vunpack.c.l.b16 %v6636
        %v6719 = vunpack.c.h.b16 %v6636
        %v6720 = vunpack.c.l.b16 %v6637
        %v6721 = vunpack.c.h.b16 %v6637
        %v6722 = vunpack.c.l.b16 %v6638
        %v6723 = vunpack.c.h.b16 %v6638
        %v6724 = vunpack.c.l.b16 %v6639
        %v6725 = vunpack.c.h.b16 %v6639
        %v6726 = vunpack.c.l.b16 %v6640
        %v6727 = vunpack.c.h.b16 %v6640
        %v6728 = vunpack.c.l.b16 %v6641
        %v6729 = vunpack.c.h.b16 %v6641
        %v6730 = vunpack.c.l.b16 %v6642
        %v6731 = vunpack.c.h.b16 %v6642
        %v6732 = vunpack.c.l.b16 %v6643
        %v6733 = vunpack.c.h.b16 %v6643
        %v6734 = vunpack.c.l.b16 %v6644
        %v6735 = vunpack.c.h.b16 %v6644
        %v6736 = vunpack.c.l.b16 %v6645
        %v6737 = vunpack.c.h.b16 %v6645
        %v6738 = vunpack.c.l.b16 %v6646
        %v6739 = vunpack.c.h.b16 %v6646
        %v6740 = vunpack.c.l.b16 %v6647
        %v6741 = vunpack.c.h.b16 %v6647
        %v6742 = vunpack.c.l.b16 %v6648
        %v6743 = vunpack.c.h.b16 %v6648
        %v6744 = vunpack.c.l.b16 %v6649
        %v6745 = vunpack.c.h.b16 %v6649
        %v6746 = vunpack.c.l.b16 %v6650
        %v6747 = vunpack.c.h.b16 %v6650
        %v6748 = vunpack.c.l.b16 %v6651
        %v6749 = vunpack.c.h.b16 %v6651
        %v6750 = vpack.c.b16 %v6688, %v6686
        %v6751 = vpack.c.b16 %v6689, %v6687
        %v6752 = vpack.c.b16 %v6692, %v6690
        %v6753 = vpack.c.b16 %v6693, %v6691
        %v6754 = vpack.c.b16 %v6696, %v6694
        %v6755 = vpack.c.b16 %v6697, %v6695
        %v6756 = vpack.c.b16 %v6700, %v6698
        %v6757 = vpack.c.b16 %v6701, %v6699
        %v6758 = vpack.c.b16 %v6704, %v6702
        %v6759 = vpack.c.b16 %v6705, %v6703
        %v6760 = vpack.c.b16 %v6708, %v6706
        %v6761 = vpack.c.b16 %v6709, %v6707
        %v6762 = vpack.c.b16 %v6712, %v6710
        %v6763 = vpack.c.b16 %v6713, %v6711
        %v6764 = vpack.c.b16 %v6716, %v6714
        %v6765 = vpack.c.b16 %v6717, %v6715
        %v6766 = vpack.c.b16 %v6720, %v6718
        %v6767 = vpack.c.b16 %v6721, %v6719
        %v6768 = vpack.c.b16 %v6724, %v6722
        %v6769 = vpack.c.b16 %v6725, %v6723
        %v6770 = vpack.c.b16 %v6728, %v6726
        %v6771 = vpack.c.b16 %v6729, %v6727
        %v6772 = vpack.c.b16 %v6732, %v6730
        %v6773 = vpack.c.b16 %v6733, %v6731
        %v6774 = vpack.c.b16 %v6736, %v6734
        %v6775 = vpack.c.b16 %v6737, %v6735
        %v6776 = vpack.c.b16 %v6740, %v6738
        %v6777 = vpack.c.b16 %v6741, %v6739
        %v6778 = vpack.c.b16 %v6744, %v6742
        %v6779 = vpack.c.b16 %v6745, %v6743
        %v6780 = vpack.c.b16 %v6748, %v6746
        %v6781 = vpack.c.b16 %v6749, %v6747
        %6814 = vmatprep.subr.bf16.mxu0 %v6751
        %6815 = vmatpush1.bf16.msra.mxu0 %v6750
        %6816 = vmatprep.subr.bf16.mxu0 %v6753
        %6817 = vmatpush1.bf16.msra.mxu0 %v6752
        %6818 = vmatprep.subr.bf16.mxu0 %v6755
        %6819 = vmatpush1.bf16.msra.mxu0 %v6754
        %6820 = vmatprep.subr.bf16.mxu0 %v6757
        %6821 = vmatpush1.bf16.msra.mxu0 %v6756
        %6822 = vmatprep.subr.bf16.mxu0 %v6759
        %6823 = vmatpush1.bf16.msra.mxu0 %v6758
        %6824 = vmatprep.subr.bf16.mxu0 %v6761
        %6825 = vmatpush1.bf16.msra.mxu0 %v6760
        %6826 = vmatprep.subr.bf16.mxu0 %v6763
        %6827 = vmatpush1.bf16.msra.mxu0 %v6762
        %6828 = vmatprep.subr.bf16.mxu0 %v6765
        %6829 = vmatpush1.bf16.msra.mxu0 %v6764
        %6830 = vmatprep.subr.bf16.mxu0 %v6767
        %6831 = vmatpush1.bf16.msra.mxu0 %v6766
        %6832 = vmatprep.subr.bf16.mxu0 %v6769
        %6833 = vmatpush1.bf16.msra.mxu0 %v6768
        %6834 = vmatprep.subr.bf16.mxu0 %v6771
        %6835 = vmatpush1.bf16.msra.mxu0 %v6770
        %6836 = vmatprep.subr.bf16.mxu0 %v6773
        %6837 = vmatpush1.bf16.msra.mxu0 %v6772
        %6838 = vmatprep.subr.bf16.mxu0 %v6775
        %6839 = vmatpush1.bf16.msra.mxu0 %v6774
        %6840 = vmatprep.subr.bf16.mxu0 %v6777
        %6841 = vmatpush1.bf16.msra.mxu0 %v6776
        %6842 = vmatprep.subr.bf16.mxu0 %v6779
        %6843 = vmatpush1.bf16.msra.mxu0 %v6778
        %6844 = vmatprep.subr.bf16.mxu0 %v6781
        %6845 = vmatpush1.bf16.msra.mxu0 %v6780
        %6846 = vmatprep.mubr.bf16.mxu0 %v6653
        %6847 = vmatmul.mubr.bf16.gmra.mrb[0].mxu0 %v6652
        %v6848 = vpop.f32.mrb[0].mxu0
        %v6849 = vadd.f32 0.0, %v6848
        %v6850 = vpop.f32.mrb[0].mxu0
        %v6851 = vadd.f32 0.0, %v6850
        %v6852 = vpop.f32.mrb[0].mxu0
        %v6853 = vadd.f32 0.0, %v6852
        %v6854 = vpop.f32.mrb[0].mxu0
        %v6855 = vadd.f32 0.0, %v6854
        %6856 = vdwg.mxu0
        %vm6857 = vcmp.ge.f32.partialorder %v6849, 0.0
        %vm6858 = vcmp.ge.f32.partialorder %v6851, 0.0
        %v6859 = vmul.f32 %v6849, 0.2
        %v6860 = vmul.f32 %v6851, 0.2
        %v6861 = vsel %vm6857, %v6849, %v6859
        %v6862 = vsel %vm6858, %v6851, %v6860
        %6863 = vst [vmem:[#allocation10] sm:$0x7] %v6861
        %6864 = vst [vmem:[#allocation10 + $0x8] sm:$0x7] %v6862
        %6865 = vst [vmem:[#allocation10] sm:$0x38] %v6861
        %6866 = vst [vmem:[#allocation10 + $0x8] sm:$0x38] %v6862
        %vm6867 = vcmp.ge.f32.partialorder %v6853, 0.0
        %vm6868 = vcmp.ge.f32.partialorder %v6855, 0.0
        %v6869 = vmul.f32 %v6853, 0.2
        %v6870 = vmul.f32 %v6855, 0.2
        %v6871 = vsel %vm6867, %v6853, %v6869
        %v6872 = vsel %vm6868, %v6855, %v6870
        %6873 = vst [vmem:[#allocation10] sm:$0xc0] %v6861
        %6874 = vst [vmem:[#allocation10 + $0x8] sm:$0xc0] %v6862
        %6875 = vst [vmem:[#allocation10 + $0x10] sm:$0x1] %v6871
        %6876 = vst [vmem:[#allocation10 + $0x18] sm:$0x1] %v6872
        %v6877 = vld [vmem:[#allocation10] sm:$0xff]
        %v6878 = vld [vmem:[#allocation10 + $0x8] sm:$0xff]
        %v6879 = vld [vmem:[#allocation10 + $0x10] sm:$0x1]
        %v6880 = vld [vmem:[#allocation10 + $0x18] sm:$0x1]
        %v6881 = vld [vmem:[#allocation23] sm:$0xff]
        %v6882 = vld [vmem:[#allocation23 + $0x8] sm:$0xff]
        %v6883 = vld [vmem:[#allocation23 + $0x10] sm:$0xff]
        %v6884 = vld [vmem:[#allocation23 + $0x18] sm:$0xff]
        %v6885 = vld [vmem:[#allocation23 + $0x20] sm:$0xff]
        %v6886 = vld [vmem:[#allocation23 + $0x28] sm:$0xff]
        %v6887 = vld [vmem:[#allocation23 + $0x30] sm:$0xff]
        %v6888 = vld [vmem:[#allocation23 + $0x38] sm:$0xff]
        %v6889 = vld [vmem:[#allocation23 + $0x40] sm:$0xff]
        %v6890 = vld [vmem:[#allocation23 + $0x48] sm:$0xff]
        %v6891 = vld [vmem:[#allocation23 + $0x50] sm:$0xff]
        %v6892 = vld [vmem:[#allocation23 + $0x58] sm:$0xff]
        %v6893 = vld [vmem:[#allocation23 + $0x60] sm:$0xff]
        %v6894 = vld [vmem:[#allocation23 + $0x68] sm:$0xff]
        %v6895 = vld [vmem:[#allocation23 + $0x70] sm:$0xff]
        %v6896 = vld [vmem:[#allocation23 + $0x78] sm:$0xff]
        %v6897 = vld [vmem:[#allocation23 + $0x80] sm:$0xff]
        %v6898 = vld [vmem:[#allocation23 + $0x88] sm:$0xff]
        %v6899 = vld [vmem:[#allocation23 + $0x90] sm:$0xff]
        %v6900 = vld [vmem:[#allocation23 + $0x98] sm:$0xff]
        %v6901 = vld [vmem:[#allocation23 + $0xa0] sm:$0xff]
        %v6902 = vld [vmem:[#allocation23 + $0xa8] sm:$0xff]
        %v6903 = vld [vmem:[#allocation23 + $0xb0] sm:$0xff]
        %v6904 = vld [vmem:[#allocation23 + $0xb8] sm:$0xff]
        %v6905 = vld [vmem:[#allocation23 + $0xc0] sm:$0xff]
        %v6906 = vld [vmem:[#allocation23 + $0xc8] sm:$0xff]
        %v6907 = vld [vmem:[#allocation23 + $0xd0] sm:$0xff]
        %v6908 = vld [vmem:[#allocation23 + $0xd8] sm:$0xff]
        %v6909 = vld [vmem:[#allocation23 + $0xe0] sm:$0xff]
        %v6910 = vld [vmem:[#allocation23 + $0xe8] sm:$0xff]
        %v6911 = vld [vmem:[#allocation23 + $0xf0] sm:$0xff]
        %v6912 = vld [vmem:[#allocation23 + $0xf8] sm:$0xff]
        %v6913 = vpack.c.bf16 %v6879, %v6877
        %v6914 = vpack.c.bf16 %v6880, %v6878
        %v6947 = vunpack.c.l.b16 %v6881
        %v6948 = vunpack.c.h.b16 %v6881
        %v6949 = vunpack.c.l.b16 %v6882
        %v6950 = vunpack.c.h.b16 %v6882
        %v6951 = vunpack.c.l.b16 %v6883
        %v6952 = vunpack.c.h.b16 %v6883
        %v6953 = vunpack.c.l.b16 %v6884
        %v6954 = vunpack.c.h.b16 %v6884
        %v6955 = vunpack.c.l.b16 %v6885
        %v6956 = vunpack.c.h.b16 %v6885
        %v6957 = vunpack.c.l.b16 %v6886
        %v6958 = vunpack.c.h.b16 %v6886
        %v6959 = vunpack.c.l.b16 %v6887
        %v6960 = vunpack.c.h.b16 %v6887
        %v6961 = vunpack.c.l.b16 %v6888
        %v6962 = vunpack.c.h.b16 %v6888
        %v6963 = vunpack.c.l.b16 %v6889
        %v6964 = vunpack.c.h.b16 %v6889
        %v6965 = vunpack.c.l.b16 %v6890
        %v6966 = vunpack.c.h.b16 %v6890
        %v6967 = vunpack.c.l.b16 %v6891
        %v6968 = vunpack.c.h.b16 %v6891
        %v6969 = vunpack.c.l.b16 %v6892
        %v6970 = vunpack.c.h.b16 %v6892
        %v6971 = vunpack.c.l.b16 %v6893
        %v6972 = vunpack.c.h.b16 %v6893
        %v6973 = vunpack.c.l.b16 %v6894
        %v6974 = vunpack.c.h.b16 %v6894
        %v6975 = vunpack.c.l.b16 %v6895
        %v6976 = vunpack.c.h.b16 %v6895
        %v6977 = vunpack.c.l.b16 %v6896
        %v6978 = vunpack.c.h.b16 %v6896
        %v6979 = vunpack.c.l.b16 %v6897
        %v6980 = vunpack.c.h.b16 %v6897
        %v6981 = vunpack.c.l.b16 %v6898
        %v6982 = vunpack.c.h.b16 %v6898
        %v6983 = vunpack.c.l.b16 %v6899
        %v6984 = vunpack.c.h.b16 %v6899
        %v6985 = vunpack.c.l.b16 %v6900
        %v6986 = vunpack.c.h.b16 %v6900
        %v6987 = vunpack.c.l.b16 %v6901
        %v6988 = vunpack.c.h.b16 %v6901
        %v6989 = vunpack.c.l.b16 %v6902
        %v6990 = vunpack.c.h.b16 %v6902
        %v6991 = vunpack.c.l.b16 %v6903
        %v6992 = vunpack.c.h.b16 %v6903
        %v6993 = vunpack.c.l.b16 %v6904
        %v6994 = vunpack.c.h.b16 %v6904
        %v6995 = vunpack.c.l.b16 %v6905
        %v6996 = vunpack.c.h.b16 %v6905
        %v6997 = vunpack.c.l.b16 %v6906
        %v6998 = vunpack.c.h.b16 %v6906
        %v6999 = vunpack.c.l.b16 %v6907
        %v7000 = vunpack.c.h.b16 %v6907
        %v7001 = vunpack.c.l.b16 %v6908
        %v7002 = vunpack.c.h.b16 %v6908
        %v7003 = vunpack.c.l.b16 %v6909
        %v7004 = vunpack.c.h.b16 %v6909
        %v7005 = vunpack.c.l.b16 %v6910
        %v7006 = vunpack.c.h.b16 %v6910
        %v7007 = vunpack.c.l.b16 %v6911
        %v7008 = vunpack.c.h.b16 %v6911
        %v7009 = vunpack.c.l.b16 %v6912
        %v7010 = vunpack.c.h.b16 %v6912
        %v7011 = vpack.c.b16 %v6949, %v6947
        %v7012 = vpack.c.b16 %v6950, %v6948
        %v7013 = vpack.c.b16 %v6953, %v6951
        %v7014 = vpack.c.b16 %v6954, %v6952
        %v7015 = vpack.c.b16 %v6957, %v6955
        %v7016 = vpack.c.b16 %v6958, %v6956
        %v7017 = vpack.c.b16 %v6961, %v6959
        %v7018 = vpack.c.b16 %v6962, %v6960
        %v7019 = vpack.c.b16 %v6965, %v6963
        %v7020 = vpack.c.b16 %v6966, %v6964
        %v7021 = vpack.c.b16 %v6969, %v6967
        %v7022 = vpack.c.b16 %v6970, %v6968
        %v7023 = vpack.c.b16 %v6973, %v6971
        %v7024 = vpack.c.b16 %v6974, %v6972
        %v7025 = vpack.c.b16 %v6977, %v6975
        %v7026 = vpack.c.b16 %v6978, %v6976
        %v7027 = vpack.c.b16 %v6981, %v6979
        %v7028 = vpack.c.b16 %v6982, %v6980
        %v7029 = vpack.c.b16 %v6985, %v6983
        %v7030 = vpack.c.b16 %v6986, %v6984
        %v7031 = vpack.c.b16 %v6989, %v6987
        %v7032 = vpack.c.b16 %v6990, %v6988
        %v7033 = vpack.c.b16 %v6993, %v6991
        %v7034 = vpack.c.b16 %v6994, %v6992
        %v7035 = vpack.c.b16 %v6997, %v6995
        %v7036 = vpack.c.b16 %v6998, %v6996
        %v7037 = vpack.c.b16 %v7001, %v6999
        %v7038 = vpack.c.b16 %v7002, %v7000
        %v7039 = vpack.c.b16 %v7005, %v7003
        %v7040 = vpack.c.b16 %v7006, %v7004
        %v7041 = vpack.c.b16 %v7009, %v7007
        %v7042 = vpack.c.b16 %v7010, %v7008
        %7075 = vmatprep.subr.bf16.mxu0 %v7012
        %7076 = vmatpush1.bf16.msra.mxu0 %v7011
        %7077 = vmatprep.subr.bf16.mxu0 %v7014
        %7078 = vmatpush1.bf16.msra.mxu0 %v7013
        %7079 = vmatprep.subr.bf16.mxu0 %v7016
        %7080 = vmatpush1.bf16.msra.mxu0 %v7015
        %7081 = vmatprep.subr.bf16.mxu0 %v7018
        %7082 = vmatpush1.bf16.msra.mxu0 %v7017
        %7083 = vmatprep.subr.bf16.mxu0 %v7020
        %7084 = vmatpush1.bf16.msra.mxu0 %v7019
        %7085 = vmatprep.subr.bf16.mxu0 %v7022
        %7086 = vmatpush1.bf16.msra.mxu0 %v7021
        %7087 = vmatprep.subr.bf16.mxu0 %v7024
        %7088 = vmatpush1.bf16.msra.mxu0 %v7023
        %7089 = vmatprep.subr.bf16.mxu0 %v7026
        %7090 = vmatpush1.bf16.msra.mxu0 %v7025
        %7091 = vmatprep.subr.bf16.mxu0 %v7028
        %7092 = vmatpush1.bf16.msra.mxu0 %v7027
        %7093 = vmatprep.subr.bf16.mxu0 %v7030
        %7094 = vmatpush1.bf16.msra.mxu0 %v7029
        %7095 = vmatprep.subr.bf16.mxu0 %v7032
        %7096 = vmatpush1.bf16.msra.mxu0 %v7031
        %7097 = vmatprep.subr.bf16.mxu0 %v7034
        %7098 = vmatpush1.bf16.msra.mxu0 %v7033
        %7099 = vmatprep.subr.bf16.mxu0 %v7036
        %7100 = vmatpush1.bf16.msra.mxu0 %v7035
        %7101 = vmatprep.subr.bf16.mxu0 %v7038
        %7102 = vmatpush1.bf16.msra.mxu0 %v7037
        %7103 = vmatprep.subr.bf16.mxu0 %v7040
        %7104 = vmatpush1.bf16.msra.mxu0 %v7039
        %7105 = vmatprep.subr.bf16.mxu0 %v7042
        %7106 = vmatpush1.bf16.msra.mxu0 %v7041
        %7107 = vmatprep.mubr.bf16.mxu0 %v6914
        %7108 = vmatmul.mubr.bf16.gmra.mrb[0].mxu0 %v6913
        %v7109 = vpop.f32.mrb[0].mxu0
        %v7110 = vadd.f32 0.0, %v7109
        %v7111 = vpop.f32.mrb[0].mxu0
        %v7112 = vadd.f32 0.0, %v7111
        %v7113 = vpop.f32.mrb[0].mxu0
        %v7114 = vadd.f32 0.0, %v7113
        %v7115 = vpop.f32.mrb[0].mxu0
        %v7116 = vadd.f32 0.0, %v7115
        %7117 = vdwg.mxu0
        %vm7118 = vcmp.ge.f32.partialorder %v7110, 0.0
        %vm7119 = vcmp.ge.f32.partialorder %v7112, 0.0
        %v7120 = vmul.f32 %v7110, 0.2
        %v7121 = vmul.f32 %v7112, 0.2
        %v7122 = vsel %vm7118, %v7110, %v7120
        %v7123 = vsel %vm7119, %v7112, %v7121
        %7124 = vst [vmem:[#allocation11] sm:$0x7] %v7122
        %7125 = vst [vmem:[#allocation11 + $0x8] sm:$0x7] %v7123
        %7126 = vst [vmem:[#allocation11] sm:$0x38] %v7122
        %7127 = vst [vmem:[#allocation11 + $0x8] sm:$0x38] %v7123
        %vm7128 = vcmp.ge.f32.partialorder %v7114, 0.0
        %vm7129 = vcmp.ge.f32.partialorder %v7116, 0.0
        %v7130 = vmul.f32 %v7114, 0.2
        %v7131 = vmul.f32 %v7116, 0.2
        %v7132 = vsel %vm7128, %v7114, %v7130
        %v7133 = vsel %vm7129, %v7116, %v7131
        %7134 = vst [vmem:[#allocation11] sm:$0xc0] %v7122
        %7135 = vst [vmem:[#allocation11 + $0x8] sm:$0xc0] %v7123
        %7136 = vst [vmem:[#allocation11 + $0x10] sm:$0x1] %v7132
        %7137 = vst [vmem:[#allocation11 + $0x18] sm:$0x1] %v7133
        %v7138 = vld [vmem:[#allocation11] ss:$8 sm:$0x3]
        %s7139 = scalar_lea.vmem [#allocation11], 1
        %v7140 = vld [vmem:[%s7139] ss:$8 sm:$0x3]
        %v7141 = vadd.f32 %v7138, %v7140
        %s7142 = scalar_lea.vmem [#allocation11], 3
        %v7143 = vld [vmem:[%s7142] ss:$8 sm:$0x3]
        %v7144 = vadd.f32 %v7141, %v7143
        %s7145 = scalar_lea.vmem [#allocation11], 4
        %v7146 = vld [vmem:[%s7145] ss:$8 sm:$0x3]
        %v7147 = vadd.f32 %v7144, %v7146
        %v7148 = vmul.f32 %v7147, 0.25
        %v7149 = vlaneseq
        %vm7150 = vcmp.ge.s32.totalorder %v7149, 0
        %vm7151 = vcmp.lt.s32.totalorder %v7149, 256
        %vm7152 = vmand %vm7150, %vm7151
        %7153 = vst.msk [vmem:[%s550] sm:$0x3] %vm7152, %v7148
        %v7155 = vlaneseq
        %v7156 = vshrl.u32 %v7155, 7
        %v7157 = vsub.s32 0, %v7156
        %v7158 = vrot.slane %v7148, %v7157
        %v7159 = vlaneseq
        %v7160 = vshrl.u32 %v7159, 7
        %v7161 = vsub.s32 1, %v7160
        %v7162 = vrot.slane %v7148, %v7161
        %v7165 = vpack.c.bf16 %v7158, %v7158
        %v7166 = vpack.c.bf16 %v7162, %v7162
        %v7167 = vld [vmem:[%s10] sm:$0xf]
        %v7168 = vld [vmem:[%s10 + $0x4] sm:$0xf]
        %v7169 = vld [vmem:[%s10 + $0x8] sm:$0xf]
        %v7170 = vld [vmem:[%s10 + $0xc] sm:$0xf]
        %v7171 = vld [vmem:[%s10 + $0x10] sm:$0xf]
        %v7172 = vld [vmem:[%s10 + $0x14] sm:$0xf]
        %v7173 = vld [vmem:[%s10 + $0x18] sm:$0xf]
        %v7174 = vld [vmem:[%s10 + $0x1c] sm:$0xf]
        %v7175 = vld [vmem:[%s10 + $0x20] sm:$0xf]
        %v7176 = vld [vmem:[%s10 + $0x24] sm:$0xf]
        %v7177 = vld [vmem:[%s10 + $0x28] sm:$0xf]
        %v7178 = vld [vmem:[%s10 + $0x2c] sm:$0xf]
        %v7179 = vld [vmem:[%s10 + $0x30] sm:$0xf]
        %v7180 = vld [vmem:[%s10 + $0x34] sm:$0xf]
        %v7181 = vld [vmem:[%s10 + $0x38] sm:$0xf]
        %v7182 = vld [vmem:[%s10 + $0x3c] sm:$0xf]
        %v7183 = vld [vmem:[%s10 + $0x40] sm:$0xf]
        %v7184 = vld [vmem:[%s10 + $0x44] sm:$0xf]
        %v7185 = vld [vmem:[%s10 + $0x48] sm:$0xf]
        %v7186 = vld [vmem:[%s10 + $0x4c] sm:$0xf]
        %v7187 = vld [vmem:[%s10 + $0x50] sm:$0xf]
        %v7188 = vld [vmem:[%s10 + $0x54] sm:$0xf]
        %v7189 = vld [vmem:[%s10 + $0x58] sm:$0xf]
        %v7190 = vld [vmem:[%s10 + $0x5c] sm:$0xf]
        %v7191 = vld [vmem:[%s10 + $0x60] sm:$0xf]
        %v7192 = vld [vmem:[%s10 + $0x64] sm:$0xf]
        %v7193 = vld [vmem:[%s10 + $0x68] sm:$0xf]
        %v7194 = vld [vmem:[%s10 + $0x6c] sm:$0xf]
        %v7195 = vld [vmem:[%s10 + $0x70] sm:$0xf]
        %v7196 = vld [vmem:[%s10 + $0x74] sm:$0xf]
        %v7197 = vld [vmem:[%s10 + $0x78] sm:$0xf]
        %v7198 = vld [vmem:[%s10 + $0x7c] sm:$0xf]
        %v7199 = vld [vmem:[%s11] sm:$0x1]
        %v7232 = vunpack.c.l.b16 %v7167
        %v7233 = vunpack.c.l.b16 %v7168
        %v7234 = vunpack.c.l.b16 %v7169
        %v7235 = vunpack.c.l.b16 %v7170
        %v7236 = vunpack.c.l.b16 %v7171
        %v7237 = vunpack.c.l.b16 %v7172
        %v7238 = vunpack.c.l.b16 %v7173
        %v7239 = vunpack.c.l.b16 %v7174
        %v7240 = vunpack.c.l.b16 %v7175
        %v7241 = vunpack.c.l.b16 %v7176
        %v7242 = vunpack.c.l.b16 %v7177
        %v7243 = vunpack.c.l.b16 %v7178
        %v7244 = vunpack.c.l.b16 %v7179
        %v7245 = vunpack.c.l.b16 %v7180
        %v7246 = vunpack.c.l.b16 %v7181
        %v7247 = vunpack.c.l.b16 %v7182
        %v7248 = vunpack.c.l.b16 %v7183
        %v7249 = vunpack.c.l.b16 %v7184
        %v7250 = vunpack.c.l.b16 %v7185
        %v7251 = vunpack.c.l.b16 %v7186
        %v7252 = vunpack.c.l.b16 %v7187
        %v7253 = vunpack.c.l.b16 %v7188
        %v7254 = vunpack.c.l.b16 %v7189
        %v7255 = vunpack.c.l.b16 %v7190
        %v7256 = vunpack.c.l.b16 %v7191
        %v7257 = vunpack.c.l.b16 %v7192
        %v7258 = vunpack.c.l.b16 %v7193
        %v7259 = vunpack.c.l.b16 %v7194
        %v7260 = vunpack.c.l.b16 %v7195
        %v7261 = vunpack.c.l.b16 %v7196
        %v7262 = vunpack.c.l.b16 %v7197
        %v7263 = vunpack.c.l.b16 %v7198
        %v7264 = vpack.c.b16 %v7233, %v7232
        %v7265 = vpack.c.b16 %v7235, %v7234
        %v7266 = vpack.c.b16 %v7237, %v7236
        %v7267 = vpack.c.b16 %v7239, %v7238
        %v7268 = vpack.c.b16 %v7241, %v7240
        %v7269 = vpack.c.b16 %v7243, %v7242
        %v7270 = vpack.c.b16 %v7245, %v7244
        %v7271 = vpack.c.b16 %v7247, %v7246
        %v7272 = vpack.c.b16 %v7249, %v7248
        %v7273 = vpack.c.b16 %v7251, %v7250
        %v7274 = vpack.c.b16 %v7253, %v7252
        %v7275 = vpack.c.b16 %v7255, %v7254
        %v7276 = vpack.c.b16 %v7257, %v7256
        %v7277 = vpack.c.b16 %v7259, %v7258
        %v7278 = vpack.c.b16 %v7261, %v7260
        %v7279 = vpack.c.b16 %v7263, %v7262
        %7296 = vmatprep.subr.bf16.mxu0 0
        %7297 = vmatpush1.bf16.msra.mxu0 %v7264
        %7298 = vmatprep.subr.bf16.mxu0 0
        %7299 = vmatpush1.bf16.msra.mxu0 %v7265
        %7300 = vmatprep.subr.bf16.mxu0 0
        %7301 = vmatpush1.bf16.msra.mxu0 %v7266
        %7302 = vmatprep.subr.bf16.mxu0 0
        %7303 = vmatpush1.bf16.msra.mxu0 %v7267
        %7304 = vmatprep.subr.bf16.mxu0 0
        %7305 = vmatpush1.bf16.msra.mxu0 %v7268
        %7306 = vmatprep.subr.bf16.mxu0 0
        %7307 = vmatpush1.bf16.msra.mxu0 %v7269
        %7308 = vmatprep.subr.bf16.mxu0 0
        %7309 = vmatpush1.bf16.msra.mxu0 %v7270
        %7310 = vmatprep.subr.bf16.mxu0 0
        %7311 = vmatpush1.bf16.msra.mxu0 %v7271
        %7312 = vmatprep.subr.bf16.mxu0 0
        %7313 = vmatpush1.bf16.msra.mxu0 %v7272
        %7314 = vmatprep.subr.bf16.mxu0 0
        %7315 = vmatpush1.bf16.msra.mxu0 %v7273
        %7316 = vmatprep.subr.bf16.mxu0 0
        %7317 = vmatpush1.bf16.msra.mxu0 %v7274
        %7318 = vmatprep.subr.bf16.mxu0 0
        %7319 = vmatpush1.bf16.msra.mxu0 %v7275
        %7320 = vmatprep.subr.bf16.mxu0 0
        %7321 = vmatpush1.bf16.msra.mxu0 %v7276
        %7322 = vmatprep.subr.bf16.mxu0 0
        %7323 = vmatpush1.bf16.msra.mxu0 %v7277
        %7324 = vmatprep.subr.bf16.mxu0 0
        %7325 = vmatpush1.bf16.msra.mxu0 %v7278
        %7326 = vmatprep.subr.bf16.mxu0 0
        %7327 = vmatpush1.bf16.msra.mxu0 %v7279
        %7328 = vmatprep.mubr.bf16.mxu0 %v7166
        %7329 = vmatmul.mubr.bf16.gmra.mrb[0].mxu0 %v7165
        %v7330 = vpop.f32.mrb[0].mxu0
        %v7331 = vadd.f32 %v7199, %v7330
        %v7332 = vpop.f32.mrb[0].mxu0
        %v7333 = vpop.f32.mrb[0].mxu0
        %v7334 = vpop.f32.mrb[0].mxu0
        %7335 = vdwg.mxu0
        %vm7336 = vcmask 8192
        %7337 = vst.msk [vmem:[%s535] sm:$0x1] %vm7336, %v7331
        %s7338 = sand.u32 %s297, 1
        %s7339 = scalar_lea.sflag [#allocation14], %s7338
        %s7340 = sand.u32 %s297, 1
        %s7341 = scalar_lea.vmem [#allocation24], %s7340
        %p7342 = scmp.lt.s32.totalorder %s32, 1
        %s7343 = scalar_select %p7342, %s32, 1
        %s7344 = smul.addr %s7343, 2
        %s7345 = scalar_lea.vmem %s13, %s7344
        // Predicated region
        $region97: #{discriminator_forward.1} parent=67 // pred_check
          %p7346 = pneg %p307
        $region98: #{discriminator_forward.1} parent=67 // pred_check_branch
          %7348 = sbr.rel (%p7346) target = $region100
        $region99: #{discriminator_forward.1} parent=67 // pred_region
          %s7350 = ssub.s32 16, 16
          %7351 = vsyncadd %s7339, %s7350
          %s7352 = smul.addr %s32, 16
          %s7353 = scalar_lea.hbm %s12, %s7352
          %s7355 = sshll.u32 %s7341, 4
          %s7356 = int_to_ptr.vmem [resolvable:$true] %s7355
          %7358 = dma.vmem_to_hbm [thread:$0]  %s7356, 16, %s7353, %s7339
        $region100: #{discriminator_forward.1} parent=67 // pred_fallthru
          _
        // Predicated region
        $region101: #{discriminator_forward.1} parent=67 // pred_check
          %p7359 = pneg %p333
        $region102: #{discriminator_forward.1} parent=67 // pred_check_branch
          %7361 = sbr.rel (%p7359) target = $region104
        $region103: #{discriminator_forward.1} parent=67 // pred_region
          _
        $region104: #{discriminator_forward.1} parent=67 // pred_fallthru
          _
      $region68: #{discriminator_forward.1} parent=5 // pred_fallthru
        _
      %p7362 = scmp.le.s32.totalorder 2, %s27
      // Predicated region
      $region105: #{discriminator_forward.1} parent=5 // pred_check
        %p7363 = pneg %p7362
      $region106: #{discriminator_forward.1} parent=5 // pred_check_branch
        %7365 = sbr.rel (%p7363) target = $region108
      $region107: #{discriminator_forward.1} parent=5 // pred_region
        %s7366 = ssub.s32 %s27, 2
        // Predicated region
        $region109: #{discriminator_forward.1} parent=107 // pred_check
          %p7367 = pneg %p313
        $region110: #{discriminator_forward.1} parent=107 // pred_check_branch
          %7369 = sbr.rel (%p7367) target = $region112
        $region111: #{discriminator_forward.1} parent=107 // pred_region
          %s7370 = sand.u32 %s298, 1
          %s7371 = scalar_lea.sflag [#allocation14], %s7370
          %s7372 = sand.u32 %s298, 1
          %s7373 = scalar_lea.vmem [#allocation24], %s7372
          %7374 = dma.done %s7371, 16
        $region112: #{discriminator_forward.1} parent=107 // pred_fallthru
          _
        // Predicated region
        $region113: #{discriminator_forward.1} parent=107 // pred_check
          %p7375 = pneg %p339
        $region114: #{discriminator_forward.1} parent=107 // pred_check_branch
          %7377 = sbr.rel (%p7375) target = $region116
        $region115: #{discriminator_forward.1} parent=107 // pred_region
          %p7378 = scmp.lt.s32.totalorder %s33, 1
          %s7379 = scalar_select %p7378, %s33, 1
          %s7380 = smul.addr %s7379, 2
          %s7381 = scalar_lea.vmem %s13, %s7380
        $region116: #{discriminator_forward.1} parent=107 // pred_fallthru
          _
      $region108: #{discriminator_forward.1} parent=5 // pred_fallthru
        _
    $region6: #{discriminator_forward.1} parent=1 // loop_footer
      %s31 = sadd.s32 1, %s27
    $region7: #{discriminator_forward.1} parent=1 // loop_footer_branch
      %26 = sbr.rel target = $region3
    $region8: #{discriminator_forward.1} parent=1 // loop_exit
      _
    %7382 = vsyncpa [#allocation13], 1
    %s7383 = scalar_lea.sflag [#allocation13], 1
    %7384 = vsyncpa %s7383, 1
    %7385 = vsyncpa [#allocation16], 1
    %7386 = vsyncpa [#allocation19], 1
    %7387 = vsyncpa [#allocation22], 1
    %7388 = vsyncpa [#allocation14], 1
    %s7389 = scalar_lea.sflag [#allocation14], 1
    %7390 = vsyncpa %s7389, 1

</llo_original>
